<compile_context>
chip_gen: v7x
topology: tpu7x:2x2x1
jax: 0.10.0
libtpu: 0.0.40
codegen_flags: <defaults>
</compile_context>

<pallas_src>
import functools

import jax
import jax.numpy as jnp
from jax.experimental import pallas as pl
from jax.experimental.pallas import tpu as pltpu

LN_EPS = 1e-5
_SQRT_2_OVER_PI = 0.7978845608028654


def _gelu(x):
    # tanh-approximate GELU: tanh lowers to the (otherwise idle) EUP slot.
    return 0.5 * x * (1.0 + jnp.tanh(_SQRT_2_OVER_PI * (x + 0.044715 * x * x * x)))


def _layernorm(x, gamma, beta):
    mu = jnp.mean(x, axis=-1, keepdims=True)
    var = jnp.mean((x - mu) ** 2, axis=-1, keepdims=True)
    return (x - mu) * jax.lax.rsqrt(var + LN_EPS) * gamma + beta


# --------------------------------------------------------------------------
# Fused kernel: conv-embed + pos + all encoder blocks + regression head.
# Activations stay as a (Bg, L, D) f32 residual stream (no reshapes at all).
# --------------------------------------------------------------------------
def _fused_forward_kernel(*refs, Bg, L, k_size, num_blocks, num_heads):
    x_ref, pos_ref, wemb_ref, bemb_ref = refs[0:4]
    o_ref = refs[-1]
    idx = 4
    blocks = []
    for _ in range(num_blocks):
        blocks.append(refs[idx:idx + 14])
        idx += 14
    rw1_ref, rb1_ref, rw2_ref, rb2_ref = refs[idx:idx + 4]

    D = wemb_ref.shape[2]
    H = num_heads
    hd = D // H
    scale = 1.0 / float(hd) ** 0.5

    # ---- Conv1d 'same' embedding: k_size shifted tap matmuls, accumulated.
    xin = x_ref[...]                                         # (Bg, L+2p, Cin) bf16
    x = jnp.zeros((Bg, L, D), jnp.float32)
    for t in range(k_size):
        xt = xin[:, t:t + L, :]                              # (Bg, L, Cin)
        x = x + jnp.einsum('blc,cd->bld', xt, wemb_ref[t],
                           preferred_element_type=jnp.float32)
    # bias (1, D) and learnable positional table (L, D) broadcast over batch.
    x = x + bemb_ref[...] + pos_ref[...]                     # (Bg, L, D) f32

    # ---- Transformer encoder blocks (post-LN MHA + GELU FFN).
    for (wq_r, bq_r, wk_r, bk_r, wv_r, bv_r, wo_r, bo_r, ln1_r,
         w1_r, b1_r, w2_r, b2_r, ln2_r) in blocks:
        xb = x.astype(jnp.bfloat16)

        # Per-head weights are pre-split on the host, so head selection is a
        # leading-dim ref index (no lane slicing); head outputs are folded
        # straight into the output projection and accumulated (no concat).
        attn = jnp.zeros((Bg, L, D), jnp.float32)
        for h in range(H):
            qh = jnp.einsum('bld,de->ble', xb, wq_r[h],
                            preferred_element_type=jnp.float32) + bq_r[h]
            kh = jnp.einsum('bld,de->ble', xb, wk_r[h],
                            preferred_element_type=jnp.float32) + bk_r[h]
            vh = jnp.einsum('bld,de->ble', xb, wv_r[h],
                            preferred_element_type=jnp.float32) + bv_r[h]
            s = jnp.einsum('ble,bme->blm', qh.astype(jnp.bfloat16),
                           kh.astype(jnp.bfloat16),
                           preferred_element_type=jnp.float32) * scale
            s = s - jnp.max(s, axis=-1, keepdims=True)
            p = jnp.exp(s)
            p = p * pl.reciprocal(jnp.sum(p, axis=-1, keepdims=True), approx=True)
            oh = jnp.einsum('blm,bme->ble', p.astype(jnp.bfloat16),
                            vh.astype(jnp.bfloat16),
                            preferred_element_type=jnp.float32)
            attn = attn + jnp.einsum('ble,ed->bld', oh.astype(jnp.bfloat16),
                                     wo_r[h],
                                     preferred_element_type=jnp.float32)
        attn = attn + bo_r[...]

        x = _layernorm(x + attn, ln1_r[0:1, :], ln1_r[1:2, :])

        xb2 = x.astype(jnp.bfloat16)
        h1 = _gelu(jnp.einsum('bld,de->ble', xb2, w1_r[...],
                              preferred_element_type=jnp.float32) + b1_r[...])
        ff = jnp.einsum('ble,ed->bld', h1.astype(jnp.bfloat16), w2_r[...],
                        preferred_element_type=jnp.float32) + b2_r[...]
        x = _layernorm(x + ff, ln2_r[0:1, :], ln2_r[1:2, :])

    # ---- Regression head: AdaptiveAvgPool1d(1) over length, Linear, GELU,
    #      (Dropout = identity at inference), Linear.
    pooled = jnp.mean(x, axis=1)                             # (Bg, D)
    hid = _gelu(jnp.dot(pooled.astype(jnp.bfloat16), rw1_ref[...],
                        preferred_element_type=jnp.float32) + rb1_ref[...])
    out = jnp.dot(hid.astype(jnp.bfloat16), rw2_ref[...],
                  preferred_element_type=jnp.float32) + rb2_ref[...]   # (Bg, 1)
    o_ref[...] = out[None]                                   # (1, Bg, 1)


# --------------------------------------------------------------------------
# Wrapper: pad input, split batch into groups for the (parallel) grid axis,
# and launch one fully VMEM-resident pallas_call.
# --------------------------------------------------------------------------
def model_forward(x, params, num_heads=8):
    # x: (B, L, 24) channel-last (the PyTorch model permutes to NCL internally;
    # staying channel-last is semantically identical for the conv).
    B, L, cin = x.shape
    w = params["embed_w"]                                    # (k, Cin, D) bf16
    k_size, _, D = w.shape
    assert k_size % 2 == 1, "padding=(k-1)//2 gives 'same' output only for odd k"
    pad = (k_size - 1) // 2
    Lp = L + 2 * pad

    xpad = jnp.pad(x, ((0, 0), (pad, pad), (0, 0))).astype(jnp.bfloat16)

    # v7x: shard across the two TensorCores when each half still fills the MXU.
    G, Bg = 1, B
    if B % 2 == 0 and (B // 2) * L >= 256:
        G, Bg = 2, B // 2

    args = [xpad, params["pos"], w, params["embed_b"]]
    for bp in params["blocks"]:
        args += [bp["wq"], bp["bq"], bp["wk"], bp["bk"], bp["wv"], bp["bv"],
                 bp["wo"], bp["bo"], bp["ln1"],
                 bp["w1"], bp["b1"], bp["w2"], bp["b2"], bp["ln2"]]
    args += [params["reg_w1"], params["reg_b1"], params["reg_w2"], params["reg_b2"]]

    in_specs = [pl.BlockSpec((Bg, Lp, cin), lambda g: (g, 0, 0))]
    in_specs += [pl.BlockSpec(a.shape, lambda g, n=a.ndim: (0,) * n)
                 for a in args[1:]]
    out_spec = pl.BlockSpec((1, Bg, 1), lambda g: (g, 0, 0))

    kern = functools.partial(_fused_forward_kernel, Bg=Bg, L=L, k_size=k_size,
                             num_blocks=len(params["blocks"]),
                             num_heads=num_heads)
    out = pl.pallas_call(
        kern,
        grid=(G,),
        out_shape=jax.ShapeDtypeStruct((G, Bg, 1), jnp.float32),
        in_specs=in_specs,
        out_specs=out_spec,
        compiler_params=pltpu.CompilerParams(
            dimension_semantics=("parallel",),
            vmem_limit_bytes=32 * 1024 * 1024),
    )(*args)
    return out.reshape(B)                                    # == .squeeze(1)


# --------------------------------------------------------------------------
# Parameter init (deterministic).  Attention weights are stored per-head
# ((H, D, hd) / (H, hd, D)) so the kernel never slices along the lane axis.
# --------------------------------------------------------------------------
def init_params(key, k_size, dim, length, num_blocks, in_ch=24, num_heads=8):
    assert dim % num_heads == 0
    hd = dim // num_heads
    keys = jax.random.split(key, 3 + num_blocks)

    def nrm(k, shape, dtype=jnp.bfloat16, scale=0.02):
        return (scale * jax.random.normal(k, shape)).astype(dtype)

    ln_init = jnp.concatenate(
        [jnp.ones((1, dim), jnp.float32), jnp.zeros((1, dim), jnp.float32)], axis=0)

    params = {
        "embed_w": nrm(keys[0], (k_size, in_ch, dim)),       # bf16 MXU operand
        "embed_b": jnp.zeros((1, dim), jnp.float32),
        "pos": nrm(keys[1], (length, dim), dtype=jnp.float32),
        "blocks": [],
    }
    for i in range(num_blocks):
        bk = jax.random.split(keys[2 + i], 6)
        params["blocks"].append(dict(
            wq=nrm(bk[0], (num_heads, dim, hd)),
            bq=jnp.zeros((num_heads, 1, hd), jnp.float32),
            wk=nrm(bk[1], (num_heads, dim, hd)),
            bk=jnp.zeros((num_heads, 1, hd), jnp.float32),
            wv=nrm(bk[2], (num_heads, dim, hd)),
            bv=jnp.zeros((num_heads, 1, hd), jnp.float32),
            wo=nrm(bk[3], (num_heads, hd, dim)),
            bo=jnp.zeros((1, dim), jnp.float32),
            ln1=ln_init,
            w1=nrm(bk[4], (dim, 4 * dim)),
            b1=jnp.zeros((1, 4 * dim), jnp.float32),
            w2=nrm(bk[5], (4 * dim, dim)),
            b2=jnp.zeros((1, dim), jnp.float32),
            ln2=ln_init,
        ))
    rk = jax.random.split(keys[2 + num_blocks], 2)
    params["reg_w1"] = nrm(rk[0], (dim, 2 * dim))
    params["reg_b1"] = jnp.zeros((1, 2 * dim), jnp.float32)
    params["reg_w2"] = nrm(rk[1], (2 * dim, 1))
    params["reg_b2"] = jnp.zeros((1, 1), jnp.float32)
    return params


if __name__ == "__main__":
    B, L, C_IN = 2, 16, 24
    K_SIZE, DIM, NUM_BLOCKS, NUM_HEADS = 3, 32, 2, 8
    R = 8  # sketched dimension of the undefined reference module — unused

    key = jax.random.PRNGKey(0)
    kx, kp = jax.random.split(key)
    x = jax.random.normal(kx, (B, L, C_IN), dtype=jnp.float32)
    params = init_params(kp, K_SIZE, DIM, L, NUM_BLOCKS, in_ch=C_IN,
                         num_heads=NUM_HEADS)

    out = jax.jit(functools.partial(model_forward, num_heads=NUM_HEADS))(x, params)
    jax.block_until_ready(out)
    assert out.shape == (B,), out.shape
    assert bool(jnp.all(jnp.isfinite(out)))
    print("KERNEL_OK")
</pallas_src>

<mosaic_0001>
module attributes {stable_mosaic.version = 11 : i64} {
  func.func @_fused_forward_kernel(%arg0: i32, %arg1: memref<2x18x24xbf16, #tpu.memory_space<vmem>>, %arg2: memref<16x32xf32, #tpu.memory_space<vmem>>, %arg3: memref<3x24x32xbf16, #tpu.memory_space<vmem>>, %arg4: memref<1x32xf32, #tpu.memory_space<vmem>>, %arg5: memref<8x32x4xbf16, #tpu.memory_space<vmem>>, %arg6: memref<8x1x4xf32, #tpu.memory_space<vmem>>, %arg7: memref<8x32x4xbf16, #tpu.memory_space<vmem>>, %arg8: memref<8x1x4xf32, #tpu.memory_space<vmem>>, %arg9: memref<8x32x4xbf16, #tpu.memory_space<vmem>>, %arg10: memref<8x1x4xf32, #tpu.memory_space<vmem>>, %arg11: memref<8x4x32xbf16, #tpu.memory_space<vmem>>, %arg12: memref<1x32xf32, #tpu.memory_space<vmem>>, %arg13: memref<2x32xf32, #tpu.memory_space<vmem>>, %arg14: memref<32x128xbf16, #tpu.memory_space<vmem>>, %arg15: memref<1x128xf32, #tpu.memory_space<vmem>>, %arg16: memref<128x32xbf16, #tpu.memory_space<vmem>>, %arg17: memref<1x32xf32, #tpu.memory_space<vmem>>, %arg18: memref<2x32xf32, #tpu.memory_space<vmem>>, %arg19: memref<8x32x4xbf16, #tpu.memory_space<vmem>>, %arg20: memref<8x1x4xf32, #tpu.memory_space<vmem>>, %arg21: memref<8x32x4xbf16, #tpu.memory_space<vmem>>, %arg22: memref<8x1x4xf32, #tpu.memory_space<vmem>>, %arg23: memref<8x32x4xbf16, #tpu.memory_space<vmem>>, %arg24: memref<8x1x4xf32, #tpu.memory_space<vmem>>, %arg25: memref<8x4x32xbf16, #tpu.memory_space<vmem>>, %arg26: memref<1x32xf32, #tpu.memory_space<vmem>>, %arg27: memref<2x32xf32, #tpu.memory_space<vmem>>, %arg28: memref<32x128xbf16, #tpu.memory_space<vmem>>, %arg29: memref<1x128xf32, #tpu.memory_space<vmem>>, %arg30: memref<128x32xbf16, #tpu.memory_space<vmem>>, %arg31: memref<1x32xf32, #tpu.memory_space<vmem>>, %arg32: memref<2x32xf32, #tpu.memory_space<vmem>>, %arg33: memref<32x64xbf16, #tpu.memory_space<vmem>>, %arg34: memref<1x64xf32, #tpu.memory_space<vmem>>, %arg35: memref<64x1xbf16, #tpu.memory_space<vmem>>, %arg36: memref<1x1xf32, #tpu.memory_space<vmem>>, %arg37: memref<1x2x1xf32, #tpu.memory_space<vmem>>) attributes {dimension_semantics = [#tpu.dimension_semantics<parallel>], iteration_bounds = array<i64: 1>, scalar_prefetch = 0 : i64, scratch_operands = 0 : i64, tpu.core_type = #tpu.core_type<tc>, window_params = [{transform_indices = @transform_0, window_bounds = array<i64: 2, 18, 24>}, {pipeline_mode = #tpu.pipeline_mode<synchronous>, transform_indices = @transform_1, window_bounds = array<i64: 16, 32>}, {pipeline_mode = #tpu.pipeline_mode<synchronous>, transform_indices = @transform_2, window_bounds = array<i64: 3, 24, 32>}, {pipeline_mode = #tpu.pipeline_mode<synchronous>, transform_indices = @transform_3, window_bounds = array<i64: 1, 32>}, {pipeline_mode = #tpu.pipeline_mode<synchronous>, transform_indices = @transform_4, window_bounds = array<i64: 8, 32, 4>}, {pipeline_mode = #tpu.pipeline_mode<synchronous>, transform_indices = @transform_5, window_bounds = array<i64: 8, 1, 4>}, {pipeline_mode = #tpu.pipeline_mode<synchronous>, transform_indices = @transform_6, window_bounds = array<i64: 8, 32, 4>}, {pipeline_mode = #tpu.pipeline_mode<synchronous>, transform_indices = @transform_7, window_bounds = array<i64: 8, 1, 4>}, {pipeline_mode = #tpu.pipeline_mode<synchronous>, transform_indices = @transform_8, window_bounds = array<i64: 8, 32, 4>}, {pipeline_mode = #tpu.pipeline_mode<synchronous>, transform_indices = @transform_9, window_bounds = array<i64: 8, 1, 4>}, {pipeline_mode = #tpu.pipeline_mode<synchronous>, transform_indices = @transform_10, window_bounds = array<i64: 8, 4, 32>}, {pipeline_mode = #tpu.pipeline_mode<synchronous>, transform_indices = @transform_11, window_bounds = array<i64: 1, 32>}, {pipeline_mode = #tpu.pipeline_mode<synchronous>, transform_indices = @transform_12, window_bounds = array<i64: 2, 32>}, {pipeline_mode = #tpu.pipeline_mode<synchronous>, transform_indices = @transform_13, window_bounds = array<i64: 32, 128>}, {pipeline_mode = #tpu.pipeline_mode<synchronous>, transform_indices = @transform_14, window_bounds = array<i64: 1, 128>}, {pipeline_mode = #tpu.pipeline_mode<synchronous>, transform_indices = @transform_15, window_bounds = array<i64: 128, 32>}, {pipeline_mode = #tpu.pipeline_mode<synchronous>, transform_indices = @transform_16, window_bounds = array<i64: 1, 32>}, {pipeline_mode = #tpu.pipeline_mode<synchronous>, transform_indices = @transform_17, window_bounds = array<i64: 2, 32>}, {pipeline_mode = #tpu.pipeline_mode<synchronous>, transform_indices = @transform_18, window_bounds = array<i64: 8, 32, 4>}, {pipeline_mode = #tpu.pipeline_mode<synchronous>, transform_indices = @transform_19, window_bounds = array<i64: 8, 1, 4>}, {pipeline_mode = #tpu.pipeline_mode<synchronous>, transform_indices = @transform_20, window_bounds = array<i64: 8, 32, 4>}, {pipeline_mode = #tpu.pipeline_mode<synchronous>, transform_indices = @transform_21, window_bounds = array<i64: 8, 1, 4>}, {pipeline_mode = #tpu.pipeline_mode<synchronous>, transform_indices = @transform_22, window_bounds = array<i64: 8, 32, 4>}, {pipeline_mode = #tpu.pipeline_mode<synchronous>, transform_indices = @transform_23, window_bounds = array<i64: 8, 1, 4>}, {pipeline_mode = #tpu.pipeline_mode<synchronous>, transform_indices = @transform_24, window_bounds = array<i64: 8, 4, 32>}, {pipeline_mode = #tpu.pipeline_mode<synchronous>, transform_indices = @transform_25, window_bounds = array<i64: 1, 32>}, {pipeline_mode = #tpu.pipeline_mode<synchronous>, transform_indices = @transform_26, window_bounds = array<i64: 2, 32>}, {pipeline_mode = #tpu.pipeline_mode<synchronous>, transform_indices = @transform_27, window_bounds = array<i64: 32, 128>}, {pipeline_mode = #tpu.pipeline_mode<synchronous>, transform_indices = @transform_28, window_bounds = array<i64: 1, 128>}, {pipeline_mode = #tpu.pipeline_mode<synchronous>, transform_indices = @transform_29, window_bounds = array<i64: 128, 32>}, {pipeline_mode = #tpu.pipeline_mode<synchronous>, transform_indices = @transform_30, window_bounds = array<i64: 1, 32>}, {pipeline_mode = #tpu.pipeline_mode<synchronous>, transform_indices = @transform_31, window_bounds = array<i64: 2, 32>}, {pipeline_mode = #tpu.pipeline_mode<synchronous>, transform_indices = @transform_32, window_bounds = array<i64: 32, 64>}, {pipeline_mode = #tpu.pipeline_mode<synchronous>, transform_indices = @transform_33, window_bounds = array<i64: 1, 64>}, {pipeline_mode = #tpu.pipeline_mode<synchronous>, transform_indices = @transform_34, window_bounds = array<i64: 64, 1>}, {pipeline_mode = #tpu.pipeline_mode<synchronous>, transform_indices = @transform_35, window_bounds = array<i64: 1, 1>}, {transform_indices = @transform_36, window_bounds = array<i64: 1, 2, 1>}]} {
    %c0 = arith.constant 0 : index
    %c0_0 = arith.constant 0 : index
    %c0_1 = arith.constant 0 : index
    %0 = vector.load %arg1[%c0, %c0_0, %c0_1] : memref<2x18x24xbf16, #tpu.memory_space<vmem>>, vector<2x18x24xbf16>
    %cst = arith.constant 0.000000e+00 : f32
    %1 = vector.broadcast %cst : f32 to vector<2x16x32xf32>
    %2 = vector.extract_strided_slice %0 {offsets = [0, 0, 0], sizes = [2, 16, 24], strides = [1, 1, 1]} : vector<2x18x24xbf16> to vector<2x16x24xbf16>
    %c0_2 = arith.constant 0 : index
    %c0_3 = arith.constant 0 : index
    %c0_4 = arith.constant 0 : index
    %3 = vector.load %arg3[%c0_2, %c0_3, %c0_4] : memref<3x24x32xbf16, #tpu.memory_space<vmem>>, vector<1x24x32xbf16>
    %4 = vector.shape_cast %3 : vector<1x24x32xbf16> to vector<24x32xbf16>
    "tpu.trace_start"() <{level = 10 : i32, message = "blc,cd->bld"}> : () -> ()
    %cst_5 = arith.constant dense<0.000000e+00> : vector<2x16x32xf32>
    %5 = tpu.matmul %2, %4, %cst_5 {dimension_numbers = #tpu.dot_dimension_numbers<[2], [0], [0, 1], [1], [0, 0, 0, 1, 1, 1], [], []>} : vector<2x16x24xbf16>, vector<24x32xbf16>, vector<2x16x32xf32> -> vector<2x16x32xf32>
    "tpu.trace_stop"() : () -> ()
    %6 = arith.addf %1, %5 : vector<2x16x32xf32>
    %7 = vector.extract_strided_slice %0 {offsets = [0, 1, 0], sizes = [2, 16, 24], strides = [1, 1, 1]} : vector<2x18x24xbf16> to vector<2x16x24xbf16>
    %c1 = arith.constant 1 : index
    %c0_6 = arith.constant 0 : index
    %c0_7 = arith.constant 0 : index
    %8 = vector.load %arg3[%c1, %c0_6, %c0_7] : memref<3x24x32xbf16, #tpu.memory_space<vmem>>, vector<1x24x32xbf16>
    %9 = vector.shape_cast %8 : vector<1x24x32xbf16> to vector<24x32xbf16>
    "tpu.trace_start"() <{level = 10 : i32, message = "blc,cd->bld"}> : () -> ()
    %cst_8 = arith.constant dense<0.000000e+00> : vector<2x16x32xf32>
    %10 = tpu.matmul %7, %9, %cst_8 {dimension_numbers = #tpu.dot_dimension_numbers<[2], [0], [0, 1], [1], [0, 0, 0, 1, 1, 1], [], []>} : vector<2x16x24xbf16>, vector<24x32xbf16>, vector<2x16x32xf32> -> vector<2x16x32xf32>
    "tpu.trace_stop"() : () -> ()
    %11 = arith.addf %6, %10 : vector<2x16x32xf32>
    %12 = vector.extract_strided_slice %0 {offsets = [0, 2, 0], sizes = [2, 16, 24], strides = [1, 1, 1]} : vector<2x18x24xbf16> to vector<2x16x24xbf16>
    %c2 = arith.constant 2 : index
    %c0_9 = arith.constant 0 : index
    %c0_10 = arith.constant 0 : index
    %13 = vector.load %arg3[%c2, %c0_9, %c0_10] : memref<3x24x32xbf16, #tpu.memory_space<vmem>>, vector<1x24x32xbf16>
    %14 = vector.shape_cast %13 : vector<1x24x32xbf16> to vector<24x32xbf16>
    "tpu.trace_start"() <{level = 10 : i32, message = "blc,cd->bld"}> : () -> ()
    %cst_11 = arith.constant dense<0.000000e+00> : vector<2x16x32xf32>
    %15 = tpu.matmul %12, %14, %cst_11 {dimension_numbers = #tpu.dot_dimension_numbers<[2], [0], [0, 1], [1], [0, 0, 0, 1, 1, 1], [], []>} : vector<2x16x24xbf16>, vector<24x32xbf16>, vector<2x16x32xf32> -> vector<2x16x32xf32>
    "tpu.trace_stop"() : () -> ()
    %16 = arith.addf %11, %15 : vector<2x16x32xf32>
    %c0_12 = arith.constant 0 : index
    %c0_13 = arith.constant 0 : index
    %17 = vector.load %arg4[%c0_12, %c0_13] : memref<1x32xf32, #tpu.memory_space<vmem>>, vector<1x32xf32>
    %18 = vector.shape_cast %17 : vector<1x32xf32> to vector<1x1x32xf32>
    %19 = vector.broadcast %18 : vector<1x1x32xf32> to vector<2x16x32xf32>
    %20 = arith.addf %16, %19 : vector<2x16x32xf32>
    %c0_14 = arith.constant 0 : index
    %c0_15 = arith.constant 0 : index
    %21 = vector.load %arg2[%c0_14, %c0_15] : memref<16x32xf32, #tpu.memory_space<vmem>>, vector<16x32xf32>
    %22 = vector.shape_cast %21 : vector<16x32xf32> to vector<1x16x32xf32>
    %23 = vector.broadcast %22 : vector<1x16x32xf32> to vector<2x16x32xf32>
    %24 = arith.addf %20, %23 : vector<2x16x32xf32>
    %25 = arith.truncf %24 : vector<2x16x32xf32> to vector<2x16x32xbf16>
    %cst_16 = arith.constant 0.000000e+00 : f32
    %26 = vector.broadcast %cst_16 : f32 to vector<2x16x32xf32>
    %c0_17 = arith.constant 0 : index
    %c0_18 = arith.constant 0 : index
    %c0_19 = arith.constant 0 : index
    %27 = vector.load %arg5[%c0_17, %c0_18, %c0_19] : memref<8x32x4xbf16, #tpu.memory_space<vmem>>, vector<1x32x4xbf16>
    %28 = vector.shape_cast %27 : vector<1x32x4xbf16> to vector<32x4xbf16>
    "tpu.trace_start"() <{level = 10 : i32, message = "bld,de->ble"}> : () -> ()
    %cst_20 = arith.constant dense<0.000000e+00> : vector<2x16x4xf32>
    %29 = tpu.matmul %25, %28, %cst_20 {dimension_numbers = #tpu.dot_dimension_numbers<[2], [0], [0, 1], [1], [0, 0, 0, 1, 1, 1], [], []>} : vector<2x16x32xbf16>, vector<32x4xbf16>, vector<2x16x4xf32> -> vector<2x16x4xf32>
    "tpu.trace_stop"() : () -> ()
    %c0_21 = arith.constant 0 : index
    %c0_22 = arith.constant 0 : index
    %c0_23 = arith.constant 0 : index
    %30 = vector.load %arg6[%c0_21, %c0_22, %c0_23] : memref<8x1x4xf32, #tpu.memory_space<vmem>>, vector<1x1x4xf32>
    %31 = vector.shape_cast %30 : vector<1x1x4xf32> to vector<1x4xf32>
    %32 = vector.shape_cast %31 : vector<1x4xf32> to vector<1x1x4xf32>
    %33 = vector.broadcast %32 : vector<1x1x4xf32> to vector<2x16x4xf32>
    %34 = arith.addf %29, %33 : vector<2x16x4xf32>
    %c0_24 = arith.constant 0 : index
    %c0_25 = arith.constant 0 : index
    %c0_26 = arith.constant 0 : index
    %35 = vector.load %arg7[%c0_24, %c0_25, %c0_26] : memref<8x32x4xbf16, #tpu.memory_space<vmem>>, vector<1x32x4xbf16>
    %36 = vector.shape_cast %35 : vector<1x32x4xbf16> to vector<32x4xbf16>
    "tpu.trace_start"() <{level = 10 : i32, message = "bld,de->ble"}> : () -> ()
    %cst_27 = arith.constant dense<0.000000e+00> : vector<2x16x4xf32>
    %37 = tpu.matmul %25, %36, %cst_27 {dimension_numbers = #tpu.dot_dimension_numbers<[2], [0], [0, 1], [1], [0, 0, 0, 1, 1, 1], [], []>} : vector<2x16x32xbf16>, vector<32x4xbf16>, vector<2x16x4xf32> -> vector<2x16x4xf32>
    "tpu.trace_stop"() : () -> ()
    %c0_28 = arith.constant 0 : index
    %c0_29 = arith.constant 0 : index
    %c0_30 = arith.constant 0 : index
    %38 = vector.load %arg8[%c0_28, %c0_29, %c0_30] : memref<8x1x4xf32, #tpu.memory_space<vmem>>, vector<1x1x4xf32>
    %39 = vector.shape_cast %38 : vector<1x1x4xf32> to vector<1x4xf32>
    %40 = vector.shape_cast %39 : vector<1x4xf32> to vector<1x1x4xf32>
    %41 = vector.broadcast %40 : vector<1x1x4xf32> to vector<2x16x4xf32>
    %42 = arith.addf %37, %41 : vector<2x16x4xf32>
    %c0_31 = arith.constant 0 : index
    %c0_32 = arith.constant 0 : index
    %c0_33 = arith.constant 0 : index
    %43 = vector.load %arg9[%c0_31, %c0_32, %c0_33] : memref<8x32x4xbf16, #tpu.memory_space<vmem>>, vector<1x32x4xbf16>
    %44 = vector.shape_cast %43 : vector<1x32x4xbf16> to vector<32x4xbf16>
    "tpu.trace_start"() <{level = 10 : i32, message = "bld,de->ble"}> : () -> ()
    %cst_34 = arith.constant dense<0.000000e+00> : vector<2x16x4xf32>
    %45 = tpu.matmul %25, %44, %cst_34 {dimension_numbers = #tpu.dot_dimension_numbers<[2], [0], [0, 1], [1], [0, 0, 0, 1, 1, 1], [], []>} : vector<2x16x32xbf16>, vector<32x4xbf16>, vector<2x16x4xf32> -> vector<2x16x4xf32>
    "tpu.trace_stop"() : () -> ()
    %c0_35 = arith.constant 0 : index
    %c0_36 = arith.constant 0 : index
    %c0_37 = arith.constant 0 : index
    %46 = vector.load %arg10[%c0_35, %c0_36, %c0_37] : memref<8x1x4xf32, #tpu.memory_space<vmem>>, vector<1x1x4xf32>
    %47 = vector.shape_cast %46 : vector<1x1x4xf32> to vector<1x4xf32>
    %48 = vector.shape_cast %47 : vector<1x4xf32> to vector<1x1x4xf32>
    %49 = vector.broadcast %48 : vector<1x1x4xf32> to vector<2x16x4xf32>
    %50 = arith.addf %45, %49 : vector<2x16x4xf32>
    %51 = arith.truncf %34 : vector<2x16x4xf32> to vector<2x16x4xbf16>
    %52 = arith.truncf %42 : vector<2x16x4xf32> to vector<2x16x4xbf16>
    "tpu.trace_start"() <{level = 10 : i32, message = "ble,bme->blm"}> : () -> ()
    %cst_38 = arith.constant dense<0.000000e+00> : vector<2x16x16xf32>
    %53 = tpu.matmul %51, %52, %cst_38 {dimension_numbers = #tpu.dot_dimension_numbers<[2], [2], [1], [1], [0, 0, 0, 1, 1, 1], [0], [0]>} : vector<2x16x4xbf16>, vector<2x16x4xbf16>, vector<2x16x16xf32> -> vector<2x16x16xf32>
    "tpu.trace_stop"() : () -> ()
    %cst_39 = arith.constant 5.000000e-01 : f32
    %54 = vector.broadcast %cst_39 : f32 to vector<2x16x16xf32>
    %55 = arith.mulf %53, %54 : vector<2x16x16xf32>
    %cst_40 = arith.constant dense<0xFF800000> : vector<2x16xf32>
    %56 = vector.multi_reduction <maximumf>, %55, %cst_40 [2] : vector<2x16x16xf32> to vector<2x16xf32>
    %57 = vector.shape_cast %56 : vector<2x16xf32> to vector<2x16x1xf32>
    %58 = vector.broadcast %57 : vector<2x16x1xf32> to vector<2x16x16xf32>
    %59 = arith.subf %55, %58 : vector<2x16x16xf32>
    %60 = math.exp %59 : vector<2x16x16xf32>
    %cst_41 = arith.constant dense<0.000000e+00> : vector<2x16xf32>
    %61 = vector.multi_reduction <add>, %60, %cst_41 [2] : vector<2x16x16xf32> to vector<2x16xf32>
    %62 = vector.shape_cast %61 : vector<2x16xf32> to vector<2x16x1xf32>
    %63 = tpu.reciprocal %62 {approx = true} : vector<2x16x1xf32> -> vector<2x16x1xf32>
    %64 = vector.broadcast %63 : vector<2x16x1xf32> to vector<2x16x16xf32>
    %65 = arith.mulf %60, %64 : vector<2x16x16xf32>
    %66 = arith.truncf %65 : vector<2x16x16xf32> to vector<2x16x16xbf16>
    %67 = arith.truncf %50 : vector<2x16x4xf32> to vector<2x16x4xbf16>
    "tpu.trace_start"() <{level = 10 : i32, message = "blm,bme->ble"}> : () -> ()
    %cst_42 = arith.constant dense<0.000000e+00> : vector<2x16x4xf32>
    %68 = tpu.matmul %66, %67, %cst_42 {dimension_numbers = #tpu.dot_dimension_numbers<[2], [1], [1], [2], [0, 0, 0, 1, 1, 2], [0], [0]>} : vector<2x16x16xbf16>, vector<2x16x4xbf16>, vector<2x16x4xf32> -> vector<2x16x4xf32>
    "tpu.trace_stop"() : () -> ()
    %69 = arith.truncf %68 : vector<2x16x4xf32> to vector<2x16x4xbf16>
    %c0_43 = arith.constant 0 : index
    %c0_44 = arith.constant 0 : index
    %c0_45 = arith.constant 0 : index
    %70 = vector.load %arg11[%c0_43, %c0_44, %c0_45] : memref<8x4x32xbf16, #tpu.memory_space<vmem>>, vector<1x4x32xbf16>
    %71 = vector.shape_cast %70 : vector<1x4x32xbf16> to vector<4x32xbf16>
    "tpu.trace_start"() <{level = 10 : i32, message = "ble,ed->bld"}> : () -> ()
    %cst_46 = arith.constant dense<0.000000e+00> : vector<2x16x32xf32>
    %72 = tpu.matmul %69, %71, %cst_46 {dimension_numbers = #tpu.dot_dimension_numbers<[2], [0], [0, 1], [1], [0, 0, 0, 1, 1, 1], [], []>} : vector<2x16x4xbf16>, vector<4x32xbf16>, vector<2x16x32xf32> -> vector<2x16x32xf32>
    "tpu.trace_stop"() : () -> ()
    %73 = arith.addf %26, %72 : vector<2x16x32xf32>
    %c1_47 = arith.constant 1 : index
    %c0_48 = arith.constant 0 : index
    %c0_49 = arith.constant 0 : index
    %74 = vector.load %arg5[%c1_47, %c0_48, %c0_49] : memref<8x32x4xbf16, #tpu.memory_space<vmem>>, vector<1x32x4xbf16>
    %75 = vector.shape_cast %74 : vector<1x32x4xbf16> to vector<32x4xbf16>
    "tpu.trace_start"() <{level = 10 : i32, message = "bld,de->ble"}> : () -> ()
    %cst_50 = arith.constant dense<0.000000e+00> : vector<2x16x4xf32>
    %76 = tpu.matmul %25, %75, %cst_50 {dimension_numbers = #tpu.dot_dimension_numbers<[2], [0], [0, 1], [1], [0, 0, 0, 1, 1, 1], [], []>} : vector<2x16x32xbf16>, vector<32x4xbf16>, vector<2x16x4xf32> -> vector<2x16x4xf32>
    "tpu.trace_stop"() : () -> ()
    %c1_51 = arith.constant 1 : index
    %c0_52 = arith.constant 0 : index
    %c0_53 = arith.constant 0 : index
    %77 = vector.load %arg6[%c1_51, %c0_52, %c0_53] : memref<8x1x4xf32, #tpu.memory_space<vmem>>, vector<1x1x4xf32>
    %78 = vector.shape_cast %77 : vector<1x1x4xf32> to vector<1x4xf32>
    %79 = vector.shape_cast %78 : vector<1x4xf32> to vector<1x1x4xf32>
    %80 = vector.broadcast %79 : vector<1x1x4xf32> to vector<2x16x4xf32>
    %81 = arith.addf %76, %80 : vector<2x16x4xf32>
    %c1_54 = arith.constant 1 : index
    %c0_55 = arith.constant 0 : index
    %c0_56 = arith.constant 0 : index
    %82 = vector.load %arg7[%c1_54, %c0_55, %c0_56] : memref<8x32x4xbf16, #tpu.memory_space<vmem>>, vector<1x32x4xbf16>
    %83 = vector.shape_cast %82 : vector<1x32x4xbf16> to vector<32x4xbf16>
    "tpu.trace_start"() <{level = 10 : i32, message = "bld,de->ble"}> : () -> ()
    %cst_57 = arith.constant dense<0.000000e+00> : vector<2x16x4xf32>
    %84 = tpu.matmul %25, %83, %cst_57 {dimension_numbers = #tpu.dot_dimension_numbers<[2], [0], [0, 1], [1], [0, 0, 0, 1, 1, 1], [], []>} : vector<2x16x32xbf16>, vector<32x4xbf16>, vector<2x16x4xf32> -> vector<2x16x4xf32>
    "tpu.trace_stop"() : () -> ()
    %c1_58 = arith.constant 1 : index
    %c0_59 = arith.constant 0 : index
    %c0_60 = arith.constant 0 : index
    %85 = vector.load %arg8[%c1_58, %c0_59, %c0_60] : memref<8x1x4xf32, #tpu.memory_space<vmem>>, vector<1x1x4xf32>
    %86 = vector.shape_cast %85 : vector<1x1x4xf32> to vector<1x4xf32>
    %87 = vector.shape_cast %86 : vector<1x4xf32> to vector<1x1x4xf32>
    %88 = vector.broadcast %87 : vector<1x1x4xf32> to vector<2x16x4xf32>
    %89 = arith.addf %84, %88 : vector<2x16x4xf32>
    %c1_61 = arith.constant 1 : index
    %c0_62 = arith.constant 0 : index
    %c0_63 = arith.constant 0 : index
    %90 = vector.load %arg9[%c1_61, %c0_62, %c0_63] : memref<8x32x4xbf16, #tpu.memory_space<vmem>>, vector<1x32x4xbf16>
    %91 = vector.shape_cast %90 : vector<1x32x4xbf16> to vector<32x4xbf16>
    "tpu.trace_start"() <{level = 10 : i32, message = "bld,de->ble"}> : () -> ()
    %cst_64 = arith.constant dense<0.000000e+00> : vector<2x16x4xf32>
    %92 = tpu.matmul %25, %91, %cst_64 {dimension_numbers = #tpu.dot_dimension_numbers<[2], [0], [0, 1], [1], [0, 0, 0, 1, 1, 1], [], []>} : vector<2x16x32xbf16>, vector<32x4xbf16>, vector<2x16x4xf32> -> vector<2x16x4xf32>
    "tpu.trace_stop"() : () -> ()
    %c1_65 = arith.constant 1 : index
    %c0_66 = arith.constant 0 : index
    %c0_67 = arith.constant 0 : index
    %93 = vector.load %arg10[%c1_65, %c0_66, %c0_67] : memref<8x1x4xf32, #tpu.memory_space<vmem>>, vector<1x1x4xf32>
    %94 = vector.shape_cast %93 : vector<1x1x4xf32> to vector<1x4xf32>
    %95 = vector.shape_cast %94 : vector<1x4xf32> to vector<1x1x4xf32>
    %96 = vector.broadcast %95 : vector<1x1x4xf32> to vector<2x16x4xf32>
    %97 = arith.addf %92, %96 : vector<2x16x4xf32>
    %98 = arith.truncf %81 : vector<2x16x4xf32> to vector<2x16x4xbf16>
    %99 = arith.truncf %89 : vector<2x16x4xf32> to vector<2x16x4xbf16>
    "tpu.trace_start"() <{level = 10 : i32, message = "ble,bme->blm"}> : () -> ()
    %cst_68 = arith.constant dense<0.000000e+00> : vector<2x16x16xf32>
    %100 = tpu.matmul %98, %99, %cst_68 {dimension_numbers = #tpu.dot_dimension_numbers<[2], [2], [1], [1], [0, 0, 0, 1, 1, 1], [0], [0]>} : vector<2x16x4xbf16>, vector<2x16x4xbf16>, vector<2x16x16xf32> -> vector<2x16x16xf32>
    "tpu.trace_stop"() : () -> ()
    %cst_69 = arith.constant 5.000000e-01 : f32
    %101 = vector.broadcast %cst_69 : f32 to vector<2x16x16xf32>
    %102 = arith.mulf %100, %101 : vector<2x16x16xf32>
    %cst_70 = arith.constant dense<0xFF800000> : vector<2x16xf32>
    %103 = vector.multi_reduction <maximumf>, %102, %cst_70 [2] : vector<2x16x16xf32> to vector<2x16xf32>
    %104 = vector.shape_cast %103 : vector<2x16xf32> to vector<2x16x1xf32>
    %105 = vector.broadcast %104 : vector<2x16x1xf32> to vector<2x16x16xf32>
    %106 = arith.subf %102, %105 : vector<2x16x16xf32>
    %107 = math.exp %106 : vector<2x16x16xf32>
    %cst_71 = arith.constant dense<0.000000e+00> : vector<2x16xf32>
    %108 = vector.multi_reduction <add>, %107, %cst_71 [2] : vector<2x16x16xf32> to vector<2x16xf32>
    %109 = vector.shape_cast %108 : vector<2x16xf32> to vector<2x16x1xf32>
    %110 = tpu.reciprocal %109 {approx = true} : vector<2x16x1xf32> -> vector<2x16x1xf32>
    %111 = vector.broadcast %110 : vector<2x16x1xf32> to vector<2x16x16xf32>
    %112 = arith.mulf %107, %111 : vector<2x16x16xf32>
    %113 = arith.truncf %112 : vector<2x16x16xf32> to vector<2x16x16xbf16>
    %114 = arith.truncf %97 : vector<2x16x4xf32> to vector<2x16x4xbf16>
    "tpu.trace_start"() <{level = 10 : i32, message = "blm,bme->ble"}> : () -> ()
    %cst_72 = arith.constant dense<0.000000e+00> : vector<2x16x4xf32>
    %115 = tpu.matmul %113, %114, %cst_72 {dimension_numbers = #tpu.dot_dimension_numbers<[2], [1], [1], [2], [0, 0, 0, 1, 1, 2], [0], [0]>} : vector<2x16x16xbf16>, vector<2x16x4xbf16>, vector<2x16x4xf32> -> vector<2x16x4xf32>
    "tpu.trace_stop"() : () -> ()
    %116 = arith.truncf %115 : vector<2x16x4xf32> to vector<2x16x4xbf16>
    %c1_73 = arith.constant 1 : index
    %c0_74 = arith.constant 0 : index
    %c0_75 = arith.constant 0 : index
    %117 = vector.load %arg11[%c1_73, %c0_74, %c0_75] : memref<8x4x32xbf16, #tpu.memory_space<vmem>>, vector<1x4x32xbf16>
    %118 = vector.shape_cast %117 : vector<1x4x32xbf16> to vector<4x32xbf16>
    "tpu.trace_start"() <{level = 10 : i32, message = "ble,ed->bld"}> : () -> ()
    %cst_76 = arith.constant dense<0.000000e+00> : vector<2x16x32xf32>
    %119 = tpu.matmul %116, %118, %cst_76 {dimension_numbers = #tpu.dot_dimension_numbers<[2], [0], [0, 1], [1], [0, 0, 0, 1, 1, 1], [], []>} : vector<2x16x4xbf16>, vector<4x32xbf16>, vector<2x16x32xf32> -> vector<2x16x32xf32>
    "tpu.trace_stop"() : () -> ()
    %120 = arith.addf %73, %119 : vector<2x16x32xf32>
    %c2_77 = arith.constant 2 : index
    %c0_78 = arith.constant 0 : index
    %c0_79 = arith.constant 0 : index
    %121 = vector.load %arg5[%c2_77, %c0_78, %c0_79] : memref<8x32x4xbf16, #tpu.memory_space<vmem>>, vector<1x32x4xbf16>
    %122 = vector.shape_cast %121 : vector<1x32x4xbf16> to vector<32x4xbf16>
    "tpu.trace_start"() <{level = 10 : i32, message = "bld,de->ble"}> : () -> ()
    %cst_80 = arith.constant dense<0.000000e+00> : vector<2x16x4xf32>
    %123 = tpu.matmul %25, %122, %cst_80 {dimension_numbers = #tpu.dot_dimension_numbers<[2], [0], [0, 1], [1], [0, 0, 0, 1, 1, 1], [], []>} : vector<2x16x32xbf16>, vector<32x4xbf16>, vector<2x16x4xf32> -> vector<2x16x4xf32>
    "tpu.trace_stop"() : () -> ()
    %c2_81 = arith.constant 2 : index
    %c0_82 = arith.constant 0 : index
    %c0_83 = arith.constant 0 : index
    %124 = vector.load %arg6[%c2_81, %c0_82, %c0_83] : memref<8x1x4xf32, #tpu.memory_space<vmem>>, vector<1x1x4xf32>
    %125 = vector.shape_cast %124 : vector<1x1x4xf32> to vector<1x4xf32>
    %126 = vector.shape_cast %125 : vector<1x4xf32> to vector<1x1x4xf32>
    %127 = vector.broadcast %126 : vector<1x1x4xf32> to vector<2x16x4xf32>
    %128 = arith.addf %123, %127 : vector<2x16x4xf32>
    %c2_84 = arith.constant 2 : index
    %c0_85 = arith.constant 0 : index
    %c0_86 = arith.constant 0 : index
    %129 = vector.load %arg7[%c2_84, %c0_85, %c0_86] : memref<8x32x4xbf16, #tpu.memory_space<vmem>>, vector<1x32x4xbf16>
    %130 = vector.shape_cast %129 : vector<1x32x4xbf16> to vector<32x4xbf16>
    "tpu.trace_start"() <{level = 10 : i32, message = "bld,de->ble"}> : () -> ()
    %cst_87 = arith.constant dense<0.000000e+00> : vector<2x16x4xf32>
    %131 = tpu.matmul %25, %130, %cst_87 {dimension_numbers = #tpu.dot_dimension_numbers<[2], [0], [0, 1], [1], [0, 0, 0, 1, 1, 1], [], []>} : vector<2x16x32xbf16>, vector<32x4xbf16>, vector<2x16x4xf32> -> vector<2x16x4xf32>
    "tpu.trace_stop"() : () -> ()
    %c2_88 = arith.constant 2 : index
    %c0_89 = arith.constant 0 : index
    %c0_90 = arith.constant 0 : index
    %132 = vector.load %arg8[%c2_88, %c0_89, %c0_90] : memref<8x1x4xf32, #tpu.memory_space<vmem>>, vector<1x1x4xf32>
    %133 = vector.shape_cast %132 : vector<1x1x4xf32> to vector<1x4xf32>
    %134 = vector.shape_cast %133 : vector<1x4xf32> to vector<1x1x4xf32>
    %135 = vector.broadcast %134 : vector<1x1x4xf32> to vector<2x16x4xf32>
    %136 = arith.addf %131, %135 : vector<2x16x4xf32>
    %c2_91 = arith.constant 2 : index
    %c0_92 = arith.constant 0 : index
    %c0_93 = arith.constant 0 : index
    %137 = vector.load %arg9[%c2_91, %c0_92, %c0_93] : memref<8x32x4xbf16, #tpu.memory_space<vmem>>, vector<1x32x4xbf16>
    %138 = vector.shape_cast %137 : vector<1x32x4xbf16> to vector<32x4xbf16>
    "tpu.trace_start"() <{level = 10 : i32, message = "bld,de->ble"}> : () -> ()
    %cst_94 = arith.constant dense<0.000000e+00> : vector<2x16x4xf32>
    %139 = tpu.matmul %25, %138, %cst_94 {dimension_numbers = #tpu.dot_dimension_numbers<[2], [0], [0, 1], [1], [0, 0, 0, 1, 1, 1], [], []>} : vector<2x16x32xbf16>, vector<32x4xbf16>, vector<2x16x4xf32> -> vector<2x16x4xf32>
    "tpu.trace_stop"() : () -> ()
    %c2_95 = arith.constant 2 : index
    %c0_96 = arith.constant 0 : index
    %c0_97 = arith.constant 0 : index
    %140 = vector.load %arg10[%c2_95, %c0_96, %c0_97] : memref<8x1x4xf32, #tpu.memory_space<vmem>>, vector<1x1x4xf32>
    %141 = vector.shape_cast %140 : vector<1x1x4xf32> to vector<1x4xf32>
    %142 = vector.shape_cast %141 : vector<1x4xf32> to vector<1x1x4xf32>
    %143 = vector.broadcast %142 : vector<1x1x4xf32> to vector<2x16x4xf32>
    %144 = arith.addf %139, %143 : vector<2x16x4xf32>
    %145 = arith.truncf %128 : vector<2x16x4xf32> to vector<2x16x4xbf16>
    %146 = arith.truncf %136 : vector<2x16x4xf32> to vector<2x16x4xbf16>
    "tpu.trace_start"() <{level = 10 : i32, message = "ble,bme->blm"}> : () -> ()
    %cst_98 = arith.constant dense<0.000000e+00> : vector<2x16x16xf32>
    %147 = tpu.matmul %145, %146, %cst_98 {dimension_numbers = #tpu.dot_dimension_numbers<[2], [2], [1], [1], [0, 0, 0, 1, 1, 1], [0], [0]>} : vector<2x16x4xbf16>, vector<2x16x4xbf16>, vector<2x16x16xf32> -> vector<2x16x16xf32>
    "tpu.trace_stop"() : () -> ()
    %cst_99 = arith.constant 5.000000e-01 : f32
    %148 = vector.broadcast %cst_99 : f32 to vector<2x16x16xf32>
    %149 = arith.mulf %147, %148 : vector<2x16x16xf32>
    %cst_100 = arith.constant dense<0xFF800000> : vector<2x16xf32>
    %150 = vector.multi_reduction <maximumf>, %149, %cst_100 [2] : vector<2x16x16xf32> to vector<2x16xf32>
    %151 = vector.shape_cast %150 : vector<2x16xf32> to vector<2x16x1xf32>
    %152 = vector.broadcast %151 : vector<2x16x1xf32> to vector<2x16x16xf32>
    %153 = arith.subf %149, %152 : vector<2x16x16xf32>
    %154 = math.exp %153 : vector<2x16x16xf32>
    %cst_101 = arith.constant dense<0.000000e+00> : vector<2x16xf32>
    %155 = vector.multi_reduction <add>, %154, %cst_101 [2] : vector<2x16x16xf32> to vector<2x16xf32>
    %156 = vector.shape_cast %155 : vector<2x16xf32> to vector<2x16x1xf32>
    %157 = tpu.reciprocal %156 {approx = true} : vector<2x16x1xf32> -> vector<2x16x1xf32>
    %158 = vector.broadcast %157 : vector<2x16x1xf32> to vector<2x16x16xf32>
    %159 = arith.mulf %154, %158 : vector<2x16x16xf32>
    %160 = arith.truncf %159 : vector<2x16x16xf32> to vector<2x16x16xbf16>
    %161 = arith.truncf %144 : vector<2x16x4xf32> to vector<2x16x4xbf16>
    "tpu.trace_start"() <{level = 10 : i32, message = "blm,bme->ble"}> : () -> ()
    %cst_102 = arith.constant dense<0.000000e+00> : vector<2x16x4xf32>
    %162 = tpu.matmul %160, %161, %cst_102 {dimension_numbers = #tpu.dot_dimension_numbers<[2], [1], [1], [2], [0, 0, 0, 1, 1, 2], [0], [0]>} : vector<2x16x16xbf16>, vector<2x16x4xbf16>, vector<2x16x4xf32> -> vector<2x16x4xf32>
    "tpu.trace_stop"() : () -> ()
    %163 = arith.truncf %162 : vector<2x16x4xf32> to vector<2x16x4xbf16>
    %c2_103 = arith.constant 2 : index
    %c0_104 = arith.constant 0 : index
    %c0_105 = arith.constant 0 : index
    %164 = vector.load %arg11[%c2_103, %c0_104, %c0_105] : memref<8x4x32xbf16, #tpu.memory_space<vmem>>, vector<1x4x32xbf16>
    %165 = vector.shape_cast %164 : vector<1x4x32xbf16> to vector<4x32xbf16>
    "tpu.trace_start"() <{level = 10 : i32, message = "ble,ed->bld"}> : () -> ()
    %cst_106 = arith.constant dense<0.000000e+00> : vector<2x16x32xf32>
    %166 = tpu.matmul %163, %165, %cst_106 {dimension_numbers = #tpu.dot_dimension_numbers<[2], [0], [0, 1], [1], [0, 0, 0, 1, 1, 1], [], []>} : vector<2x16x4xbf16>, vector<4x32xbf16>, vector<2x16x32xf32> -> vector<2x16x32xf32>
    "tpu.trace_stop"() : () -> ()
    %167 = arith.addf %120, %166 : vector<2x16x32xf32>
    %c3 = arith.constant 3 : index
    %c0_107 = arith.constant 0 : index
    %c0_108 = arith.constant 0 : index
    %168 = vector.load %arg5[%c3, %c0_107, %c0_108] : memref<8x32x4xbf16, #tpu.memory_space<vmem>>, vector<1x32x4xbf16>
    %169 = vector.shape_cast %168 : vector<1x32x4xbf16> to vector<32x4xbf16>
    "tpu.trace_start"() <{level = 10 : i32, message = "bld,de->ble"}> : () -> ()
    %cst_109 = arith.constant dense<0.000000e+00> : vector<2x16x4xf32>
    %170 = tpu.matmul %25, %169, %cst_109 {dimension_numbers = #tpu.dot_dimension_numbers<[2], [0], [0, 1], [1], [0, 0, 0, 1, 1, 1], [], []>} : vector<2x16x32xbf16>, vector<32x4xbf16>, vector<2x16x4xf32> -> vector<2x16x4xf32>
    "tpu.trace_stop"() : () -> ()
    %c3_110 = arith.constant 3 : index
    %c0_111 = arith.constant 0 : index
    %c0_112 = arith.constant 0 : index
    %171 = vector.load %arg6[%c3_110, %c0_111, %c0_112] : memref<8x1x4xf32, #tpu.memory_space<vmem>>, vector<1x1x4xf32>
    %172 = vector.shape_cast %171 : vector<1x1x4xf32> to vector<1x4xf32>
    %173 = vector.shape_cast %172 : vector<1x4xf32> to vector<1x1x4xf32>
    %174 = vector.broadcast %173 : vector<1x1x4xf32> to vector<2x16x4xf32>
    %175 = arith.addf %170, %174 : vector<2x16x4xf32>
    %c3_113 = arith.constant 3 : index
    %c0_114 = arith.constant 0 : index
    %c0_115 = arith.constant 0 : index
    %176 = vector.load %arg7[%c3_113, %c0_114, %c0_115] : memref<8x32x4xbf16, #tpu.memory_space<vmem>>, vector<1x32x4xbf16>
    %177 = vector.shape_cast %176 : vector<1x32x4xbf16> to vector<32x4xbf16>
    "tpu.trace_start"() <{level = 10 : i32, message = "bld,de->ble"}> : () -> ()
    %cst_116 = arith.constant dense<0.000000e+00> : vector<2x16x4xf32>
    %178 = tpu.matmul %25, %177, %cst_116 {dimension_numbers = #tpu.dot_dimension_numbers<[2], [0], [0, 1], [1], [0, 0, 0, 1, 1, 1], [], []>} : vector<2x16x32xbf16>, vector<32x4xbf16>, vector<2x16x4xf32> -> vector<2x16x4xf32>
    "tpu.trace_stop"() : () -> ()
    %c3_117 = arith.constant 3 : index
    %c0_118 = arith.constant 0 : index
    %c0_119 = arith.constant 0 : index
    %179 = vector.load %arg8[%c3_117, %c0_118, %c0_119] : memref<8x1x4xf32, #tpu.memory_space<vmem>>, vector<1x1x4xf32>
    %180 = vector.shape_cast %179 : vector<1x1x4xf32> to vector<1x4xf32>
    %181 = vector.shape_cast %180 : vector<1x4xf32> to vector<1x1x4xf32>
    %182 = vector.broadcast %181 : vector<1x1x4xf32> to vector<2x16x4xf32>
    %183 = arith.addf %178, %182 : vector<2x16x4xf32>
    %c3_120 = arith.constant 3 : index
    %c0_121 = arith.constant 0 : index
    %c0_122 = arith.constant 0 : index
    %184 = vector.load %arg9[%c3_120, %c0_121, %c0_122] : memref<8x32x4xbf16, #tpu.memory_space<vmem>>, vector<1x32x4xbf16>
    %185 = vector.shape_cast %184 : vector<1x32x4xbf16> to vector<32x4xbf16>
    "tpu.trace_start"() <{level = 10 : i32, message = "bld,de->ble"}> : () -> ()
    %cst_123 = arith.constant dense<0.000000e+00> : vector<2x16x4xf32>
    %186 = tpu.matmul %25, %185, %cst_123 {dimension_numbers = #tpu.dot_dimension_numbers<[2], [0], [0, 1], [1], [0, 0, 0, 1, 1, 1], [], []>} : vector<2x16x32xbf16>, vector<32x4xbf16>, vector<2x16x4xf32> -> vector<2x16x4xf32>
    "tpu.trace_stop"() : () -> ()
    %c3_124 = arith.constant 3 : index
    %c0_125 = arith.constant 0 : index
    %c0_126 = arith.constant 0 : index
    %187 = vector.load %arg10[%c3_124, %c0_125, %c0_126] : memref<8x1x4xf32, #tpu.memory_space<vmem>>, vector<1x1x4xf32>
    %188 = vector.shape_cast %187 : vector<1x1x4xf32> to vector<1x4xf32>
    %189 = vector.shape_cast %188 : vector<1x4xf32> to vector<1x1x4xf32>
    %190 = vector.broadcast %189 : vector<1x1x4xf32> to vector<2x16x4xf32>
    %191 = arith.addf %186, %190 : vector<2x16x4xf32>
    %192 = arith.truncf %175 : vector<2x16x4xf32> to vector<2x16x4xbf16>
    %193 = arith.truncf %183 : vector<2x16x4xf32> to vector<2x16x4xbf16>
    "tpu.trace_start"() <{level = 10 : i32, message = "ble,bme->blm"}> : () -> ()
    %cst_127 = arith.constant dense<0.000000e+00> : vector<2x16x16xf32>
    %194 = tpu.matmul %192, %193, %cst_127 {dimension_numbers = #tpu.dot_dimension_numbers<[2], [2], [1], [1], [0, 0, 0, 1, 1, 1], [0], [0]>} : vector<2x16x4xbf16>, vector<2x16x4xbf16>, vector<2x16x16xf32> -> vector<2x16x16xf32>
    "tpu.trace_stop"() : () -> ()
    %cst_128 = arith.constant 5.000000e-01 : f32
    %195 = vector.broadcast %cst_128 : f32 to vector<2x16x16xf32>
    %196 = arith.mulf %194, %195 : vector<2x16x16xf32>
    %cst_129 = arith.constant dense<0xFF800000> : vector<2x16xf32>
    %197 = vector.multi_reduction <maximumf>, %196, %cst_129 [2] : vector<2x16x16xf32> to vector<2x16xf32>
    %198 = vector.shape_cast %197 : vector<2x16xf32> to vector<2x16x1xf32>
    %199 = vector.broadcast %198 : vector<2x16x1xf32> to vector<2x16x16xf32>
    %200 = arith.subf %196, %199 : vector<2x16x16xf32>
    %201 = math.exp %200 : vector<2x16x16xf32>
    %cst_130 = arith.constant dense<0.000000e+00> : vector<2x16xf32>
    %202 = vector.multi_reduction <add>, %201, %cst_130 [2] : vector<2x16x16xf32> to vector<2x16xf32>
    %203 = vector.shape_cast %202 : vector<2x16xf32> to vector<2x16x1xf32>
    %204 = tpu.reciprocal %203 {approx = true} : vector<2x16x1xf32> -> vector<2x16x1xf32>
    %205 = vector.broadcast %204 : vector<2x16x1xf32> to vector<2x16x16xf32>
    %206 = arith.mulf %201, %205 : vector<2x16x16xf32>
    %207 = arith.truncf %206 : vector<2x16x16xf32> to vector<2x16x16xbf16>
    %208 = arith.truncf %191 : vector<2x16x4xf32> to vector<2x16x4xbf16>
    "tpu.trace_start"() <{level = 10 : i32, message = "blm,bme->ble"}> : () -> ()
    %cst_131 = arith.constant dense<0.000000e+00> : vector<2x16x4xf32>
    %209 = tpu.matmul %207, %208, %cst_131 {dimension_numbers = #tpu.dot_dimension_numbers<[2], [1], [1], [2], [0, 0, 0, 1, 1, 2], [0], [0]>} : vector<2x16x16xbf16>, vector<2x16x4xbf16>, vector<2x16x4xf32> -> vector<2x16x4xf32>
    "tpu.trace_stop"() : () -> ()
    %210 = arith.truncf %209 : vector<2x16x4xf32> to vector<2x16x4xbf16>
    %c3_132 = arith.constant 3 : index
    %c0_133 = arith.constant 0 : index
    %c0_134 = arith.constant 0 : index
    %211 = vector.load %arg11[%c3_132, %c0_133, %c0_134] : memref<8x4x32xbf16, #tpu.memory_space<vmem>>, vector<1x4x32xbf16>
    %212 = vector.shape_cast %211 : vector<1x4x32xbf16> to vector<4x32xbf16>
    "tpu.trace_start"() <{level = 10 : i32, message = "ble,ed->bld"}> : () -> ()
    %cst_135 = arith.constant dense<0.000000e+00> : vector<2x16x32xf32>
    %213 = tpu.matmul %210, %212, %cst_135 {dimension_numbers = #tpu.dot_dimension_numbers<[2], [0], [0, 1], [1], [0, 0, 0, 1, 1, 1], [], []>} : vector<2x16x4xbf16>, vector<4x32xbf16>, vector<2x16x32xf32> -> vector<2x16x32xf32>
    "tpu.trace_stop"() : () -> ()
    %214 = arith.addf %167, %213 : vector<2x16x32xf32>
    %c4 = arith.constant 4 : index
    %c0_136 = arith.constant 0 : index
    %c0_137 = arith.constant 0 : index
    %215 = vector.load %arg5[%c4, %c0_136, %c0_137] : memref<8x32x4xbf16, #tpu.memory_space<vmem>>, vector<1x32x4xbf16>
    %216 = vector.shape_cast %215 : vector<1x32x4xbf16> to vector<32x4xbf16>
    "tpu.trace_start"() <{level = 10 : i32, message = "bld,de->ble"}> : () -> ()
    %cst_138 = arith.constant dense<0.000000e+00> : vector<2x16x4xf32>
    %217 = tpu.matmul %25, %216, %cst_138 {dimension_numbers = #tpu.dot_dimension_numbers<[2], [0], [0, 1], [1], [0, 0, 0, 1, 1, 1], [], []>} : vector<2x16x32xbf16>, vector<32x4xbf16>, vector<2x16x4xf32> -> vector<2x16x4xf32>
    "tpu.trace_stop"() : () -> ()
    %c4_139 = arith.constant 4 : index
    %c0_140 = arith.constant 0 : index
    %c0_141 = arith.constant 0 : index
    %218 = vector.load %arg6[%c4_139, %c0_140, %c0_141] : memref<8x1x4xf32, #tpu.memory_space<vmem>>, vector<1x1x4xf32>
    %219 = vector.shape_cast %218 : vector<1x1x4xf32> to vector<1x4xf32>
    %220 = vector.shape_cast %219 : vector<1x4xf32> to vector<1x1x4xf32>
    %221 = vector.broadcast %220 : vector<1x1x4xf32> to vector<2x16x4xf32>
    %222 = arith.addf %217, %221 : vector<2x16x4xf32>
    %c4_142 = arith.constant 4 : index
    %c0_143 = arith.constant 0 : index
    %c0_144 = arith.constant 0 : index
    %223 = vector.load %arg7[%c4_142, %c0_143, %c0_144] : memref<8x32x4xbf16, #tpu.memory_space<vmem>>, vector<1x32x4xbf16>
    %224 = vector.shape_cast %223 : vector<1x32x4xbf16> to vector<32x4xbf16>
    "tpu.trace_start"() <{level = 10 : i32, message = "bld,de->ble"}> : () -> ()
    %cst_145 = arith.constant dense<0.000000e+00> : vector<2x16x4xf32>
    %225 = tpu.matmul %25, %224, %cst_145 {dimension_numbers = #tpu.dot_dimension_numbers<[2], [0], [0, 1], [1], [0, 0, 0, 1, 1, 1], [], []>} : vector<2x16x32xbf16>, vector<32x4xbf16>, vector<2x16x4xf32> -> vector<2x16x4xf32>
    "tpu.trace_stop"() : () -> ()
    %c4_146 = arith.constant 4 : index
    %c0_147 = arith.constant 0 : index
    %c0_148 = arith.constant 0 : index
    %226 = vector.load %arg8[%c4_146, %c0_147, %c0_148] : memref<8x1x4xf32, #tpu.memory_space<vmem>>, vector<1x1x4xf32>
    %227 = vector.shape_cast %226 : vector<1x1x4xf32> to vector<1x4xf32>
    %228 = vector.shape_cast %227 : vector<1x4xf32> to vector<1x1x4xf32>
    %229 = vector.broadcast %228 : vector<1x1x4xf32> to vector<2x16x4xf32>
    %230 = arith.addf %225, %229 : vector<2x16x4xf32>
    %c4_149 = arith.constant 4 : index
    %c0_150 = arith.constant 0 : index
    %c0_151 = arith.constant 0 : index
    %231 = vector.load %arg9[%c4_149, %c0_150, %c0_151] : memref<8x32x4xbf16, #tpu.memory_space<vmem>>, vector<1x32x4xbf16>
    %232 = vector.shape_cast %231 : vector<1x32x4xbf16> to vector<32x4xbf16>
    "tpu.trace_start"() <{level = 10 : i32, message = "bld,de->ble"}> : () -> ()
    %cst_152 = arith.constant dense<0.000000e+00> : vector<2x16x4xf32>
    %233 = tpu.matmul %25, %232, %cst_152 {dimension_numbers = #tpu.dot_dimension_numbers<[2], [0], [0, 1], [1], [0, 0, 0, 1, 1, 1], [], []>} : vector<2x16x32xbf16>, vector<32x4xbf16>, vector<2x16x4xf32> -> vector<2x16x4xf32>
    "tpu.trace_stop"() : () -> ()
    %c4_153 = arith.constant 4 : index
    %c0_154 = arith.constant 0 : index
    %c0_155 = arith.constant 0 : index
    %234 = vector.load %arg10[%c4_153, %c0_154, %c0_155] : memref<8x1x4xf32, #tpu.memory_space<vmem>>, vector<1x1x4xf32>
    %235 = vector.shape_cast %234 : vector<1x1x4xf32> to vector<1x4xf32>
    %236 = vector.shape_cast %235 : vector<1x4xf32> to vector<1x1x4xf32>
    %237 = vector.broadcast %236 : vector<1x1x4xf32> to vector<2x16x4xf32>
    %238 = arith.addf %233, %237 : vector<2x16x4xf32>
    %239 = arith.truncf %222 : vector<2x16x4xf32> to vector<2x16x4xbf16>
    %240 = arith.truncf %230 : vector<2x16x4xf32> to vector<2x16x4xbf16>
    "tpu.trace_start"() <{level = 10 : i32, message = "ble,bme->blm"}> : () -> ()
    %cst_156 = arith.constant dense<0.000000e+00> : vector<2x16x16xf32>
    %241 = tpu.matmul %239, %240, %cst_156 {dimension_numbers = #tpu.dot_dimension_numbers<[2], [2], [1], [1], [0, 0, 0, 1, 1, 1], [0], [0]>} : vector<2x16x4xbf16>, vector<2x16x4xbf16>, vector<2x16x16xf32> -> vector<2x16x16xf32>
    "tpu.trace_stop"() : () -> ()
    %cst_157 = arith.constant 5.000000e-01 : f32
    %242 = vector.broadcast %cst_157 : f32 to vector<2x16x16xf32>
    %243 = arith.mulf %241, %242 : vector<2x16x16xf32>
    %cst_158 = arith.constant dense<0xFF800000> : vector<2x16xf32>
    %244 = vector.multi_reduction <maximumf>, %243, %cst_158 [2] : vector<2x16x16xf32> to vector<2x16xf32>
    %245 = vector.shape_cast %244 : vector<2x16xf32> to vector<2x16x1xf32>
    %246 = vector.broadcast %245 : vector<2x16x1xf32> to vector<2x16x16xf32>
    %247 = arith.subf %243, %246 : vector<2x16x16xf32>
    %248 = math.exp %247 : vector<2x16x16xf32>
    %cst_159 = arith.constant dense<0.000000e+00> : vector<2x16xf32>
    %249 = vector.multi_reduction <add>, %248, %cst_159 [2] : vector<2x16x16xf32> to vector<2x16xf32>
    %250 = vector.shape_cast %249 : vector<2x16xf32> to vector<2x16x1xf32>
    %251 = tpu.reciprocal %250 {approx = true} : vector<2x16x1xf32> -> vector<2x16x1xf32>
    %252 = vector.broadcast %251 : vector<2x16x1xf32> to vector<2x16x16xf32>
    %253 = arith.mulf %248, %252 : vector<2x16x16xf32>
    %254 = arith.truncf %253 : vector<2x16x16xf32> to vector<2x16x16xbf16>
    %255 = arith.truncf %238 : vector<2x16x4xf32> to vector<2x16x4xbf16>
    "tpu.trace_start"() <{level = 10 : i32, message = "blm,bme->ble"}> : () -> ()
    %cst_160 = arith.constant dense<0.000000e+00> : vector<2x16x4xf32>
    %256 = tpu.matmul %254, %255, %cst_160 {dimension_numbers = #tpu.dot_dimension_numbers<[2], [1], [1], [2], [0, 0, 0, 1, 1, 2], [0], [0]>} : vector<2x16x16xbf16>, vector<2x16x4xbf16>, vector<2x16x4xf32> -> vector<2x16x4xf32>
    "tpu.trace_stop"() : () -> ()
    %257 = arith.truncf %256 : vector<2x16x4xf32> to vector<2x16x4xbf16>
    %c4_161 = arith.constant 4 : index
    %c0_162 = arith.constant 0 : index
    %c0_163 = arith.constant 0 : index
    %258 = vector.load %arg11[%c4_161, %c0_162, %c0_163] : memref<8x4x32xbf16, #tpu.memory_space<vmem>>, vector<1x4x32xbf16>
    %259 = vector.shape_cast %258 : vector<1x4x32xbf16> to vector<4x32xbf16>
    "tpu.trace_start"() <{level = 10 : i32, message = "ble,ed->bld"}> : () -> ()
    %cst_164 = arith.constant dense<0.000000e+00> : vector<2x16x32xf32>
    %260 = tpu.matmul %257, %259, %cst_164 {dimension_numbers = #tpu.dot_dimension_numbers<[2], [0], [0, 1], [1], [0, 0, 0, 1, 1, 1], [], []>} : vector<2x16x4xbf16>, vector<4x32xbf16>, vector<2x16x32xf32> -> vector<2x16x32xf32>
    "tpu.trace_stop"() : () -> ()
    %261 = arith.addf %214, %260 : vector<2x16x32xf32>
    %c5 = arith.constant 5 : index
    %c0_165 = arith.constant 0 : index
    %c0_166 = arith.constant 0 : index
    %262 = vector.load %arg5[%c5, %c0_165, %c0_166] : memref<8x32x4xbf16, #tpu.memory_space<vmem>>, vector<1x32x4xbf16>
    %263 = vector.shape_cast %262 : vector<1x32x4xbf16> to vector<32x4xbf16>
    "tpu.trace_start"() <{level = 10 : i32, message = "bld,de->ble"}> : () -> ()
    %cst_167 = arith.constant dense<0.000000e+00> : vector<2x16x4xf32>
    %264 = tpu.matmul %25, %263, %cst_167 {dimension_numbers = #tpu.dot_dimension_numbers<[2], [0], [0, 1], [1], [0, 0, 0, 1, 1, 1], [], []>} : vector<2x16x32xbf16>, vector<32x4xbf16>, vector<2x16x4xf32> -> vector<2x16x4xf32>
    "tpu.trace_stop"() : () -> ()
    %c5_168 = arith.constant 5 : index
    %c0_169 = arith.constant 0 : index
    %c0_170 = arith.constant 0 : index
    %265 = vector.load %arg6[%c5_168, %c0_169, %c0_170] : memref<8x1x4xf32, #tpu.memory_space<vmem>>, vector<1x1x4xf32>
    %266 = vector.shape_cast %265 : vector<1x1x4xf32> to vector<1x4xf32>
    %267 = vector.shape_cast %266 : vector<1x4xf32> to vector<1x1x4xf32>
    %268 = vector.broadcast %267 : vector<1x1x4xf32> to vector<2x16x4xf32>
    %269 = arith.addf %264, %268 : vector<2x16x4xf32>
    %c5_171 = arith.constant 5 : index
    %c0_172 = arith.constant 0 : index
    %c0_173 = arith.constant 0 : index
    %270 = vector.load %arg7[%c5_171, %c0_172, %c0_173] : memref<8x32x4xbf16, #tpu.memory_space<vmem>>, vector<1x32x4xbf16>
    %271 = vector.shape_cast %270 : vector<1x32x4xbf16> to vector<32x4xbf16>
    "tpu.trace_start"() <{level = 10 : i32, message = "bld,de->ble"}> : () -> ()
    %cst_174 = arith.constant dense<0.000000e+00> : vector<2x16x4xf32>
    %272 = tpu.matmul %25, %271, %cst_174 {dimension_numbers = #tpu.dot_dimension_numbers<[2], [0], [0, 1], [1], [0, 0, 0, 1, 1, 1], [], []>} : vector<2x16x32xbf16>, vector<32x4xbf16>, vector<2x16x4xf32> -> vector<2x16x4xf32>
    "tpu.trace_stop"() : () -> ()
    %c5_175 = arith.constant 5 : index
    %c0_176 = arith.constant 0 : index
    %c0_177 = arith.constant 0 : index
    %273 = vector.load %arg8[%c5_175, %c0_176, %c0_177] : memref<8x1x4xf32, #tpu.memory_space<vmem>>, vector<1x1x4xf32>
    %274 = vector.shape_cast %273 : vector<1x1x4xf32> to vector<1x4xf32>
    %275 = vector.shape_cast %274 : vector<1x4xf32> to vector<1x1x4xf32>
    %276 = vector.broadcast %275 : vector<1x1x4xf32> to vector<2x16x4xf32>
    %277 = arith.addf %272, %276 : vector<2x16x4xf32>
    %c5_178 = arith.constant 5 : index
    %c0_179 = arith.constant 0 : index
    %c0_180 = arith.constant 0 : index
    %278 = vector.load %arg9[%c5_178, %c0_179, %c0_180] : memref<8x32x4xbf16, #tpu.memory_space<vmem>>, vector<1x32x4xbf16>
    %279 = vector.shape_cast %278 : vector<1x32x4xbf16> to vector<32x4xbf16>
    "tpu.trace_start"() <{level = 10 : i32, message = "bld,de->ble"}> : () -> ()
    %cst_181 = arith.constant dense<0.000000e+00> : vector<2x16x4xf32>
    %280 = tpu.matmul %25, %279, %cst_181 {dimension_numbers = #tpu.dot_dimension_numbers<[2], [0], [0, 1], [1], [0, 0, 0, 1, 1, 1], [], []>} : vector<2x16x32xbf16>, vector<32x4xbf16>, vector<2x16x4xf32> -> vector<2x16x4xf32>
    "tpu.trace_stop"() : () -> ()
    %c5_182 = arith.constant 5 : index
    %c0_183 = arith.constant 0 : index
    %c0_184 = arith.constant 0 : index
    %281 = vector.load %arg10[%c5_182, %c0_183, %c0_184] : memref<8x1x4xf32, #tpu.memory_space<vmem>>, vector<1x1x4xf32>
    %282 = vector.shape_cast %281 : vector<1x1x4xf32> to vector<1x4xf32>
    %283 = vector.shape_cast %282 : vector<1x4xf32> to vector<1x1x4xf32>
    %284 = vector.broadcast %283 : vector<1x1x4xf32> to vector<2x16x4xf32>
    %285 = arith.addf %280, %284 : vector<2x16x4xf32>
    %286 = arith.truncf %269 : vector<2x16x4xf32> to vector<2x16x4xbf16>
    %287 = arith.truncf %277 : vector<2x16x4xf32> to vector<2x16x4xbf16>
    "tpu.trace_start"() <{level = 10 : i32, message = "ble,bme->blm"}> : () -> ()
    %cst_185 = arith.constant dense<0.000000e+00> : vector<2x16x16xf32>
    %288 = tpu.matmul %286, %287, %cst_185 {dimension_numbers = #tpu.dot_dimension_numbers<[2], [2], [1], [1], [0, 0, 0, 1, 1, 1], [0], [0]>} : vector<2x16x4xbf16>, vector<2x16x4xbf16>, vector<2x16x16xf32> -> vector<2x16x16xf32>
    "tpu.trace_stop"() : () -> ()
    %cst_186 = arith.constant 5.000000e-01 : f32
    %289 = vector.broadcast %cst_186 : f32 to vector<2x16x16xf32>
    %290 = arith.mulf %288, %289 : vector<2x16x16xf32>
    %cst_187 = arith.constant dense<0xFF800000> : vector<2x16xf32>
    %291 = vector.multi_reduction <maximumf>, %290, %cst_187 [2] : vector<2x16x16xf32> to vector<2x16xf32>
    %292 = vector.shape_cast %291 : vector<2x16xf32> to vector<2x16x1xf32>
    %293 = vector.broadcast %292 : vector<2x16x1xf32> to vector<2x16x16xf32>
    %294 = arith.subf %290, %293 : vector<2x16x16xf32>
    %295 = math.exp %294 : vector<2x16x16xf32>
    %cst_188 = arith.constant dense<0.000000e+00> : vector<2x16xf32>
    %296 = vector.multi_reduction <add>, %295, %cst_188 [2] : vector<2x16x16xf32> to vector<2x16xf32>
    %297 = vector.shape_cast %296 : vector<2x16xf32> to vector<2x16x1xf32>
    %298 = tpu.reciprocal %297 {approx = true} : vector<2x16x1xf32> -> vector<2x16x1xf32>
    %299 = vector.broadcast %298 : vector<2x16x1xf32> to vector<2x16x16xf32>
    %300 = arith.mulf %295, %299 : vector<2x16x16xf32>
    %301 = arith.truncf %300 : vector<2x16x16xf32> to vector<2x16x16xbf16>
    %302 = arith.truncf %285 : vector<2x16x4xf32> to vector<2x16x4xbf16>
    "tpu.trace_start"() <{level = 10 : i32, message = "blm,bme->ble"}> : () -> ()
    %cst_189 = arith.constant dense<0.000000e+00> : vector<2x16x4xf32>
    %303 = tpu.matmul %301, %302, %cst_189 {dimension_numbers = #tpu.dot_dimension_numbers<[2], [1], [1], [2], [0, 0, 0, 1, 1, 2], [0], [0]>} : vector<2x16x16xbf16>, vector<2x16x4xbf16>, vector<2x16x4xf32> -> vector<2x16x4xf32>
    "tpu.trace_stop"() : () -> ()
    %304 = arith.truncf %303 : vector<2x16x4xf32> to vector<2x16x4xbf16>
    %c5_190 = arith.constant 5 : index
    %c0_191 = arith.constant 0 : index
    %c0_192 = arith.constant 0 : index
    %305 = vector.load %arg11[%c5_190, %c0_191, %c0_192] : memref<8x4x32xbf16, #tpu.memory_space<vmem>>, vector<1x4x32xbf16>
    %306 = vector.shape_cast %305 : vector<1x4x32xbf16> to vector<4x32xbf16>
    "tpu.trace_start"() <{level = 10 : i32, message = "ble,ed->bld"}> : () -> ()
    %cst_193 = arith.constant dense<0.000000e+00> : vector<2x16x32xf32>
    %307 = tpu.matmul %304, %306, %cst_193 {dimension_numbers = #tpu.dot_dimension_numbers<[2], [0], [0, 1], [1], [0, 0, 0, 1, 1, 1], [], []>} : vector<2x16x4xbf16>, vector<4x32xbf16>, vector<2x16x32xf32> -> vector<2x16x32xf32>
    "tpu.trace_stop"() : () -> ()
    %308 = arith.addf %261, %307 : vector<2x16x32xf32>
    %c6 = arith.constant 6 : index
    %c0_194 = arith.constant 0 : index
    %c0_195 = arith.constant 0 : index
    %309 = vector.load %arg5[%c6, %c0_194, %c0_195] : memref<8x32x4xbf16, #tpu.memory_space<vmem>>, vector<1x32x4xbf16>
    %310 = vector.shape_cast %309 : vector<1x32x4xbf16> to vector<32x4xbf16>
    "tpu.trace_start"() <{level = 10 : i32, message = "bld,de->ble"}> : () -> ()
    %cst_196 = arith.constant dense<0.000000e+00> : vector<2x16x4xf32>
    %311 = tpu.matmul %25, %310, %cst_196 {dimension_numbers = #tpu.dot_dimension_numbers<[2], [0], [0, 1], [1], [0, 0, 0, 1, 1, 1], [], []>} : vector<2x16x32xbf16>, vector<32x4xbf16>, vector<2x16x4xf32> -> vector<2x16x4xf32>
    "tpu.trace_stop"() : () -> ()
    %c6_197 = arith.constant 6 : index
    %c0_198 = arith.constant 0 : index
    %c0_199 = arith.constant 0 : index
    %312 = vector.load %arg6[%c6_197, %c0_198, %c0_199] : memref<8x1x4xf32, #tpu.memory_space<vmem>>, vector<1x1x4xf32>
    %313 = vector.shape_cast %312 : vector<1x1x4xf32> to vector<1x4xf32>
    %314 = vector.shape_cast %313 : vector<1x4xf32> to vector<1x1x4xf32>
    %315 = vector.broadcast %314 : vector<1x1x4xf32> to vector<2x16x4xf32>
    %316 = arith.addf %311, %315 : vector<2x16x4xf32>
    %c6_200 = arith.constant 6 : index
    %c0_201 = arith.constant 0 : index
    %c0_202 = arith.constant 0 : index
    %317 = vector.load %arg7[%c6_200, %c0_201, %c0_202] : memref<8x32x4xbf16, #tpu.memory_space<vmem>>, vector<1x32x4xbf16>
    %318 = vector.shape_cast %317 : vector<1x32x4xbf16> to vector<32x4xbf16>
    "tpu.trace_start"() <{level = 10 : i32, message = "bld,de->ble"}> : () -> ()
    %cst_203 = arith.constant dense<0.000000e+00> : vector<2x16x4xf32>
    %319 = tpu.matmul %25, %318, %cst_203 {dimension_numbers = #tpu.dot_dimension_numbers<[2], [0], [0, 1], [1], [0, 0, 0, 1, 1, 1], [], []>} : vector<2x16x32xbf16>, vector<32x4xbf16>, vector<2x16x4xf32> -> vector<2x16x4xf32>
    "tpu.trace_stop"() : () -> ()
    %c6_204 = arith.constant 6 : index
    %c0_205 = arith.constant 0 : index
    %c0_206 = arith.constant 0 : index
    %320 = vector.load %arg8[%c6_204, %c0_205, %c0_206] : memref<8x1x4xf32, #tpu.memory_space<vmem>>, vector<1x1x4xf32>
    %321 = vector.shape_cast %320 : vector<1x1x4xf32> to vector<1x4xf32>
    %322 = vector.shape_cast %321 : vector<1x4xf32> to vector<1x1x4xf32>
    %323 = vector.broadcast %322 : vector<1x1x4xf32> to vector<2x16x4xf32>
    %324 = arith.addf %319, %323 : vector<2x16x4xf32>
    %c6_207 = arith.constant 6 : index
    %c0_208 = arith.constant 0 : index
    %c0_209 = arith.constant 0 : index
    %325 = vector.load %arg9[%c6_207, %c0_208, %c0_209] : memref<8x32x4xbf16, #tpu.memory_space<vmem>>, vector<1x32x4xbf16>
    %326 = vector.shape_cast %325 : vector<1x32x4xbf16> to vector<32x4xbf16>
    "tpu.trace_start"() <{level = 10 : i32, message = "bld,de->ble"}> : () -> ()
    %cst_210 = arith.constant dense<0.000000e+00> : vector<2x16x4xf32>
    %327 = tpu.matmul %25, %326, %cst_210 {dimension_numbers = #tpu.dot_dimension_numbers<[2], [0], [0, 1], [1], [0, 0, 0, 1, 1, 1], [], []>} : vector<2x16x32xbf16>, vector<32x4xbf16>, vector<2x16x4xf32> -> vector<2x16x4xf32>
    "tpu.trace_stop"() : () -> ()
    %c6_211 = arith.constant 6 : index
    %c0_212 = arith.constant 0 : index
    %c0_213 = arith.constant 0 : index
    %328 = vector.load %arg10[%c6_211, %c0_212, %c0_213] : memref<8x1x4xf32, #tpu.memory_space<vmem>>, vector<1x1x4xf32>
    %329 = vector.shape_cast %328 : vector<1x1x4xf32> to vector<1x4xf32>
    %330 = vector.shape_cast %329 : vector<1x4xf32> to vector<1x1x4xf32>
    %331 = vector.broadcast %330 : vector<1x1x4xf32> to vector<2x16x4xf32>
    %332 = arith.addf %327, %331 : vector<2x16x4xf32>
    %333 = arith.truncf %316 : vector<2x16x4xf32> to vector<2x16x4xbf16>
    %334 = arith.truncf %324 : vector<2x16x4xf32> to vector<2x16x4xbf16>
    "tpu.trace_start"() <{level = 10 : i32, message = "ble,bme->blm"}> : () -> ()
    %cst_214 = arith.constant dense<0.000000e+00> : vector<2x16x16xf32>
    %335 = tpu.matmul %333, %334, %cst_214 {dimension_numbers = #tpu.dot_dimension_numbers<[2], [2], [1], [1], [0, 0, 0, 1, 1, 1], [0], [0]>} : vector<2x16x4xbf16>, vector<2x16x4xbf16>, vector<2x16x16xf32> -> vector<2x16x16xf32>
    "tpu.trace_stop"() : () -> ()
    %cst_215 = arith.constant 5.000000e-01 : f32
    %336 = vector.broadcast %cst_215 : f32 to vector<2x16x16xf32>
    %337 = arith.mulf %335, %336 : vector<2x16x16xf32>
    %cst_216 = arith.constant dense<0xFF800000> : vector<2x16xf32>
    %338 = vector.multi_reduction <maximumf>, %337, %cst_216 [2] : vector<2x16x16xf32> to vector<2x16xf32>
    %339 = vector.shape_cast %338 : vector<2x16xf32> to vector<2x16x1xf32>
    %340 = vector.broadcast %339 : vector<2x16x1xf32> to vector<2x16x16xf32>
    %341 = arith.subf %337, %340 : vector<2x16x16xf32>
    %342 = math.exp %341 : vector<2x16x16xf32>
    %cst_217 = arith.constant dense<0.000000e+00> : vector<2x16xf32>
    %343 = vector.multi_reduction <add>, %342, %cst_217 [2] : vector<2x16x16xf32> to vector<2x16xf32>
    %344 = vector.shape_cast %343 : vector<2x16xf32> to vector<2x16x1xf32>
    %345 = tpu.reciprocal %344 {approx = true} : vector<2x16x1xf32> -> vector<2x16x1xf32>
    %346 = vector.broadcast %345 : vector<2x16x1xf32> to vector<2x16x16xf32>
    %347 = arith.mulf %342, %346 : vector<2x16x16xf32>
    %348 = arith.truncf %347 : vector<2x16x16xf32> to vector<2x16x16xbf16>
    %349 = arith.truncf %332 : vector<2x16x4xf32> to vector<2x16x4xbf16>
    "tpu.trace_start"() <{level = 10 : i32, message = "blm,bme->ble"}> : () -> ()
    %cst_218 = arith.constant dense<0.000000e+00> : vector<2x16x4xf32>
    %350 = tpu.matmul %348, %349, %cst_218 {dimension_numbers = #tpu.dot_dimension_numbers<[2], [1], [1], [2], [0, 0, 0, 1, 1, 2], [0], [0]>} : vector<2x16x16xbf16>, vector<2x16x4xbf16>, vector<2x16x4xf32> -> vector<2x16x4xf32>
    "tpu.trace_stop"() : () -> ()
    %351 = arith.truncf %350 : vector<2x16x4xf32> to vector<2x16x4xbf16>
    %c6_219 = arith.constant 6 : index
    %c0_220 = arith.constant 0 : index
    %c0_221 = arith.constant 0 : index
    %352 = vector.load %arg11[%c6_219, %c0_220, %c0_221] : memref<8x4x32xbf16, #tpu.memory_space<vmem>>, vector<1x4x32xbf16>
    %353 = vector.shape_cast %352 : vector<1x4x32xbf16> to vector<4x32xbf16>
    "tpu.trace_start"() <{level = 10 : i32, message = "ble,ed->bld"}> : () -> ()
    %cst_222 = arith.constant dense<0.000000e+00> : vector<2x16x32xf32>
    %354 = tpu.matmul %351, %353, %cst_222 {dimension_numbers = #tpu.dot_dimension_numbers<[2], [0], [0, 1], [1], [0, 0, 0, 1, 1, 1], [], []>} : vector<2x16x4xbf16>, vector<4x32xbf16>, vector<2x16x32xf32> -> vector<2x16x32xf32>
    "tpu.trace_stop"() : () -> ()
    %355 = arith.addf %308, %354 : vector<2x16x32xf32>
    %c7 = arith.constant 7 : index
    %c0_223 = arith.constant 0 : index
    %c0_224 = arith.constant 0 : index
    %356 = vector.load %arg5[%c7, %c0_223, %c0_224] : memref<8x32x4xbf16, #tpu.memory_space<vmem>>, vector<1x32x4xbf16>
    %357 = vector.shape_cast %356 : vector<1x32x4xbf16> to vector<32x4xbf16>
    "tpu.trace_start"() <{level = 10 : i32, message = "bld,de->ble"}> : () -> ()
    %cst_225 = arith.constant dense<0.000000e+00> : vector<2x16x4xf32>
    %358 = tpu.matmul %25, %357, %cst_225 {dimension_numbers = #tpu.dot_dimension_numbers<[2], [0], [0, 1], [1], [0, 0, 0, 1, 1, 1], [], []>} : vector<2x16x32xbf16>, vector<32x4xbf16>, vector<2x16x4xf32> -> vector<2x16x4xf32>
    "tpu.trace_stop"() : () -> ()
    %c7_226 = arith.constant 7 : index
    %c0_227 = arith.constant 0 : index
    %c0_228 = arith.constant 0 : index
    %359 = vector.load %arg6[%c7_226, %c0_227, %c0_228] : memref<8x1x4xf32, #tpu.memory_space<vmem>>, vector<1x1x4xf32>
    %360 = vector.shape_cast %359 : vector<1x1x4xf32> to vector<1x4xf32>
    %361 = vector.shape_cast %360 : vector<1x4xf32> to vector<1x1x4xf32>
    %362 = vector.broadcast %361 : vector<1x1x4xf32> to vector<2x16x4xf32>
    %363 = arith.addf %358, %362 : vector<2x16x4xf32>
    %c7_229 = arith.constant 7 : index
    %c0_230 = arith.constant 0 : index
    %c0_231 = arith.constant 0 : index
    %364 = vector.load %arg7[%c7_229, %c0_230, %c0_231] : memref<8x32x4xbf16, #tpu.memory_space<vmem>>, vector<1x32x4xbf16>
    %365 = vector.shape_cast %364 : vector<1x32x4xbf16> to vector<32x4xbf16>
    "tpu.trace_start"() <{level = 10 : i32, message = "bld,de->ble"}> : () -> ()
    %cst_232 = arith.constant dense<0.000000e+00> : vector<2x16x4xf32>
    %366 = tpu.matmul %25, %365, %cst_232 {dimension_numbers = #tpu.dot_dimension_numbers<[2], [0], [0, 1], [1], [0, 0, 0, 1, 1, 1], [], []>} : vector<2x16x32xbf16>, vector<32x4xbf16>, vector<2x16x4xf32> -> vector<2x16x4xf32>
    "tpu.trace_stop"() : () -> ()
    %c7_233 = arith.constant 7 : index
    %c0_234 = arith.constant 0 : index
    %c0_235 = arith.constant 0 : index
    %367 = vector.load %arg8[%c7_233, %c0_234, %c0_235] : memref<8x1x4xf32, #tpu.memory_space<vmem>>, vector<1x1x4xf32>
    %368 = vector.shape_cast %367 : vector<1x1x4xf32> to vector<1x4xf32>
    %369 = vector.shape_cast %368 : vector<1x4xf32> to vector<1x1x4xf32>
    %370 = vector.broadcast %369 : vector<1x1x4xf32> to vector<2x16x4xf32>
    %371 = arith.addf %366, %370 : vector<2x16x4xf32>
    %c7_236 = arith.constant 7 : index
    %c0_237 = arith.constant 0 : index
    %c0_238 = arith.constant 0 : index
    %372 = vector.load %arg9[%c7_236, %c0_237, %c0_238] : memref<8x32x4xbf16, #tpu.memory_space<vmem>>, vector<1x32x4xbf16>
    %373 = vector.shape_cast %372 : vector<1x32x4xbf16> to vector<32x4xbf16>
    "tpu.trace_start"() <{level = 10 : i32, message = "bld,de->ble"}> : () -> ()
    %cst_239 = arith.constant dense<0.000000e+00> : vector<2x16x4xf32>
    %374 = tpu.matmul %25, %373, %cst_239 {dimension_numbers = #tpu.dot_dimension_numbers<[2], [0], [0, 1], [1], [0, 0, 0, 1, 1, 1], [], []>} : vector<2x16x32xbf16>, vector<32x4xbf16>, vector<2x16x4xf32> -> vector<2x16x4xf32>
    "tpu.trace_stop"() : () -> ()
    %c7_240 = arith.constant 7 : index
    %c0_241 = arith.constant 0 : index
    %c0_242 = arith.constant 0 : index
    %375 = vector.load %arg10[%c7_240, %c0_241, %c0_242] : memref<8x1x4xf32, #tpu.memory_space<vmem>>, vector<1x1x4xf32>
    %376 = vector.shape_cast %375 : vector<1x1x4xf32> to vector<1x4xf32>
    %377 = vector.shape_cast %376 : vector<1x4xf32> to vector<1x1x4xf32>
    %378 = vector.broadcast %377 : vector<1x1x4xf32> to vector<2x16x4xf32>
    %379 = arith.addf %374, %378 : vector<2x16x4xf32>
    %380 = arith.truncf %363 : vector<2x16x4xf32> to vector<2x16x4xbf16>
    %381 = arith.truncf %371 : vector<2x16x4xf32> to vector<2x16x4xbf16>
    "tpu.trace_start"() <{level = 10 : i32, message = "ble,bme->blm"}> : () -> ()
    %cst_243 = arith.constant dense<0.000000e+00> : vector<2x16x16xf32>
    %382 = tpu.matmul %380, %381, %cst_243 {dimension_numbers = #tpu.dot_dimension_numbers<[2], [2], [1], [1], [0, 0, 0, 1, 1, 1], [0], [0]>} : vector<2x16x4xbf16>, vector<2x16x4xbf16>, vector<2x16x16xf32> -> vector<2x16x16xf32>
    "tpu.trace_stop"() : () -> ()
    %cst_244 = arith.constant 5.000000e-01 : f32
    %383 = vector.broadcast %cst_244 : f32 to vector<2x16x16xf32>
    %384 = arith.mulf %382, %383 : vector<2x16x16xf32>
    %cst_245 = arith.constant dense<0xFF800000> : vector<2x16xf32>
    %385 = vector.multi_reduction <maximumf>, %384, %cst_245 [2] : vector<2x16x16xf32> to vector<2x16xf32>
    %386 = vector.shape_cast %385 : vector<2x16xf32> to vector<2x16x1xf32>
    %387 = vector.broadcast %386 : vector<2x16x1xf32> to vector<2x16x16xf32>
    %388 = arith.subf %384, %387 : vector<2x16x16xf32>
    %389 = math.exp %388 : vector<2x16x16xf32>
    %cst_246 = arith.constant dense<0.000000e+00> : vector<2x16xf32>
    %390 = vector.multi_reduction <add>, %389, %cst_246 [2] : vector<2x16x16xf32> to vector<2x16xf32>
    %391 = vector.shape_cast %390 : vector<2x16xf32> to vector<2x16x1xf32>
    %392 = tpu.reciprocal %391 {approx = true} : vector<2x16x1xf32> -> vector<2x16x1xf32>
    %393 = vector.broadcast %392 : vector<2x16x1xf32> to vector<2x16x16xf32>
    %394 = arith.mulf %389, %393 : vector<2x16x16xf32>
    %395 = arith.truncf %394 : vector<2x16x16xf32> to vector<2x16x16xbf16>
    %396 = arith.truncf %379 : vector<2x16x4xf32> to vector<2x16x4xbf16>
    "tpu.trace_start"() <{level = 10 : i32, message = "blm,bme->ble"}> : () -> ()
    %cst_247 = arith.constant dense<0.000000e+00> : vector<2x16x4xf32>
    %397 = tpu.matmul %395, %396, %cst_247 {dimension_numbers = #tpu.dot_dimension_numbers<[2], [1], [1], [2], [0, 0, 0, 1, 1, 2], [0], [0]>} : vector<2x16x16xbf16>, vector<2x16x4xbf16>, vector<2x16x4xf32> -> vector<2x16x4xf32>
    "tpu.trace_stop"() : () -> ()
    %398 = arith.truncf %397 : vector<2x16x4xf32> to vector<2x16x4xbf16>
    %c7_248 = arith.constant 7 : index
    %c0_249 = arith.constant 0 : index
    %c0_250 = arith.constant 0 : index
    %399 = vector.load %arg11[%c7_248, %c0_249, %c0_250] : memref<8x4x32xbf16, #tpu.memory_space<vmem>>, vector<1x4x32xbf16>
    %400 = vector.shape_cast %399 : vector<1x4x32xbf16> to vector<4x32xbf16>
    "tpu.trace_start"() <{level = 10 : i32, message = "ble,ed->bld"}> : () -> ()
    %cst_251 = arith.constant dense<0.000000e+00> : vector<2x16x32xf32>
    %401 = tpu.matmul %398, %400, %cst_251 {dimension_numbers = #tpu.dot_dimension_numbers<[2], [0], [0, 1], [1], [0, 0, 0, 1, 1, 1], [], []>} : vector<2x16x4xbf16>, vector<4x32xbf16>, vector<2x16x32xf32> -> vector<2x16x32xf32>
    "tpu.trace_stop"() : () -> ()
    %402 = arith.addf %355, %401 : vector<2x16x32xf32>
    %c0_252 = arith.constant 0 : index
    %c0_253 = arith.constant 0 : index
    %403 = vector.load %arg12[%c0_252, %c0_253] : memref<1x32xf32, #tpu.memory_space<vmem>>, vector<1x32xf32>
    %404 = vector.shape_cast %403 : vector<1x32xf32> to vector<1x1x32xf32>
    %405 = vector.broadcast %404 : vector<1x1x32xf32> to vector<2x16x32xf32>
    %406 = arith.addf %402, %405 : vector<2x16x32xf32>
    %407 = arith.addf %24, %406 : vector<2x16x32xf32>
    %c0_254 = arith.constant 0 : index
    %c0_255 = arith.constant 0 : index
    %408 = vector.load %arg13[%c0_254, %c0_255] : memref<2x32xf32, #tpu.memory_space<vmem>>, vector<1x32xf32>
    %c1_256 = arith.constant 1 : index
    %c0_257 = arith.constant 0 : index
    %409 = vector.load %arg13[%c1_256, %c0_257] : memref<2x32xf32, #tpu.memory_space<vmem>>, vector<1x32xf32>
    %cst_258 = arith.constant dense<0.000000e+00> : vector<2x16xf32>
    %410 = vector.multi_reduction <add>, %407, %cst_258 [2] : vector<2x16x32xf32> to vector<2x16xf32>
    %411 = vector.shape_cast %410 : vector<2x16xf32> to vector<2x16x1xf32>
    %cst_259 = arith.constant 3.200000e+01 : f32
    %412 = vector.broadcast %cst_259 : f32 to vector<2x16x1xf32>
    %413 = arith.divf %411, %412 : vector<2x16x1xf32>
    %414 = vector.broadcast %413 : vector<2x16x1xf32> to vector<2x16x32xf32>
    %415 = arith.subf %407, %414 : vector<2x16x32xf32>
    %416 = arith.mulf %415, %415 : vector<2x16x32xf32>
    %cst_260 = arith.constant dense<0.000000e+00> : vector<2x16xf32>
    %417 = vector.multi_reduction <add>, %416, %cst_260 [2] : vector<2x16x32xf32> to vector<2x16xf32>
    %418 = vector.shape_cast %417 : vector<2x16xf32> to vector<2x16x1xf32>
    %cst_261 = arith.constant 3.200000e+01 : f32
    %419 = vector.broadcast %cst_261 : f32 to vector<2x16x1xf32>
    %420 = arith.divf %418, %419 : vector<2x16x1xf32>
    %421 = vector.broadcast %413 : vector<2x16x1xf32> to vector<2x16x32xf32>
    %422 = arith.subf %407, %421 : vector<2x16x32xf32>
    %cst_262 = arith.constant 9.99999974E-6 : f32
    %423 = vector.broadcast %cst_262 : f32 to vector<2x16x1xf32>
    %424 = arith.addf %420, %423 : vector<2x16x1xf32>
    %425 = math.rsqrt %424 : vector<2x16x1xf32>
    %426 = vector.broadcast %425 : vector<2x16x1xf32> to vector<2x16x32xf32>
    %427 = arith.mulf %422, %426 : vector<2x16x32xf32>
    %428 = vector.shape_cast %408 : vector<1x32xf32> to vector<1x1x32xf32>
    %429 = vector.broadcast %428 : vector<1x1x32xf32> to vector<2x16x32xf32>
    %430 = arith.mulf %427, %429 : vector<2x16x32xf32>
    %431 = vector.shape_cast %409 : vector<1x32xf32> to vector<1x1x32xf32>
    %432 = vector.broadcast %431 : vector<1x1x32xf32> to vector<2x16x32xf32>
    %433 = arith.addf %430, %432 : vector<2x16x32xf32>
    %434 = arith.truncf %433 : vector<2x16x32xf32> to vector<2x16x32xbf16>
    %c0_263 = arith.constant 0 : index
    %c0_264 = arith.constant 0 : index
    %435 = vector.load %arg14[%c0_263, %c0_264] : memref<32x128xbf16, #tpu.memory_space<vmem>>, vector<32x128xbf16>
    "tpu.trace_start"() <{level = 10 : i32, message = "bld,de->ble"}> : () -> ()
    %cst_265 = arith.constant dense<0.000000e+00> : vector<2x16x128xf32>
    %436 = tpu.matmul %434, %435, %cst_265 {dimension_numbers = #tpu.dot_dimension_numbers<[2], [0], [0, 1], [1], [0, 0, 0, 1, 1, 1], [], []>} : vector<2x16x32xbf16>, vector<32x128xbf16>, vector<2x16x128xf32> -> vector<2x16x128xf32>
    "tpu.trace_stop"() : () -> ()
    %c0_266 = arith.constant 0 : index
    %c0_267 = arith.constant 0 : index
    %437 = vector.load %arg15[%c0_266, %c0_267] : memref<1x128xf32, #tpu.memory_space<vmem>>, vector<1x128xf32>
    %438 = vector.shape_cast %437 : vector<1x128xf32> to vector<1x1x128xf32>
    %439 = vector.broadcast %438 : vector<1x1x128xf32> to vector<2x16x128xf32>
    %440 = arith.addf %436, %439 : vector<2x16x128xf32>
    %cst_268 = arith.constant 5.000000e-01 : f32
    %441 = vector.broadcast %cst_268 : f32 to vector<2x16x128xf32>
    %442 = arith.mulf %441, %440 : vector<2x16x128xf32>
    %cst_269 = arith.constant 4.471500e-02 : f32
    %443 = vector.broadcast %cst_269 : f32 to vector<2x16x128xf32>
    %444 = arith.mulf %443, %440 : vector<2x16x128xf32>
    %445 = arith.mulf %444, %440 : vector<2x16x128xf32>
    %446 = arith.mulf %445, %440 : vector<2x16x128xf32>
    %447 = arith.addf %440, %446 : vector<2x16x128xf32>
    %cst_270 = arith.constant 0.797884583 : f32
    %448 = vector.broadcast %cst_270 : f32 to vector<2x16x128xf32>
    %449 = arith.mulf %448, %447 : vector<2x16x128xf32>
    %450 = math.tanh %449 : vector<2x16x128xf32>
    %cst_271 = arith.constant 1.000000e+00 : f32
    %451 = vector.broadcast %cst_271 : f32 to vector<2x16x128xf32>
    %452 = arith.addf %451, %450 : vector<2x16x128xf32>
    %453 = arith.mulf %442, %452 : vector<2x16x128xf32>
    %454 = arith.truncf %453 : vector<2x16x128xf32> to vector<2x16x128xbf16>
    %c0_272 = arith.constant 0 : index
    %c0_273 = arith.constant 0 : index
    %455 = vector.load %arg16[%c0_272, %c0_273] : memref<128x32xbf16, #tpu.memory_space<vmem>>, vector<128x32xbf16>
    "tpu.trace_start"() <{level = 10 : i32, message = "ble,ed->bld"}> : () -> ()
    %cst_274 = arith.constant dense<0.000000e+00> : vector<2x16x32xf32>
    %456 = tpu.matmul %454, %455, %cst_274 {dimension_numbers = #tpu.dot_dimension_numbers<[2], [0], [0, 1], [1], [0, 0, 0, 1, 1, 1], [], []>} : vector<2x16x128xbf16>, vector<128x32xbf16>, vector<2x16x32xf32> -> vector<2x16x32xf32>
    "tpu.trace_stop"() : () -> ()
    %c0_275 = arith.constant 0 : index
    %c0_276 = arith.constant 0 : index
    %457 = vector.load %arg17[%c0_275, %c0_276] : memref<1x32xf32, #tpu.memory_space<vmem>>, vector<1x32xf32>
    %458 = vector.shape_cast %457 : vector<1x32xf32> to vector<1x1x32xf32>
    %459 = vector.broadcast %458 : vector<1x1x32xf32> to vector<2x16x32xf32>
    %460 = arith.addf %456, %459 : vector<2x16x32xf32>
    %461 = arith.addf %433, %460 : vector<2x16x32xf32>
    %c0_277 = arith.constant 0 : index
    %c0_278 = arith.constant 0 : index
    %462 = vector.load %arg18[%c0_277, %c0_278] : memref<2x32xf32, #tpu.memory_space<vmem>>, vector<1x32xf32>
    %c1_279 = arith.constant 1 : index
    %c0_280 = arith.constant 0 : index
    %463 = vector.load %arg18[%c1_279, %c0_280] : memref<2x32xf32, #tpu.memory_space<vmem>>, vector<1x32xf32>
    %cst_281 = arith.constant dense<0.000000e+00> : vector<2x16xf32>
    %464 = vector.multi_reduction <add>, %461, %cst_281 [2] : vector<2x16x32xf32> to vector<2x16xf32>
    %465 = vector.shape_cast %464 : vector<2x16xf32> to vector<2x16x1xf32>
    %cst_282 = arith.constant 3.200000e+01 : f32
    %466 = vector.broadcast %cst_282 : f32 to vector<2x16x1xf32>
    %467 = arith.divf %465, %466 : vector<2x16x1xf32>
    %468 = vector.broadcast %467 : vector<2x16x1xf32> to vector<2x16x32xf32>
    %469 = arith.subf %461, %468 : vector<2x16x32xf32>
    %470 = arith.mulf %469, %469 : vector<2x16x32xf32>
    %cst_283 = arith.constant dense<0.000000e+00> : vector<2x16xf32>
    %471 = vector.multi_reduction <add>, %470, %cst_283 [2] : vector<2x16x32xf32> to vector<2x16xf32>
    %472 = vector.shape_cast %471 : vector<2x16xf32> to vector<2x16x1xf32>
    %cst_284 = arith.constant 3.200000e+01 : f32
    %473 = vector.broadcast %cst_284 : f32 to vector<2x16x1xf32>
    %474 = arith.divf %472, %473 : vector<2x16x1xf32>
    %475 = vector.broadcast %467 : vector<2x16x1xf32> to vector<2x16x32xf32>
    %476 = arith.subf %461, %475 : vector<2x16x32xf32>
    %cst_285 = arith.constant 9.99999974E-6 : f32
    %477 = vector.broadcast %cst_285 : f32 to vector<2x16x1xf32>
    %478 = arith.addf %474, %477 : vector<2x16x1xf32>
    %479 = math.rsqrt %478 : vector<2x16x1xf32>
    %480 = vector.broadcast %479 : vector<2x16x1xf32> to vector<2x16x32xf32>
    %481 = arith.mulf %476, %480 : vector<2x16x32xf32>
    %482 = vector.shape_cast %462 : vector<1x32xf32> to vector<1x1x32xf32>
    %483 = vector.broadcast %482 : vector<1x1x32xf32> to vector<2x16x32xf32>
    %484 = arith.mulf %481, %483 : vector<2x16x32xf32>
    %485 = vector.shape_cast %463 : vector<1x32xf32> to vector<1x1x32xf32>
    %486 = vector.broadcast %485 : vector<1x1x32xf32> to vector<2x16x32xf32>
    %487 = arith.addf %484, %486 : vector<2x16x32xf32>
    %488 = arith.truncf %487 : vector<2x16x32xf32> to vector<2x16x32xbf16>
    %cst_286 = arith.constant 0.000000e+00 : f32
    %489 = vector.broadcast %cst_286 : f32 to vector<2x16x32xf32>
    %c0_287 = arith.constant 0 : index
    %c0_288 = arith.constant 0 : index
    %c0_289 = arith.constant 0 : index
    %490 = vector.load %arg19[%c0_287, %c0_288, %c0_289] : memref<8x32x4xbf16, #tpu.memory_space<vmem>>, vector<1x32x4xbf16>
    %491 = vector.shape_cast %490 : vector<1x32x4xbf16> to vector<32x4xbf16>
    "tpu.trace_start"() <{level = 10 : i32, message = "bld,de->ble"}> : () -> ()
    %cst_290 = arith.constant dense<0.000000e+00> : vector<2x16x4xf32>
    %492 = tpu.matmul %488, %491, %cst_290 {dimension_numbers = #tpu.dot_dimension_numbers<[2], [0], [0, 1], [1], [0, 0, 0, 1, 1, 1], [], []>} : vector<2x16x32xbf16>, vector<32x4xbf16>, vector<2x16x4xf32> -> vector<2x16x4xf32>
    "tpu.trace_stop"() : () -> ()
    %c0_291 = arith.constant 0 : index
    %c0_292 = arith.constant 0 : index
    %c0_293 = arith.constant 0 : index
    %493 = vector.load %arg20[%c0_291, %c0_292, %c0_293] : memref<8x1x4xf32, #tpu.memory_space<vmem>>, vector<1x1x4xf32>
    %494 = vector.shape_cast %493 : vector<1x1x4xf32> to vector<1x4xf32>
    %495 = vector.shape_cast %494 : vector<1x4xf32> to vector<1x1x4xf32>
    %496 = vector.broadcast %495 : vector<1x1x4xf32> to vector<2x16x4xf32>
    %497 = arith.addf %492, %496 : vector<2x16x4xf32>
    %c0_294 = arith.constant 0 : index
    %c0_295 = arith.constant 0 : index
    %c0_296 = arith.constant 0 : index
    %498 = vector.load %arg21[%c0_294, %c0_295, %c0_296] : memref<8x32x4xbf16, #tpu.memory_space<vmem>>, vector<1x32x4xbf16>
    %499 = vector.shape_cast %498 : vector<1x32x4xbf16> to vector<32x4xbf16>
    "tpu.trace_start"() <{level = 10 : i32, message = "bld,de->ble"}> : () -> ()
    %cst_297 = arith.constant dense<0.000000e+00> : vector<2x16x4xf32>
    %500 = tpu.matmul %488, %499, %cst_297 {dimension_numbers = #tpu.dot_dimension_numbers<[2], [0], [0, 1], [1], [0, 0, 0, 1, 1, 1], [], []>} : vector<2x16x32xbf16>, vector<32x4xbf16>, vector<2x16x4xf32> -> vector<2x16x4xf32>
    "tpu.trace_stop"() : () -> ()
    %c0_298 = arith.constant 0 : index
    %c0_299 = arith.constant 0 : index
    %c0_300 = arith.constant 0 : index
    %501 = vector.load %arg22[%c0_298, %c0_299, %c0_300] : memref<8x1x4xf32, #tpu.memory_space<vmem>>, vector<1x1x4xf32>
    %502 = vector.shape_cast %501 : vector<1x1x4xf32> to vector<1x4xf32>
    %503 = vector.shape_cast %502 : vector<1x4xf32> to vector<1x1x4xf32>
    %504 = vector.broadcast %503 : vector<1x1x4xf32> to vector<2x16x4xf32>
    %505 = arith.addf %500, %504 : vector<2x16x4xf32>
    %c0_301 = arith.constant 0 : index
    %c0_302 = arith.constant 0 : index
    %c0_303 = arith.constant 0 : index
    %506 = vector.load %arg23[%c0_301, %c0_302, %c0_303] : memref<8x32x4xbf16, #tpu.memory_space<vmem>>, vector<1x32x4xbf16>
    %507 = vector.shape_cast %506 : vector<1x32x4xbf16> to vector<32x4xbf16>
    "tpu.trace_start"() <{level = 10 : i32, message = "bld,de->ble"}> : () -> ()
    %cst_304 = arith.constant dense<0.000000e+00> : vector<2x16x4xf32>
    %508 = tpu.matmul %488, %507, %cst_304 {dimension_numbers = #tpu.dot_dimension_numbers<[2], [0], [0, 1], [1], [0, 0, 0, 1, 1, 1], [], []>} : vector<2x16x32xbf16>, vector<32x4xbf16>, vector<2x16x4xf32> -> vector<2x16x4xf32>
    "tpu.trace_stop"() : () -> ()
    %c0_305 = arith.constant 0 : index
    %c0_306 = arith.constant 0 : index
    %c0_307 = arith.constant 0 : index
    %509 = vector.load %arg24[%c0_305, %c0_306, %c0_307] : memref<8x1x4xf32, #tpu.memory_space<vmem>>, vector<1x1x4xf32>
    %510 = vector.shape_cast %509 : vector<1x1x4xf32> to vector<1x4xf32>
    %511 = vector.shape_cast %510 : vector<1x4xf32> to vector<1x1x4xf32>
    %512 = vector.broadcast %511 : vector<1x1x4xf32> to vector<2x16x4xf32>
    %513 = arith.addf %508, %512 : vector<2x16x4xf32>
    %514 = arith.truncf %497 : vector<2x16x4xf32> to vector<2x16x4xbf16>
    %515 = arith.truncf %505 : vector<2x16x4xf32> to vector<2x16x4xbf16>
    "tpu.trace_start"() <{level = 10 : i32, message = "ble,bme->blm"}> : () -> ()
    %cst_308 = arith.constant dense<0.000000e+00> : vector<2x16x16xf32>
    %516 = tpu.matmul %514, %515, %cst_308 {dimension_numbers = #tpu.dot_dimension_numbers<[2], [2], [1], [1], [0, 0, 0, 1, 1, 1], [0], [0]>} : vector<2x16x4xbf16>, vector<2x16x4xbf16>, vector<2x16x16xf32> -> vector<2x16x16xf32>
    "tpu.trace_stop"() : () -> ()
    %cst_309 = arith.constant 5.000000e-01 : f32
    %517 = vector.broadcast %cst_309 : f32 to vector<2x16x16xf32>
    %518 = arith.mulf %516, %517 : vector<2x16x16xf32>
    %cst_310 = arith.constant dense<0xFF800000> : vector<2x16xf32>
    %519 = vector.multi_reduction <maximumf>, %518, %cst_310 [2] : vector<2x16x16xf32> to vector<2x16xf32>
    %520 = vector.shape_cast %519 : vector<2x16xf32> to vector<2x16x1xf32>
    %521 = vector.broadcast %520 : vector<2x16x1xf32> to vector<2x16x16xf32>
    %522 = arith.subf %518, %521 : vector<2x16x16xf32>
    %523 = math.exp %522 : vector<2x16x16xf32>
    %cst_311 = arith.constant dense<0.000000e+00> : vector<2x16xf32>
    %524 = vector.multi_reduction <add>, %523, %cst_311 [2] : vector<2x16x16xf32> to vector<2x16xf32>
    %525 = vector.shape_cast %524 : vector<2x16xf32> to vector<2x16x1xf32>
    %526 = tpu.reciprocal %525 {approx = true} : vector<2x16x1xf32> -> vector<2x16x1xf32>
    %527 = vector.broadcast %526 : vector<2x16x1xf32> to vector<2x16x16xf32>
    %528 = arith.mulf %523, %527 : vector<2x16x16xf32>
    %529 = arith.truncf %528 : vector<2x16x16xf32> to vector<2x16x16xbf16>
    %530 = arith.truncf %513 : vector<2x16x4xf32> to vector<2x16x4xbf16>
    "tpu.trace_start"() <{level = 10 : i32, message = "blm,bme->ble"}> : () -> ()
    %cst_312 = arith.constant dense<0.000000e+00> : vector<2x16x4xf32>
    %531 = tpu.matmul %529, %530, %cst_312 {dimension_numbers = #tpu.dot_dimension_numbers<[2], [1], [1], [2], [0, 0, 0, 1, 1, 2], [0], [0]>} : vector<2x16x16xbf16>, vector<2x16x4xbf16>, vector<2x16x4xf32> -> vector<2x16x4xf32>
    "tpu.trace_stop"() : () -> ()
    %532 = arith.truncf %531 : vector<2x16x4xf32> to vector<2x16x4xbf16>
    %c0_313 = arith.constant 0 : index
    %c0_314 = arith.constant 0 : index
    %c0_315 = arith.constant 0 : index
    %533 = vector.load %arg25[%c0_313, %c0_314, %c0_315] : memref<8x4x32xbf16, #tpu.memory_space<vmem>>, vector<1x4x32xbf16>
    %534 = vector.shape_cast %533 : vector<1x4x32xbf16> to vector<4x32xbf16>
    "tpu.trace_start"() <{level = 10 : i32, message = "ble,ed->bld"}> : () -> ()
    %cst_316 = arith.constant dense<0.000000e+00> : vector<2x16x32xf32>
    %535 = tpu.matmul %532, %534, %cst_316 {dimension_numbers = #tpu.dot_dimension_numbers<[2], [0], [0, 1], [1], [0, 0, 0, 1, 1, 1], [], []>} : vector<2x16x4xbf16>, vector<4x32xbf16>, vector<2x16x32xf32> -> vector<2x16x32xf32>
    "tpu.trace_stop"() : () -> ()
    %536 = arith.addf %489, %535 : vector<2x16x32xf32>
    %c1_317 = arith.constant 1 : index
    %c0_318 = arith.constant 0 : index
    %c0_319 = arith.constant 0 : index
    %537 = vector.load %arg19[%c1_317, %c0_318, %c0_319] : memref<8x32x4xbf16, #tpu.memory_space<vmem>>, vector<1x32x4xbf16>
    %538 = vector.shape_cast %537 : vector<1x32x4xbf16> to vector<32x4xbf16>
    "tpu.trace_start"() <{level = 10 : i32, message = "bld,de->ble"}> : () -> ()
    %cst_320 = arith.constant dense<0.000000e+00> : vector<2x16x4xf32>
    %539 = tpu.matmul %488, %538, %cst_320 {dimension_numbers = #tpu.dot_dimension_numbers<[2], [0], [0, 1], [1], [0, 0, 0, 1, 1, 1], [], []>} : vector<2x16x32xbf16>, vector<32x4xbf16>, vector<2x16x4xf32> -> vector<2x16x4xf32>
    "tpu.trace_stop"() : () -> ()
    %c1_321 = arith.constant 1 : index
    %c0_322 = arith.constant 0 : index
    %c0_323 = arith.constant 0 : index
    %540 = vector.load %arg20[%c1_321, %c0_322, %c0_323] : memref<8x1x4xf32, #tpu.memory_space<vmem>>, vector<1x1x4xf32>
    %541 = vector.shape_cast %540 : vector<1x1x4xf32> to vector<1x4xf32>
    %542 = vector.shape_cast %541 : vector<1x4xf32> to vector<1x1x4xf32>
    %543 = vector.broadcast %542 : vector<1x1x4xf32> to vector<2x16x4xf32>
    %544 = arith.addf %539, %543 : vector<2x16x4xf32>
    %c1_324 = arith.constant 1 : index
    %c0_325 = arith.constant 0 : index
    %c0_326 = arith.constant 0 : index
    %545 = vector.load %arg21[%c1_324, %c0_325, %c0_326] : memref<8x32x4xbf16, #tpu.memory_space<vmem>>, vector<1x32x4xbf16>
    %546 = vector.shape_cast %545 : vector<1x32x4xbf16> to vector<32x4xbf16>
    "tpu.trace_start"() <{level = 10 : i32, message = "bld,de->ble"}> : () -> ()
    %cst_327 = arith.constant dense<0.000000e+00> : vector<2x16x4xf32>
    %547 = tpu.matmul %488, %546, %cst_327 {dimension_numbers = #tpu.dot_dimension_numbers<[2], [0], [0, 1], [1], [0, 0, 0, 1, 1, 1], [], []>} : vector<2x16x32xbf16>, vector<32x4xbf16>, vector<2x16x4xf32> -> vector<2x16x4xf32>
    "tpu.trace_stop"() : () -> ()
    %c1_328 = arith.constant 1 : index
    %c0_329 = arith.constant 0 : index
    %c0_330 = arith.constant 0 : index
    %548 = vector.load %arg22[%c1_328, %c0_329, %c0_330] : memref<8x1x4xf32, #tpu.memory_space<vmem>>, vector<1x1x4xf32>
    %549 = vector.shape_cast %548 : vector<1x1x4xf32> to vector<1x4xf32>
    %550 = vector.shape_cast %549 : vector<1x4xf32> to vector<1x1x4xf32>
    %551 = vector.broadcast %550 : vector<1x1x4xf32> to vector<2x16x4xf32>
    %552 = arith.addf %547, %551 : vector<2x16x4xf32>
    %c1_331 = arith.constant 1 : index
    %c0_332 = arith.constant 0 : index
    %c0_333 = arith.constant 0 : index
    %553 = vector.load %arg23[%c1_331, %c0_332, %c0_333] : memref<8x32x4xbf16, #tpu.memory_space<vmem>>, vector<1x32x4xbf16>
    %554 = vector.shape_cast %553 : vector<1x32x4xbf16> to vector<32x4xbf16>
    "tpu.trace_start"() <{level = 10 : i32, message = "bld,de->ble"}> : () -> ()
    %cst_334 = arith.constant dense<0.000000e+00> : vector<2x16x4xf32>
    %555 = tpu.matmul %488, %554, %cst_334 {dimension_numbers = #tpu.dot_dimension_numbers<[2], [0], [0, 1], [1], [0, 0, 0, 1, 1, 1], [], []>} : vector<2x16x32xbf16>, vector<32x4xbf16>, vector<2x16x4xf32> -> vector<2x16x4xf32>
    "tpu.trace_stop"() : () -> ()
    %c1_335 = arith.constant 1 : index
    %c0_336 = arith.constant 0 : index
    %c0_337 = arith.constant 0 : index
    %556 = vector.load %arg24[%c1_335, %c0_336, %c0_337] : memref<8x1x4xf32, #tpu.memory_space<vmem>>, vector<1x1x4xf32>
    %557 = vector.shape_cast %556 : vector<1x1x4xf32> to vector<1x4xf32>
    %558 = vector.shape_cast %557 : vector<1x4xf32> to vector<1x1x4xf32>
    %559 = vector.broadcast %558 : vector<1x1x4xf32> to vector<2x16x4xf32>
    %560 = arith.addf %555, %559 : vector<2x16x4xf32>
    %561 = arith.truncf %544 : vector<2x16x4xf32> to vector<2x16x4xbf16>
    %562 = arith.truncf %552 : vector<2x16x4xf32> to vector<2x16x4xbf16>
    "tpu.trace_start"() <{level = 10 : i32, message = "ble,bme->blm"}> : () -> ()
    %cst_338 = arith.constant dense<0.000000e+00> : vector<2x16x16xf32>
    %563 = tpu.matmul %561, %562, %cst_338 {dimension_numbers = #tpu.dot_dimension_numbers<[2], [2], [1], [1], [0, 0, 0, 1, 1, 1], [0], [0]>} : vector<2x16x4xbf16>, vector<2x16x4xbf16>, vector<2x16x16xf32> -> vector<2x16x16xf32>
    "tpu.trace_stop"() : () -> ()
    %cst_339 = arith.constant 5.000000e-01 : f32
    %564 = vector.broadcast %cst_339 : f32 to vector<2x16x16xf32>
    %565 = arith.mulf %563, %564 : vector<2x16x16xf32>
    %cst_340 = arith.constant dense<0xFF800000> : vector<2x16xf32>
    %566 = vector.multi_reduction <maximumf>, %565, %cst_340 [2] : vector<2x16x16xf32> to vector<2x16xf32>
    %567 = vector.shape_cast %566 : vector<2x16xf32> to vector<2x16x1xf32>
    %568 = vector.broadcast %567 : vector<2x16x1xf32> to vector<2x16x16xf32>
    %569 = arith.subf %565, %568 : vector<2x16x16xf32>
    %570 = math.exp %569 : vector<2x16x16xf32>
    %cst_341 = arith.constant dense<0.000000e+00> : vector<2x16xf32>
    %571 = vector.multi_reduction <add>, %570, %cst_341 [2] : vector<2x16x16xf32> to vector<2x16xf32>
    %572 = vector.shape_cast %571 : vector<2x16xf32> to vector<2x16x1xf32>
    %573 = tpu.reciprocal %572 {approx = true} : vector<2x16x1xf32> -> vector<2x16x1xf32>
    %574 = vector.broadcast %573 : vector<2x16x1xf32> to vector<2x16x16xf32>
    %575 = arith.mulf %570, %574 : vector<2x16x16xf32>
    %576 = arith.truncf %575 : vector<2x16x16xf32> to vector<2x16x16xbf16>
    %577 = arith.truncf %560 : vector<2x16x4xf32> to vector<2x16x4xbf16>
    "tpu.trace_start"() <{level = 10 : i32, message = "blm,bme->ble"}> : () -> ()
    %cst_342 = arith.constant dense<0.000000e+00> : vector<2x16x4xf32>
    %578 = tpu.matmul %576, %577, %cst_342 {dimension_numbers = #tpu.dot_dimension_numbers<[2], [1], [1], [2], [0, 0, 0, 1, 1, 2], [0], [0]>} : vector<2x16x16xbf16>, vector<2x16x4xbf16>, vector<2x16x4xf32> -> vector<2x16x4xf32>
    "tpu.trace_stop"() : () -> ()
    %579 = arith.truncf %578 : vector<2x16x4xf32> to vector<2x16x4xbf16>
    %c1_343 = arith.constant 1 : index
    %c0_344 = arith.constant 0 : index
    %c0_345 = arith.constant 0 : index
    %580 = vector.load %arg25[%c1_343, %c0_344, %c0_345] : memref<8x4x32xbf16, #tpu.memory_space<vmem>>, vector<1x4x32xbf16>
    %581 = vector.shape_cast %580 : vector<1x4x32xbf16> to vector<4x32xbf16>
    "tpu.trace_start"() <{level = 10 : i32, message = "ble,ed->bld"}> : () -> ()
    %cst_346 = arith.constant dense<0.000000e+00> : vector<2x16x32xf32>
    %582 = tpu.matmul %579, %581, %cst_346 {dimension_numbers = #tpu.dot_dimension_numbers<[2], [0], [0, 1], [1], [0, 0, 0, 1, 1, 1], [], []>} : vector<2x16x4xbf16>, vector<4x32xbf16>, vector<2x16x32xf32> -> vector<2x16x32xf32>
    "tpu.trace_stop"() : () -> ()
    %583 = arith.addf %536, %582 : vector<2x16x32xf32>
    %c2_347 = arith.constant 2 : index
    %c0_348 = arith.constant 0 : index
    %c0_349 = arith.constant 0 : index
    %584 = vector.load %arg19[%c2_347, %c0_348, %c0_349] : memref<8x32x4xbf16, #tpu.memory_space<vmem>>, vector<1x32x4xbf16>
    %585 = vector.shape_cast %584 : vector<1x32x4xbf16> to vector<32x4xbf16>
    "tpu.trace_start"() <{level = 10 : i32, message = "bld,de->ble"}> : () -> ()
    %cst_350 = arith.constant dense<0.000000e+00> : vector<2x16x4xf32>
    %586 = tpu.matmul %488, %585, %cst_350 {dimension_numbers = #tpu.dot_dimension_numbers<[2], [0], [0, 1], [1], [0, 0, 0, 1, 1, 1], [], []>} : vector<2x16x32xbf16>, vector<32x4xbf16>, vector<2x16x4xf32> -> vector<2x16x4xf32>
    "tpu.trace_stop"() : () -> ()
    %c2_351 = arith.constant 2 : index
    %c0_352 = arith.constant 0 : index
    %c0_353 = arith.constant 0 : index
    %587 = vector.load %arg20[%c2_351, %c0_352, %c0_353] : memref<8x1x4xf32, #tpu.memory_space<vmem>>, vector<1x1x4xf32>
    %588 = vector.shape_cast %587 : vector<1x1x4xf32> to vector<1x4xf32>
    %589 = vector.shape_cast %588 : vector<1x4xf32> to vector<1x1x4xf32>
    %590 = vector.broadcast %589 : vector<1x1x4xf32> to vector<2x16x4xf32>
    %591 = arith.addf %586, %590 : vector<2x16x4xf32>
    %c2_354 = arith.constant 2 : index
    %c0_355 = arith.constant 0 : index
    %c0_356 = arith.constant 0 : index
    %592 = vector.load %arg21[%c2_354, %c0_355, %c0_356] : memref<8x32x4xbf16, #tpu.memory_space<vmem>>, vector<1x32x4xbf16>
    %593 = vector.shape_cast %592 : vector<1x32x4xbf16> to vector<32x4xbf16>
    "tpu.trace_start"() <{level = 10 : i32, message = "bld,de->ble"}> : () -> ()
    %cst_357 = arith.constant dense<0.000000e+00> : vector<2x16x4xf32>
    %594 = tpu.matmul %488, %593, %cst_357 {dimension_numbers = #tpu.dot_dimension_numbers<[2], [0], [0, 1], [1], [0, 0, 0, 1, 1, 1], [], []>} : vector<2x16x32xbf16>, vector<32x4xbf16>, vector<2x16x4xf32> -> vector<2x16x4xf32>
    "tpu.trace_stop"() : () -> ()
    %c2_358 = arith.constant 2 : index
    %c0_359 = arith.constant 0 : index
    %c0_360 = arith.constant 0 : index
    %595 = vector.load %arg22[%c2_358, %c0_359, %c0_360] : memref<8x1x4xf32, #tpu.memory_space<vmem>>, vector<1x1x4xf32>
    %596 = vector.shape_cast %595 : vector<1x1x4xf32> to vector<1x4xf32>
    %597 = vector.shape_cast %596 : vector<1x4xf32> to vector<1x1x4xf32>
    %598 = vector.broadcast %597 : vector<1x1x4xf32> to vector<2x16x4xf32>
    %599 = arith.addf %594, %598 : vector<2x16x4xf32>
    %c2_361 = arith.constant 2 : index
    %c0_362 = arith.constant 0 : index
    %c0_363 = arith.constant 0 : index
    %600 = vector.load %arg23[%c2_361, %c0_362, %c0_363] : memref<8x32x4xbf16, #tpu.memory_space<vmem>>, vector<1x32x4xbf16>
    %601 = vector.shape_cast %600 : vector<1x32x4xbf16> to vector<32x4xbf16>
    "tpu.trace_start"() <{level = 10 : i32, message = "bld,de->ble"}> : () -> ()
    %cst_364 = arith.constant dense<0.000000e+00> : vector<2x16x4xf32>
    %602 = tpu.matmul %488, %601, %cst_364 {dimension_numbers = #tpu.dot_dimension_numbers<[2], [0], [0, 1], [1], [0, 0, 0, 1, 1, 1], [], []>} : vector<2x16x32xbf16>, vector<32x4xbf16>, vector<2x16x4xf32> -> vector<2x16x4xf32>
    "tpu.trace_stop"() : () -> ()
    %c2_365 = arith.constant 2 : index
    %c0_366 = arith.constant 0 : index
    %c0_367 = arith.constant 0 : index
    %603 = vector.load %arg24[%c2_365, %c0_366, %c0_367] : memref<8x1x4xf32, #tpu.memory_space<vmem>>, vector<1x1x4xf32>
    %604 = vector.shape_cast %603 : vector<1x1x4xf32> to vector<1x4xf32>
    %605 = vector.shape_cast %604 : vector<1x4xf32> to vector<1x1x4xf32>
    %606 = vector.broadcast %605 : vector<1x1x4xf32> to vector<2x16x4xf32>
    %607 = arith.addf %602, %606 : vector<2x16x4xf32>
    %608 = arith.truncf %591 : vector<2x16x4xf32> to vector<2x16x4xbf16>
    %609 = arith.truncf %599 : vector<2x16x4xf32> to vector<2x16x4xbf16>
    "tpu.trace_start"() <{level = 10 : i32, message = "ble,bme->blm"}> : () -> ()
    %cst_368 = arith.constant dense<0.000000e+00> : vector<2x16x16xf32>
    %610 = tpu.matmul %608, %609, %cst_368 {dimension_numbers = #tpu.dot_dimension_numbers<[2], [2], [1], [1], [0, 0, 0, 1, 1, 1], [0], [0]>} : vector<2x16x4xbf16>, vector<2x16x4xbf16>, vector<2x16x16xf32> -> vector<2x16x16xf32>
    "tpu.trace_stop"() : () -> ()
    %cst_369 = arith.constant 5.000000e-01 : f32
    %611 = vector.broadcast %cst_369 : f32 to vector<2x16x16xf32>
    %612 = arith.mulf %610, %611 : vector<2x16x16xf32>
    %cst_370 = arith.constant dense<0xFF800000> : vector<2x16xf32>
    %613 = vector.multi_reduction <maximumf>, %612, %cst_370 [2] : vector<2x16x16xf32> to vector<2x16xf32>
    %614 = vector.shape_cast %613 : vector<2x16xf32> to vector<2x16x1xf32>
    %615 = vector.broadcast %614 : vector<2x16x1xf32> to vector<2x16x16xf32>
    %616 = arith.subf %612, %615 : vector<2x16x16xf32>
    %617 = math.exp %616 : vector<2x16x16xf32>
    %cst_371 = arith.constant dense<0.000000e+00> : vector<2x16xf32>
    %618 = vector.multi_reduction <add>, %617, %cst_371 [2] : vector<2x16x16xf32> to vector<2x16xf32>
    %619 = vector.shape_cast %618 : vector<2x16xf32> to vector<2x16x1xf32>
    %620 = tpu.reciprocal %619 {approx = true} : vector<2x16x1xf32> -> vector<2x16x1xf32>
    %621 = vector.broadcast %620 : vector<2x16x1xf32> to vector<2x16x16xf32>
    %622 = arith.mulf %617, %621 : vector<2x16x16xf32>
    %623 = arith.truncf %622 : vector<2x16x16xf32> to vector<2x16x16xbf16>
    %624 = arith.truncf %607 : vector<2x16x4xf32> to vector<2x16x4xbf16>
    "tpu.trace_start"() <{level = 10 : i32, message = "blm,bme->ble"}> : () -> ()
    %cst_372 = arith.constant dense<0.000000e+00> : vector<2x16x4xf32>
    %625 = tpu.matmul %623, %624, %cst_372 {dimension_numbers = #tpu.dot_dimension_numbers<[2], [1], [1], [2], [0, 0, 0, 1, 1, 2], [0], [0]>} : vector<2x16x16xbf16>, vector<2x16x4xbf16>, vector<2x16x4xf32> -> vector<2x16x4xf32>
    "tpu.trace_stop"() : () -> ()
    %626 = arith.truncf %625 : vector<2x16x4xf32> to vector<2x16x4xbf16>
    %c2_373 = arith.constant 2 : index
    %c0_374 = arith.constant 0 : index
    %c0_375 = arith.constant 0 : index
    %627 = vector.load %arg25[%c2_373, %c0_374, %c0_375] : memref<8x4x32xbf16, #tpu.memory_space<vmem>>, vector<1x4x32xbf16>
    %628 = vector.shape_cast %627 : vector<1x4x32xbf16> to vector<4x32xbf16>
    "tpu.trace_start"() <{level = 10 : i32, message = "ble,ed->bld"}> : () -> ()
    %cst_376 = arith.constant dense<0.000000e+00> : vector<2x16x32xf32>
    %629 = tpu.matmul %626, %628, %cst_376 {dimension_numbers = #tpu.dot_dimension_numbers<[2], [0], [0, 1], [1], [0, 0, 0, 1, 1, 1], [], []>} : vector<2x16x4xbf16>, vector<4x32xbf16>, vector<2x16x32xf32> -> vector<2x16x32xf32>
    "tpu.trace_stop"() : () -> ()
    %630 = arith.addf %583, %629 : vector<2x16x32xf32>
    %c3_377 = arith.constant 3 : index
    %c0_378 = arith.constant 0 : index
    %c0_379 = arith.constant 0 : index
    %631 = vector.load %arg19[%c3_377, %c0_378, %c0_379] : memref<8x32x4xbf16, #tpu.memory_space<vmem>>, vector<1x32x4xbf16>
    %632 = vector.shape_cast %631 : vector<1x32x4xbf16> to vector<32x4xbf16>
    "tpu.trace_start"() <{level = 10 : i32, message = "bld,de->ble"}> : () -> ()
    %cst_380 = arith.constant dense<0.000000e+00> : vector<2x16x4xf32>
    %633 = tpu.matmul %488, %632, %cst_380 {dimension_numbers = #tpu.dot_dimension_numbers<[2], [0], [0, 1], [1], [0, 0, 0, 1, 1, 1], [], []>} : vector<2x16x32xbf16>, vector<32x4xbf16>, vector<2x16x4xf32> -> vector<2x16x4xf32>
    "tpu.trace_stop"() : () -> ()
    %c3_381 = arith.constant 3 : index
    %c0_382 = arith.constant 0 : index
    %c0_383 = arith.constant 0 : index
    %634 = vector.load %arg20[%c3_381, %c0_382, %c0_383] : memref<8x1x4xf32, #tpu.memory_space<vmem>>, vector<1x1x4xf32>
    %635 = vector.shape_cast %634 : vector<1x1x4xf32> to vector<1x4xf32>
    %636 = vector.shape_cast %635 : vector<1x4xf32> to vector<1x1x4xf32>
    %637 = vector.broadcast %636 : vector<1x1x4xf32> to vector<2x16x4xf32>
    %638 = arith.addf %633, %637 : vector<2x16x4xf32>
    %c3_384 = arith.constant 3 : index
    %c0_385 = arith.constant 0 : index
    %c0_386 = arith.constant 0 : index
    %639 = vector.load %arg21[%c3_384, %c0_385, %c0_386] : memref<8x32x4xbf16, #tpu.memory_space<vmem>>, vector<1x32x4xbf16>
    %640 = vector.shape_cast %639 : vector<1x32x4xbf16> to vector<32x4xbf16>
    "tpu.trace_start"() <{level = 10 : i32, message = "bld,de->ble"}> : () -> ()
    %cst_387 = arith.constant dense<0.000000e+00> : vector<2x16x4xf32>
    %641 = tpu.matmul %488, %640, %cst_387 {dimension_numbers = #tpu.dot_dimension_numbers<[2], [0], [0, 1], [1], [0, 0, 0, 1, 1, 1], [], []>} : vector<2x16x32xbf16>, vector<32x4xbf16>, vector<2x16x4xf32> -> vector<2x16x4xf32>
    "tpu.trace_stop"() : () -> ()
    %c3_388 = arith.constant 3 : index
    %c0_389 = arith.constant 0 : index
    %c0_390 = arith.constant 0 : index
    %642 = vector.load %arg22[%c3_388, %c0_389, %c0_390] : memref<8x1x4xf32, #tpu.memory_space<vmem>>, vector<1x1x4xf32>
    %643 = vector.shape_cast %642 : vector<1x1x4xf32> to vector<1x4xf32>
    %644 = vector.shape_cast %643 : vector<1x4xf32> to vector<1x1x4xf32>
    %645 = vector.broadcast %644 : vector<1x1x4xf32> to vector<2x16x4xf32>
    %646 = arith.addf %641, %645 : vector<2x16x4xf32>
    %c3_391 = arith.constant 3 : index
    %c0_392 = arith.constant 0 : index
    %c0_393 = arith.constant 0 : index
    %647 = vector.load %arg23[%c3_391, %c0_392, %c0_393] : memref<8x32x4xbf16, #tpu.memory_space<vmem>>, vector<1x32x4xbf16>
    %648 = vector.shape_cast %647 : vector<1x32x4xbf16> to vector<32x4xbf16>
    "tpu.trace_start"() <{level = 10 : i32, message = "bld,de->ble"}> : () -> ()
    %cst_394 = arith.constant dense<0.000000e+00> : vector<2x16x4xf32>
    %649 = tpu.matmul %488, %648, %cst_394 {dimension_numbers = #tpu.dot_dimension_numbers<[2], [0], [0, 1], [1], [0, 0, 0, 1, 1, 1], [], []>} : vector<2x16x32xbf16>, vector<32x4xbf16>, vector<2x16x4xf32> -> vector<2x16x4xf32>
    "tpu.trace_stop"() : () -> ()
    %c3_395 = arith.constant 3 : index
    %c0_396 = arith.constant 0 : index
    %c0_397 = arith.constant 0 : index
    %650 = vector.load %arg24[%c3_395, %c0_396, %c0_397] : memref<8x1x4xf32, #tpu.memory_space<vmem>>, vector<1x1x4xf32>
    %651 = vector.shape_cast %650 : vector<1x1x4xf32> to vector<1x4xf32>
    %652 = vector.shape_cast %651 : vector<1x4xf32> to vector<1x1x4xf32>
    %653 = vector.broadcast %652 : vector<1x1x4xf32> to vector<2x16x4xf32>
    %654 = arith.addf %649, %653 : vector<2x16x4xf32>
    %655 = arith.truncf %638 : vector<2x16x4xf32> to vector<2x16x4xbf16>
    %656 = arith.truncf %646 : vector<2x16x4xf32> to vector<2x16x4xbf16>
    "tpu.trace_start"() <{level = 10 : i32, message = "ble,bme->blm"}> : () -> ()
    %cst_398 = arith.constant dense<0.000000e+00> : vector<2x16x16xf32>
    %657 = tpu.matmul %655, %656, %cst_398 {dimension_numbers = #tpu.dot_dimension_numbers<[2], [2], [1], [1], [0, 0, 0, 1, 1, 1], [0], [0]>} : vector<2x16x4xbf16>, vector<2x16x4xbf16>, vector<2x16x16xf32> -> vector<2x16x16xf32>
    "tpu.trace_stop"() : () -> ()
    %cst_399 = arith.constant 5.000000e-01 : f32
    %658 = vector.broadcast %cst_399 : f32 to vector<2x16x16xf32>
    %659 = arith.mulf %657, %658 : vector<2x16x16xf32>
    %cst_400 = arith.constant dense<0xFF800000> : vector<2x16xf32>
    %660 = vector.multi_reduction <maximumf>, %659, %cst_400 [2] : vector<2x16x16xf32> to vector<2x16xf32>
    %661 = vector.shape_cast %660 : vector<2x16xf32> to vector<2x16x1xf32>
    %662 = vector.broadcast %661 : vector<2x16x1xf32> to vector<2x16x16xf32>
    %663 = arith.subf %659, %662 : vector<2x16x16xf32>
    %664 = math.exp %663 : vector<2x16x16xf32>
    %cst_401 = arith.constant dense<0.000000e+00> : vector<2x16xf32>
    %665 = vector.multi_reduction <add>, %664, %cst_401 [2] : vector<2x16x16xf32> to vector<2x16xf32>
    %666 = vector.shape_cast %665 : vector<2x16xf32> to vector<2x16x1xf32>
    %667 = tpu.reciprocal %666 {approx = true} : vector<2x16x1xf32> -> vector<2x16x1xf32>
    %668 = vector.broadcast %667 : vector<2x16x1xf32> to vector<2x16x16xf32>
    %669 = arith.mulf %664, %668 : vector<2x16x16xf32>
    %670 = arith.truncf %669 : vector<2x16x16xf32> to vector<2x16x16xbf16>
    %671 = arith.truncf %654 : vector<2x16x4xf32> to vector<2x16x4xbf16>
    "tpu.trace_start"() <{level = 10 : i32, message = "blm,bme->ble"}> : () -> ()
    %cst_402 = arith.constant dense<0.000000e+00> : vector<2x16x4xf32>
    %672 = tpu.matmul %670, %671, %cst_402 {dimension_numbers = #tpu.dot_dimension_numbers<[2], [1], [1], [2], [0, 0, 0, 1, 1, 2], [0], [0]>} : vector<2x16x16xbf16>, vector<2x16x4xbf16>, vector<2x16x4xf32> -> vector<2x16x4xf32>
    "tpu.trace_stop"() : () -> ()
    %673 = arith.truncf %672 : vector<2x16x4xf32> to vector<2x16x4xbf16>
    %c3_403 = arith.constant 3 : index
    %c0_404 = arith.constant 0 : index
    %c0_405 = arith.constant 0 : index
    %674 = vector.load %arg25[%c3_403, %c0_404, %c0_405] : memref<8x4x32xbf16, #tpu.memory_space<vmem>>, vector<1x4x32xbf16>
    %675 = vector.shape_cast %674 : vector<1x4x32xbf16> to vector<4x32xbf16>
    "tpu.trace_start"() <{level = 10 : i32, message = "ble,ed->bld"}> : () -> ()
    %cst_406 = arith.constant dense<0.000000e+00> : vector<2x16x32xf32>
    %676 = tpu.matmul %673, %675, %cst_406 {dimension_numbers = #tpu.dot_dimension_numbers<[2], [0], [0, 1], [1], [0, 0, 0, 1, 1, 1], [], []>} : vector<2x16x4xbf16>, vector<4x32xbf16>, vector<2x16x32xf32> -> vector<2x16x32xf32>
    "tpu.trace_stop"() : () -> ()
    %677 = arith.addf %630, %676 : vector<2x16x32xf32>
    %c4_407 = arith.constant 4 : index
    %c0_408 = arith.constant 0 : index
    %c0_409 = arith.constant 0 : index
    %678 = vector.load %arg19[%c4_407, %c0_408, %c0_409] : memref<8x32x4xbf16, #tpu.memory_space<vmem>>, vector<1x32x4xbf16>
    %679 = vector.shape_cast %678 : vector<1x32x4xbf16> to vector<32x4xbf16>
    "tpu.trace_start"() <{level = 10 : i32, message = "bld,de->ble"}> : () -> ()
    %cst_410 = arith.constant dense<0.000000e+00> : vector<2x16x4xf32>
    %680 = tpu.matmul %488, %679, %cst_410 {dimension_numbers = #tpu.dot_dimension_numbers<[2], [0], [0, 1], [1], [0, 0, 0, 1, 1, 1], [], []>} : vector<2x16x32xbf16>, vector<32x4xbf16>, vector<2x16x4xf32> -> vector<2x16x4xf32>
    "tpu.trace_stop"() : () -> ()
    %c4_411 = arith.constant 4 : index
    %c0_412 = arith.constant 0 : index
    %c0_413 = arith.constant 0 : index
    %681 = vector.load %arg20[%c4_411, %c0_412, %c0_413] : memref<8x1x4xf32, #tpu.memory_space<vmem>>, vector<1x1x4xf32>
    %682 = vector.shape_cast %681 : vector<1x1x4xf32> to vector<1x4xf32>
    %683 = vector.shape_cast %682 : vector<1x4xf32> to vector<1x1x4xf32>
    %684 = vector.broadcast %683 : vector<1x1x4xf32> to vector<2x16x4xf32>
    %685 = arith.addf %680, %684 : vector<2x16x4xf32>
    %c4_414 = arith.constant 4 : index
    %c0_415 = arith.constant 0 : index
    %c0_416 = arith.constant 0 : index
    %686 = vector.load %arg21[%c4_414, %c0_415, %c0_416] : memref<8x32x4xbf16, #tpu.memory_space<vmem>>, vector<1x32x4xbf16>
    %687 = vector.shape_cast %686 : vector<1x32x4xbf16> to vector<32x4xbf16>
    "tpu.trace_start"() <{level = 10 : i32, message = "bld,de->ble"}> : () -> ()
    %cst_417 = arith.constant dense<0.000000e+00> : vector<2x16x4xf32>
    %688 = tpu.matmul %488, %687, %cst_417 {dimension_numbers = #tpu.dot_dimension_numbers<[2], [0], [0, 1], [1], [0, 0, 0, 1, 1, 1], [], []>} : vector<2x16x32xbf16>, vector<32x4xbf16>, vector<2x16x4xf32> -> vector<2x16x4xf32>
    "tpu.trace_stop"() : () -> ()
    %c4_418 = arith.constant 4 : index
    %c0_419 = arith.constant 0 : index
    %c0_420 = arith.constant 0 : index
    %689 = vector.load %arg22[%c4_418, %c0_419, %c0_420] : memref<8x1x4xf32, #tpu.memory_space<vmem>>, vector<1x1x4xf32>
    %690 = vector.shape_cast %689 : vector<1x1x4xf32> to vector<1x4xf32>
    %691 = vector.shape_cast %690 : vector<1x4xf32> to vector<1x1x4xf32>
    %692 = vector.broadcast %691 : vector<1x1x4xf32> to vector<2x16x4xf32>
    %693 = arith.addf %688, %692 : vector<2x16x4xf32>
    %c4_421 = arith.constant 4 : index
    %c0_422 = arith.constant 0 : index
    %c0_423 = arith.constant 0 : index
    %694 = vector.load %arg23[%c4_421, %c0_422, %c0_423] : memref<8x32x4xbf16, #tpu.memory_space<vmem>>, vector<1x32x4xbf16>
    %695 = vector.shape_cast %694 : vector<1x32x4xbf16> to vector<32x4xbf16>
    "tpu.trace_start"() <{level = 10 : i32, message = "bld,de->ble"}> : () -> ()
    %cst_424 = arith.constant dense<0.000000e+00> : vector<2x16x4xf32>
    %696 = tpu.matmul %488, %695, %cst_424 {dimension_numbers = #tpu.dot_dimension_numbers<[2], [0], [0, 1], [1], [0, 0, 0, 1, 1, 1], [], []>} : vector<2x16x32xbf16>, vector<32x4xbf16>, vector<2x16x4xf32> -> vector<2x16x4xf32>
    "tpu.trace_stop"() : () -> ()
    %c4_425 = arith.constant 4 : index
    %c0_426 = arith.constant 0 : index
    %c0_427 = arith.constant 0 : index
    %697 = vector.load %arg24[%c4_425, %c0_426, %c0_427] : memref<8x1x4xf32, #tpu.memory_space<vmem>>, vector<1x1x4xf32>
    %698 = vector.shape_cast %697 : vector<1x1x4xf32> to vector<1x4xf32>
    %699 = vector.shape_cast %698 : vector<1x4xf32> to vector<1x1x4xf32>
    %700 = vector.broadcast %699 : vector<1x1x4xf32> to vector<2x16x4xf32>
    %701 = arith.addf %696, %700 : vector<2x16x4xf32>
    %702 = arith.truncf %685 : vector<2x16x4xf32> to vector<2x16x4xbf16>
    %703 = arith.truncf %693 : vector<2x16x4xf32> to vector<2x16x4xbf16>
    "tpu.trace_start"() <{level = 10 : i32, message = "ble,bme->blm"}> : () -> ()
    %cst_428 = arith.constant dense<0.000000e+00> : vector<2x16x16xf32>
    %704 = tpu.matmul %702, %703, %cst_428 {dimension_numbers = #tpu.dot_dimension_numbers<[2], [2], [1], [1], [0, 0, 0, 1, 1, 1], [0], [0]>} : vector<2x16x4xbf16>, vector<2x16x4xbf16>, vector<2x16x16xf32> -> vector<2x16x16xf32>
    "tpu.trace_stop"() : () -> ()
    %cst_429 = arith.constant 5.000000e-01 : f32
    %705 = vector.broadcast %cst_429 : f32 to vector<2x16x16xf32>
    %706 = arith.mulf %704, %705 : vector<2x16x16xf32>
    %cst_430 = arith.constant dense<0xFF800000> : vector<2x16xf32>
    %707 = vector.multi_reduction <maximumf>, %706, %cst_430 [2] : vector<2x16x16xf32> to vector<2x16xf32>
    %708 = vector.shape_cast %707 : vector<2x16xf32> to vector<2x16x1xf32>
    %709 = vector.broadcast %708 : vector<2x16x1xf32> to vector<2x16x16xf32>
    %710 = arith.subf %706, %709 : vector<2x16x16xf32>
    %711 = math.exp %710 : vector<2x16x16xf32>
    %cst_431 = arith.constant dense<0.000000e+00> : vector<2x16xf32>
    %712 = vector.multi_reduction <add>, %711, %cst_431 [2] : vector<2x16x16xf32> to vector<2x16xf32>
    %713 = vector.shape_cast %712 : vector<2x16xf32> to vector<2x16x1xf32>
    %714 = tpu.reciprocal %713 {approx = true} : vector<2x16x1xf32> -> vector<2x16x1xf32>
    %715 = vector.broadcast %714 : vector<2x16x1xf32> to vector<2x16x16xf32>
    %716 = arith.mulf %711, %715 : vector<2x16x16xf32>
    %717 = arith.truncf %716 : vector<2x16x16xf32> to vector<2x16x16xbf16>
    %718 = arith.truncf %701 : vector<2x16x4xf32> to vector<2x16x4xbf16>
    "tpu.trace_start"() <{level = 10 : i32, message = "blm,bme->ble"}> : () -> ()
    %cst_432 = arith.constant dense<0.000000e+00> : vector<2x16x4xf32>
    %719 = tpu.matmul %717, %718, %cst_432 {dimension_numbers = #tpu.dot_dimension_numbers<[2], [1], [1], [2], [0, 0, 0, 1, 1, 2], [0], [0]>} : vector<2x16x16xbf16>, vector<2x16x4xbf16>, vector<2x16x4xf32> -> vector<2x16x4xf32>
    "tpu.trace_stop"() : () -> ()
    %720 = arith.truncf %719 : vector<2x16x4xf32> to vector<2x16x4xbf16>
    %c4_433 = arith.constant 4 : index
    %c0_434 = arith.constant 0 : index
    %c0_435 = arith.constant 0 : index
    %721 = vector.load %arg25[%c4_433, %c0_434, %c0_435] : memref<8x4x32xbf16, #tpu.memory_space<vmem>>, vector<1x4x32xbf16>
    %722 = vector.shape_cast %721 : vector<1x4x32xbf16> to vector<4x32xbf16>
    "tpu.trace_start"() <{level = 10 : i32, message = "ble,ed->bld"}> : () -> ()
    %cst_436 = arith.constant dense<0.000000e+00> : vector<2x16x32xf32>
    %723 = tpu.matmul %720, %722, %cst_436 {dimension_numbers = #tpu.dot_dimension_numbers<[2], [0], [0, 1], [1], [0, 0, 0, 1, 1, 1], [], []>} : vector<2x16x4xbf16>, vector<4x32xbf16>, vector<2x16x32xf32> -> vector<2x16x32xf32>
    "tpu.trace_stop"() : () -> ()
    %724 = arith.addf %677, %723 : vector<2x16x32xf32>
    %c5_437 = arith.constant 5 : index
    %c0_438 = arith.constant 0 : index
    %c0_439 = arith.constant 0 : index
    %725 = vector.load %arg19[%c5_437, %c0_438, %c0_439] : memref<8x32x4xbf16, #tpu.memory_space<vmem>>, vector<1x32x4xbf16>
    %726 = vector.shape_cast %725 : vector<1x32x4xbf16> to vector<32x4xbf16>
    "tpu.trace_start"() <{level = 10 : i32, message = "bld,de->ble"}> : () -> ()
    %cst_440 = arith.constant dense<0.000000e+00> : vector<2x16x4xf32>
    %727 = tpu.matmul %488, %726, %cst_440 {dimension_numbers = #tpu.dot_dimension_numbers<[2], [0], [0, 1], [1], [0, 0, 0, 1, 1, 1], [], []>} : vector<2x16x32xbf16>, vector<32x4xbf16>, vector<2x16x4xf32> -> vector<2x16x4xf32>
    "tpu.trace_stop"() : () -> ()
    %c5_441 = arith.constant 5 : index
    %c0_442 = arith.constant 0 : index
    %c0_443 = arith.constant 0 : index
    %728 = vector.load %arg20[%c5_441, %c0_442, %c0_443] : memref<8x1x4xf32, #tpu.memory_space<vmem>>, vector<1x1x4xf32>
    %729 = vector.shape_cast %728 : vector<1x1x4xf32> to vector<1x4xf32>
    %730 = vector.shape_cast %729 : vector<1x4xf32> to vector<1x1x4xf32>
    %731 = vector.broadcast %730 : vector<1x1x4xf32> to vector<2x16x4xf32>
    %732 = arith.addf %727, %731 : vector<2x16x4xf32>
    %c5_444 = arith.constant 5 : index
    %c0_445 = arith.constant 0 : index
    %c0_446 = arith.constant 0 : index
    %733 = vector.load %arg21[%c5_444, %c0_445, %c0_446] : memref<8x32x4xbf16, #tpu.memory_space<vmem>>, vector<1x32x4xbf16>
    %734 = vector.shape_cast %733 : vector<1x32x4xbf16> to vector<32x4xbf16>
    "tpu.trace_start"() <{level = 10 : i32, message = "bld,de->ble"}> : () -> ()
    %cst_447 = arith.constant dense<0.000000e+00> : vector<2x16x4xf32>
    %735 = tpu.matmul %488, %734, %cst_447 {dimension_numbers = #tpu.dot_dimension_numbers<[2], [0], [0, 1], [1], [0, 0, 0, 1, 1, 1], [], []>} : vector<2x16x32xbf16>, vector<32x4xbf16>, vector<2x16x4xf32> -> vector<2x16x4xf32>
    "tpu.trace_stop"() : () -> ()
    %c5_448 = arith.constant 5 : index
    %c0_449 = arith.constant 0 : index
    %c0_450 = arith.constant 0 : index
    %736 = vector.load %arg22[%c5_448, %c0_449, %c0_450] : memref<8x1x4xf32, #tpu.memory_space<vmem>>, vector<1x1x4xf32>
    %737 = vector.shape_cast %736 : vector<1x1x4xf32> to vector<1x4xf32>
    %738 = vector.shape_cast %737 : vector<1x4xf32> to vector<1x1x4xf32>
    %739 = vector.broadcast %738 : vector<1x1x4xf32> to vector<2x16x4xf32>
    %740 = arith.addf %735, %739 : vector<2x16x4xf32>
    %c5_451 = arith.constant 5 : index
    %c0_452 = arith.constant 0 : index
    %c0_453 = arith.constant 0 : index
    %741 = vector.load %arg23[%c5_451, %c0_452, %c0_453] : memref<8x32x4xbf16, #tpu.memory_space<vmem>>, vector<1x32x4xbf16>
    %742 = vector.shape_cast %741 : vector<1x32x4xbf16> to vector<32x4xbf16>
    "tpu.trace_start"() <{level = 10 : i32, message = "bld,de->ble"}> : () -> ()
    %cst_454 = arith.constant dense<0.000000e+00> : vector<2x16x4xf32>
    %743 = tpu.matmul %488, %742, %cst_454 {dimension_numbers = #tpu.dot_dimension_numbers<[2], [0], [0, 1], [1], [0, 0, 0, 1, 1, 1], [], []>} : vector<2x16x32xbf16>, vector<32x4xbf16>, vector<2x16x4xf32> -> vector<2x16x4xf32>
    "tpu.trace_stop"() : () -> ()
    %c5_455 = arith.constant 5 : index
    %c0_456 = arith.constant 0 : index
    %c0_457 = arith.constant 0 : index
    %744 = vector.load %arg24[%c5_455, %c0_456, %c0_457] : memref<8x1x4xf32, #tpu.memory_space<vmem>>, vector<1x1x4xf32>
    %745 = vector.shape_cast %744 : vector<1x1x4xf32> to vector<1x4xf32>
    %746 = vector.shape_cast %745 : vector<1x4xf32> to vector<1x1x4xf32>
    %747 = vector.broadcast %746 : vector<1x1x4xf32> to vector<2x16x4xf32>
    %748 = arith.addf %743, %747 : vector<2x16x4xf32>
    %749 = arith.truncf %732 : vector<2x16x4xf32> to vector<2x16x4xbf16>
    %750 = arith.truncf %740 : vector<2x16x4xf32> to vector<2x16x4xbf16>
    "tpu.trace_start"() <{level = 10 : i32, message = "ble,bme->blm"}> : () -> ()
    %cst_458 = arith.constant dense<0.000000e+00> : vector<2x16x16xf32>
    %751 = tpu.matmul %749, %750, %cst_458 {dimension_numbers = #tpu.dot_dimension_numbers<[2], [2], [1], [1], [0, 0, 0, 1, 1, 1], [0], [0]>} : vector<2x16x4xbf16>, vector<2x16x4xbf16>, vector<2x16x16xf32> -> vector<2x16x16xf32>
    "tpu.trace_stop"() : () -> ()
    %cst_459 = arith.constant 5.000000e-01 : f32
    %752 = vector.broadcast %cst_459 : f32 to vector<2x16x16xf32>
    %753 = arith.mulf %751, %752 : vector<2x16x16xf32>
    %cst_460 = arith.constant dense<0xFF800000> : vector<2x16xf32>
    %754 = vector.multi_reduction <maximumf>, %753, %cst_460 [2] : vector<2x16x16xf32> to vector<2x16xf32>
    %755 = vector.shape_cast %754 : vector<2x16xf32> to vector<2x16x1xf32>
    %756 = vector.broadcast %755 : vector<2x16x1xf32> to vector<2x16x16xf32>
    %757 = arith.subf %753, %756 : vector<2x16x16xf32>
    %758 = math.exp %757 : vector<2x16x16xf32>
    %cst_461 = arith.constant dense<0.000000e+00> : vector<2x16xf32>
    %759 = vector.multi_reduction <add>, %758, %cst_461 [2] : vector<2x16x16xf32> to vector<2x16xf32>
    %760 = vector.shape_cast %759 : vector<2x16xf32> to vector<2x16x1xf32>
    %761 = tpu.reciprocal %760 {approx = true} : vector<2x16x1xf32> -> vector<2x16x1xf32>
    %762 = vector.broadcast %761 : vector<2x16x1xf32> to vector<2x16x16xf32>
    %763 = arith.mulf %758, %762 : vector<2x16x16xf32>
    %764 = arith.truncf %763 : vector<2x16x16xf32> to vector<2x16x16xbf16>
    %765 = arith.truncf %748 : vector<2x16x4xf32> to vector<2x16x4xbf16>
    "tpu.trace_start"() <{level = 10 : i32, message = "blm,bme->ble"}> : () -> ()
    %cst_462 = arith.constant dense<0.000000e+00> : vector<2x16x4xf32>
    %766 = tpu.matmul %764, %765, %cst_462 {dimension_numbers = #tpu.dot_dimension_numbers<[2], [1], [1], [2], [0, 0, 0, 1, 1, 2], [0], [0]>} : vector<2x16x16xbf16>, vector<2x16x4xbf16>, vector<2x16x4xf32> -> vector<2x16x4xf32>
    "tpu.trace_stop"() : () -> ()
    %767 = arith.truncf %766 : vector<2x16x4xf32> to vector<2x16x4xbf16>
    %c5_463 = arith.constant 5 : index
    %c0_464 = arith.constant 0 : index
    %c0_465 = arith.constant 0 : index
    %768 = vector.load %arg25[%c5_463, %c0_464, %c0_465] : memref<8x4x32xbf16, #tpu.memory_space<vmem>>, vector<1x4x32xbf16>
    %769 = vector.shape_cast %768 : vector<1x4x32xbf16> to vector<4x32xbf16>
    "tpu.trace_start"() <{level = 10 : i32, message = "ble,ed->bld"}> : () -> ()
    %cst_466 = arith.constant dense<0.000000e+00> : vector<2x16x32xf32>
    %770 = tpu.matmul %767, %769, %cst_466 {dimension_numbers = #tpu.dot_dimension_numbers<[2], [0], [0, 1], [1], [0, 0, 0, 1, 1, 1], [], []>} : vector<2x16x4xbf16>, vector<4x32xbf16>, vector<2x16x32xf32> -> vector<2x16x32xf32>
    "tpu.trace_stop"() : () -> ()
    %771 = arith.addf %724, %770 : vector<2x16x32xf32>
    %c6_467 = arith.constant 6 : index
    %c0_468 = arith.constant 0 : index
    %c0_469 = arith.constant 0 : index
    %772 = vector.load %arg19[%c6_467, %c0_468, %c0_469] : memref<8x32x4xbf16, #tpu.memory_space<vmem>>, vector<1x32x4xbf16>
    %773 = vector.shape_cast %772 : vector<1x32x4xbf16> to vector<32x4xbf16>
    "tpu.trace_start"() <{level = 10 : i32, message = "bld,de->ble"}> : () -> ()
    %cst_470 = arith.constant dense<0.000000e+00> : vector<2x16x4xf32>
    %774 = tpu.matmul %488, %773, %cst_470 {dimension_numbers = #tpu.dot_dimension_numbers<[2], [0], [0, 1], [1], [0, 0, 0, 1, 1, 1], [], []>} : vector<2x16x32xbf16>, vector<32x4xbf16>, vector<2x16x4xf32> -> vector<2x16x4xf32>
    "tpu.trace_stop"() : () -> ()
    %c6_471 = arith.constant 6 : index
    %c0_472 = arith.constant 0 : index
    %c0_473 = arith.constant 0 : index
    %775 = vector.load %arg20[%c6_471, %c0_472, %c0_473] : memref<8x1x4xf32, #tpu.memory_space<vmem>>, vector<1x1x4xf32>
    %776 = vector.shape_cast %775 : vector<1x1x4xf32> to vector<1x4xf32>
    %777 = vector.shape_cast %776 : vector<1x4xf32> to vector<1x1x4xf32>
    %778 = vector.broadcast %777 : vector<1x1x4xf32> to vector<2x16x4xf32>
    %779 = arith.addf %774, %778 : vector<2x16x4xf32>
    %c6_474 = arith.constant 6 : index
    %c0_475 = arith.constant 0 : index
    %c0_476 = arith.constant 0 : index
    %780 = vector.load %arg21[%c6_474, %c0_475, %c0_476] : memref<8x32x4xbf16, #tpu.memory_space<vmem>>, vector<1x32x4xbf16>
    %781 = vector.shape_cast %780 : vector<1x32x4xbf16> to vector<32x4xbf16>
    "tpu.trace_start"() <{level = 10 : i32, message = "bld,de->ble"}> : () -> ()
    %cst_477 = arith.constant dense<0.000000e+00> : vector<2x16x4xf32>
    %782 = tpu.matmul %488, %781, %cst_477 {dimension_numbers = #tpu.dot_dimension_numbers<[2], [0], [0, 1], [1], [0, 0, 0, 1, 1, 1], [], []>} : vector<2x16x32xbf16>, vector<32x4xbf16>, vector<2x16x4xf32> -> vector<2x16x4xf32>
    "tpu.trace_stop"() : () -> ()
    %c6_478 = arith.constant 6 : index
    %c0_479 = arith.constant 0 : index
    %c0_480 = arith.constant 0 : index
    %783 = vector.load %arg22[%c6_478, %c0_479, %c0_480] : memref<8x1x4xf32, #tpu.memory_space<vmem>>, vector<1x1x4xf32>
    %784 = vector.shape_cast %783 : vector<1x1x4xf32> to vector<1x4xf32>
    %785 = vector.shape_cast %784 : vector<1x4xf32> to vector<1x1x4xf32>
    %786 = vector.broadcast %785 : vector<1x1x4xf32> to vector<2x16x4xf32>
    %787 = arith.addf %782, %786 : vector<2x16x4xf32>
    %c6_481 = arith.constant 6 : index
    %c0_482 = arith.constant 0 : index
    %c0_483 = arith.constant 0 : index
    %788 = vector.load %arg23[%c6_481, %c0_482, %c0_483] : memref<8x32x4xbf16, #tpu.memory_space<vmem>>, vector<1x32x4xbf16>
    %789 = vector.shape_cast %788 : vector<1x32x4xbf16> to vector<32x4xbf16>
    "tpu.trace_start"() <{level = 10 : i32, message = "bld,de->ble"}> : () -> ()
    %cst_484 = arith.constant dense<0.000000e+00> : vector<2x16x4xf32>
    %790 = tpu.matmul %488, %789, %cst_484 {dimension_numbers = #tpu.dot_dimension_numbers<[2], [0], [0, 1], [1], [0, 0, 0, 1, 1, 1], [], []>} : vector<2x16x32xbf16>, vector<32x4xbf16>, vector<2x16x4xf32> -> vector<2x16x4xf32>
    "tpu.trace_stop"() : () -> ()
    %c6_485 = arith.constant 6 : index
    %c0_486 = arith.constant 0 : index
    %c0_487 = arith.constant 0 : index
    %791 = vector.load %arg24[%c6_485, %c0_486, %c0_487] : memref<8x1x4xf32, #tpu.memory_space<vmem>>, vector<1x1x4xf32>
    %792 = vector.shape_cast %791 : vector<1x1x4xf32> to vector<1x4xf32>
    %793 = vector.shape_cast %792 : vector<1x4xf32> to vector<1x1x4xf32>
    %794 = vector.broadcast %793 : vector<1x1x4xf32> to vector<2x16x4xf32>
    %795 = arith.addf %790, %794 : vector<2x16x4xf32>
    %796 = arith.truncf %779 : vector<2x16x4xf32> to vector<2x16x4xbf16>
    %797 = arith.truncf %787 : vector<2x16x4xf32> to vector<2x16x4xbf16>
    "tpu.trace_start"() <{level = 10 : i32, message = "ble,bme->blm"}> : () -> ()
    %cst_488 = arith.constant dense<0.000000e+00> : vector<2x16x16xf32>
    %798 = tpu.matmul %796, %797, %cst_488 {dimension_numbers = #tpu.dot_dimension_numbers<[2], [2], [1], [1], [0, 0, 0, 1, 1, 1], [0], [0]>} : vector<2x16x4xbf16>, vector<2x16x4xbf16>, vector<2x16x16xf32> -> vector<2x16x16xf32>
    "tpu.trace_stop"() : () -> ()
    %cst_489 = arith.constant 5.000000e-01 : f32
    %799 = vector.broadcast %cst_489 : f32 to vector<2x16x16xf32>
    %800 = arith.mulf %798, %799 : vector<2x16x16xf32>
    %cst_490 = arith.constant dense<0xFF800000> : vector<2x16xf32>
    %801 = vector.multi_reduction <maximumf>, %800, %cst_490 [2] : vector<2x16x16xf32> to vector<2x16xf32>
    %802 = vector.shape_cast %801 : vector<2x16xf32> to vector<2x16x1xf32>
    %803 = vector.broadcast %802 : vector<2x16x1xf32> to vector<2x16x16xf32>
    %804 = arith.subf %800, %803 : vector<2x16x16xf32>
    %805 = math.exp %804 : vector<2x16x16xf32>
    %cst_491 = arith.constant dense<0.000000e+00> : vector<2x16xf32>
    %806 = vector.multi_reduction <add>, %805, %cst_491 [2] : vector<2x16x16xf32> to vector<2x16xf32>
    %807 = vector.shape_cast %806 : vector<2x16xf32> to vector<2x16x1xf32>
    %808 = tpu.reciprocal %807 {approx = true} : vector<2x16x1xf32> -> vector<2x16x1xf32>
    %809 = vector.broadcast %808 : vector<2x16x1xf32> to vector<2x16x16xf32>
    %810 = arith.mulf %805, %809 : vector<2x16x16xf32>
    %811 = arith.truncf %810 : vector<2x16x16xf32> to vector<2x16x16xbf16>
    %812 = arith.truncf %795 : vector<2x16x4xf32> to vector<2x16x4xbf16>
    "tpu.trace_start"() <{level = 10 : i32, message = "blm,bme->ble"}> : () -> ()
    %cst_492 = arith.constant dense<0.000000e+00> : vector<2x16x4xf32>
    %813 = tpu.matmul %811, %812, %cst_492 {dimension_numbers = #tpu.dot_dimension_numbers<[2], [1], [1], [2], [0, 0, 0, 1, 1, 2], [0], [0]>} : vector<2x16x16xbf16>, vector<2x16x4xbf16>, vector<2x16x4xf32> -> vector<2x16x4xf32>
    "tpu.trace_stop"() : () -> ()
    %814 = arith.truncf %813 : vector<2x16x4xf32> to vector<2x16x4xbf16>
    %c6_493 = arith.constant 6 : index
    %c0_494 = arith.constant 0 : index
    %c0_495 = arith.constant 0 : index
    %815 = vector.load %arg25[%c6_493, %c0_494, %c0_495] : memref<8x4x32xbf16, #tpu.memory_space<vmem>>, vector<1x4x32xbf16>
    %816 = vector.shape_cast %815 : vector<1x4x32xbf16> to vector<4x32xbf16>
    "tpu.trace_start"() <{level = 10 : i32, message = "ble,ed->bld"}> : () -> ()
    %cst_496 = arith.constant dense<0.000000e+00> : vector<2x16x32xf32>
    %817 = tpu.matmul %814, %816, %cst_496 {dimension_numbers = #tpu.dot_dimension_numbers<[2], [0], [0, 1], [1], [0, 0, 0, 1, 1, 1], [], []>} : vector<2x16x4xbf16>, vector<4x32xbf16>, vector<2x16x32xf32> -> vector<2x16x32xf32>
    "tpu.trace_stop"() : () -> ()
    %818 = arith.addf %771, %817 : vector<2x16x32xf32>
    %c7_497 = arith.constant 7 : index
    %c0_498 = arith.constant 0 : index
    %c0_499 = arith.constant 0 : index
    %819 = vector.load %arg19[%c7_497, %c0_498, %c0_499] : memref<8x32x4xbf16, #tpu.memory_space<vmem>>, vector<1x32x4xbf16>
    %820 = vector.shape_cast %819 : vector<1x32x4xbf16> to vector<32x4xbf16>
    "tpu.trace_start"() <{level = 10 : i32, message = "bld,de->ble"}> : () -> ()
    %cst_500 = arith.constant dense<0.000000e+00> : vector<2x16x4xf32>
    %821 = tpu.matmul %488, %820, %cst_500 {dimension_numbers = #tpu.dot_dimension_numbers<[2], [0], [0, 1], [1], [0, 0, 0, 1, 1, 1], [], []>} : vector<2x16x32xbf16>, vector<32x4xbf16>, vector<2x16x4xf32> -> vector<2x16x4xf32>
    "tpu.trace_stop"() : () -> ()
    %c7_501 = arith.constant 7 : index
    %c0_502 = arith.constant 0 : index
    %c0_503 = arith.constant 0 : index
    %822 = vector.load %arg20[%c7_501, %c0_502, %c0_503] : memref<8x1x4xf32, #tpu.memory_space<vmem>>, vector<1x1x4xf32>
    %823 = vector.shape_cast %822 : vector<1x1x4xf32> to vector<1x4xf32>
    %824 = vector.shape_cast %823 : vector<1x4xf32> to vector<1x1x4xf32>
    %825 = vector.broadcast %824 : vector<1x1x4xf32> to vector<2x16x4xf32>
    %826 = arith.addf %821, %825 : vector<2x16x4xf32>
    %c7_504 = arith.constant 7 : index
    %c0_505 = arith.constant 0 : index
    %c0_506 = arith.constant 0 : index
    %827 = vector.load %arg21[%c7_504, %c0_505, %c0_506] : memref<8x32x4xbf16, #tpu.memory_space<vmem>>, vector<1x32x4xbf16>
    %828 = vector.shape_cast %827 : vector<1x32x4xbf16> to vector<32x4xbf16>
    "tpu.trace_start"() <{level = 10 : i32, message = "bld,de->ble"}> : () -> ()
    %cst_507 = arith.constant dense<0.000000e+00> : vector<2x16x4xf32>
    %829 = tpu.matmul %488, %828, %cst_507 {dimension_numbers = #tpu.dot_dimension_numbers<[2], [0], [0, 1], [1], [0, 0, 0, 1, 1, 1], [], []>} : vector<2x16x32xbf16>, vector<32x4xbf16>, vector<2x16x4xf32> -> vector<2x16x4xf32>
    "tpu.trace_stop"() : () -> ()
    %c7_508 = arith.constant 7 : index
    %c0_509 = arith.constant 0 : index
    %c0_510 = arith.constant 0 : index
    %830 = vector.load %arg22[%c7_508, %c0_509, %c0_510] : memref<8x1x4xf32, #tpu.memory_space<vmem>>, vector<1x1x4xf32>
    %831 = vector.shape_cast %830 : vector<1x1x4xf32> to vector<1x4xf32>
    %832 = vector.shape_cast %831 : vector<1x4xf32> to vector<1x1x4xf32>
    %833 = vector.broadcast %832 : vector<1x1x4xf32> to vector<2x16x4xf32>
    %834 = arith.addf %829, %833 : vector<2x16x4xf32>
    %c7_511 = arith.constant 7 : index
    %c0_512 = arith.constant 0 : index
    %c0_513 = arith.constant 0 : index
    %835 = vector.load %arg23[%c7_511, %c0_512, %c0_513] : memref<8x32x4xbf16, #tpu.memory_space<vmem>>, vector<1x32x4xbf16>
    %836 = vector.shape_cast %835 : vector<1x32x4xbf16> to vector<32x4xbf16>
    "tpu.trace_start"() <{level = 10 : i32, message = "bld,de->ble"}> : () -> ()
    %cst_514 = arith.constant dense<0.000000e+00> : vector<2x16x4xf32>
    %837 = tpu.matmul %488, %836, %cst_514 {dimension_numbers = #tpu.dot_dimension_numbers<[2], [0], [0, 1], [1], [0, 0, 0, 1, 1, 1], [], []>} : vector<2x16x32xbf16>, vector<32x4xbf16>, vector<2x16x4xf32> -> vector<2x16x4xf32>
    "tpu.trace_stop"() : () -> ()
    %c7_515 = arith.constant 7 : index
    %c0_516 = arith.constant 0 : index
    %c0_517 = arith.constant 0 : index
    %838 = vector.load %arg24[%c7_515, %c0_516, %c0_517] : memref<8x1x4xf32, #tpu.memory_space<vmem>>, vector<1x1x4xf32>
    %839 = vector.shape_cast %838 : vector<1x1x4xf32> to vector<1x4xf32>
    %840 = vector.shape_cast %839 : vector<1x4xf32> to vector<1x1x4xf32>
    %841 = vector.broadcast %840 : vector<1x1x4xf32> to vector<2x16x4xf32>
    %842 = arith.addf %837, %841 : vector<2x16x4xf32>
    %843 = arith.truncf %826 : vector<2x16x4xf32> to vector<2x16x4xbf16>
    %844 = arith.truncf %834 : vector<2x16x4xf32> to vector<2x16x4xbf16>
    "tpu.trace_start"() <{level = 10 : i32, message = "ble,bme->blm"}> : () -> ()
    %cst_518 = arith.constant dense<0.000000e+00> : vector<2x16x16xf32>
    %845 = tpu.matmul %843, %844, %cst_518 {dimension_numbers = #tpu.dot_dimension_numbers<[2], [2], [1], [1], [0, 0, 0, 1, 1, 1], [0], [0]>} : vector<2x16x4xbf16>, vector<2x16x4xbf16>, vector<2x16x16xf32> -> vector<2x16x16xf32>
    "tpu.trace_stop"() : () -> ()
    %cst_519 = arith.constant 5.000000e-01 : f32
    %846 = vector.broadcast %cst_519 : f32 to vector<2x16x16xf32>
    %847 = arith.mulf %845, %846 : vector<2x16x16xf32>
    %cst_520 = arith.constant dense<0xFF800000> : vector<2x16xf32>
    %848 = vector.multi_reduction <maximumf>, %847, %cst_520 [2] : vector<2x16x16xf32> to vector<2x16xf32>
    %849 = vector.shape_cast %848 : vector<2x16xf32> to vector<2x16x1xf32>
    %850 = vector.broadcast %849 : vector<2x16x1xf32> to vector<2x16x16xf32>
    %851 = arith.subf %847, %850 : vector<2x16x16xf32>
    %852 = math.exp %851 : vector<2x16x16xf32>
    %cst_521 = arith.constant dense<0.000000e+00> : vector<2x16xf32>
    %853 = vector.multi_reduction <add>, %852, %cst_521 [2] : vector<2x16x16xf32> to vector<2x16xf32>
    %854 = vector.shape_cast %853 : vector<2x16xf32> to vector<2x16x1xf32>
    %855 = tpu.reciprocal %854 {approx = true} : vector<2x16x1xf32> -> vector<2x16x1xf32>
    %856 = vector.broadcast %855 : vector<2x16x1xf32> to vector<2x16x16xf32>
    %857 = arith.mulf %852, %856 : vector<2x16x16xf32>
    %858 = arith.truncf %857 : vector<2x16x16xf32> to vector<2x16x16xbf16>
    %859 = arith.truncf %842 : vector<2x16x4xf32> to vector<2x16x4xbf16>
    "tpu.trace_start"() <{level = 10 : i32, message = "blm,bme->ble"}> : () -> ()
    %cst_522 = arith.constant dense<0.000000e+00> : vector<2x16x4xf32>
    %860 = tpu.matmul %858, %859, %cst_522 {dimension_numbers = #tpu.dot_dimension_numbers<[2], [1], [1], [2], [0, 0, 0, 1, 1, 2], [0], [0]>} : vector<2x16x16xbf16>, vector<2x16x4xbf16>, vector<2x16x4xf32> -> vector<2x16x4xf32>
    "tpu.trace_stop"() : () -> ()
    %861 = arith.truncf %860 : vector<2x16x4xf32> to vector<2x16x4xbf16>
    %c7_523 = arith.constant 7 : index
    %c0_524 = arith.constant 0 : index
    %c0_525 = arith.constant 0 : index
    %862 = vector.load %arg25[%c7_523, %c0_524, %c0_525] : memref<8x4x32xbf16, #tpu.memory_space<vmem>>, vector<1x4x32xbf16>
    %863 = vector.shape_cast %862 : vector<1x4x32xbf16> to vector<4x32xbf16>
    "tpu.trace_start"() <{level = 10 : i32, message = "ble,ed->bld"}> : () -> ()
    %cst_526 = arith.constant dense<0.000000e+00> : vector<2x16x32xf32>
    %864 = tpu.matmul %861, %863, %cst_526 {dimension_numbers = #tpu.dot_dimension_numbers<[2], [0], [0, 1], [1], [0, 0, 0, 1, 1, 1], [], []>} : vector<2x16x4xbf16>, vector<4x32xbf16>, vector<2x16x32xf32> -> vector<2x16x32xf32>
    "tpu.trace_stop"() : () -> ()
    %865 = arith.addf %818, %864 : vector<2x16x32xf32>
    %c0_527 = arith.constant 0 : index
    %c0_528 = arith.constant 0 : index
    %866 = vector.load %arg26[%c0_527, %c0_528] : memref<1x32xf32, #tpu.memory_space<vmem>>, vector<1x32xf32>
    %867 = vector.shape_cast %866 : vector<1x32xf32> to vector<1x1x32xf32>
    %868 = vector.broadcast %867 : vector<1x1x32xf32> to vector<2x16x32xf32>
    %869 = arith.addf %865, %868 : vector<2x16x32xf32>
    %870 = arith.addf %487, %869 : vector<2x16x32xf32>
    %c0_529 = arith.constant 0 : index
    %c0_530 = arith.constant 0 : index
    %871 = vector.load %arg27[%c0_529, %c0_530] : memref<2x32xf32, #tpu.memory_space<vmem>>, vector<1x32xf32>
    %c1_531 = arith.constant 1 : index
    %c0_532 = arith.constant 0 : index
    %872 = vector.load %arg27[%c1_531, %c0_532] : memref<2x32xf32, #tpu.memory_space<vmem>>, vector<1x32xf32>
    %cst_533 = arith.constant dense<0.000000e+00> : vector<2x16xf32>
    %873 = vector.multi_reduction <add>, %870, %cst_533 [2] : vector<2x16x32xf32> to vector<2x16xf32>
    %874 = vector.shape_cast %873 : vector<2x16xf32> to vector<2x16x1xf32>
    %cst_534 = arith.constant 3.200000e+01 : f32
    %875 = vector.broadcast %cst_534 : f32 to vector<2x16x1xf32>
    %876 = arith.divf %874, %875 : vector<2x16x1xf32>
    %877 = vector.broadcast %876 : vector<2x16x1xf32> to vector<2x16x32xf32>
    %878 = arith.subf %870, %877 : vector<2x16x32xf32>
    %879 = arith.mulf %878, %878 : vector<2x16x32xf32>
    %cst_535 = arith.constant dense<0.000000e+00> : vector<2x16xf32>
    %880 = vector.multi_reduction <add>, %879, %cst_535 [2] : vector<2x16x32xf32> to vector<2x16xf32>
    %881 = vector.shape_cast %880 : vector<2x16xf32> to vector<2x16x1xf32>
    %cst_536 = arith.constant 3.200000e+01 : f32
    %882 = vector.broadcast %cst_536 : f32 to vector<2x16x1xf32>
    %883 = arith.divf %881, %882 : vector<2x16x1xf32>
    %884 = vector.broadcast %876 : vector<2x16x1xf32> to vector<2x16x32xf32>
    %885 = arith.subf %870, %884 : vector<2x16x32xf32>
    %cst_537 = arith.constant 9.99999974E-6 : f32
    %886 = vector.broadcast %cst_537 : f32 to vector<2x16x1xf32>
    %887 = arith.addf %883, %886 : vector<2x16x1xf32>
    %888 = math.rsqrt %887 : vector<2x16x1xf32>
    %889 = vector.broadcast %888 : vector<2x16x1xf32> to vector<2x16x32xf32>
    %890 = arith.mulf %885, %889 : vector<2x16x32xf32>
    %891 = vector.shape_cast %871 : vector<1x32xf32> to vector<1x1x32xf32>
    %892 = vector.broadcast %891 : vector<1x1x32xf32> to vector<2x16x32xf32>
    %893 = arith.mulf %890, %892 : vector<2x16x32xf32>
    %894 = vector.shape_cast %872 : vector<1x32xf32> to vector<1x1x32xf32>
    %895 = vector.broadcast %894 : vector<1x1x32xf32> to vector<2x16x32xf32>
    %896 = arith.addf %893, %895 : vector<2x16x32xf32>
    %897 = arith.truncf %896 : vector<2x16x32xf32> to vector<2x16x32xbf16>
    %c0_538 = arith.constant 0 : index
    %c0_539 = arith.constant 0 : index
    %898 = vector.load %arg28[%c0_538, %c0_539] : memref<32x128xbf16, #tpu.memory_space<vmem>>, vector<32x128xbf16>
    "tpu.trace_start"() <{level = 10 : i32, message = "bld,de->ble"}> : () -> ()
    %cst_540 = arith.constant dense<0.000000e+00> : vector<2x16x128xf32>
    %899 = tpu.matmul %897, %898, %cst_540 {dimension_numbers = #tpu.dot_dimension_numbers<[2], [0], [0, 1], [1], [0, 0, 0, 1, 1, 1], [], []>} : vector<2x16x32xbf16>, vector<32x128xbf16>, vector<2x16x128xf32> -> vector<2x16x128xf32>
    "tpu.trace_stop"() : () -> ()
    %c0_541 = arith.constant 0 : index
    %c0_542 = arith.constant 0 : index
    %900 = vector.load %arg29[%c0_541, %c0_542] : memref<1x128xf32, #tpu.memory_space<vmem>>, vector<1x128xf32>
    %901 = vector.shape_cast %900 : vector<1x128xf32> to vector<1x1x128xf32>
    %902 = vector.broadcast %901 : vector<1x1x128xf32> to vector<2x16x128xf32>
    %903 = arith.addf %899, %902 : vector<2x16x128xf32>
    %cst_543 = arith.constant 5.000000e-01 : f32
    %904 = vector.broadcast %cst_543 : f32 to vector<2x16x128xf32>
    %905 = arith.mulf %904, %903 : vector<2x16x128xf32>
    %cst_544 = arith.constant 4.471500e-02 : f32
    %906 = vector.broadcast %cst_544 : f32 to vector<2x16x128xf32>
    %907 = arith.mulf %906, %903 : vector<2x16x128xf32>
    %908 = arith.mulf %907, %903 : vector<2x16x128xf32>
    %909 = arith.mulf %908, %903 : vector<2x16x128xf32>
    %910 = arith.addf %903, %909 : vector<2x16x128xf32>
    %cst_545 = arith.constant 0.797884583 : f32
    %911 = vector.broadcast %cst_545 : f32 to vector<2x16x128xf32>
    %912 = arith.mulf %911, %910 : vector<2x16x128xf32>
    %913 = math.tanh %912 : vector<2x16x128xf32>
    %cst_546 = arith.constant 1.000000e+00 : f32
    %914 = vector.broadcast %cst_546 : f32 to vector<2x16x128xf32>
    %915 = arith.addf %914, %913 : vector<2x16x128xf32>
    %916 = arith.mulf %905, %915 : vector<2x16x128xf32>
    %917 = arith.truncf %916 : vector<2x16x128xf32> to vector<2x16x128xbf16>
    %c0_547 = arith.constant 0 : index
    %c0_548 = arith.constant 0 : index
    %918 = vector.load %arg30[%c0_547, %c0_548] : memref<128x32xbf16, #tpu.memory_space<vmem>>, vector<128x32xbf16>
    "tpu.trace_start"() <{level = 10 : i32, message = "ble,ed->bld"}> : () -> ()
    %cst_549 = arith.constant dense<0.000000e+00> : vector<2x16x32xf32>
    %919 = tpu.matmul %917, %918, %cst_549 {dimension_numbers = #tpu.dot_dimension_numbers<[2], [0], [0, 1], [1], [0, 0, 0, 1, 1, 1], [], []>} : vector<2x16x128xbf16>, vector<128x32xbf16>, vector<2x16x32xf32> -> vector<2x16x32xf32>
    "tpu.trace_stop"() : () -> ()
    %c0_550 = arith.constant 0 : index
    %c0_551 = arith.constant 0 : index
    %920 = vector.load %arg31[%c0_550, %c0_551] : memref<1x32xf32, #tpu.memory_space<vmem>>, vector<1x32xf32>
    %921 = vector.shape_cast %920 : vector<1x32xf32> to vector<1x1x32xf32>
    %922 = vector.broadcast %921 : vector<1x1x32xf32> to vector<2x16x32xf32>
    %923 = arith.addf %919, %922 : vector<2x16x32xf32>
    %924 = arith.addf %896, %923 : vector<2x16x32xf32>
    %c0_552 = arith.constant 0 : index
    %c0_553 = arith.constant 0 : index
    %925 = vector.load %arg32[%c0_552, %c0_553] : memref<2x32xf32, #tpu.memory_space<vmem>>, vector<1x32xf32>
    %c1_554 = arith.constant 1 : index
    %c0_555 = arith.constant 0 : index
    %926 = vector.load %arg32[%c1_554, %c0_555] : memref<2x32xf32, #tpu.memory_space<vmem>>, vector<1x32xf32>
    %cst_556 = arith.constant dense<0.000000e+00> : vector<2x16xf32>
    %927 = vector.multi_reduction <add>, %924, %cst_556 [2] : vector<2x16x32xf32> to vector<2x16xf32>
    %928 = vector.shape_cast %927 : vector<2x16xf32> to vector<2x16x1xf32>
    %cst_557 = arith.constant 3.200000e+01 : f32
    %929 = vector.broadcast %cst_557 : f32 to vector<2x16x1xf32>
    %930 = arith.divf %928, %929 : vector<2x16x1xf32>
    %931 = vector.broadcast %930 : vector<2x16x1xf32> to vector<2x16x32xf32>
    %932 = arith.subf %924, %931 : vector<2x16x32xf32>
    %933 = arith.mulf %932, %932 : vector<2x16x32xf32>
    %cst_558 = arith.constant dense<0.000000e+00> : vector<2x16xf32>
    %934 = vector.multi_reduction <add>, %933, %cst_558 [2] : vector<2x16x32xf32> to vector<2x16xf32>
    %935 = vector.shape_cast %934 : vector<2x16xf32> to vector<2x16x1xf32>
    %cst_559 = arith.constant 3.200000e+01 : f32
    %936 = vector.broadcast %cst_559 : f32 to vector<2x16x1xf32>
    %937 = arith.divf %935, %936 : vector<2x16x1xf32>
    %938 = vector.broadcast %930 : vector<2x16x1xf32> to vector<2x16x32xf32>
    %939 = arith.subf %924, %938 : vector<2x16x32xf32>
    %cst_560 = arith.constant 9.99999974E-6 : f32
    %940 = vector.broadcast %cst_560 : f32 to vector<2x16x1xf32>
    %941 = arith.addf %937, %940 : vector<2x16x1xf32>
    %942 = math.rsqrt %941 : vector<2x16x1xf32>
    %943 = vector.broadcast %942 : vector<2x16x1xf32> to vector<2x16x32xf32>
    %944 = arith.mulf %939, %943 : vector<2x16x32xf32>
    %945 = vector.shape_cast %925 : vector<1x32xf32> to vector<1x1x32xf32>
    %946 = vector.broadcast %945 : vector<1x1x32xf32> to vector<2x16x32xf32>
    %947 = arith.mulf %944, %946 : vector<2x16x32xf32>
    %948 = vector.shape_cast %926 : vector<1x32xf32> to vector<1x1x32xf32>
    %949 = vector.broadcast %948 : vector<1x1x32xf32> to vector<2x16x32xf32>
    %950 = arith.addf %947, %949 : vector<2x16x32xf32>
    %cst_561 = arith.constant dense<0.000000e+00> : vector<2x32xf32>
    %951 = vector.multi_reduction <add>, %950, %cst_561 [1] : vector<2x16x32xf32> to vector<2x32xf32>
    %cst_562 = arith.constant 1.600000e+01 : f32
    %952 = vector.broadcast %cst_562 : f32 to vector<2x32xf32>
    %953 = arith.divf %951, %952 : vector<2x32xf32>
    %954 = arith.truncf %953 : vector<2x32xf32> to vector<2x32xbf16>
    %c0_563 = arith.constant 0 : index
    %c0_564 = arith.constant 0 : index
    %955 = vector.load %arg33[%c0_563, %c0_564] : memref<32x64xbf16, #tpu.memory_space<vmem>>, vector<32x64xbf16>
    %cst_565 = arith.constant dense<0.000000e+00> : vector<2x64xf32>
    %956 = tpu.matmul %954, %955, %cst_565 {dimension_numbers = #tpu.dot_dimension_numbers<[1], [0], [0], [1], [0, 0, 1, 1], [], []>} : vector<2x32xbf16>, vector<32x64xbf16>, vector<2x64xf32> -> vector<2x64xf32>
    %c0_566 = arith.constant 0 : index
    %c0_567 = arith.constant 0 : index
    %957 = vector.load %arg34[%c0_566, %c0_567] : memref<1x64xf32, #tpu.memory_space<vmem>>, vector<1x64xf32>
    %958 = vector.broadcast %957 : vector<1x64xf32> to vector<2x64xf32>
    %959 = arith.addf %956, %958 : vector<2x64xf32>
    %cst_568 = arith.constant 5.000000e-01 : f32
    %960 = vector.broadcast %cst_568 : f32 to vector<2x64xf32>
    %961 = arith.mulf %960, %959 : vector<2x64xf32>
    %cst_569 = arith.constant 4.471500e-02 : f32
    %962 = vector.broadcast %cst_569 : f32 to vector<2x64xf32>
    %963 = arith.mulf %962, %959 : vector<2x64xf32>
    %964 = arith.mulf %963, %959 : vector<2x64xf32>
    %965 = arith.mulf %964, %959 : vector<2x64xf32>
    %966 = arith.addf %959, %965 : vector<2x64xf32>
    %cst_570 = arith.constant 0.797884583 : f32
    %967 = vector.broadcast %cst_570 : f32 to vector<2x64xf32>
    %968 = arith.mulf %967, %966 : vector<2x64xf32>
    %969 = math.tanh %968 : vector<2x64xf32>
    %cst_571 = arith.constant 1.000000e+00 : f32
    %970 = vector.broadcast %cst_571 : f32 to vector<2x64xf32>
    %971 = arith.addf %970, %969 : vector<2x64xf32>
    %972 = arith.mulf %961, %971 : vector<2x64xf32>
    %973 = arith.truncf %972 : vector<2x64xf32> to vector<2x64xbf16>
    %c0_572 = arith.constant 0 : index
    %c0_573 = arith.constant 0 : index
    %974 = vector.load %arg35[%c0_572, %c0_573] : memref<64x1xbf16, #tpu.memory_space<vmem>>, vector<64x1xbf16>
    %cst_574 = arith.constant dense<0.000000e+00> : vector<2x1xf32>
    %975 = tpu.matmul %973, %974, %cst_574 {dimension_numbers = #tpu.dot_dimension_numbers<[1], [0], [0], [1], [0, 0, 1, 1], [], []>} : vector<2x64xbf16>, vector<64x1xbf16>, vector<2x1xf32> -> vector<2x1xf32>
    %c0_575 = arith.constant 0 : index
    %c0_576 = arith.constant 0 : index
    %976 = vector.load %arg36[%c0_575, %c0_576] : memref<1x1xf32, #tpu.memory_space<vmem>>, vector<1x1xf32>
    %977 = vector.broadcast %976 : vector<1x1xf32> to vector<2x1xf32>
    %978 = arith.addf %975, %977 : vector<2x1xf32>
    %979 = vector.shape_cast %978 : vector<2x1xf32> to vector<1x2x1xf32>
    %c0_577 = arith.constant 0 : index
    %c0_578 = arith.constant 0 : index
    %c0_579 = arith.constant 0 : index
    %980 = vector.load %arg37[%c0_577, %c0_578, %c0_579] : memref<1x2x1xf32, #tpu.memory_space<vmem>>, vector<1x2x1xf32>
    tpu.vector_store %arg37[%c0_577, %c0_578, %c0_579], %979 {strides = array<i32>} : memref<1x2x1xf32, #tpu.memory_space<vmem>>, vector<1x2x1xf32>,
    return
  }
  func.func @transform_0(%arg0: i32) -> (i32, i32, i32) {
    %c0_i32 = arith.constant 0 : i32
    %c0_i32_0 = arith.constant 0 : i32
    %c0_i32_1 = arith.constant 0 : i32
    return %arg0, %c0_i32, %c0_i32_0 : i32, i32, i32
  }
  func.func @transform_1(%arg0: i32) -> (i32, i32) {
    %c0_i32 = arith.constant 0 : i32
    %c0_i32_0 = arith.constant 0 : i32
    %c0_i32_1 = arith.constant 0 : i32
    return %c0_i32, %c0_i32_0 : i32, i32
  }
  func.func @transform_2(%arg0: i32) -> (i32, i32, i32) {
    %c0_i32 = arith.constant 0 : i32
    %c0_i32_0 = arith.constant 0 : i32
    %c0_i32_1 = arith.constant 0 : i32
    %c0_i32_2 = arith.constant 0 : i32
    return %c0_i32, %c0_i32_0, %c0_i32_1 : i32, i32, i32
  }
  func.func @transform_3(%arg0: i32) -> (i32, i32) {
    %c0_i32 = arith.constant 0 : i32
    %c0_i32_0 = arith.constant 0 : i32
    %c0_i32_1 = arith.constant 0 : i32
    return %c0_i32, %c0_i32_0 : i32, i32
  }
  func.func @transform_4(%arg0: i32) -> (i32, i32, i32) {
    %c0_i32 = arith.constant 0 : i32
    %c0_i32_0 = arith.constant 0 : i32
    %c0_i32_1 = arith.constant 0 : i32
    %c0_i32_2 = arith.constant 0 : i32
    return %c0_i32, %c0_i32_0, %c0_i32_1 : i32, i32, i32
  }
  func.func @transform_5(%arg0: i32) -> (i32, i32, i32) {
    %c0_i32 = arith.constant 0 : i32
    %c0_i32_0 = arith.constant 0 : i32
    %c0_i32_1 = arith.constant 0 : i32
    %c0_i32_2 = arith.constant 0 : i32
    return %c0_i32, %c0_i32_0, %c0_i32_1 : i32, i32, i32
  }
  func.func @transform_6(%arg0: i32) -> (i32, i32, i32) {
    %c0_i32 = arith.constant 0 : i32
    %c0_i32_0 = arith.constant 0 : i32
    %c0_i32_1 = arith.constant 0 : i32
    %c0_i32_2 = arith.constant 0 : i32
    return %c0_i32, %c0_i32_0, %c0_i32_1 : i32, i32, i32
  }
  func.func @transform_7(%arg0: i32) -> (i32, i32, i32) {
    %c0_i32 = arith.constant 0 : i32
    %c0_i32_0 = arith.constant 0 : i32
    %c0_i32_1 = arith.constant 0 : i32
    %c0_i32_2 = arith.constant 0 : i32
    return %c0_i32, %c0_i32_0, %c0_i32_1 : i32, i32, i32
  }
  func.func @transform_8(%arg0: i32) -> (i32, i32, i32) {
    %c0_i32 = arith.constant 0 : i32
    %c0_i32_0 = arith.constant 0 : i32
    %c0_i32_1 = arith.constant 0 : i32
    %c0_i32_2 = arith.constant 0 : i32
    return %c0_i32, %c0_i32_0, %c0_i32_1 : i32, i32, i32
  }
  func.func @transform_9(%arg0: i32) -> (i32, i32, i32) {
    %c0_i32 = arith.constant 0 : i32
    %c0_i32_0 = arith.constant 0 : i32
    %c0_i32_1 = arith.constant 0 : i32
    %c0_i32_2 = arith.constant 0 : i32
    return %c0_i32, %c0_i32_0, %c0_i32_1 : i32, i32, i32
  }
  func.func @transform_10(%arg0: i32) -> (i32, i32, i32) {
    %c0_i32 = arith.constant 0 : i32
    %c0_i32_0 = arith.constant 0 : i32
    %c0_i32_1 = arith.constant 0 : i32
    %c0_i32_2 = arith.constant 0 : i32
    return %c0_i32, %c0_i32_0, %c0_i32_1 : i32, i32, i32
  }
  func.func @transform_11(%arg0: i32) -> (i32, i32) {
    %c0_i32 = arith.constant 0 : i32
    %c0_i32_0 = arith.constant 0 : i32
    %c0_i32_1 = arith.constant 0 : i32
    return %c0_i32, %c0_i32_0 : i32, i32
  }
  func.func @transform_12(%arg0: i32) -> (i32, i32) {
    %c0_i32 = arith.constant 0 : i32
    %c0_i32_0 = arith.constant 0 : i32
    %c0_i32_1 = arith.constant 0 : i32
    return %c0_i32, %c0_i32_0 : i32, i32
  }
  func.func @transform_13(%arg0: i32) -> (i32, i32) {
    %c0_i32 = arith.constant 0 : i32
    %c0_i32_0 = arith.constant 0 : i32
    %c0_i32_1 = arith.constant 0 : i32
    return %c0_i32, %c0_i32_0 : i32, i32
  }
  func.func @transform_14(%arg0: i32) -> (i32, i32) {
    %c0_i32 = arith.constant 0 : i32
    %c0_i32_0 = arith.constant 0 : i32
    %c0_i32_1 = arith.constant 0 : i32
    return %c0_i32, %c0_i32_0 : i32, i32
  }
  func.func @transform_15(%arg0: i32) -> (i32, i32) {
    %c0_i32 = arith.constant 0 : i32
    %c0_i32_0 = arith.constant 0 : i32
    %c0_i32_1 = arith.constant 0 : i32
    return %c0_i32, %c0_i32_0 : i32, i32
  }
  func.func @transform_16(%arg0: i32) -> (i32, i32) {
    %c0_i32 = arith.constant 0 : i32
    %c0_i32_0 = arith.constant 0 : i32
    %c0_i32_1 = arith.constant 0 : i32
    return %c0_i32, %c0_i32_0 : i32, i32
  }
  func.func @transform_17(%arg0: i32) -> (i32, i32) {
    %c0_i32 = arith.constant 0 : i32
    %c0_i32_0 = arith.constant 0 : i32
    %c0_i32_1 = arith.constant 0 : i32
    return %c0_i32, %c0_i32_0 : i32, i32
  }
  func.func @transform_18(%arg0: i32) -> (i32, i32, i32) {
    %c0_i32 = arith.constant 0 : i32
    %c0_i32_0 = arith.constant 0 : i32
    %c0_i32_1 = arith.constant 0 : i32
    %c0_i32_2 = arith.constant 0 : i32
    return %c0_i32, %c0_i32_0, %c0_i32_1 : i32, i32, i32
  }
  func.func @transform_19(%arg0: i32) -> (i32, i32, i32) {
    %c0_i32 = arith.constant 0 : i32
    %c0_i32_0 = arith.constant 0 : i32
    %c0_i32_1 = arith.constant 0 : i32
    %c0_i32_2 = arith.constant 0 : i32
    return %c0_i32, %c0_i32_0, %c0_i32_1 : i32, i32, i32
  }
  func.func @transform_20(%arg0: i32) -> (i32, i32, i32) {
    %c0_i32 = arith.constant 0 : i32
    %c0_i32_0 = arith.constant 0 : i32
    %c0_i32_1 = arith.constant 0 : i32
    %c0_i32_2 = arith.constant 0 : i32
    return %c0_i32, %c0_i32_0, %c0_i32_1 : i32, i32, i32
  }
  func.func @transform_21(%arg0: i32) -> (i32, i32, i32) {
    %c0_i32 = arith.constant 0 : i32
    %c0_i32_0 = arith.constant 0 : i32
    %c0_i32_1 = arith.constant 0 : i32
    %c0_i32_2 = arith.constant 0 : i32
    return %c0_i32, %c0_i32_0, %c0_i32_1 : i32, i32, i32
  }
  func.func @transform_22(%arg0: i32) -> (i32, i32, i32) {
    %c0_i32 = arith.constant 0 : i32
    %c0_i32_0 = arith.constant 0 : i32
    %c0_i32_1 = arith.constant 0 : i32
    %c0_i32_2 = arith.constant 0 : i32
    return %c0_i32, %c0_i32_0, %c0_i32_1 : i32, i32, i32
  }
  func.func @transform_23(%arg0: i32) -> (i32, i32, i32) {
    %c0_i32 = arith.constant 0 : i32
    %c0_i32_0 = arith.constant 0 : i32
    %c0_i32_1 = arith.constant 0 : i32
    %c0_i32_2 = arith.constant 0 : i32
    return %c0_i32, %c0_i32_0, %c0_i32_1 : i32, i32, i32
  }
  func.func @transform_24(%arg0: i32) -> (i32, i32, i32) {
    %c0_i32 = arith.constant 0 : i32
    %c0_i32_0 = arith.constant 0 : i32
    %c0_i32_1 = arith.constant 0 : i32
    %c0_i32_2 = arith.constant 0 : i32
    return %c0_i32, %c0_i32_0, %c0_i32_1 : i32, i32, i32
  }
  func.func @transform_25(%arg0: i32) -> (i32, i32) {
    %c0_i32 = arith.constant 0 : i32
    %c0_i32_0 = arith.constant 0 : i32
    %c0_i32_1 = arith.constant 0 : i32
    return %c0_i32, %c0_i32_0 : i32, i32
  }
  func.func @transform_26(%arg0: i32) -> (i32, i32) {
    %c0_i32 = arith.constant 0 : i32
    %c0_i32_0 = arith.constant 0 : i32
    %c0_i32_1 = arith.constant 0 : i32
    return %c0_i32, %c0_i32_0 : i32, i32
  }
  func.func @transform_27(%arg0: i32) -> (i32, i32) {
    %c0_i32 = arith.constant 0 : i32
    %c0_i32_0 = arith.constant 0 : i32
    %c0_i32_1 = arith.constant 0 : i32
    return %c0_i32, %c0_i32_0 : i32, i32
  }
  func.func @transform_28(%arg0: i32) -> (i32, i32) {
    %c0_i32 = arith.constant 0 : i32
    %c0_i32_0 = arith.constant 0 : i32
    %c0_i32_1 = arith.constant 0 : i32
    return %c0_i32, %c0_i32_0 : i32, i32
  }
  func.func @transform_29(%arg0: i32) -> (i32, i32) {
    %c0_i32 = arith.constant 0 : i32
    %c0_i32_0 = arith.constant 0 : i32
    %c0_i32_1 = arith.constant 0 : i32
    return %c0_i32, %c0_i32_0 : i32, i32
  }
  func.func @transform_30(%arg0: i32) -> (i32, i32) {
    %c0_i32 = arith.constant 0 : i32
    %c0_i32_0 = arith.constant 0 : i32
    %c0_i32_1 = arith.constant 0 : i32
    return %c0_i32, %c0_i32_0 : i32, i32
  }
  func.func @transform_31(%arg0: i32) -> (i32, i32) {
    %c0_i32 = arith.constant 0 : i32
    %c0_i32_0 = arith.constant 0 : i32
    %c0_i32_1 = arith.constant 0 : i32
    return %c0_i32, %c0_i32_0 : i32, i32
  }
  func.func @transform_32(%arg0: i32) -> (i32, i32) {
    %c0_i32 = arith.constant 0 : i32
    %c0_i32_0 = arith.constant 0 : i32
    %c0_i32_1 = arith.constant 0 : i32
    return %c0_i32, %c0_i32_0 : i32, i32
  }
  func.func @transform_33(%arg0: i32) -> (i32, i32) {
    %c0_i32 = arith.constant 0 : i32
    %c0_i32_0 = arith.constant 0 : i32
    %c0_i32_1 = arith.constant 0 : i32
    return %c0_i32, %c0_i32_0 : i32, i32
  }
  func.func @transform_34(%arg0: i32) -> (i32, i32) {
    %c0_i32 = arith.constant 0 : i32
    %c0_i32_0 = arith.constant 0 : i32
    %c0_i32_1 = arith.constant 0 : i32
    return %c0_i32, %c0_i32_0 : i32, i32
  }
  func.func @transform_35(%arg0: i32) -> (i32, i32) {
    %c0_i32 = arith.constant 0 : i32
    %c0_i32_0 = arith.constant 0 : i32
    %c0_i32_1 = arith.constant 0 : i32
    return %c0_i32, %c0_i32_0 : i32, i32
  }
  func.func @transform_36(%arg0: i32) -> (i32, i32, i32) {
    %c0_i32 = arith.constant 0 : i32
    %c0_i32_0 = arith.constant 0 : i32
    %c0_i32_1 = arith.constant 0 : i32
    return %arg0, %c0_i32, %c0_i32_0 : i32, i32, i32
  }
}

</mosaic_0001>

<llo_original>
// kernel: model_forward.1
$region0: #{model_forward.1}
  #allocation0 [shape = 'u32[]', space=smem, size = 0x4, offset = 0x4, fixed_abs, tag = 'smem constant byte address 0x4 - core index']
  #allocation1 [shape = 'u32[144,128]{1,0:T(1,128)}', space=vmem, size = 0x12000, scoped, tag = 'internal scratch']
  #allocation2 [shape = 'f32[1,1]{1,0:T(1,128)S(1)}', space=vmem, size = 0x200, scoped, tag = 'scoped memory for model_forward.1']
  %s0 = inlined_call_operand.smem [shape: u32[37], index: -1, kind: input, shape index: {}]
  %s1 = sld [smem:[%s0]]
  %s2 = scalar_lea.smem %s0, 1
  %s3 = sld [smem:[%s2]]
  %s4 = scalar_lea.smem %s0, 2
  %s5 = sld [smem:[%s4]]
  %s6 = scalar_lea.smem %s0, 3
  %s7 = sld [smem:[%s6]]
  %s8 = scalar_lea.smem %s0, 4
  %s9 = sld [smem:[%s8]]
  %s10 = scalar_lea.smem %s0, 5
  %s11 = sld [smem:[%s10]]
  %s12 = scalar_lea.smem %s0, 6
  %s13 = sld [smem:[%s12]]
  %s14 = scalar_lea.smem %s0, 7
  %s15 = sld [smem:[%s14]]
  %s16 = scalar_lea.smem %s0, 8
  %s17 = sld [smem:[%s16]]
  %s18 = scalar_lea.smem %s0, 9
  %s19 = sld [smem:[%s18]]
  %s20 = scalar_lea.smem %s0, 10
  %s21 = sld [smem:[%s20]]
  %s22 = scalar_lea.smem %s0, 11
  %s23 = sld [smem:[%s22]]
  %s24 = scalar_lea.smem %s0, 12
  %s25 = sld [smem:[%s24]]
  %s26 = scalar_lea.smem %s0, 13
  %s27 = sld [smem:[%s26]]
  %s28 = scalar_lea.smem %s0, 14
  %s29 = sld [smem:[%s28]]
  %s30 = scalar_lea.smem %s0, 15
  %s31 = sld [smem:[%s30]]
  %s32 = scalar_lea.smem %s0, 16
  %s33 = sld [smem:[%s32]]
  %s34 = scalar_lea.smem %s0, 17
  %s35 = sld [smem:[%s34]]
  %s36 = scalar_lea.smem %s0, 18
  %s37 = sld [smem:[%s36]]
  %s38 = scalar_lea.smem %s0, 19
  %s39 = sld [smem:[%s38]]
  %s40 = scalar_lea.smem %s0, 20
  %s41 = sld [smem:[%s40]]
  %s42 = scalar_lea.smem %s0, 21
  %s43 = sld [smem:[%s42]]
  %s44 = scalar_lea.smem %s0, 22
  %s45 = sld [smem:[%s44]]
  %s46 = scalar_lea.smem %s0, 23
  %s47 = sld [smem:[%s46]]
  %s48 = scalar_lea.smem %s0, 24
  %s49 = sld [smem:[%s48]]
  %s50 = scalar_lea.smem %s0, 25
  %s51 = sld [smem:[%s50]]
  %s52 = scalar_lea.smem %s0, 26
  %s53 = sld [smem:[%s52]]
  %s54 = scalar_lea.smem %s0, 27
  %s55 = sld [smem:[%s54]]
  %s56 = scalar_lea.smem %s0, 28
  %s57 = sld [smem:[%s56]]
  %s58 = scalar_lea.smem %s0, 29
  %s59 = sld [smem:[%s58]]
  %s60 = scalar_lea.smem %s0, 30
  %s61 = sld [smem:[%s60]]
  %s62 = scalar_lea.smem %s0, 31
  %s63 = sld [smem:[%s62]]
  %s64 = scalar_lea.smem %s0, 32
  %s65 = sld [smem:[%s64]]
  %s66 = scalar_lea.smem %s0, 33
  %s67 = sld [smem:[%s66]]
  %s68 = scalar_lea.smem %s0, 34
  %s69 = sld [smem:[%s68]]
  %s70 = scalar_lea.smem %s0, 35
  %s71 = sld [smem:[%s70]]
  %s72 = scalar_lea.smem %s0, 36
  %s73 = sld [smem:[%s72]]
  %s74 = sld [smem:[#allocation0]]
  $region154: #{model_forward.1} parent=0
    _
  %s76 = ssub.s32 1, %s74
  %s77 = scalar_select 0, %s76, %s74
  %v78 = vstv %s71
  %79 = vst [vmem:[#allocation2] sm:$0x1] %v78
  // Predicated region
  $region2: #{model_forward.1} parent=0 // pred_check
    _
  $region3: #{model_forward.1} parent=0 // pred_check_branch
    %81 = sbr.rel (0) target = $region5
  $region4: #{model_forward.1} parent=0 // pred_region
    _
  $region5: #{model_forward.1} parent=0 // pred_fallthru
    _
  // Predicated region
  $region6: #{model_forward.1} parent=0 // pred_check
    _
  $region7: #{model_forward.1} parent=0 // pred_check_branch
    %83 = sbr.rel (0) target = $region9
  $region8: #{model_forward.1} parent=0 // pred_region
    _
  $region9: #{model_forward.1} parent=0 // pred_fallthru
    _
  // Predicated region
  $region10: #{model_forward.1} parent=0 // pred_check
    _
  $region11: #{model_forward.1} parent=0 // pred_check_branch
    %85 = sbr.rel (0) target = $region13
  $region12: #{model_forward.1} parent=0 // pred_region
    _
  $region13: #{model_forward.1} parent=0 // pred_fallthru
    _
  // Predicated region
  $region14: #{model_forward.1} parent=0 // pred_check
    _
  $region15: #{model_forward.1} parent=0 // pred_check_branch
    %87 = sbr.rel (0) target = $region17
  $region16: #{model_forward.1} parent=0 // pred_region
    _
  $region17: #{model_forward.1} parent=0 // pred_fallthru
    _
  // Predicated region
  $region18: #{model_forward.1} parent=0 // pred_check
    _
  $region19: #{model_forward.1} parent=0 // pred_check_branch
    %89 = sbr.rel (0) target = $region21
  $region20: #{model_forward.1} parent=0 // pred_region
    _
  $region21: #{model_forward.1} parent=0 // pred_fallthru
    _
  // Predicated region
  $region22: #{model_forward.1} parent=0 // pred_check
    _
  $region23: #{model_forward.1} parent=0 // pred_check_branch
    %91 = sbr.rel (0) target = $region25
  $region24: #{model_forward.1} parent=0 // pred_region
    _
  $region25: #{model_forward.1} parent=0 // pred_fallthru
    _
  // Predicated region
  $region26: #{model_forward.1} parent=0 // pred_check
    _
  $region27: #{model_forward.1} parent=0 // pred_check_branch
    %93 = sbr.rel (0) target = $region29
  $region28: #{model_forward.1} parent=0 // pred_region
    _
  $region29: #{model_forward.1} parent=0 // pred_fallthru
    _
  // Predicated region
  $region30: #{model_forward.1} parent=0 // pred_check
    _
  $region31: #{model_forward.1} parent=0 // pred_check_branch
    %95 = sbr.rel (0) target = $region33
  $region32: #{model_forward.1} parent=0 // pred_region
    _
  $region33: #{model_forward.1} parent=0 // pred_fallthru
    _
  // Predicated region
  $region34: #{model_forward.1} parent=0 // pred_check
    _
  $region35: #{model_forward.1} parent=0 // pred_check_branch
    %97 = sbr.rel (0) target = $region37
  $region36: #{model_forward.1} parent=0 // pred_region
    _
  $region37: #{model_forward.1} parent=0 // pred_fallthru
    _
  // Predicated region
  $region38: #{model_forward.1} parent=0 // pred_check
    _
  $region39: #{model_forward.1} parent=0 // pred_check_branch
    %99 = sbr.rel (0) target = $region41
  $region40: #{model_forward.1} parent=0 // pred_region
    _
  $region41: #{model_forward.1} parent=0 // pred_fallthru
    _
  // Predicated region
  $region42: #{model_forward.1} parent=0 // pred_check
    _
  $region43: #{model_forward.1} parent=0 // pred_check_branch
    %101 = sbr.rel (0) target = $region45
  $region44: #{model_forward.1} parent=0 // pred_region
    _
  $region45: #{model_forward.1} parent=0 // pred_fallthru
    _
  // Predicated region
  $region46: #{model_forward.1} parent=0 // pred_check
    _
  $region47: #{model_forward.1} parent=0 // pred_check_branch
    %103 = sbr.rel (0) target = $region49
  $region48: #{model_forward.1} parent=0 // pred_region
    _
  $region49: #{model_forward.1} parent=0 // pred_fallthru
    _
  // Predicated region
  $region50: #{model_forward.1} parent=0 // pred_check
    _
  $region51: #{model_forward.1} parent=0 // pred_check_branch
    %105 = sbr.rel (0) target = $region53
  $region52: #{model_forward.1} parent=0 // pred_region
    _
  $region53: #{model_forward.1} parent=0 // pred_fallthru
    _
  // Predicated region
  $region54: #{model_forward.1} parent=0 // pred_check
    _
  $region55: #{model_forward.1} parent=0 // pred_check_branch
    %107 = sbr.rel (0) target = $region57
  $region56: #{model_forward.1} parent=0 // pred_region
    _
  $region57: #{model_forward.1} parent=0 // pred_fallthru
    _
  // Predicated region
  $region58: #{model_forward.1} parent=0 // pred_check
    _
  $region59: #{model_forward.1} parent=0 // pred_check_branch
    %109 = sbr.rel (0) target = $region61
  $region60: #{model_forward.1} parent=0 // pred_region
    _
  $region61: #{model_forward.1} parent=0 // pred_fallthru
    _
  // Predicated region
  $region62: #{model_forward.1} parent=0 // pred_check
    _
  $region63: #{model_forward.1} parent=0 // pred_check_branch
    %111 = sbr.rel (0) target = $region65
  $region64: #{model_forward.1} parent=0 // pred_region
    _
  $region65: #{model_forward.1} parent=0 // pred_fallthru
    _
  // Predicated region
  $region66: #{model_forward.1} parent=0 // pred_check
    _
  $region67: #{model_forward.1} parent=0 // pred_check_branch
    %113 = sbr.rel (0) target = $region69
  $region68: #{model_forward.1} parent=0 // pred_region
    _
  $region69: #{model_forward.1} parent=0 // pred_fallthru
    _
  // Predicated region
  $region70: #{model_forward.1} parent=0 // pred_check
    _
  $region71: #{model_forward.1} parent=0 // pred_check_branch
    %115 = sbr.rel (0) target = $region73
  $region72: #{model_forward.1} parent=0 // pred_region
    _
  $region73: #{model_forward.1} parent=0 // pred_fallthru
    _
  // Predicated region
  $region74: #{model_forward.1} parent=0 // pred_check
    _
  $region75: #{model_forward.1} parent=0 // pred_check_branch
    %117 = sbr.rel (0) target = $region77
  $region76: #{model_forward.1} parent=0 // pred_region
    _
  $region77: #{model_forward.1} parent=0 // pred_fallthru
    _
  // Predicated region
  $region78: #{model_forward.1} parent=0 // pred_check
    _
  $region79: #{model_forward.1} parent=0 // pred_check_branch
    %119 = sbr.rel (0) target = $region81
  $region80: #{model_forward.1} parent=0 // pred_region
    _
  $region81: #{model_forward.1} parent=0 // pred_fallthru
    _
  // Predicated region
  $region82: #{model_forward.1} parent=0 // pred_check
    _
  $region83: #{model_forward.1} parent=0 // pred_check_branch
    %121 = sbr.rel (0) target = $region85
  $region84: #{model_forward.1} parent=0 // pred_region
    _
  $region85: #{model_forward.1} parent=0 // pred_fallthru
    _
  // Predicated region
  $region86: #{model_forward.1} parent=0 // pred_check
    _
  $region87: #{model_forward.1} parent=0 // pred_check_branch
    %123 = sbr.rel (0) target = $region89
  $region88: #{model_forward.1} parent=0 // pred_region
    _
  $region89: #{model_forward.1} parent=0 // pred_fallthru
    _
  // Predicated region
  $region90: #{model_forward.1} parent=0 // pred_check
    _
  $region91: #{model_forward.1} parent=0 // pred_check_branch
    %125 = sbr.rel (0) target = $region93
  $region92: #{model_forward.1} parent=0 // pred_region
    _
  $region93: #{model_forward.1} parent=0 // pred_fallthru
    _
  // Predicated region
  $region94: #{model_forward.1} parent=0 // pred_check
    _
  $region95: #{model_forward.1} parent=0 // pred_check_branch
    %127 = sbr.rel (0) target = $region97
  $region96: #{model_forward.1} parent=0 // pred_region
    _
  $region97: #{model_forward.1} parent=0 // pred_fallthru
    _
  // Predicated region
  $region98: #{model_forward.1} parent=0 // pred_check
    _
  $region99: #{model_forward.1} parent=0 // pred_check_branch
    %129 = sbr.rel (0) target = $region101
  $region100: #{model_forward.1} parent=0 // pred_region
    _
  $region101: #{model_forward.1} parent=0 // pred_fallthru
    _
  // Predicated region
  $region102: #{model_forward.1} parent=0 // pred_check
    _
  $region103: #{model_forward.1} parent=0 // pred_check_branch
    %131 = sbr.rel (0) target = $region105
  $region104: #{model_forward.1} parent=0 // pred_region
    _
  $region105: #{model_forward.1} parent=0 // pred_fallthru
    _
  // Predicated region
  $region106: #{model_forward.1} parent=0 // pred_check
    _
  $region107: #{model_forward.1} parent=0 // pred_check_branch
    %133 = sbr.rel (0) target = $region109
  $region108: #{model_forward.1} parent=0 // pred_region
    _
  $region109: #{model_forward.1} parent=0 // pred_fallthru
    _
  // Predicated region
  $region110: #{model_forward.1} parent=0 // pred_check
    _
  $region111: #{model_forward.1} parent=0 // pred_check_branch
    %135 = sbr.rel (0) target = $region113
  $region112: #{model_forward.1} parent=0 // pred_region
    _
  $region113: #{model_forward.1} parent=0 // pred_fallthru
    _
  // Predicated region
  $region114: #{model_forward.1} parent=0 // pred_check
    _
  $region115: #{model_forward.1} parent=0 // pred_check_branch
    %137 = sbr.rel (0) target = $region117
  $region116: #{model_forward.1} parent=0 // pred_region
    _
  $region117: #{model_forward.1} parent=0 // pred_fallthru
    _
  // Predicated region
  $region118: #{model_forward.1} parent=0 // pred_check
    _
  $region119: #{model_forward.1} parent=0 // pred_check_branch
    %139 = sbr.rel (0) target = $region121
  $region120: #{model_forward.1} parent=0 // pred_region
    _
  $region121: #{model_forward.1} parent=0 // pred_fallthru
    _
  // Predicated region
  $region122: #{model_forward.1} parent=0 // pred_check
    _
  $region123: #{model_forward.1} parent=0 // pred_check_branch
    %141 = sbr.rel (0) target = $region125
  $region124: #{model_forward.1} parent=0 // pred_region
    _
  $region125: #{model_forward.1} parent=0 // pred_fallthru
    _
  // Predicated region
  $region126: #{model_forward.1} parent=0 // pred_check
    _
  $region127: #{model_forward.1} parent=0 // pred_check_branch
    %143 = sbr.rel (0) target = $region129
  $region128: #{model_forward.1} parent=0 // pred_region
    _
  $region129: #{model_forward.1} parent=0 // pred_fallthru
    _
  // Predicated region
  $region130: #{model_forward.1} parent=0 // pred_check
    _
  $region131: #{model_forward.1} parent=0 // pred_check_branch
    %145 = sbr.rel (0) target = $region133
  $region132: #{model_forward.1} parent=0 // pred_region
    _
  $region133: #{model_forward.1} parent=0 // pred_fallthru
    _
  // Predicated region
  $region134: #{model_forward.1} parent=0 // pred_check
    _
  $region135: #{model_forward.1} parent=0 // pred_check_branch
    %147 = sbr.rel (0) target = $region137
  $region136: #{model_forward.1} parent=0 // pred_region
    _
  $region137: #{model_forward.1} parent=0 // pred_fallthru
    _
  // Predicated region
  $region138: #{model_forward.1} parent=0 // pred_check
    _
  $region139: #{model_forward.1} parent=0 // pred_check_branch
    %149 = sbr.rel (0) target = $region141
  $region140: #{model_forward.1} parent=0 // pred_region
    _
  $region141: #{model_forward.1} parent=0 // pred_fallthru
    _
  // Predicated region
  $region142: #{model_forward.1} parent=0 // pred_check
    _
  $region143: #{model_forward.1} parent=0 // pred_check_branch
    %151 = sbr.rel (0) target = $region145
  $region144: #{model_forward.1} parent=0 // pred_region
    _
  $region145: #{model_forward.1} parent=0 // pred_fallthru
    _
  %v153 = vld [vmem:[%s1] sm:$0xf]
  %v154 = vld [vmem:[%s1 + $0x4] sm:$0xf]
  %v155 = vld [vmem:[%s1 + $0x8] sm:$0x1]
  %v156 = vld [vmem:[%s1 + $0xc] sm:$0xf]
  %v157 = vld [vmem:[%s1 + $0x10] sm:$0xf]
  %v158 = vld [vmem:[%s1 + $0x14] sm:$0x1]
  %v159 = vld [vmem:[%s5] sm:$0xf]
  %v160 = vld [vmem:[%s5 + $0x4] sm:$0xf]
  %v161 = vld [vmem:[%s5 + $0x8] sm:$0xf]
  %s162 = scalar_lea.vmem %s5, 12
  %v163 = vld [vmem:[%s162] sm:$0xf]
  %v164 = vld [vmem:[%s162 + $0x4] sm:$0xf]
  %v165 = vld [vmem:[%s162 + $0x8] sm:$0xf]
  %vm166 = vsmask.f32 3328
  %vm167 = vsmask.f32 7440
  %vm168 = vmor %vm166, %vm167
  %v170 = vshrl.u32 %v153, 16
  %v172 = vrot.slane %v170, 4
  %v173 = vshll.u32 %v153, 16
  %v175 = vrot.slane %v173, 5
  %v176 = vor.u32 %v172, %v175
  %v177 = vrot.slane %v176, 4
  %v179 = vshll.u32 %v154, 16
  %v181 = vrot.slane %v179, 5
  %v182 = vsel %vm168, %v177, %v181
  %v183 = vshrl.u32 %v154, 16
  %v185 = vrot.slane %v183, 4
  %v186 = vor.u32 %v185, %v181
  %v187 = vrot.slane %v186, 4
  %v189 = vshll.u32 %v155, 16
  %v191 = vrot.slane %v189, 5
  %v192 = vsel %vm168, %v187, %v191
  %v194 = vshrl.u32 %v156, 16
  %v196 = vrot.slane %v194, 4
  %v197 = vshll.u32 %v156, 16
  %v199 = vrot.slane %v197, 5
  %v200 = vor.u32 %v196, %v199
  %v201 = vrot.slane %v200, 4
  %v203 = vshll.u32 %v157, 16
  %v205 = vrot.slane %v203, 5
  %v206 = vsel %vm168, %v201, %v205
  %v207 = vshrl.u32 %v157, 16
  %v209 = vrot.slane %v207, 4
  %v210 = vor.u32 %v209, %v205
  %v211 = vrot.slane %v210, 4
  %v213 = vshll.u32 %v158, 16
  %v215 = vrot.slane %v213, 5
  %v216 = vsel %vm168, %v211, %v215
  %v217 = vunpack.c.l.b16 %v182
  %v218 = vunpack.c.l.b16 %v192
  %v219 = vunpack.c.l.b16 %v206
  %v220 = vunpack.c.l.b16 %v216
  %v221 = vpack.c.b16 %v218, %v217
  %v222 = vpack.c.b16 %v220, %v219
  %v226 = vunpack.c.l.b16 %v163
  %v227 = vunpack.c.l.b16 %v164
  %v228 = vunpack.c.l.b16 %v165
  %v229 = vpack.c.b16 %v227, %v226
  %v230 = vpack.c.b16 %v228, %v228
  %vm232 = vcmask 195584
  %v234 = vsel %vm232, %v221, 0
  %v237 = vsel %vm232, %v222, 0
  %vm239 = vcmask 1043456
  %v241 = vsel %vm239, %v230, 0
  %243 = vmatprep.subr.bf16.mxu0 0
  %244 = vmatpush1.bf16.msra.mxu0 %v229
  %245 = vmatprep.subr.bf16.mxu0 0
  %246 = vmatpush1.bf16.msra.mxu0 %v241
  %247 = vmatprep.subr.bf16.mxu0 0
  %248 = vmatpush1.bf16.msra.mxu0 0
  %249 = vmatprep.subr.bf16.mxu0 0
  %250 = vmatpush1.bf16.msra.mxu0 0
  %251 = vmatprep.subr.bf16.mxu0 0
  %252 = vmatpush1.bf16.msra.mxu0 0
  %253 = vmatprep.subr.bf16.mxu0 0
  %254 = vmatpush1.bf16.msra.mxu0 0
  %255 = vmatprep.subr.bf16.mxu0 0
  %256 = vmatpush1.bf16.msra.mxu0 0
  %257 = vmatprep.subr.bf16.mxu0 0
  %258 = vmatpush1.bf16.msra.mxu0 0
  %259 = vmatprep.subr.bf16.mxu0 0
  %260 = vmatpush1.bf16.msra.mxu0 0
  %261 = vmatprep.subr.bf16.mxu0 0
  %262 = vmatpush1.bf16.msra.mxu0 0
  %263 = vmatprep.subr.bf16.mxu0 0
  %264 = vmatpush1.bf16.msra.mxu0 0
  %265 = vmatprep.subr.bf16.mxu0 0
  %266 = vmatpush1.bf16.msra.mxu0 0
  %267 = vmatprep.subr.bf16.mxu0 0
  %268 = vmatpush1.bf16.msra.mxu0 0
  %269 = vmatprep.subr.bf16.mxu0 0
  %270 = vmatpush1.bf16.msra.mxu0 0
  %271 = vmatprep.subr.bf16.mxu0 0
  %272 = vmatpush1.bf16.msra.mxu0 0
  %273 = vmatprep.subr.bf16.mxu0 0
  %274 = vmatpush1.bf16.msra.mxu0 0
  %275 = vmatprep.mubr.bf16.mxu0 0
  %276 = vmatmul.mubr.bf16.gmra.mrb[0].mxu0 %v234
  %v277 = vpop.f32.mrb[0].mxu0
  %v278 = vadd.f32 0.0, %v277
  %v279 = vpop.f32.mrb[0].mxu0
  %v280 = vpop.f32.mrb[0].mxu0
  %v281 = vadd.f32 0.0, %v280
  %v282 = vpop.f32.mrb[0].mxu0
  %283 = vmatprep.mubr.bf16.mxu0 0
  %284 = vmatmul.mubr.bf16.gmra.mrb[0].mxu0 %v237
  %v285 = vpop.f32.mrb[0].mxu0
  %v286 = vadd.f32 0.0, %v285
  %v287 = vpop.f32.mrb[0].mxu0
  %v288 = vpop.f32.mrb[0].mxu0
  %v289 = vadd.f32 0.0, %v288
  %v290 = vpop.f32.mrb[0].mxu0
  %291 = vdwg.mxu0
  %v296 = vunpack.c.l.b16 %v153
  %v297 = vunpack.c.l.b16 %v154
  %v298 = vunpack.c.l.b16 %v156
  %v299 = vunpack.c.l.b16 %v157
  %v300 = vpack.c.b16 %v297, %v296
  %v301 = vpack.c.b16 %v299, %v298
  %v305 = vunpack.c.l.b16 %v159
  %v306 = vunpack.c.l.b16 %v160
  %v307 = vunpack.c.l.b16 %v161
  %v308 = vpack.c.b16 %v306, %v305
  %v309 = vpack.c.b16 %v307, %v307
  %v312 = vsel %vm232, %v300, 0
  %v315 = vsel %vm232, %v301, 0
  %v318 = vsel %vm239, %v309, 0
  %320 = vmatprep.subr.bf16.mxu0 0
  %321 = vmatpush1.bf16.msra.mxu0 %v308
  %322 = vmatprep.subr.bf16.mxu0 0
  %323 = vmatpush1.bf16.msra.mxu0 %v318
  %324 = vmatprep.subr.bf16.mxu0 0
  %325 = vmatpush1.bf16.msra.mxu0 0
  %326 = vmatprep.subr.bf16.mxu0 0
  %327 = vmatpush1.bf16.msra.mxu0 0
  %328 = vmatprep.subr.bf16.mxu0 0
  %329 = vmatpush1.bf16.msra.mxu0 0
  %330 = vmatprep.subr.bf16.mxu0 0
  %331 = vmatpush1.bf16.msra.mxu0 0
  %332 = vmatprep.subr.bf16.mxu0 0
  %333 = vmatpush1.bf16.msra.mxu0 0
  %334 = vmatprep.subr.bf16.mxu0 0
  %335 = vmatpush1.bf16.msra.mxu0 0
  %336 = vmatprep.subr.bf16.mxu0 0
  %337 = vmatpush1.bf16.msra.mxu0 0
  %338 = vmatprep.subr.bf16.mxu0 0
  %339 = vmatpush1.bf16.msra.mxu0 0
  %340 = vmatprep.subr.bf16.mxu0 0
  %341 = vmatpush1.bf16.msra.mxu0 0
  %342 = vmatprep.subr.bf16.mxu0 0
  %343 = vmatpush1.bf16.msra.mxu0 0
  %344 = vmatprep.subr.bf16.mxu0 0
  %345 = vmatpush1.bf16.msra.mxu0 0
  %346 = vmatprep.subr.bf16.mxu0 0
  %347 = vmatpush1.bf16.msra.mxu0 0
  %348 = vmatprep.subr.bf16.mxu0 0
  %349 = vmatpush1.bf16.msra.mxu0 0
  %350 = vmatprep.subr.bf16.mxu0 0
  %351 = vmatpush1.bf16.msra.mxu0 0
  %352 = vmatprep.mubr.bf16.mxu0 0
  %353 = vmatmul.mubr.bf16.gmra.mrb[0].mxu0 %v312
  %v354 = vpop.f32.mrb[0].mxu0
  %v355 = vadd.f32 %v278, %v354
  %v356 = vpop.f32.mrb[0].mxu0
  %v357 = vpop.f32.mrb[0].mxu0
  %v358 = vadd.f32 %v281, %v357
  %v359 = vpop.f32.mrb[0].mxu0
  %360 = vmatprep.mubr.bf16.mxu0 0
  %361 = vmatmul.mubr.bf16.gmra.mrb[0].mxu0 %v315
  %v362 = vpop.f32.mrb[0].mxu0
  %v363 = vadd.f32 %v286, %v362
  %v364 = vpop.f32.mrb[0].mxu0
  %v365 = vpop.f32.mrb[0].mxu0
  %v366 = vadd.f32 %v289, %v365
  %v367 = vpop.f32.mrb[0].mxu0
  %368 = vdwg.mxu0
  %s369 = scalar_lea.vmem %s5, 24
  %v370 = vld [vmem:[%s369] sm:$0xf]
  %v371 = vld [vmem:[%s369 + $0x4] sm:$0xf]
  %v372 = vld [vmem:[%s369 + $0x8] sm:$0xf]
  %vm375 = vcmask 1042432
  %vm376 = vcmask 1046532
  %vm377 = vmor %vm375, %vm376
  %v378 = vrot.slane %v153, 5
  %v379 = vrot.slane %v378, 4
  %v380 = vrot.slane %v154, 5
  %v381 = vsel %vm377, %v379, %v380
  %v382 = vrot.slane %v380, 4
  %v383 = vrot.slane %v155, 5
  %v384 = vsel %vm377, %v382, %v383
  %v385 = vrot.slane %v156, 5
  %v386 = vrot.slane %v385, 4
  %v387 = vrot.slane %v157, 5
  %v388 = vsel %vm377, %v386, %v387
  %v389 = vrot.slane %v387, 4
  %v390 = vrot.slane %v158, 5
  %v391 = vsel %vm377, %v389, %v390
  %v392 = vunpack.c.l.b16 %v381
  %v393 = vunpack.c.l.b16 %v384
  %v394 = vunpack.c.l.b16 %v388
  %v395 = vunpack.c.l.b16 %v391
  %v396 = vpack.c.b16 %v393, %v392
  %v397 = vpack.c.b16 %v395, %v394
  %v401 = vunpack.c.l.b16 %v370
  %v402 = vunpack.c.l.b16 %v371
  %v403 = vunpack.c.l.b16 %v372
  %v404 = vpack.c.b16 %v402, %v401
  %v405 = vpack.c.b16 %v403, %v403
  %v408 = vsel %vm232, %v396, 0
  %v411 = vsel %vm232, %v397, 0
  %v414 = vsel %vm239, %v405, 0
  %416 = vmatprep.subr.bf16.mxu0 0
  %417 = vmatpush1.bf16.msra.mxu0 %v404
  %418 = vmatprep.subr.bf16.mxu0 0
  %419 = vmatpush1.bf16.msra.mxu0 %v414
  %420 = vmatprep.subr.bf16.mxu0 0
  %421 = vmatpush1.bf16.msra.mxu0 0
  %422 = vmatprep.subr.bf16.mxu0 0
  %423 = vmatpush1.bf16.msra.mxu0 0
  %424 = vmatprep.subr.bf16.mxu0 0
  %425 = vmatpush1.bf16.msra.mxu0 0
  %426 = vmatprep.subr.bf16.mxu0 0
  %427 = vmatpush1.bf16.msra.mxu0 0
  %428 = vmatprep.subr.bf16.mxu0 0
  %429 = vmatpush1.bf16.msra.mxu0 0
  %430 = vmatprep.subr.bf16.mxu0 0
  %431 = vmatpush1.bf16.msra.mxu0 0
  %432 = vmatprep.subr.bf16.mxu0 0
  %433 = vmatpush1.bf16.msra.mxu0 0
  %434 = vmatprep.subr.bf16.mxu0 0
  %435 = vmatpush1.bf16.msra.mxu0 0
  %436 = vmatprep.subr.bf16.mxu0 0
  %437 = vmatpush1.bf16.msra.mxu0 0
  %438 = vmatprep.subr.bf16.mxu0 0
  %439 = vmatpush1.bf16.msra.mxu0 0
  %440 = vmatprep.subr.bf16.mxu0 0
  %441 = vmatpush1.bf16.msra.mxu0 0
  %442 = vmatprep.subr.bf16.mxu0 0
  %443 = vmatpush1.bf16.msra.mxu0 0
  %444 = vmatprep.subr.bf16.mxu0 0
  %445 = vmatpush1.bf16.msra.mxu0 0
  %446 = vmatprep.subr.bf16.mxu0 0
  %447 = vmatpush1.bf16.msra.mxu0 0
  %448 = vmatprep.mubr.bf16.mxu0 0
  %449 = vmatmul.mubr.bf16.gmra.mrb[0].mxu0 %v408
  %v450 = vpop.f32.mrb[0].mxu0
  %v451 = vadd.f32 0.0, %v450
  %v452 = vpop.f32.mrb[0].mxu0
  %v453 = vpop.f32.mrb[0].mxu0
  %v454 = vadd.f32 0.0, %v453
  %v455 = vpop.f32.mrb[0].mxu0
  %456 = vmatprep.mubr.bf16.mxu0 0
  %457 = vmatmul.mubr.bf16.gmra.mrb[0].mxu0 %v411
  %v458 = vpop.f32.mrb[0].mxu0
  %v459 = vadd.f32 0.0, %v458
  %v460 = vpop.f32.mrb[0].mxu0
  %v461 = vpop.f32.mrb[0].mxu0
  %v462 = vadd.f32 0.0, %v461
  %v463 = vpop.f32.mrb[0].mxu0
  %464 = vdwg.mxu0
  %v465 = vadd.f32 %v355, %v451
  %v466 = vadd.f32 %v358, %v454
  %v467 = vadd.f32 %v363, %v459
  %v468 = vadd.f32 %v366, %v462
  %v469 = vld [vmem:[%s7] sm:$0x1]
  %v471 = vlaneseq
  %v472 = vshrl.u32 %v471, 7
  %v473 = vsub.s32 0, %v472
  %v474 = vrot.slane %v469, %v473
  %v476 = vadd.f32 %v465, %v474
  %v477 = vadd.f32 %v466, %v474
  %v478 = vadd.f32 %v467, %v474
  %v479 = vadd.f32 %v468, %v474
  %v480 = vld [vmem:[%s3] sm:$0xff]
  %v481 = vld [vmem:[%s3 + $0x8] sm:$0xff]
  %v482 = vadd.f32 %v476, %v480
  %v483 = vadd.f32 %v477, %v481
  %v484 = vadd.f32 %v478, %v480
  %v485 = vadd.f32 %v479, %v481
  %v486 = vpack.c.bf16 %v483, %v482
  %v487 = vpack.c.bf16 %v485, %v484
  %v488 = vld [vmem:[%s9] sm:$0xf]
  %v489 = vld [vmem:[%s9 + $0x4] sm:$0xf]
  %v490 = vld [vmem:[%s9 + $0x8] sm:$0xf]
  %v491 = vld [vmem:[%s9 + $0xc] sm:$0xf]
  %v492 = vld [vmem:[%s11] sm:$0x1]
  %v494 = vlaneseq
  %v495 = vshrl.u32 %v494, 7
  %v496 = vsub.s32 0, %v495
  %v497 = vrot.slane %v492, %v496
  %v503 = vunpack.c.l.b16 %v488
  %v504 = vunpack.c.l.b16 %v489
  %v505 = vunpack.c.l.b16 %v490
  %v506 = vunpack.c.l.b16 %v491
  %v507 = vpack.c.b16 %v504, %v503
  %v508 = vpack.c.b16 %v506, %v505
  %vm511 = vcmask 261120
  %v513 = vsel %vm511, %v486, 0
  %v516 = vsel %vm511, %v487, 0
  %518 = vmatprep.subr.bf16.mxu0 0
  %519 = vmatpush1.bf16.msra.mxu0 %v507
  %520 = vmatprep.subr.bf16.mxu0 0
  %521 = vmatpush1.bf16.msra.mxu0 %v508
  %522 = vmatprep.subr.bf16.mxu0 0
  %523 = vmatpush1.bf16.msra.mxu0 0
  %524 = vmatprep.subr.bf16.mxu0 0
  %525 = vmatpush1.bf16.msra.mxu0 0
  %526 = vmatprep.subr.bf16.mxu0 0
  %527 = vmatpush1.bf16.msra.mxu0 0
  %528 = vmatprep.subr.bf16.mxu0 0
  %529 = vmatpush1.bf16.msra.mxu0 0
  %530 = vmatprep.subr.bf16.mxu0 0
  %531 = vmatpush1.bf16.msra.mxu0 0
  %532 = vmatprep.subr.bf16.mxu0 0
  %533 = vmatpush1.bf16.msra.mxu0 0
  %534 = vmatprep.subr.bf16.mxu0 0
  %535 = vmatpush1.bf16.msra.mxu0 0
  %536 = vmatprep.subr.bf16.mxu0 0
  %537 = vmatpush1.bf16.msra.mxu0 0
  %538 = vmatprep.subr.bf16.mxu0 0
  %539 = vmatpush1.bf16.msra.mxu0 0
  %540 = vmatprep.subr.bf16.mxu0 0
  %541 = vmatpush1.bf16.msra.mxu0 0
  %542 = vmatprep.subr.bf16.mxu0 0
  %543 = vmatpush1.bf16.msra.mxu0 0
  %544 = vmatprep.subr.bf16.mxu0 0
  %545 = vmatpush1.bf16.msra.mxu0 0
  %546 = vmatprep.subr.bf16.mxu0 0
  %547 = vmatpush1.bf16.msra.mxu0 0
  %548 = vmatprep.subr.bf16.mxu0 0
  %549 = vmatpush1.bf16.msra.mxu0 0
  %550 = vmatprep.mubr.bf16.mxu0 0
  %551 = vmatmul.mubr.bf16.gmra.mrb[0].mxu0 %v513
  %v552 = vpop.f32.mrb[0].mxu0
  %v553 = vadd.f32 %v497, %v552
  %v554 = vpop.f32.mrb[0].mxu0
  %v555 = vpop.f32.mrb[0].mxu0
  %v556 = vadd.f32 %v497, %v555
  %v557 = vpop.f32.mrb[0].mxu0
  %558 = vmatprep.mubr.bf16.mxu0 0
  %559 = vmatmul.mubr.bf16.gmra.mrb[0].mxu0 %v516
  %v560 = vpop.f32.mrb[0].mxu0
  %v561 = vadd.f32 %v497, %v560
  %v562 = vpop.f32.mrb[0].mxu0
  %v563 = vpop.f32.mrb[0].mxu0
  %v564 = vadd.f32 %v497, %v563
  %v565 = vpop.f32.mrb[0].mxu0
  %566 = vdwg.mxu0
  %v567 = vld [vmem:[%s13] sm:$0xf]
  %v568 = vld [vmem:[%s13 + $0x4] sm:$0xf]
  %v569 = vld [vmem:[%s13 + $0x8] sm:$0xf]
  %v570 = vld [vmem:[%s13 + $0xc] sm:$0xf]
  %v571 = vld [vmem:[%s15] sm:$0x1]
  %v573 = vlaneseq
  %v574 = vshrl.u32 %v573, 7
  %v575 = vsub.s32 0, %v574
  %v576 = vrot.slane %v571, %v575
  %v582 = vunpack.c.l.b16 %v567
  %v583 = vunpack.c.l.b16 %v568
  %v584 = vunpack.c.l.b16 %v569
  %v585 = vunpack.c.l.b16 %v570
  %v586 = vpack.c.b16 %v583, %v582
  %v587 = vpack.c.b16 %v585, %v584
  %590 = vmatprep.subr.bf16.mxu0 0
  %591 = vmatpush1.bf16.msra.mxu0 %v586
  %592 = vmatprep.subr.bf16.mxu0 0
  %593 = vmatpush1.bf16.msra.mxu0 %v587
  %594 = vmatprep.subr.bf16.mxu0 0
  %595 = vmatpush1.bf16.msra.mxu0 0
  %596 = vmatprep.subr.bf16.mxu0 0
  %597 = vmatpush1.bf16.msra.mxu0 0
  %598 = vmatprep.subr.bf16.mxu0 0
  %599 = vmatpush1.bf16.msra.mxu0 0
  %600 = vmatprep.subr.bf16.mxu0 0
  %601 = vmatpush1.bf16.msra.mxu0 0
  %602 = vmatprep.subr.bf16.mxu0 0
  %603 = vmatpush1.bf16.msra.mxu0 0
  %604 = vmatprep.subr.bf16.mxu0 0
  %605 = vmatpush1.bf16.msra.mxu0 0
  %606 = vmatprep.subr.bf16.mxu0 0
  %607 = vmatpush1.bf16.msra.mxu0 0
  %608 = vmatprep.subr.bf16.mxu0 0
  %609 = vmatpush1.bf16.msra.mxu0 0
  %610 = vmatprep.subr.bf16.mxu0 0
  %611 = vmatpush1.bf16.msra.mxu0 0
  %612 = vmatprep.subr.bf16.mxu0 0
  %613 = vmatpush1.bf16.msra.mxu0 0
  %614 = vmatprep.subr.bf16.mxu0 0
  %615 = vmatpush1.bf16.msra.mxu0 0
  %616 = vmatprep.subr.bf16.mxu0 0
  %617 = vmatpush1.bf16.msra.mxu0 0
  %618 = vmatprep.subr.bf16.mxu0 0
  %619 = vmatpush1.bf16.msra.mxu0 0
  %620 = vmatprep.subr.bf16.mxu0 0
  %621 = vmatpush1.bf16.msra.mxu0 0
  %622 = vmatprep.mubr.bf16.mxu0 0
  %623 = vmatmul.mubr.bf16.gmra.mrb[0].mxu0 %v513
  %v624 = vpop.f32.mrb[0].mxu0
  %v625 = vadd.f32 %v576, %v624
  %v626 = vpop.f32.mrb[0].mxu0
  %v627 = vpop.f32.mrb[0].mxu0
  %v628 = vadd.f32 %v576, %v627
  %v629 = vpop.f32.mrb[0].mxu0
  %630 = vmatprep.mubr.bf16.mxu0 0
  %631 = vmatmul.mubr.bf16.gmra.mrb[0].mxu0 %v516
  %v632 = vpop.f32.mrb[0].mxu0
  %v633 = vadd.f32 %v576, %v632
  %v634 = vpop.f32.mrb[0].mxu0
  %v635 = vpop.f32.mrb[0].mxu0
  %v636 = vadd.f32 %v576, %v635
  %v637 = vpop.f32.mrb[0].mxu0
  %638 = vdwg.mxu0
  %v639 = vld [vmem:[%s17] sm:$0xf]
  %v640 = vld [vmem:[%s17 + $0x4] sm:$0xf]
  %v641 = vld [vmem:[%s17 + $0x8] sm:$0xf]
  %v642 = vld [vmem:[%s17 + $0xc] sm:$0xf]
  %v643 = vld [vmem:[%s19] sm:$0x1]
  %v645 = vlaneseq
  %v646 = vshrl.u32 %v645, 7
  %v647 = vsub.s32 0, %v646
  %v648 = vrot.slane %v643, %v647
  %v654 = vunpack.c.l.b16 %v639
  %v655 = vunpack.c.l.b16 %v640
  %v656 = vunpack.c.l.b16 %v641
  %v657 = vunpack.c.l.b16 %v642
  %v658 = vpack.c.b16 %v655, %v654
  %v659 = vpack.c.b16 %v657, %v656
  %662 = vmatprep.subr.bf16.mxu0 0
  %663 = vmatpush1.bf16.msra.mxu0 %v658
  %664 = vmatprep.subr.bf16.mxu0 0
  %665 = vmatpush1.bf16.msra.mxu0 %v659
  %666 = vmatprep.subr.bf16.mxu0 0
  %667 = vmatpush1.bf16.msra.mxu0 0
  %668 = vmatprep.subr.bf16.mxu0 0
  %669 = vmatpush1.bf16.msra.mxu0 0
  %670 = vmatprep.subr.bf16.mxu0 0
  %671 = vmatpush1.bf16.msra.mxu0 0
  %672 = vmatprep.subr.bf16.mxu0 0
  %673 = vmatpush1.bf16.msra.mxu0 0
  %674 = vmatprep.subr.bf16.mxu0 0
  %675 = vmatpush1.bf16.msra.mxu0 0
  %676 = vmatprep.subr.bf16.mxu0 0
  %677 = vmatpush1.bf16.msra.mxu0 0
  %678 = vmatprep.subr.bf16.mxu0 0
  %679 = vmatpush1.bf16.msra.mxu0 0
  %680 = vmatprep.subr.bf16.mxu0 0
  %681 = vmatpush1.bf16.msra.mxu0 0
  %682 = vmatprep.subr.bf16.mxu0 0
  %683 = vmatpush1.bf16.msra.mxu0 0
  %684 = vmatprep.subr.bf16.mxu0 0
  %685 = vmatpush1.bf16.msra.mxu0 0
  %686 = vmatprep.subr.bf16.mxu0 0
  %687 = vmatpush1.bf16.msra.mxu0 0
  %688 = vmatprep.subr.bf16.mxu0 0
  %689 = vmatpush1.bf16.msra.mxu0 0
  %690 = vmatprep.subr.bf16.mxu0 0
  %691 = vmatpush1.bf16.msra.mxu0 0
  %692 = vmatprep.subr.bf16.mxu0 0
  %693 = vmatpush1.bf16.msra.mxu0 0
  %694 = vmatprep.mubr.bf16.mxu0 0
  %695 = vmatmul.mubr.bf16.gmra.mrb[0].mxu0 %v513
  %v696 = vpop.f32.mrb[0].mxu0
  %v697 = vadd.f32 %v648, %v696
  %v698 = vpop.f32.mrb[0].mxu0
  %v699 = vpop.f32.mrb[0].mxu0
  %v700 = vadd.f32 %v648, %v699
  %v701 = vpop.f32.mrb[0].mxu0
  %702 = vmatprep.mubr.bf16.mxu0 0
  %703 = vmatmul.mubr.bf16.gmra.mrb[0].mxu0 %v516
  %v704 = vpop.f32.mrb[0].mxu0
  %v705 = vadd.f32 %v648, %v704
  %v706 = vpop.f32.mrb[0].mxu0
  %v707 = vpop.f32.mrb[0].mxu0
  %v708 = vadd.f32 %v648, %v707
  %v709 = vpop.f32.mrb[0].mxu0
  %710 = vdwg.mxu0
  %v711 = vpack.c.bf16 %v556, %v553
  %v712 = vpack.c.bf16 %v564, %v561
  %v713 = vpack.c.bf16 %v628, %v625
  %v714 = vpack.c.bf16 %v636, %v633
  %vm715 = vcmask 31744
  %v717 = vsel %vm715, %v711, 0
  %v720 = vsel %vm715, %v713, 0
  %722 = vmatprep.subr.bf16.mxu0 0
  %723 = vmatpush1.bf16.xpose.msra.mxu0 %v720
  %724 = vmatprep.subr.bf16.mxu0 0
  %725 = vmatpush1.bf16.xpose.msra.mxu0 0
  %726 = vmatprep.subr.bf16.mxu0 0
  %727 = vmatpush1.bf16.xpose.msra.mxu0 0
  %728 = vmatprep.subr.bf16.mxu0 0
  %729 = vmatpush1.bf16.xpose.msra.mxu0 0
  %730 = vmatprep.subr.bf16.mxu0 0
  %731 = vmatpush1.bf16.xpose.msra.mxu0 0
  %732 = vmatprep.subr.bf16.mxu0 0
  %733 = vmatpush1.bf16.xpose.msra.mxu0 0
  %734 = vmatprep.subr.bf16.mxu0 0
  %735 = vmatpush1.bf16.xpose.msra.mxu0 0
  %736 = vmatprep.subr.bf16.mxu0 0
  %737 = vmatpush1.bf16.xpose.msra.mxu0 0
  %738 = vmatprep.subr.bf16.mxu0 0
  %739 = vmatpush1.bf16.xpose.msra.mxu0 0
  %740 = vmatprep.subr.bf16.mxu0 0
  %741 = vmatpush1.bf16.xpose.msra.mxu0 0
  %742 = vmatprep.subr.bf16.mxu0 0
  %743 = vmatpush1.bf16.xpose.msra.mxu0 0
  %744 = vmatprep.subr.bf16.mxu0 0
  %745 = vmatpush1.bf16.xpose.msra.mxu0 0
  %746 = vmatprep.subr.bf16.mxu0 0
  %747 = vmatpush1.bf16.xpose.msra.mxu0 0
  %748 = vmatprep.subr.bf16.mxu0 0
  %749 = vmatpush1.bf16.xpose.msra.mxu0 0
  %750 = vmatprep.subr.bf16.mxu0 0
  %751 = vmatpush1.bf16.xpose.msra.mxu0 0
  %752 = vmatprep.subr.bf16.mxu0 0
  %753 = vmatpush1.bf16.xpose.msra.mxu0 0
  %754 = vmatprep.mubr.bf16.mxu0 0
  %755 = vmatmul.mubr.bf16.gmra.mrb[0].mxu0 %v717
  %v756 = vpop.f32.mrb[0].mxu0
  %v757 = vadd.f32 0.0, %v756
  %v758 = vpop.f32.mrb[0].mxu0
  %v759 = vpop.f32.mrb[0].mxu0
  %v760 = vadd.f32 0.0, %v759
  %v761 = vpop.f32.mrb[0].mxu0
  %762 = vdwg.mxu0
  %v764 = vsel %vm715, %v712, 0
  %v767 = vsel %vm715, %v714, 0
  %769 = vmatprep.subr.bf16.mxu0 0
  %770 = vmatpush1.bf16.xpose.msra.mxu0 %v767
  %771 = vmatprep.subr.bf16.mxu0 0
  %772 = vmatpush1.bf16.xpose.msra.mxu0 0
  %773 = vmatprep.subr.bf16.mxu0 0
  %774 = vmatpush1.bf16.xpose.msra.mxu0 0
  %775 = vmatprep.subr.bf16.mxu0 0
  %776 = vmatpush1.bf16.xpose.msra.mxu0 0
  %777 = vmatprep.subr.bf16.mxu0 0
  %778 = vmatpush1.bf16.xpose.msra.mxu0 0
  %779 = vmatprep.subr.bf16.mxu0 0
  %780 = vmatpush1.bf16.xpose.msra.mxu0 0
  %781 = vmatprep.subr.bf16.mxu0 0
  %782 = vmatpush1.bf16.xpose.msra.mxu0 0
  %783 = vmatprep.subr.bf16.mxu0 0
  %784 = vmatpush1.bf16.xpose.msra.mxu0 0
  %785 = vmatprep.subr.bf16.mxu0 0
  %786 = vmatpush1.bf16.xpose.msra.mxu0 0
  %787 = vmatprep.subr.bf16.mxu0 0
  %788 = vmatpush1.bf16.xpose.msra.mxu0 0
  %789 = vmatprep.subr.bf16.mxu0 0
  %790 = vmatpush1.bf16.xpose.msra.mxu0 0
  %791 = vmatprep.subr.bf16.mxu0 0
  %792 = vmatpush1.bf16.xpose.msra.mxu0 0
  %793 = vmatprep.subr.bf16.mxu0 0
  %794 = vmatpush1.bf16.xpose.msra.mxu0 0
  %795 = vmatprep.subr.bf16.mxu0 0
  %796 = vmatpush1.bf16.xpose.msra.mxu0 0
  %797 = vmatprep.subr.bf16.mxu0 0
  %798 = vmatpush1.bf16.xpose.msra.mxu0 0
  %799 = vmatprep.subr.bf16.mxu0 0
  %800 = vmatpush1.bf16.xpose.msra.mxu0 0
  %801 = vmatprep.mubr.bf16.mxu0 0
  %802 = vmatmul.mubr.bf16.gmra.mrb[0].mxu0 %v764
  %v803 = vpop.f32.mrb[0].mxu0
  %v804 = vadd.f32 0.0, %v803
  %v805 = vpop.f32.mrb[0].mxu0
  %v806 = vpop.f32.mrb[0].mxu0
  %v807 = vadd.f32 0.0, %v806
  %v808 = vpop.f32.mrb[0].mxu0
  %809 = vdwg.mxu0
  %v810 = vmul.f32 %v757, 0.5
  %v811 = vmul.f32 %v760, 0.5
  %v812 = vmul.f32 %v804, 0.5
  %v813 = vmul.f32 %v807, 0.5
  %vm814 = vcmask 130048
  %v815 = vsel %vm814, %v810, -inf
  %816 = vmax.xlane.f32.xlu0 %v815
  %v817 = vpop.xlane.xlu0 %816
  %v818 = vsel %vm814, %v811, -inf
  %819 = vmax.xlane.f32.xlu0 %v818
  %v820 = vpop.xlane.xlu0 %819
  %v821 = vsel %vm814, %v812, -inf
  %822 = vmax.xlane.f32.xlu0 %v821
  %v823 = vpop.xlane.xlu0 %822
  %v824 = vsel %vm814, %v813, -inf
  %825 = vmax.xlane.f32.xlu0 %v824
  %v826 = vpop.xlane.xlu0 %825
  %v827 = vsub.f32 %v810, %v817
  %v828 = vsub.f32 %v811, %v820
  %v829 = vsub.f32 %v812, %v823
  %v830 = vsub.f32 %v813, %v826
  %v831 = vmul.f32 %v827, 1.442695
  %v832 = vpow.pop %v831
  %v833 = vmul.f32 %v828, 1.442695
  %v834 = vpow.pop %v833
  %v835 = vmul.f32 %v829, 1.442695
  %v836 = vpow.pop %v835
  %v837 = vmul.f32 %v830, 1.442695
  %v838 = vpow.pop %v837
  %v839 = vsel %vm814, %v832, 0.0
  %840 = vadd.xlane.f32.xlu0 %v839
  %v841 = vpop.xlane.xlu0 %840
  %v842 = vsel %vm814, %v834, 0.0
  %843 = vadd.xlane.f32.xlu0 %v842
  %v844 = vpop.xlane.xlu0 %843
  %v845 = vsel %vm814, %v836, 0.0
  %846 = vadd.xlane.f32.xlu0 %v845
  %v847 = vpop.xlane.xlu0 %846
  %v848 = vsel %vm814, %v838, 0.0
  %849 = vadd.xlane.f32.xlu0 %v848
  %v850 = vpop.xlane.xlu0 %849
  %v851 = vrcp.pop %v841
  %v852 = vrcp.pop %v844
  %v853 = vrcp.pop %v847
  %v854 = vrcp.pop %v850
  %v855 = vmul.f32 %v832, %v851
  %v856 = vmul.f32 %v834, %v852
  %v857 = vmul.f32 %v836, %v853
  %v858 = vmul.f32 %v838, %v854
  %v859 = vpack.c.bf16 %v856, %v855
  %v860 = vpack.c.bf16 %v858, %v857
  %v861 = vpack.c.bf16 %v700, %v697
  %v862 = vpack.c.bf16 %v708, %v705
  %v864 = vsel %vm814, %v859, 0
  %866 = vmatprep.subr.bf16.mxu0 0
  %867 = vmatpush1.bf16.msra.mxu0 %v861
  %868 = vmatprep.subr.bf16.mxu0 0
  %869 = vmatpush1.bf16.msra.mxu0 0
  %870 = vmatprep.subr.bf16.mxu0 0
  %871 = vmatpush1.bf16.msra.mxu0 0
  %872 = vmatprep.subr.bf16.mxu0 0
  %873 = vmatpush1.bf16.msra.mxu0 0
  %874 = vmatprep.subr.bf16.mxu0 0
  %875 = vmatpush1.bf16.msra.mxu0 0
  %876 = vmatprep.subr.bf16.mxu0 0
  %877 = vmatpush1.bf16.msra.mxu0 0
  %878 = vmatprep.subr.bf16.mxu0 0
  %879 = vmatpush1.bf16.msra.mxu0 0
  %880 = vmatprep.subr.bf16.mxu0 0
  %881 = vmatpush1.bf16.msra.mxu0 0
  %882 = vmatprep.subr.bf16.mxu0 0
  %883 = vmatpush1.bf16.msra.mxu0 0
  %884 = vmatprep.subr.bf16.mxu0 0
  %885 = vmatpush1.bf16.msra.mxu0 0
  %886 = vmatprep.subr.bf16.mxu0 0
  %887 = vmatpush1.bf16.msra.mxu0 0
  %888 = vmatprep.subr.bf16.mxu0 0
  %889 = vmatpush1.bf16.msra.mxu0 0
  %890 = vmatprep.subr.bf16.mxu0 0
  %891 = vmatpush1.bf16.msra.mxu0 0
  %892 = vmatprep.subr.bf16.mxu0 0
  %893 = vmatpush1.bf16.msra.mxu0 0
  %894 = vmatprep.subr.bf16.mxu0 0
  %895 = vmatpush1.bf16.msra.mxu0 0
  %896 = vmatprep.subr.bf16.mxu0 0
  %897 = vmatpush1.bf16.msra.mxu0 0
  %898 = vmatprep.mubr.bf16.mxu0 0
  %899 = vmatmul.mubr.bf16.gmra.mrb[0].mxu0 %v864
  %v900 = vpop.f32.mrb[0].mxu0
  %v901 = vadd.f32 0.0, %v900
  %v902 = vpop.f32.mrb[0].mxu0
  %v903 = vpop.f32.mrb[0].mxu0
  %v904 = vadd.f32 0.0, %v903
  %v905 = vpop.f32.mrb[0].mxu0
  %906 = vdwg.mxu0
  %v908 = vsel %vm814, %v860, 0
  %910 = vmatprep.subr.bf16.mxu0 0
  %911 = vmatpush1.bf16.msra.mxu0 %v862
  %912 = vmatprep.subr.bf16.mxu0 0
  %913 = vmatpush1.bf16.msra.mxu0 0
  %914 = vmatprep.subr.bf16.mxu0 0
  %915 = vmatpush1.bf16.msra.mxu0 0
  %916 = vmatprep.subr.bf16.mxu0 0
  %917 = vmatpush1.bf16.msra.mxu0 0
  %918 = vmatprep.subr.bf16.mxu0 0
  %919 = vmatpush1.bf16.msra.mxu0 0
  %920 = vmatprep.subr.bf16.mxu0 0
  %921 = vmatpush1.bf16.msra.mxu0 0
  %922 = vmatprep.subr.bf16.mxu0 0
  %923 = vmatpush1.bf16.msra.mxu0 0
  %924 = vmatprep.subr.bf16.mxu0 0
  %925 = vmatpush1.bf16.msra.mxu0 0
  %926 = vmatprep.subr.bf16.mxu0 0
  %927 = vmatpush1.bf16.msra.mxu0 0
  %928 = vmatprep.subr.bf16.mxu0 0
  %929 = vmatpush1.bf16.msra.mxu0 0
  %930 = vmatprep.subr.bf16.mxu0 0
  %931 = vmatpush1.bf16.msra.mxu0 0
  %932 = vmatprep.subr.bf16.mxu0 0
  %933 = vmatpush1.bf16.msra.mxu0 0
  %934 = vmatprep.subr.bf16.mxu0 0
  %935 = vmatpush1.bf16.msra.mxu0 0
  %936 = vmatprep.subr.bf16.mxu0 0
  %937 = vmatpush1.bf16.msra.mxu0 0
  %938 = vmatprep.subr.bf16.mxu0 0
  %939 = vmatpush1.bf16.msra.mxu0 0
  %940 = vmatprep.subr.bf16.mxu0 0
  %941 = vmatpush1.bf16.msra.mxu0 0
  %942 = vmatprep.mubr.bf16.mxu0 0
  %943 = vmatmul.mubr.bf16.gmra.mrb[0].mxu0 %v908
  %v944 = vpop.f32.mrb[0].mxu0
  %v945 = vadd.f32 0.0, %v944
  %v946 = vpop.f32.mrb[0].mxu0
  %v947 = vpop.f32.mrb[0].mxu0
  %v948 = vadd.f32 0.0, %v947
  %v949 = vpop.f32.mrb[0].mxu0
  %950 = vdwg.mxu0
  %v951 = vpack.c.bf16 %v904, %v901
  %v952 = vpack.c.bf16 %v948, %v945
  %v953 = vld [vmem:[%s21] sm:$0x3]
  %s954 = scalar_lea.vmem %s9, 16
  %v955 = vld [vmem:[%s954] sm:$0xf]
  %v956 = vld [vmem:[%s954 + $0x4] sm:$0xf]
  %v957 = vld [vmem:[%s954 + $0x8] sm:$0xf]
  %v958 = vld [vmem:[%s954 + $0xc] sm:$0xf]
  %s959 = scalar_lea.vmem %s11, 1
  %v960 = vld [vmem:[%s959] sm:$0x1]
  %v962 = vlaneseq
  %v963 = vshrl.u32 %v962, 7
  %v964 = vsub.s32 0, %v963
  %v965 = vrot.slane %v960, %v964
  %v971 = vunpack.c.l.b16 %v955
  %v972 = vunpack.c.l.b16 %v956
  %v973 = vunpack.c.l.b16 %v957
  %v974 = vunpack.c.l.b16 %v958
  %v975 = vpack.c.b16 %v972, %v971
  %v976 = vpack.c.b16 %v974, %v973
  %979 = vmatprep.subr.bf16.mxu0 0
  %980 = vmatpush1.bf16.msra.mxu0 %v975
  %981 = vmatprep.subr.bf16.mxu0 0
  %982 = vmatpush1.bf16.msra.mxu0 %v976
  %983 = vmatprep.subr.bf16.mxu0 0
  %984 = vmatpush1.bf16.msra.mxu0 0
  %985 = vmatprep.subr.bf16.mxu0 0
  %986 = vmatpush1.bf16.msra.mxu0 0
  %987 = vmatprep.subr.bf16.mxu0 0
  %988 = vmatpush1.bf16.msra.mxu0 0
  %989 = vmatprep.subr.bf16.mxu0 0
  %990 = vmatpush1.bf16.msra.mxu0 0
  %991 = vmatprep.subr.bf16.mxu0 0
  %992 = vmatpush1.bf16.msra.mxu0 0
  %993 = vmatprep.subr.bf16.mxu0 0
  %994 = vmatpush1.bf16.msra.mxu0 0
  %995 = vmatprep.subr.bf16.mxu0 0
  %996 = vmatpush1.bf16.msra.mxu0 0
  %997 = vmatprep.subr.bf16.mxu0 0
  %998 = vmatpush1.bf16.msra.mxu0 0
  %999 = vmatprep.subr.bf16.mxu0 0
  %1000 = vmatpush1.bf16.msra.mxu0 0
  %1001 = vmatprep.subr.bf16.mxu0 0
  %1002 = vmatpush1.bf16.msra.mxu0 0
  %1003 = vmatprep.subr.bf16.mxu0 0
  %1004 = vmatpush1.bf16.msra.mxu0 0
  %1005 = vmatprep.subr.bf16.mxu0 0
  %1006 = vmatpush1.bf16.msra.mxu0 0
  %1007 = vmatprep.subr.bf16.mxu0 0
  %1008 = vmatpush1.bf16.msra.mxu0 0
  %1009 = vmatprep.subr.bf16.mxu0 0
  %1010 = vmatpush1.bf16.msra.mxu0 0
  %1011 = vmatprep.mubr.bf16.mxu0 0
  %1012 = vmatmul.mubr.bf16.gmra.mrb[0].mxu0 %v513
  %v1013 = vpop.f32.mrb[0].mxu0
  %v1014 = vadd.f32 %v965, %v1013
  %v1015 = vpop.f32.mrb[0].mxu0
  %v1016 = vpop.f32.mrb[0].mxu0
  %v1017 = vadd.f32 %v965, %v1016
  %v1018 = vpop.f32.mrb[0].mxu0
  %1019 = vmatprep.mubr.bf16.mxu0 0
  %1020 = vmatmul.mubr.bf16.gmra.mrb[0].mxu0 %v516
  %v1021 = vpop.f32.mrb[0].mxu0
  %v1022 = vadd.f32 %v965, %v1021
  %v1023 = vpop.f32.mrb[0].mxu0
  %v1024 = vpop.f32.mrb[0].mxu0
  %v1025 = vadd.f32 %v965, %v1024
  %v1026 = vpop.f32.mrb[0].mxu0
  %1027 = vdwg.mxu0
  %s1028 = scalar_lea.vmem %s13, 16
  %v1029 = vld [vmem:[%s1028] sm:$0xf]
  %v1030 = vld [vmem:[%s1028 + $0x4] sm:$0xf]
  %v1031 = vld [vmem:[%s1028 + $0x8] sm:$0xf]
  %v1032 = vld [vmem:[%s1028 + $0xc] sm:$0xf]
  %s1033 = scalar_lea.vmem %s15, 1
  %v1034 = vld [vmem:[%s1033] sm:$0x1]
  %v1036 = vlaneseq
  %v1037 = vshrl.u32 %v1036, 7
  %v1038 = vsub.s32 0, %v1037
  %v1039 = vrot.slane %v1034, %v1038
  %v1045 = vunpack.c.l.b16 %v1029
  %v1046 = vunpack.c.l.b16 %v1030
  %v1047 = vunpack.c.l.b16 %v1031
  %v1048 = vunpack.c.l.b16 %v1032
  %v1049 = vpack.c.b16 %v1046, %v1045
  %v1050 = vpack.c.b16 %v1048, %v1047
  %1053 = vmatprep.subr.bf16.mxu0 0
  %1054 = vmatpush1.bf16.msra.mxu0 %v1049
  %1055 = vmatprep.subr.bf16.mxu0 0
  %1056 = vmatpush1.bf16.msra.mxu0 %v1050
  %1057 = vmatprep.subr.bf16.mxu0 0
  %1058 = vmatpush1.bf16.msra.mxu0 0
  %1059 = vmatprep.subr.bf16.mxu0 0
  %1060 = vmatpush1.bf16.msra.mxu0 0
  %1061 = vmatprep.subr.bf16.mxu0 0
  %1062 = vmatpush1.bf16.msra.mxu0 0
  %1063 = vmatprep.subr.bf16.mxu0 0
  %1064 = vmatpush1.bf16.msra.mxu0 0
  %1065 = vmatprep.subr.bf16.mxu0 0
  %1066 = vmatpush1.bf16.msra.mxu0 0
  %1067 = vmatprep.subr.bf16.mxu0 0
  %1068 = vmatpush1.bf16.msra.mxu0 0
  %1069 = vmatprep.subr.bf16.mxu0 0
  %1070 = vmatpush1.bf16.msra.mxu0 0
  %1071 = vmatprep.subr.bf16.mxu0 0
  %1072 = vmatpush1.bf16.msra.mxu0 0
  %1073 = vmatprep.subr.bf16.mxu0 0
  %1074 = vmatpush1.bf16.msra.mxu0 0
  %1075 = vmatprep.subr.bf16.mxu0 0
  %1076 = vmatpush1.bf16.msra.mxu0 0
  %1077 = vmatprep.subr.bf16.mxu0 0
  %1078 = vmatpush1.bf16.msra.mxu0 0
  %1079 = vmatprep.subr.bf16.mxu0 0
  %1080 = vmatpush1.bf16.msra.mxu0 0
  %1081 = vmatprep.subr.bf16.mxu0 0
  %1082 = vmatpush1.bf16.msra.mxu0 0
  %1083 = vmatprep.subr.bf16.mxu0 0
  %1084 = vmatpush1.bf16.msra.mxu0 0
  %1085 = vmatprep.mubr.bf16.mxu0 0
  %1086 = vmatmul.mubr.bf16.gmra.mrb[0].mxu0 %v513
  %v1087 = vpop.f32.mrb[0].mxu0
  %v1088 = vadd.f32 %v1039, %v1087
  %v1089 = vpop.f32.mrb[0].mxu0
  %v1090 = vpop.f32.mrb[0].mxu0
  %v1091 = vadd.f32 %v1039, %v1090
  %v1092 = vpop.f32.mrb[0].mxu0
  %1093 = vmatprep.mubr.bf16.mxu0 0
  %1094 = vmatmul.mubr.bf16.gmra.mrb[0].mxu0 %v516
  %v1095 = vpop.f32.mrb[0].mxu0
  %v1096 = vadd.f32 %v1039, %v1095
  %v1097 = vpop.f32.mrb[0].mxu0
  %v1098 = vpop.f32.mrb[0].mxu0
  %v1099 = vadd.f32 %v1039, %v1098
  %v1100 = vpop.f32.mrb[0].mxu0
  %1101 = vdwg.mxu0
  %s1102 = scalar_lea.vmem %s17, 16
  %v1103 = vld [vmem:[%s1102] sm:$0xf]
  %v1104 = vld [vmem:[%s1102 + $0x4] sm:$0xf]
  %v1105 = vld [vmem:[%s1102 + $0x8] sm:$0xf]
  %v1106 = vld [vmem:[%s1102 + $0xc] sm:$0xf]
  %s1107 = scalar_lea.vmem %s19, 1
  %v1108 = vld [vmem:[%s1107] sm:$0x1]
  %v1110 = vlaneseq
  %v1111 = vshrl.u32 %v1110, 7
  %v1112 = vsub.s32 0, %v1111
  %v1113 = vrot.slane %v1108, %v1112
  %v1119 = vunpack.c.l.b16 %v1103
  %v1120 = vunpack.c.l.b16 %v1104
  %v1121 = vunpack.c.l.b16 %v1105
  %v1122 = vunpack.c.l.b16 %v1106
  %v1123 = vpack.c.b16 %v1120, %v1119
  %v1124 = vpack.c.b16 %v1122, %v1121
  %1127 = vmatprep.subr.bf16.mxu0 0
  %1128 = vmatpush1.bf16.msra.mxu0 %v1123
  %1129 = vmatprep.subr.bf16.mxu0 0
  %1130 = vmatpush1.bf16.msra.mxu0 %v1124
  %1131 = vmatprep.subr.bf16.mxu0 0
  %1132 = vmatpush1.bf16.msra.mxu0 0
  %1133 = vmatprep.subr.bf16.mxu0 0
  %1134 = vmatpush1.bf16.msra.mxu0 0
  %1135 = vmatprep.subr.bf16.mxu0 0
  %1136 = vmatpush1.bf16.msra.mxu0 0
  %1137 = vmatprep.subr.bf16.mxu0 0
  %1138 = vmatpush1.bf16.msra.mxu0 0
  %1139 = vmatprep.subr.bf16.mxu0 0
  %1140 = vmatpush1.bf16.msra.mxu0 0
  %1141 = vmatprep.subr.bf16.mxu0 0
  %1142 = vmatpush1.bf16.msra.mxu0 0
  %1143 = vmatprep.subr.bf16.mxu0 0
  %1144 = vmatpush1.bf16.msra.mxu0 0
  %1145 = vmatprep.subr.bf16.mxu0 0
  %1146 = vmatpush1.bf16.msra.mxu0 0
  %1147 = vmatprep.subr.bf16.mxu0 0
  %1148 = vmatpush1.bf16.msra.mxu0 0
  %1149 = vmatprep.subr.bf16.mxu0 0
  %1150 = vmatpush1.bf16.msra.mxu0 0
  %1151 = vmatprep.subr.bf16.mxu0 0
  %1152 = vmatpush1.bf16.msra.mxu0 0
  %1153 = vmatprep.subr.bf16.mxu0 0
  %1154 = vmatpush1.bf16.msra.mxu0 0
  %1155 = vmatprep.subr.bf16.mxu0 0
  %1156 = vmatpush1.bf16.msra.mxu0 0
  %1157 = vmatprep.subr.bf16.mxu0 0
  %1158 = vmatpush1.bf16.msra.mxu0 0
  %1159 = vmatprep.mubr.bf16.mxu0 0
  %1160 = vmatmul.mubr.bf16.gmra.mrb[0].mxu0 %v513
  %v1161 = vpop.f32.mrb[0].mxu0
  %v1162 = vadd.f32 %v1113, %v1161
  %v1163 = vpop.f32.mrb[0].mxu0
  %v1164 = vpop.f32.mrb[0].mxu0
  %v1165 = vadd.f32 %v1113, %v1164
  %v1166 = vpop.f32.mrb[0].mxu0
  %1167 = vmatprep.mubr.bf16.mxu0 0
  %1168 = vmatmul.mubr.bf16.gmra.mrb[0].mxu0 %v516
  %v1169 = vpop.f32.mrb[0].mxu0
  %v1170 = vadd.f32 %v1113, %v1169
  %v1171 = vpop.f32.mrb[0].mxu0
  %v1172 = vpop.f32.mrb[0].mxu0
  %v1173 = vadd.f32 %v1113, %v1172
  %v1174 = vpop.f32.mrb[0].mxu0
  %1175 = vdwg.mxu0
  %v1176 = vpack.c.bf16 %v1017, %v1014
  %v1177 = vpack.c.bf16 %v1025, %v1022
  %v1178 = vpack.c.bf16 %v1091, %v1088
  %v1179 = vpack.c.bf16 %v1099, %v1096
  %v1181 = vsel %vm715, %v1176, 0
  %v1184 = vsel %vm715, %v1178, 0
  %1186 = vmatprep.subr.bf16.mxu0 0
  %1187 = vmatpush1.bf16.xpose.msra.mxu0 %v1184
  %1188 = vmatprep.subr.bf16.mxu0 0
  %1189 = vmatpush1.bf16.xpose.msra.mxu0 0
  %1190 = vmatprep.subr.bf16.mxu0 0
  %1191 = vmatpush1.bf16.xpose.msra.mxu0 0
  %1192 = vmatprep.subr.bf16.mxu0 0
  %1193 = vmatpush1.bf16.xpose.msra.mxu0 0
  %1194 = vmatprep.subr.bf16.mxu0 0
  %1195 = vmatpush1.bf16.xpose.msra.mxu0 0
  %1196 = vmatprep.subr.bf16.mxu0 0
  %1197 = vmatpush1.bf16.xpose.msra.mxu0 0
  %1198 = vmatprep.subr.bf16.mxu0 0
  %1199 = vmatpush1.bf16.xpose.msra.mxu0 0
  %1200 = vmatprep.subr.bf16.mxu0 0
  %1201 = vmatpush1.bf16.xpose.msra.mxu0 0
  %1202 = vmatprep.subr.bf16.mxu0 0
  %1203 = vmatpush1.bf16.xpose.msra.mxu0 0
  %1204 = vmatprep.subr.bf16.mxu0 0
  %1205 = vmatpush1.bf16.xpose.msra.mxu0 0
  %1206 = vmatprep.subr.bf16.mxu0 0
  %1207 = vmatpush1.bf16.xpose.msra.mxu0 0
  %1208 = vmatprep.subr.bf16.mxu0 0
  %1209 = vmatpush1.bf16.xpose.msra.mxu0 0
  %1210 = vmatprep.subr.bf16.mxu0 0
  %1211 = vmatpush1.bf16.xpose.msra.mxu0 0
  %1212 = vmatprep.subr.bf16.mxu0 0
  %1213 = vmatpush1.bf16.xpose.msra.mxu0 0
  %1214 = vmatprep.subr.bf16.mxu0 0
  %1215 = vmatpush1.bf16.xpose.msra.mxu0 0
  %1216 = vmatprep.subr.bf16.mxu0 0
  %1217 = vmatpush1.bf16.xpose.msra.mxu0 0
  %1218 = vmatprep.mubr.bf16.mxu0 0
  %1219 = vmatmul.mubr.bf16.gmra.mrb[0].mxu0 %v1181
  %v1220 = vpop.f32.mrb[0].mxu0
  %v1221 = vadd.f32 0.0, %v1220
  %v1222 = vpop.f32.mrb[0].mxu0
  %v1223 = vpop.f32.mrb[0].mxu0
  %v1224 = vadd.f32 0.0, %v1223
  %v1225 = vpop.f32.mrb[0].mxu0
  %1226 = vdwg.mxu0
  %v1228 = vsel %vm715, %v1177, 0
  %v1231 = vsel %vm715, %v1179, 0
  %1233 = vmatprep.subr.bf16.mxu0 0
  %1234 = vmatpush1.bf16.xpose.msra.mxu0 %v1231
  %1235 = vmatprep.subr.bf16.mxu0 0
  %1236 = vmatpush1.bf16.xpose.msra.mxu0 0
  %1237 = vmatprep.subr.bf16.mxu0 0
  %1238 = vmatpush1.bf16.xpose.msra.mxu0 0
  %1239 = vmatprep.subr.bf16.mxu0 0
  %1240 = vmatpush1.bf16.xpose.msra.mxu0 0
  %1241 = vmatprep.subr.bf16.mxu0 0
  %1242 = vmatpush1.bf16.xpose.msra.mxu0 0
  %1243 = vmatprep.subr.bf16.mxu0 0
  %1244 = vmatpush1.bf16.xpose.msra.mxu0 0
  %1245 = vmatprep.subr.bf16.mxu0 0
  %1246 = vmatpush1.bf16.xpose.msra.mxu0 0
  %1247 = vmatprep.subr.bf16.mxu0 0
  %1248 = vmatpush1.bf16.xpose.msra.mxu0 0
  %1249 = vmatprep.subr.bf16.mxu0 0
  %1250 = vmatpush1.bf16.xpose.msra.mxu0 0
  %1251 = vmatprep.subr.bf16.mxu0 0
  %1252 = vmatpush1.bf16.xpose.msra.mxu0 0
  %1253 = vmatprep.subr.bf16.mxu0 0
  %1254 = vmatpush1.bf16.xpose.msra.mxu0 0
  %1255 = vmatprep.subr.bf16.mxu0 0
  %1256 = vmatpush1.bf16.xpose.msra.mxu0 0
  %1257 = vmatprep.subr.bf16.mxu0 0
  %1258 = vmatpush1.bf16.xpose.msra.mxu0 0
  %1259 = vmatprep.subr.bf16.mxu0 0
  %1260 = vmatpush1.bf16.xpose.msra.mxu0 0
  %1261 = vmatprep.subr.bf16.mxu0 0
  %1262 = vmatpush1.bf16.xpose.msra.mxu0 0
  %1263 = vmatprep.subr.bf16.mxu0 0
  %1264 = vmatpush1.bf16.xpose.msra.mxu0 0
  %1265 = vmatprep.mubr.bf16.mxu0 0
  %1266 = vmatmul.mubr.bf16.gmra.mrb[0].mxu0 %v1228
  %v1267 = vpop.f32.mrb[0].mxu0
  %v1268 = vadd.f32 0.0, %v1267
  %v1269 = vpop.f32.mrb[0].mxu0
  %v1270 = vpop.f32.mrb[0].mxu0
  %v1271 = vadd.f32 0.0, %v1270
  %v1272 = vpop.f32.mrb[0].mxu0
  %1273 = vdwg.mxu0
  %v1274 = vmul.f32 %v1221, 0.5
  %v1275 = vmul.f32 %v1224, 0.5
  %v1276 = vmul.f32 %v1268, 0.5
  %v1277 = vmul.f32 %v1271, 0.5
  %v1278 = vsel %vm814, %v1274, -inf
  %1279 = vmax.xlane.f32.xlu0 %v1278
  %v1280 = vpop.xlane.xlu0 %1279
  %v1281 = vsel %vm814, %v1275, -inf
  %1282 = vmax.xlane.f32.xlu0 %v1281
  %v1283 = vpop.xlane.xlu0 %1282
  %v1284 = vsel %vm814, %v1276, -inf
  %1285 = vmax.xlane.f32.xlu0 %v1284
  %v1286 = vpop.xlane.xlu0 %1285
  %v1287 = vsel %vm814, %v1277, -inf
  %1288 = vmax.xlane.f32.xlu0 %v1287
  %v1289 = vpop.xlane.xlu0 %1288
  %v1290 = vsub.f32 %v1274, %v1280
  %v1291 = vsub.f32 %v1275, %v1283
  %v1292 = vsub.f32 %v1276, %v1286
  %v1293 = vsub.f32 %v1277, %v1289
  %v1294 = vmul.f32 %v1290, 1.442695
  %v1295 = vpow.pop %v1294
  %v1296 = vmul.f32 %v1291, 1.442695
  %v1297 = vpow.pop %v1296
  %v1298 = vmul.f32 %v1292, 1.442695
  %v1299 = vpow.pop %v1298
  %v1300 = vmul.f32 %v1293, 1.442695
  %v1301 = vpow.pop %v1300
  %v1302 = vsel %vm814, %v1295, 0.0
  %1303 = vadd.xlane.f32.xlu0 %v1302
  %v1304 = vpop.xlane.xlu0 %1303
  %v1305 = vsel %vm814, %v1297, 0.0
  %1306 = vadd.xlane.f32.xlu0 %v1305
  %v1307 = vpop.xlane.xlu0 %1306
  %v1308 = vsel %vm814, %v1299, 0.0
  %1309 = vadd.xlane.f32.xlu0 %v1308
  %v1310 = vpop.xlane.xlu0 %1309
  %v1311 = vsel %vm814, %v1301, 0.0
  %1312 = vadd.xlane.f32.xlu0 %v1311
  %v1313 = vpop.xlane.xlu0 %1312
  %v1314 = vrcp.pop %v1304
  %v1315 = vrcp.pop %v1307
  %v1316 = vrcp.pop %v1310
  %v1317 = vrcp.pop %v1313
  %v1318 = vmul.f32 %v1295, %v1314
  %v1319 = vmul.f32 %v1297, %v1315
  %v1320 = vmul.f32 %v1299, %v1316
  %v1321 = vmul.f32 %v1301, %v1317
  %v1322 = vpack.c.bf16 %v1319, %v1318
  %v1323 = vpack.c.bf16 %v1321, %v1320
  %v1324 = vpack.c.bf16 %v1165, %v1162
  %v1325 = vpack.c.bf16 %v1173, %v1170
  %v1327 = vsel %vm814, %v1322, 0
  %1329 = vmatprep.subr.bf16.mxu0 0
  %1330 = vmatpush1.bf16.msra.mxu0 %v1324
  %1331 = vmatprep.subr.bf16.mxu0 0
  %1332 = vmatpush1.bf16.msra.mxu0 0
  %1333 = vmatprep.subr.bf16.mxu0 0
  %1334 = vmatpush1.bf16.msra.mxu0 0
  %1335 = vmatprep.subr.bf16.mxu0 0
  %1336 = vmatpush1.bf16.msra.mxu0 0
  %1337 = vmatprep.subr.bf16.mxu0 0
  %1338 = vmatpush1.bf16.msra.mxu0 0
  %1339 = vmatprep.subr.bf16.mxu0 0
  %1340 = vmatpush1.bf16.msra.mxu0 0
  %1341 = vmatprep.subr.bf16.mxu0 0
  %1342 = vmatpush1.bf16.msra.mxu0 0
  %1343 = vmatprep.subr.bf16.mxu0 0
  %1344 = vmatpush1.bf16.msra.mxu0 0
  %1345 = vmatprep.subr.bf16.mxu0 0
  %1346 = vmatpush1.bf16.msra.mxu0 0
  %1347 = vmatprep.subr.bf16.mxu0 0
  %1348 = vmatpush1.bf16.msra.mxu0 0
  %1349 = vmatprep.subr.bf16.mxu0 0
  %1350 = vmatpush1.bf16.msra.mxu0 0
  %1351 = vmatprep.subr.bf16.mxu0 0
  %1352 = vmatpush1.bf16.msra.mxu0 0
  %1353 = vmatprep.subr.bf16.mxu0 0
  %1354 = vmatpush1.bf16.msra.mxu0 0
  %1355 = vmatprep.subr.bf16.mxu0 0
  %1356 = vmatpush1.bf16.msra.mxu0 0
  %1357 = vmatprep.subr.bf16.mxu0 0
  %1358 = vmatpush1.bf16.msra.mxu0 0
  %1359 = vmatprep.subr.bf16.mxu0 0
  %1360 = vmatpush1.bf16.msra.mxu0 0
  %1361 = vmatprep.mubr.bf16.mxu0 0
  %1362 = vmatmul.mubr.bf16.gmra.mrb[0].mxu0 %v1327
  %v1363 = vpop.f32.mrb[0].mxu0
  %v1364 = vadd.f32 0.0, %v1363
  %v1365 = vpop.f32.mrb[0].mxu0
  %v1366 = vpop.f32.mrb[0].mxu0
  %v1367 = vadd.f32 0.0, %v1366
  %v1368 = vpop.f32.mrb[0].mxu0
  %1369 = vdwg.mxu0
  %v1371 = vsel %vm814, %v1323, 0
  %1373 = vmatprep.subr.bf16.mxu0 0
  %1374 = vmatpush1.bf16.msra.mxu0 %v1325
  %1375 = vmatprep.subr.bf16.mxu0 0
  %1376 = vmatpush1.bf16.msra.mxu0 0
  %1377 = vmatprep.subr.bf16.mxu0 0
  %1378 = vmatpush1.bf16.msra.mxu0 0
  %1379 = vmatprep.subr.bf16.mxu0 0
  %1380 = vmatpush1.bf16.msra.mxu0 0
  %1381 = vmatprep.subr.bf16.mxu0 0
  %1382 = vmatpush1.bf16.msra.mxu0 0
  %1383 = vmatprep.subr.bf16.mxu0 0
  %1384 = vmatpush1.bf16.msra.mxu0 0
  %1385 = vmatprep.subr.bf16.mxu0 0
  %1386 = vmatpush1.bf16.msra.mxu0 0
  %1387 = vmatprep.subr.bf16.mxu0 0
  %1388 = vmatpush1.bf16.msra.mxu0 0
  %1389 = vmatprep.subr.bf16.mxu0 0
  %1390 = vmatpush1.bf16.msra.mxu0 0
  %1391 = vmatprep.subr.bf16.mxu0 0
  %1392 = vmatpush1.bf16.msra.mxu0 0
  %1393 = vmatprep.subr.bf16.mxu0 0
  %1394 = vmatpush1.bf16.msra.mxu0 0
  %1395 = vmatprep.subr.bf16.mxu0 0
  %1396 = vmatpush1.bf16.msra.mxu0 0
  %1397 = vmatprep.subr.bf16.mxu0 0
  %1398 = vmatpush1.bf16.msra.mxu0 0
  %1399 = vmatprep.subr.bf16.mxu0 0
  %1400 = vmatpush1.bf16.msra.mxu0 0
  %1401 = vmatprep.subr.bf16.mxu0 0
  %1402 = vmatpush1.bf16.msra.mxu0 0
  %1403 = vmatprep.subr.bf16.mxu0 0
  %1404 = vmatpush1.bf16.msra.mxu0 0
  %1405 = vmatprep.mubr.bf16.mxu0 0
  %1406 = vmatmul.mubr.bf16.gmra.mrb[0].mxu0 %v1371
  %v1407 = vpop.f32.mrb[0].mxu0
  %v1408 = vadd.f32 0.0, %v1407
  %v1409 = vpop.f32.mrb[0].mxu0
  %v1410 = vpop.f32.mrb[0].mxu0
  %v1411 = vadd.f32 0.0, %v1410
  %v1412 = vpop.f32.mrb[0].mxu0
  %1413 = vdwg.mxu0
  %v1414 = vpack.c.bf16 %v1367, %v1364
  %v1415 = vpack.c.bf16 %v1411, %v1408
  %s1416 = scalar_lea.vmem %s21, 2
  %v1417 = vld [vmem:[%s1416] sm:$0x3]
  %v1419 = vsel %vm715, %v1414, 0
  %v1422 = vsel %vm715, %v1415, 0
  %vm1424 = vcmask 1041408
  %v1426 = vsel %vm1424, %v1417, 0
  %1428 = vmatprep.subr.bf16.mxu0 0
  %1429 = vmatpush1.bf16.msra.mxu0 %v1426
  %1430 = vmatprep.subr.bf16.mxu0 0
  %1431 = vmatpush1.bf16.msra.mxu0 0
  %1432 = vmatprep.subr.bf16.mxu0 0
  %1433 = vmatpush1.bf16.msra.mxu0 0
  %1434 = vmatprep.subr.bf16.mxu0 0
  %1435 = vmatpush1.bf16.msra.mxu0 0
  %1436 = vmatprep.subr.bf16.mxu0 0
  %1437 = vmatpush1.bf16.msra.mxu0 0
  %1438 = vmatprep.subr.bf16.mxu0 0
  %1439 = vmatpush1.bf16.msra.mxu0 0
  %1440 = vmatprep.subr.bf16.mxu0 0
  %1441 = vmatpush1.bf16.msra.mxu0 0
  %1442 = vmatprep.subr.bf16.mxu0 0
  %1443 = vmatpush1.bf16.msra.mxu0 0
  %1444 = vmatprep.subr.bf16.mxu0 0
  %1445 = vmatpush1.bf16.msra.mxu0 0
  %1446 = vmatprep.subr.bf16.mxu0 0
  %1447 = vmatpush1.bf16.msra.mxu0 0
  %1448 = vmatprep.subr.bf16.mxu0 0
  %1449 = vmatpush1.bf16.msra.mxu0 0
  %1450 = vmatprep.subr.bf16.mxu0 0
  %1451 = vmatpush1.bf16.msra.mxu0 0
  %1452 = vmatprep.subr.bf16.mxu0 0
  %1453 = vmatpush1.bf16.msra.mxu0 0
  %1454 = vmatprep.subr.bf16.mxu0 0
  %1455 = vmatpush1.bf16.msra.mxu0 0
  %1456 = vmatprep.subr.bf16.mxu0 0
  %1457 = vmatpush1.bf16.msra.mxu0 0
  %1458 = vmatprep.subr.bf16.mxu0 0
  %1459 = vmatpush1.bf16.msra.mxu0 0
  %1460 = vmatprep.mubr.bf16.mxu0 0
  %1461 = vmatmul.mubr.bf16.gmra.mrb[0].mxu0 %v1419
  %v1462 = vpop.f32.mrb[0].mxu0
  %v1463 = vadd.f32 0.0, %v1462
  %v1464 = vpop.f32.mrb[0].mxu0
  %v1465 = vpop.f32.mrb[0].mxu0
  %v1466 = vadd.f32 0.0, %v1465
  %v1467 = vpop.f32.mrb[0].mxu0
  %1468 = vmatprep.mubr.bf16.mxu0 0
  %1469 = vmatmul.mubr.bf16.gmra.mrb[0].mxu0 %v1422
  %v1470 = vpop.f32.mrb[0].mxu0
  %v1471 = vadd.f32 0.0, %v1470
  %v1472 = vpop.f32.mrb[0].mxu0
  %v1473 = vpop.f32.mrb[0].mxu0
  %v1474 = vadd.f32 0.0, %v1473
  %v1475 = vpop.f32.mrb[0].mxu0
  %1476 = vdwg.mxu0
  %v1478 = vsel %vm715, %v951, 0
  %v1481 = vsel %vm715, %v952, 0
  %v1484 = vsel %vm1424, %v953, 0
  %1486 = vmatprep.subr.bf16.mxu0 0
  %1487 = vmatpush1.bf16.msra.mxu0 %v1484
  %1488 = vmatprep.subr.bf16.mxu0 0
  %1489 = vmatpush1.bf16.msra.mxu0 0
  %1490 = vmatprep.subr.bf16.mxu0 0
  %1491 = vmatpush1.bf16.msra.mxu0 0
  %1492 = vmatprep.subr.bf16.mxu0 0
  %1493 = vmatpush1.bf16.msra.mxu0 0
  %1494 = vmatprep.subr.bf16.mxu0 0
  %1495 = vmatpush1.bf16.msra.mxu0 0
  %1496 = vmatprep.subr.bf16.mxu0 0
  %1497 = vmatpush1.bf16.msra.mxu0 0
  %1498 = vmatprep.subr.bf16.mxu0 0
  %1499 = vmatpush1.bf16.msra.mxu0 0
  %1500 = vmatprep.subr.bf16.mxu0 0
  %1501 = vmatpush1.bf16.msra.mxu0 0
  %1502 = vmatprep.subr.bf16.mxu0 0
  %1503 = vmatpush1.bf16.msra.mxu0 0
  %1504 = vmatprep.subr.bf16.mxu0 0
  %1505 = vmatpush1.bf16.msra.mxu0 0
  %1506 = vmatprep.subr.bf16.mxu0 0
  %1507 = vmatpush1.bf16.msra.mxu0 0
  %1508 = vmatprep.subr.bf16.mxu0 0
  %1509 = vmatpush1.bf16.msra.mxu0 0
  %1510 = vmatprep.subr.bf16.mxu0 0
  %1511 = vmatpush1.bf16.msra.mxu0 0
  %1512 = vmatprep.subr.bf16.mxu0 0
  %1513 = vmatpush1.bf16.msra.mxu0 0
  %1514 = vmatprep.subr.bf16.mxu0 0
  %1515 = vmatpush1.bf16.msra.mxu0 0
  %1516 = vmatprep.subr.bf16.mxu0 0
  %1517 = vmatpush1.bf16.msra.mxu0 0
  %1518 = vmatprep.mubr.bf16.mxu0 0
  %1519 = vmatmul.mubr.bf16.gmra.mrb[0].mxu0 %v1478
  %v1520 = vpop.f32.mrb[0].mxu0
  %v1521 = vadd.f32 %v1463, %v1520
  %v1522 = vpop.f32.mrb[0].mxu0
  %v1523 = vpop.f32.mrb[0].mxu0
  %v1524 = vadd.f32 %v1466, %v1523
  %v1525 = vpop.f32.mrb[0].mxu0
  %1526 = vmatprep.mubr.bf16.mxu0 0
  %1527 = vmatmul.mubr.bf16.gmra.mrb[0].mxu0 %v1481
  %v1528 = vpop.f32.mrb[0].mxu0
  %v1529 = vadd.f32 %v1471, %v1528
  %v1530 = vpop.f32.mrb[0].mxu0
  %v1531 = vpop.f32.mrb[0].mxu0
  %v1532 = vadd.f32 %v1474, %v1531
  %v1533 = vpop.f32.mrb[0].mxu0
  %1534 = vdwg.mxu0
  %s1535 = scalar_lea.vmem %s9, 32
  %v1536 = vld [vmem:[%s1535] sm:$0xf]
  %v1537 = vld [vmem:[%s1535 + $0x4] sm:$0xf]
  %v1538 = vld [vmem:[%s1535 + $0x8] sm:$0xf]
  %v1539 = vld [vmem:[%s1535 + $0xc] sm:$0xf]
  %s1540 = scalar_lea.vmem %s11, 2
  %v1541 = vld [vmem:[%s1540] sm:$0x1]
  %v1543 = vlaneseq
  %v1544 = vshrl.u32 %v1543, 7
  %v1545 = vsub.s32 0, %v1544
  %v1546 = vrot.slane %v1541, %v1545
  %v1552 = vunpack.c.l.b16 %v1536
  %v1553 = vunpack.c.l.b16 %v1537
  %v1554 = vunpack.c.l.b16 %v1538
  %v1555 = vunpack.c.l.b16 %v1539
  %v1556 = vpack.c.b16 %v1553, %v1552
  %v1557 = vpack.c.b16 %v1555, %v1554
  %1560 = vmatprep.subr.bf16.mxu0 0
  %1561 = vmatpush1.bf16.msra.mxu0 %v1556
  %1562 = vmatprep.subr.bf16.mxu0 0
  %1563 = vmatpush1.bf16.msra.mxu0 %v1557
  %1564 = vmatprep.subr.bf16.mxu0 0
  %1565 = vmatpush1.bf16.msra.mxu0 0
  %1566 = vmatprep.subr.bf16.mxu0 0
  %1567 = vmatpush1.bf16.msra.mxu0 0
  %1568 = vmatprep.subr.bf16.mxu0 0
  %1569 = vmatpush1.bf16.msra.mxu0 0
  %1570 = vmatprep.subr.bf16.mxu0 0
  %1571 = vmatpush1.bf16.msra.mxu0 0
  %1572 = vmatprep.subr.bf16.mxu0 0
  %1573 = vmatpush1.bf16.msra.mxu0 0
  %1574 = vmatprep.subr.bf16.mxu0 0
  %1575 = vmatpush1.bf16.msra.mxu0 0
  %1576 = vmatprep.subr.bf16.mxu0 0
  %1577 = vmatpush1.bf16.msra.mxu0 0
  %1578 = vmatprep.subr.bf16.mxu0 0
  %1579 = vmatpush1.bf16.msra.mxu0 0
  %1580 = vmatprep.subr.bf16.mxu0 0
  %1581 = vmatpush1.bf16.msra.mxu0 0
  %1582 = vmatprep.subr.bf16.mxu0 0
  %1583 = vmatpush1.bf16.msra.mxu0 0
  %1584 = vmatprep.subr.bf16.mxu0 0
  %1585 = vmatpush1.bf16.msra.mxu0 0
  %1586 = vmatprep.subr.bf16.mxu0 0
  %1587 = vmatpush1.bf16.msra.mxu0 0
  %1588 = vmatprep.subr.bf16.mxu0 0
  %1589 = vmatpush1.bf16.msra.mxu0 0
  %1590 = vmatprep.subr.bf16.mxu0 0
  %1591 = vmatpush1.bf16.msra.mxu0 0
  %1592 = vmatprep.mubr.bf16.mxu0 0
  %1593 = vmatmul.mubr.bf16.gmra.mrb[0].mxu0 %v513
  %v1594 = vpop.f32.mrb[0].mxu0
  %v1595 = vadd.f32 %v1546, %v1594
  %v1596 = vpop.f32.mrb[0].mxu0
  %v1597 = vpop.f32.mrb[0].mxu0
  %v1598 = vadd.f32 %v1546, %v1597
  %v1599 = vpop.f32.mrb[0].mxu0
  %1600 = vmatprep.mubr.bf16.mxu0 0
  %1601 = vmatmul.mubr.bf16.gmra.mrb[0].mxu0 %v516
  %v1602 = vpop.f32.mrb[0].mxu0
  %v1603 = vadd.f32 %v1546, %v1602
  %v1604 = vpop.f32.mrb[0].mxu0
  %v1605 = vpop.f32.mrb[0].mxu0
  %v1606 = vadd.f32 %v1546, %v1605
  %v1607 = vpop.f32.mrb[0].mxu0
  %1608 = vdwg.mxu0
  %s1609 = scalar_lea.vmem %s13, 32
  %v1610 = vld [vmem:[%s1609] sm:$0xf]
  %v1611 = vld [vmem:[%s1609 + $0x4] sm:$0xf]
  %v1612 = vld [vmem:[%s1609 + $0x8] sm:$0xf]
  %v1613 = vld [vmem:[%s1609 + $0xc] sm:$0xf]
  %s1614 = scalar_lea.vmem %s15, 2
  %v1615 = vld [vmem:[%s1614] sm:$0x1]
  %v1617 = vlaneseq
  %v1618 = vshrl.u32 %v1617, 7
  %v1619 = vsub.s32 0, %v1618
  %v1620 = vrot.slane %v1615, %v1619
  %v1626 = vunpack.c.l.b16 %v1610
  %v1627 = vunpack.c.l.b16 %v1611
  %v1628 = vunpack.c.l.b16 %v1612
  %v1629 = vunpack.c.l.b16 %v1613
  %v1630 = vpack.c.b16 %v1627, %v1626
  %v1631 = vpack.c.b16 %v1629, %v1628
  %1634 = vmatprep.subr.bf16.mxu0 0
  %1635 = vmatpush1.bf16.msra.mxu0 %v1630
  %1636 = vmatprep.subr.bf16.mxu0 0
  %1637 = vmatpush1.bf16.msra.mxu0 %v1631
  %1638 = vmatprep.subr.bf16.mxu0 0
  %1639 = vmatpush1.bf16.msra.mxu0 0
  %1640 = vmatprep.subr.bf16.mxu0 0
  %1641 = vmatpush1.bf16.msra.mxu0 0
  %1642 = vmatprep.subr.bf16.mxu0 0
  %1643 = vmatpush1.bf16.msra.mxu0 0
  %1644 = vmatprep.subr.bf16.mxu0 0
  %1645 = vmatpush1.bf16.msra.mxu0 0
  %1646 = vmatprep.subr.bf16.mxu0 0
  %1647 = vmatpush1.bf16.msra.mxu0 0
  %1648 = vmatprep.subr.bf16.mxu0 0
  %1649 = vmatpush1.bf16.msra.mxu0 0
  %1650 = vmatprep.subr.bf16.mxu0 0
  %1651 = vmatpush1.bf16.msra.mxu0 0
  %1652 = vmatprep.subr.bf16.mxu0 0
  %1653 = vmatpush1.bf16.msra.mxu0 0
  %1654 = vmatprep.subr.bf16.mxu0 0
  %1655 = vmatpush1.bf16.msra.mxu0 0
  %1656 = vmatprep.subr.bf16.mxu0 0
  %1657 = vmatpush1.bf16.msra.mxu0 0
  %1658 = vmatprep.subr.bf16.mxu0 0
  %1659 = vmatpush1.bf16.msra.mxu0 0
  %1660 = vmatprep.subr.bf16.mxu0 0
  %1661 = vmatpush1.bf16.msra.mxu0 0
  %1662 = vmatprep.subr.bf16.mxu0 0
  %1663 = vmatpush1.bf16.msra.mxu0 0
  %1664 = vmatprep.subr.bf16.mxu0 0
  %1665 = vmatpush1.bf16.msra.mxu0 0
  %1666 = vmatprep.mubr.bf16.mxu0 0
  %1667 = vmatmul.mubr.bf16.gmra.mrb[0].mxu0 %v513
  %v1668 = vpop.f32.mrb[0].mxu0
  %v1669 = vadd.f32 %v1620, %v1668
  %v1670 = vpop.f32.mrb[0].mxu0
  %v1671 = vpop.f32.mrb[0].mxu0
  %v1672 = vadd.f32 %v1620, %v1671
  %v1673 = vpop.f32.mrb[0].mxu0
  %1674 = vmatprep.mubr.bf16.mxu0 0
  %1675 = vmatmul.mubr.bf16.gmra.mrb[0].mxu0 %v516
  %v1676 = vpop.f32.mrb[0].mxu0
  %v1677 = vadd.f32 %v1620, %v1676
  %v1678 = vpop.f32.mrb[0].mxu0
  %v1679 = vpop.f32.mrb[0].mxu0
  %v1680 = vadd.f32 %v1620, %v1679
  %v1681 = vpop.f32.mrb[0].mxu0
  %1682 = vdwg.mxu0
  %s1683 = scalar_lea.vmem %s17, 32
  %v1684 = vld [vmem:[%s1683] sm:$0xf]
  %v1685 = vld [vmem:[%s1683 + $0x4] sm:$0xf]
  %v1686 = vld [vmem:[%s1683 + $0x8] sm:$0xf]
  %v1687 = vld [vmem:[%s1683 + $0xc] sm:$0xf]
  %s1688 = scalar_lea.vmem %s19, 2
  %v1689 = vld [vmem:[%s1688] sm:$0x1]
  %v1691 = vlaneseq
  %v1692 = vshrl.u32 %v1691, 7
  %v1693 = vsub.s32 0, %v1692
  %v1694 = vrot.slane %v1689, %v1693
  %v1700 = vunpack.c.l.b16 %v1684
  %v1701 = vunpack.c.l.b16 %v1685
  %v1702 = vunpack.c.l.b16 %v1686
  %v1703 = vunpack.c.l.b16 %v1687
  %v1704 = vpack.c.b16 %v1701, %v1700
  %v1705 = vpack.c.b16 %v1703, %v1702
  %1708 = vmatprep.subr.bf16.mxu0 0
  %1709 = vmatpush1.bf16.msra.mxu0 %v1704
  %1710 = vmatprep.subr.bf16.mxu0 0
  %1711 = vmatpush1.bf16.msra.mxu0 %v1705
  %1712 = vmatprep.subr.bf16.mxu0 0
  %1713 = vmatpush1.bf16.msra.mxu0 0
  %1714 = vmatprep.subr.bf16.mxu0 0
  %1715 = vmatpush1.bf16.msra.mxu0 0
  %1716 = vmatprep.subr.bf16.mxu0 0
  %1717 = vmatpush1.bf16.msra.mxu0 0
  %1718 = vmatprep.subr.bf16.mxu0 0
  %1719 = vmatpush1.bf16.msra.mxu0 0
  %1720 = vmatprep.subr.bf16.mxu0 0
  %1721 = vmatpush1.bf16.msra.mxu0 0
  %1722 = vmatprep.subr.bf16.mxu0 0
  %1723 = vmatpush1.bf16.msra.mxu0 0
  %1724 = vmatprep.subr.bf16.mxu0 0
  %1725 = vmatpush1.bf16.msra.mxu0 0
  %1726 = vmatprep.subr.bf16.mxu0 0
  %1727 = vmatpush1.bf16.msra.mxu0 0
  %1728 = vmatprep.subr.bf16.mxu0 0
  %1729 = vmatpush1.bf16.msra.mxu0 0
  %1730 = vmatprep.subr.bf16.mxu0 0
  %1731 = vmatpush1.bf16.msra.mxu0 0
  %1732 = vmatprep.subr.bf16.mxu0 0
  %1733 = vmatpush1.bf16.msra.mxu0 0
  %1734 = vmatprep.subr.bf16.mxu0 0
  %1735 = vmatpush1.bf16.msra.mxu0 0
  %1736 = vmatprep.subr.bf16.mxu0 0
  %1737 = vmatpush1.bf16.msra.mxu0 0
  %1738 = vmatprep.subr.bf16.mxu0 0
  %1739 = vmatpush1.bf16.msra.mxu0 0
  %1740 = vmatprep.mubr.bf16.mxu0 0
  %1741 = vmatmul.mubr.bf16.gmra.mrb[0].mxu0 %v513
  %v1742 = vpop.f32.mrb[0].mxu0
  %v1743 = vadd.f32 %v1694, %v1742
  %v1744 = vpop.f32.mrb[0].mxu0
  %v1745 = vpop.f32.mrb[0].mxu0
  %v1746 = vadd.f32 %v1694, %v1745
  %v1747 = vpop.f32.mrb[0].mxu0
  %1748 = vmatprep.mubr.bf16.mxu0 0
  %1749 = vmatmul.mubr.bf16.gmra.mrb[0].mxu0 %v516
  %v1750 = vpop.f32.mrb[0].mxu0
  %v1751 = vadd.f32 %v1694, %v1750
  %v1752 = vpop.f32.mrb[0].mxu0
  %v1753 = vpop.f32.mrb[0].mxu0
  %v1754 = vadd.f32 %v1694, %v1753
  %v1755 = vpop.f32.mrb[0].mxu0
  %1756 = vdwg.mxu0
  %v1757 = vpack.c.bf16 %v1598, %v1595
  %v1758 = vpack.c.bf16 %v1606, %v1603
  %v1759 = vpack.c.bf16 %v1672, %v1669
  %v1760 = vpack.c.bf16 %v1680, %v1677
  %v1762 = vsel %vm715, %v1757, 0
  %v1765 = vsel %vm715, %v1759, 0
  %1767 = vmatprep.subr.bf16.mxu0 0
  %1768 = vmatpush1.bf16.xpose.msra.mxu0 %v1765
  %1769 = vmatprep.subr.bf16.mxu0 0
  %1770 = vmatpush1.bf16.xpose.msra.mxu0 0
  %1771 = vmatprep.subr.bf16.mxu0 0
  %1772 = vmatpush1.bf16.xpose.msra.mxu0 0
  %1773 = vmatprep.subr.bf16.mxu0 0
  %1774 = vmatpush1.bf16.xpose.msra.mxu0 0
  %1775 = vmatprep.subr.bf16.mxu0 0
  %1776 = vmatpush1.bf16.xpose.msra.mxu0 0
  %1777 = vmatprep.subr.bf16.mxu0 0
  %1778 = vmatpush1.bf16.xpose.msra.mxu0 0
  %1779 = vmatprep.subr.bf16.mxu0 0
  %1780 = vmatpush1.bf16.xpose.msra.mxu0 0
  %1781 = vmatprep.subr.bf16.mxu0 0
  %1782 = vmatpush1.bf16.xpose.msra.mxu0 0
  %1783 = vmatprep.subr.bf16.mxu0 0
  %1784 = vmatpush1.bf16.xpose.msra.mxu0 0
  %1785 = vmatprep.subr.bf16.mxu0 0
  %1786 = vmatpush1.bf16.xpose.msra.mxu0 0
  %1787 = vmatprep.subr.bf16.mxu0 0
  %1788 = vmatpush1.bf16.xpose.msra.mxu0 0
  %1789 = vmatprep.subr.bf16.mxu0 0
  %1790 = vmatpush1.bf16.xpose.msra.mxu0 0
  %1791 = vmatprep.subr.bf16.mxu0 0
  %1792 = vmatpush1.bf16.xpose.msra.mxu0 0
  %1793 = vmatprep.subr.bf16.mxu0 0
  %1794 = vmatpush1.bf16.xpose.msra.mxu0 0
  %1795 = vmatprep.subr.bf16.mxu0 0
  %1796 = vmatpush1.bf16.xpose.msra.mxu0 0
  %1797 = vmatprep.subr.bf16.mxu0 0
  %1798 = vmatpush1.bf16.xpose.msra.mxu0 0
  %1799 = vmatprep.mubr.bf16.mxu0 0
  %1800 = vmatmul.mubr.bf16.gmra.mrb[0].mxu0 %v1762
  %v1801 = vpop.f32.mrb[0].mxu0
  %v1802 = vadd.f32 0.0, %v1801
  %v1803 = vpop.f32.mrb[0].mxu0
  %v1804 = vpop.f32.mrb[0].mxu0
  %v1805 = vadd.f32 0.0, %v1804
  %v1806 = vpop.f32.mrb[0].mxu0
  %1807 = vdwg.mxu0
  %v1809 = vsel %vm715, %v1758, 0
  %v1812 = vsel %vm715, %v1760, 0
  %1814 = vmatprep.subr.bf16.mxu0 0
  %1815 = vmatpush1.bf16.xpose.msra.mxu0 %v1812
  %1816 = vmatprep.subr.bf16.mxu0 0
  %1817 = vmatpush1.bf16.xpose.msra.mxu0 0
  %1818 = vmatprep.subr.bf16.mxu0 0
  %1819 = vmatpush1.bf16.xpose.msra.mxu0 0
  %1820 = vmatprep.subr.bf16.mxu0 0
  %1821 = vmatpush1.bf16.xpose.msra.mxu0 0
  %1822 = vmatprep.subr.bf16.mxu0 0
  %1823 = vmatpush1.bf16.xpose.msra.mxu0 0
  %1824 = vmatprep.subr.bf16.mxu0 0
  %1825 = vmatpush1.bf16.xpose.msra.mxu0 0
  %1826 = vmatprep.subr.bf16.mxu0 0
  %1827 = vmatpush1.bf16.xpose.msra.mxu0 0
  %1828 = vmatprep.subr.bf16.mxu0 0
  %1829 = vmatpush1.bf16.xpose.msra.mxu0 0
  %1830 = vmatprep.subr.bf16.mxu0 0
  %1831 = vmatpush1.bf16.xpose.msra.mxu0 0
  %1832 = vmatprep.subr.bf16.mxu0 0
  %1833 = vmatpush1.bf16.xpose.msra.mxu0 0
  %1834 = vmatprep.subr.bf16.mxu0 0
  %1835 = vmatpush1.bf16.xpose.msra.mxu0 0
  %1836 = vmatprep.subr.bf16.mxu0 0
  %1837 = vmatpush1.bf16.xpose.msra.mxu0 0
  %1838 = vmatprep.subr.bf16.mxu0 0
  %1839 = vmatpush1.bf16.xpose.msra.mxu0 0
  %1840 = vmatprep.subr.bf16.mxu0 0
  %1841 = vmatpush1.bf16.xpose.msra.mxu0 0
  %1842 = vmatprep.subr.bf16.mxu0 0
  %1843 = vmatpush1.bf16.xpose.msra.mxu0 0
  %1844 = vmatprep.subr.bf16.mxu0 0
  %1845 = vmatpush1.bf16.xpose.msra.mxu0 0
  %1846 = vmatprep.mubr.bf16.mxu0 0
  %1847 = vmatmul.mubr.bf16.gmra.mrb[0].mxu0 %v1809
  %v1848 = vpop.f32.mrb[0].mxu0
  %v1849 = vadd.f32 0.0, %v1848
  %v1850 = vpop.f32.mrb[0].mxu0
  %v1851 = vpop.f32.mrb[0].mxu0
  %v1852 = vadd.f32 0.0, %v1851
  %v1853 = vpop.f32.mrb[0].mxu0
  %1854 = vdwg.mxu0
  %v1855 = vmul.f32 %v1802, 0.5
  %v1856 = vmul.f32 %v1805, 0.5
  %v1857 = vmul.f32 %v1849, 0.5
  %v1858 = vmul.f32 %v1852, 0.5
  %v1859 = vsel %vm814, %v1855, -inf
  %1860 = vmax.xlane.f32.xlu0 %v1859
  %v1861 = vpop.xlane.xlu0 %1860
  %v1862 = vsel %vm814, %v1856, -inf
  %1863 = vmax.xlane.f32.xlu0 %v1862
  %v1864 = vpop.xlane.xlu0 %1863
  %v1865 = vsel %vm814, %v1857, -inf
  %1866 = vmax.xlane.f32.xlu0 %v1865
  %v1867 = vpop.xlane.xlu0 %1866
  %v1868 = vsel %vm814, %v1858, -inf
  %1869 = vmax.xlane.f32.xlu0 %v1868
  %v1870 = vpop.xlane.xlu0 %1869
  %v1871 = vsub.f32 %v1855, %v1861
  %v1872 = vsub.f32 %v1856, %v1864
  %v1873 = vsub.f32 %v1857, %v1867
  %v1874 = vsub.f32 %v1858, %v1870
  %v1875 = vmul.f32 %v1871, 1.442695
  %v1876 = vpow.pop %v1875
  %v1877 = vmul.f32 %v1872, 1.442695
  %v1878 = vpow.pop %v1877
  %v1879 = vmul.f32 %v1873, 1.442695
  %v1880 = vpow.pop %v1879
  %v1881 = vmul.f32 %v1874, 1.442695
  %v1882 = vpow.pop %v1881
  %v1883 = vsel %vm814, %v1876, 0.0
  %1884 = vadd.xlane.f32.xlu0 %v1883
  %v1885 = vpop.xlane.xlu0 %1884
  %v1886 = vsel %vm814, %v1878, 0.0
  %1887 = vadd.xlane.f32.xlu0 %v1886
  %v1888 = vpop.xlane.xlu0 %1887
  %v1889 = vsel %vm814, %v1880, 0.0
  %1890 = vadd.xlane.f32.xlu0 %v1889
  %v1891 = vpop.xlane.xlu0 %1890
  %v1892 = vsel %vm814, %v1882, 0.0
  %1893 = vadd.xlane.f32.xlu0 %v1892
  %v1894 = vpop.xlane.xlu0 %1893
  %v1895 = vrcp.pop %v1885
  %v1896 = vrcp.pop %v1888
  %v1897 = vrcp.pop %v1891
  %v1898 = vrcp.pop %v1894
  %v1899 = vmul.f32 %v1876, %v1895
  %v1900 = vmul.f32 %v1878, %v1896
  %v1901 = vmul.f32 %v1880, %v1897
  %v1902 = vmul.f32 %v1882, %v1898
  %v1903 = vpack.c.bf16 %v1900, %v1899
  %v1904 = vpack.c.bf16 %v1902, %v1901
  %v1905 = vpack.c.bf16 %v1746, %v1743
  %v1906 = vpack.c.bf16 %v1754, %v1751
  %v1908 = vsel %vm814, %v1903, 0
  %1910 = vmatprep.subr.bf16.mxu0 0
  %1911 = vmatpush1.bf16.msra.mxu0 %v1905
  %1912 = vmatprep.subr.bf16.mxu0 0
  %1913 = vmatpush1.bf16.msra.mxu0 0
  %1914 = vmatprep.subr.bf16.mxu0 0
  %1915 = vmatpush1.bf16.msra.mxu0 0
  %1916 = vmatprep.subr.bf16.mxu0 0
  %1917 = vmatpush1.bf16.msra.mxu0 0
  %1918 = vmatprep.subr.bf16.mxu0 0
  %1919 = vmatpush1.bf16.msra.mxu0 0
  %1920 = vmatprep.subr.bf16.mxu0 0
  %1921 = vmatpush1.bf16.msra.mxu0 0
  %1922 = vmatprep.subr.bf16.mxu0 0
  %1923 = vmatpush1.bf16.msra.mxu0 0
  %1924 = vmatprep.subr.bf16.mxu0 0
  %1925 = vmatpush1.bf16.msra.mxu0 0
  %1926 = vmatprep.subr.bf16.mxu0 0
  %1927 = vmatpush1.bf16.msra.mxu0 0
  %1928 = vmatprep.subr.bf16.mxu0 0
  %1929 = vmatpush1.bf16.msra.mxu0 0
  %1930 = vmatprep.subr.bf16.mxu0 0
  %1931 = vmatpush1.bf16.msra.mxu0 0
  %1932 = vmatprep.subr.bf16.mxu0 0
  %1933 = vmatpush1.bf16.msra.mxu0 0
  %1934 = vmatprep.subr.bf16.mxu0 0
  %1935 = vmatpush1.bf16.msra.mxu0 0
  %1936 = vmatprep.subr.bf16.mxu0 0
  %1937 = vmatpush1.bf16.msra.mxu0 0
  %1938 = vmatprep.subr.bf16.mxu0 0
  %1939 = vmatpush1.bf16.msra.mxu0 0
  %1940 = vmatprep.subr.bf16.mxu0 0
  %1941 = vmatpush1.bf16.msra.mxu0 0
  %1942 = vmatprep.mubr.bf16.mxu0 0
  %1943 = vmatmul.mubr.bf16.gmra.mrb[0].mxu0 %v1908
  %v1944 = vpop.f32.mrb[0].mxu0
  %v1945 = vadd.f32 0.0, %v1944
  %v1946 = vpop.f32.mrb[0].mxu0
  %v1947 = vpop.f32.mrb[0].mxu0
  %v1948 = vadd.f32 0.0, %v1947
  %v1949 = vpop.f32.mrb[0].mxu0
  %1950 = vdwg.mxu0
  %v1952 = vsel %vm814, %v1904, 0
  %1954 = vmatprep.subr.bf16.mxu0 0
  %1955 = vmatpush1.bf16.msra.mxu0 %v1906
  %1956 = vmatprep.subr.bf16.mxu0 0
  %1957 = vmatpush1.bf16.msra.mxu0 0
  %1958 = vmatprep.subr.bf16.mxu0 0
  %1959 = vmatpush1.bf16.msra.mxu0 0
  %1960 = vmatprep.subr.bf16.mxu0 0
  %1961 = vmatpush1.bf16.msra.mxu0 0
  %1962 = vmatprep.subr.bf16.mxu0 0
  %1963 = vmatpush1.bf16.msra.mxu0 0
  %1964 = vmatprep.subr.bf16.mxu0 0
  %1965 = vmatpush1.bf16.msra.mxu0 0
  %1966 = vmatprep.subr.bf16.mxu0 0
  %1967 = vmatpush1.bf16.msra.mxu0 0
  %1968 = vmatprep.subr.bf16.mxu0 0
  %1969 = vmatpush1.bf16.msra.mxu0 0
  %1970 = vmatprep.subr.bf16.mxu0 0
  %1971 = vmatpush1.bf16.msra.mxu0 0
  %1972 = vmatprep.subr.bf16.mxu0 0
  %1973 = vmatpush1.bf16.msra.mxu0 0
  %1974 = vmatprep.subr.bf16.mxu0 0
  %1975 = vmatpush1.bf16.msra.mxu0 0
  %1976 = vmatprep.subr.bf16.mxu0 0
  %1977 = vmatpush1.bf16.msra.mxu0 0
  %1978 = vmatprep.subr.bf16.mxu0 0
  %1979 = vmatpush1.bf16.msra.mxu0 0
  %1980 = vmatprep.subr.bf16.mxu0 0
  %1981 = vmatpush1.bf16.msra.mxu0 0
  %1982 = vmatprep.subr.bf16.mxu0 0
  %1983 = vmatpush1.bf16.msra.mxu0 0
  %1984 = vmatprep.subr.bf16.mxu0 0
  %1985 = vmatpush1.bf16.msra.mxu0 0
  %1986 = vmatprep.mubr.bf16.mxu0 0
  %1987 = vmatmul.mubr.bf16.gmra.mrb[0].mxu0 %v1952
  %v1988 = vpop.f32.mrb[0].mxu0
  %v1989 = vadd.f32 0.0, %v1988
  %v1990 = vpop.f32.mrb[0].mxu0
  %v1991 = vpop.f32.mrb[0].mxu0
  %v1992 = vadd.f32 0.0, %v1991
  %v1993 = vpop.f32.mrb[0].mxu0
  %1994 = vdwg.mxu0
  %v1995 = vpack.c.bf16 %v1948, %v1945
  %v1996 = vpack.c.bf16 %v1992, %v1989
  %s1997 = scalar_lea.vmem %s21, 4
  %v1998 = vld [vmem:[%s1997] sm:$0x3]
  %v2000 = vsel %vm715, %v1995, 0
  %v2003 = vsel %vm715, %v1996, 0
  %v2006 = vsel %vm1424, %v1998, 0
  %2008 = vmatprep.subr.bf16.mxu0 0
  %2009 = vmatpush1.bf16.msra.mxu0 %v2006
  %2010 = vmatprep.subr.bf16.mxu0 0
  %2011 = vmatpush1.bf16.msra.mxu0 0
  %2012 = vmatprep.subr.bf16.mxu0 0
  %2013 = vmatpush1.bf16.msra.mxu0 0
  %2014 = vmatprep.subr.bf16.mxu0 0
  %2015 = vmatpush1.bf16.msra.mxu0 0
  %2016 = vmatprep.subr.bf16.mxu0 0
  %2017 = vmatpush1.bf16.msra.mxu0 0
  %2018 = vmatprep.subr.bf16.mxu0 0
  %2019 = vmatpush1.bf16.msra.mxu0 0
  %2020 = vmatprep.subr.bf16.mxu0 0
  %2021 = vmatpush1.bf16.msra.mxu0 0
  %2022 = vmatprep.subr.bf16.mxu0 0
  %2023 = vmatpush1.bf16.msra.mxu0 0
  %2024 = vmatprep.subr.bf16.mxu0 0
  %2025 = vmatpush1.bf16.msra.mxu0 0
  %2026 = vmatprep.subr.bf16.mxu0 0
  %2027 = vmatpush1.bf16.msra.mxu0 0
  %2028 = vmatprep.subr.bf16.mxu0 0
  %2029 = vmatpush1.bf16.msra.mxu0 0
  %2030 = vmatprep.subr.bf16.mxu0 0
  %2031 = vmatpush1.bf16.msra.mxu0 0
  %2032 = vmatprep.subr.bf16.mxu0 0
  %2033 = vmatpush1.bf16.msra.mxu0 0
  %2034 = vmatprep.subr.bf16.mxu0 0
  %2035 = vmatpush1.bf16.msra.mxu0 0
  %2036 = vmatprep.subr.bf16.mxu0 0
  %2037 = vmatpush1.bf16.msra.mxu0 0
  %2038 = vmatprep.subr.bf16.mxu0 0
  %2039 = vmatpush1.bf16.msra.mxu0 0
  %2040 = vmatprep.mubr.bf16.mxu0 0
  %2041 = vmatmul.mubr.bf16.gmra.mrb[0].mxu0 %v2000
  %v2042 = vpop.f32.mrb[0].mxu0
  %v2043 = vadd.f32 0.0, %v2042
  %v2044 = vpop.f32.mrb[0].mxu0
  %v2045 = vpop.f32.mrb[0].mxu0
  %v2046 = vadd.f32 0.0, %v2045
  %v2047 = vpop.f32.mrb[0].mxu0
  %2048 = vmatprep.mubr.bf16.mxu0 0
  %2049 = vmatmul.mubr.bf16.gmra.mrb[0].mxu0 %v2003
  %v2050 = vpop.f32.mrb[0].mxu0
  %v2051 = vadd.f32 0.0, %v2050
  %v2052 = vpop.f32.mrb[0].mxu0
  %v2053 = vpop.f32.mrb[0].mxu0
  %v2054 = vadd.f32 0.0, %v2053
  %v2055 = vpop.f32.mrb[0].mxu0
  %2056 = vdwg.mxu0
  %v2057 = vadd.f32 %v1521, %v2043
  %v2058 = vadd.f32 %v1524, %v2046
  %v2059 = vadd.f32 %v1529, %v2051
  %v2060 = vadd.f32 %v1532, %v2054
  %s2061 = scalar_lea.vmem %s9, 48
  %v2062 = vld [vmem:[%s2061] sm:$0xf]
  %v2063 = vld [vmem:[%s2061 + $0x4] sm:$0xf]
  %v2064 = vld [vmem:[%s2061 + $0x8] sm:$0xf]
  %v2065 = vld [vmem:[%s2061 + $0xc] sm:$0xf]
  %s2066 = scalar_lea.vmem %s11, 3
  %v2067 = vld [vmem:[%s2066] sm:$0x1]
  %v2069 = vlaneseq
  %v2070 = vshrl.u32 %v2069, 7
  %v2071 = vsub.s32 0, %v2070
  %v2072 = vrot.slane %v2067, %v2071
  %v2078 = vunpack.c.l.b16 %v2062
  %v2079 = vunpack.c.l.b16 %v2063
  %v2080 = vunpack.c.l.b16 %v2064
  %v2081 = vunpack.c.l.b16 %v2065
  %v2082 = vpack.c.b16 %v2079, %v2078
  %v2083 = vpack.c.b16 %v2081, %v2080
  %2086 = vmatprep.subr.bf16.mxu0 0
  %2087 = vmatpush1.bf16.msra.mxu0 %v2082
  %2088 = vmatprep.subr.bf16.mxu0 0
  %2089 = vmatpush1.bf16.msra.mxu0 %v2083
  %2090 = vmatprep.subr.bf16.mxu0 0
  %2091 = vmatpush1.bf16.msra.mxu0 0
  %2092 = vmatprep.subr.bf16.mxu0 0
  %2093 = vmatpush1.bf16.msra.mxu0 0
  %2094 = vmatprep.subr.bf16.mxu0 0
  %2095 = vmatpush1.bf16.msra.mxu0 0
  %2096 = vmatprep.subr.bf16.mxu0 0
  %2097 = vmatpush1.bf16.msra.mxu0 0
  %2098 = vmatprep.subr.bf16.mxu0 0
  %2099 = vmatpush1.bf16.msra.mxu0 0
  %2100 = vmatprep.subr.bf16.mxu0 0
  %2101 = vmatpush1.bf16.msra.mxu0 0
  %2102 = vmatprep.subr.bf16.mxu0 0
  %2103 = vmatpush1.bf16.msra.mxu0 0
  %2104 = vmatprep.subr.bf16.mxu0 0
  %2105 = vmatpush1.bf16.msra.mxu0 0
  %2106 = vmatprep.subr.bf16.mxu0 0
  %2107 = vmatpush1.bf16.msra.mxu0 0
  %2108 = vmatprep.subr.bf16.mxu0 0
  %2109 = vmatpush1.bf16.msra.mxu0 0
  %2110 = vmatprep.subr.bf16.mxu0 0
  %2111 = vmatpush1.bf16.msra.mxu0 0
  %2112 = vmatprep.subr.bf16.mxu0 0
  %2113 = vmatpush1.bf16.msra.mxu0 0
  %2114 = vmatprep.subr.bf16.mxu0 0
  %2115 = vmatpush1.bf16.msra.mxu0 0
  %2116 = vmatprep.subr.bf16.mxu0 0
  %2117 = vmatpush1.bf16.msra.mxu0 0
  %2118 = vmatprep.mubr.bf16.mxu0 0
  %2119 = vmatmul.mubr.bf16.gmra.mrb[0].mxu0 %v513
  %v2120 = vpop.f32.mrb[0].mxu0
  %v2121 = vadd.f32 %v2072, %v2120
  %v2122 = vpop.f32.mrb[0].mxu0
  %v2123 = vpop.f32.mrb[0].mxu0
  %v2124 = vadd.f32 %v2072, %v2123
  %v2125 = vpop.f32.mrb[0].mxu0
  %2126 = vmatprep.mubr.bf16.mxu0 0
  %2127 = vmatmul.mubr.bf16.gmra.mrb[0].mxu0 %v516
  %v2128 = vpop.f32.mrb[0].mxu0
  %v2129 = vadd.f32 %v2072, %v2128
  %v2130 = vpop.f32.mrb[0].mxu0
  %v2131 = vpop.f32.mrb[0].mxu0
  %v2132 = vadd.f32 %v2072, %v2131
  %v2133 = vpop.f32.mrb[0].mxu0
  %2134 = vdwg.mxu0
  %s2135 = scalar_lea.vmem %s13, 48
  %v2136 = vld [vmem:[%s2135] sm:$0xf]
  %v2137 = vld [vmem:[%s2135 + $0x4] sm:$0xf]
  %v2138 = vld [vmem:[%s2135 + $0x8] sm:$0xf]
  %v2139 = vld [vmem:[%s2135 + $0xc] sm:$0xf]
  %s2140 = scalar_lea.vmem %s15, 3
  %v2141 = vld [vmem:[%s2140] sm:$0x1]
  %v2143 = vlaneseq
  %v2144 = vshrl.u32 %v2143, 7
  %v2145 = vsub.s32 0, %v2144
  %v2146 = vrot.slane %v2141, %v2145
  %v2152 = vunpack.c.l.b16 %v2136
  %v2153 = vunpack.c.l.b16 %v2137
  %v2154 = vunpack.c.l.b16 %v2138
  %v2155 = vunpack.c.l.b16 %v2139
  %v2156 = vpack.c.b16 %v2153, %v2152
  %v2157 = vpack.c.b16 %v2155, %v2154
  %2160 = vmatprep.subr.bf16.mxu0 0
  %2161 = vmatpush1.bf16.msra.mxu0 %v2156
  %2162 = vmatprep.subr.bf16.mxu0 0
  %2163 = vmatpush1.bf16.msra.mxu0 %v2157
  %2164 = vmatprep.subr.bf16.mxu0 0
  %2165 = vmatpush1.bf16.msra.mxu0 0
  %2166 = vmatprep.subr.bf16.mxu0 0
  %2167 = vmatpush1.bf16.msra.mxu0 0
  %2168 = vmatprep.subr.bf16.mxu0 0
  %2169 = vmatpush1.bf16.msra.mxu0 0
  %2170 = vmatprep.subr.bf16.mxu0 0
  %2171 = vmatpush1.bf16.msra.mxu0 0
  %2172 = vmatprep.subr.bf16.mxu0 0
  %2173 = vmatpush1.bf16.msra.mxu0 0
  %2174 = vmatprep.subr.bf16.mxu0 0
  %2175 = vmatpush1.bf16.msra.mxu0 0
  %2176 = vmatprep.subr.bf16.mxu0 0
  %2177 = vmatpush1.bf16.msra.mxu0 0
  %2178 = vmatprep.subr.bf16.mxu0 0
  %2179 = vmatpush1.bf16.msra.mxu0 0
  %2180 = vmatprep.subr.bf16.mxu0 0
  %2181 = vmatpush1.bf16.msra.mxu0 0
  %2182 = vmatprep.subr.bf16.mxu0 0
  %2183 = vmatpush1.bf16.msra.mxu0 0
  %2184 = vmatprep.subr.bf16.mxu0 0
  %2185 = vmatpush1.bf16.msra.mxu0 0
  %2186 = vmatprep.subr.bf16.mxu0 0
  %2187 = vmatpush1.bf16.msra.mxu0 0
  %2188 = vmatprep.subr.bf16.mxu0 0
  %2189 = vmatpush1.bf16.msra.mxu0 0
  %2190 = vmatprep.subr.bf16.mxu0 0
  %2191 = vmatpush1.bf16.msra.mxu0 0
  %2192 = vmatprep.mubr.bf16.mxu0 0
  %2193 = vmatmul.mubr.bf16.gmra.mrb[0].mxu0 %v513
  %v2194 = vpop.f32.mrb[0].mxu0
  %v2195 = vadd.f32 %v2146, %v2194
  %v2196 = vpop.f32.mrb[0].mxu0
  %v2197 = vpop.f32.mrb[0].mxu0
  %v2198 = vadd.f32 %v2146, %v2197
  %v2199 = vpop.f32.mrb[0].mxu0
  %2200 = vmatprep.mubr.bf16.mxu0 0
  %2201 = vmatmul.mubr.bf16.gmra.mrb[0].mxu0 %v516
  %v2202 = vpop.f32.mrb[0].mxu0
  %v2203 = vadd.f32 %v2146, %v2202
  %v2204 = vpop.f32.mrb[0].mxu0
  %v2205 = vpop.f32.mrb[0].mxu0
  %v2206 = vadd.f32 %v2146, %v2205
  %v2207 = vpop.f32.mrb[0].mxu0
  %2208 = vdwg.mxu0
  %s2209 = scalar_lea.vmem %s17, 48
  %v2210 = vld [vmem:[%s2209] sm:$0xf]
  %v2211 = vld [vmem:[%s2209 + $0x4] sm:$0xf]
  %v2212 = vld [vmem:[%s2209 + $0x8] sm:$0xf]
  %v2213 = vld [vmem:[%s2209 + $0xc] sm:$0xf]
  %s2214 = scalar_lea.vmem %s19, 3
  %v2215 = vld [vmem:[%s2214] sm:$0x1]
  %v2217 = vlaneseq
  %v2218 = vshrl.u32 %v2217, 7
  %v2219 = vsub.s32 0, %v2218
  %v2220 = vrot.slane %v2215, %v2219
  %v2226 = vunpack.c.l.b16 %v2210
  %v2227 = vunpack.c.l.b16 %v2211
  %v2228 = vunpack.c.l.b16 %v2212
  %v2229 = vunpack.c.l.b16 %v2213
  %v2230 = vpack.c.b16 %v2227, %v2226
  %v2231 = vpack.c.b16 %v2229, %v2228
  %2234 = vmatprep.subr.bf16.mxu0 0
  %2235 = vmatpush1.bf16.msra.mxu0 %v2230
  %2236 = vmatprep.subr.bf16.mxu0 0
  %2237 = vmatpush1.bf16.msra.mxu0 %v2231
  %2238 = vmatprep.subr.bf16.mxu0 0
  %2239 = vmatpush1.bf16.msra.mxu0 0
  %2240 = vmatprep.subr.bf16.mxu0 0
  %2241 = vmatpush1.bf16.msra.mxu0 0
  %2242 = vmatprep.subr.bf16.mxu0 0
  %2243 = vmatpush1.bf16.msra.mxu0 0
  %2244 = vmatprep.subr.bf16.mxu0 0
  %2245 = vmatpush1.bf16.msra.mxu0 0
  %2246 = vmatprep.subr.bf16.mxu0 0
  %2247 = vmatpush1.bf16.msra.mxu0 0
  %2248 = vmatprep.subr.bf16.mxu0 0
  %2249 = vmatpush1.bf16.msra.mxu0 0
  %2250 = vmatprep.subr.bf16.mxu0 0
  %2251 = vmatpush1.bf16.msra.mxu0 0
  %2252 = vmatprep.subr.bf16.mxu0 0
  %2253 = vmatpush1.bf16.msra.mxu0 0
  %2254 = vmatprep.subr.bf16.mxu0 0
  %2255 = vmatpush1.bf16.msra.mxu0 0
  %2256 = vmatprep.subr.bf16.mxu0 0
  %2257 = vmatpush1.bf16.msra.mxu0 0
  %2258 = vmatprep.subr.bf16.mxu0 0
  %2259 = vmatpush1.bf16.msra.mxu0 0
  %2260 = vmatprep.subr.bf16.mxu0 0
  %2261 = vmatpush1.bf16.msra.mxu0 0
  %2262 = vmatprep.subr.bf16.mxu0 0
  %2263 = vmatpush1.bf16.msra.mxu0 0
  %2264 = vmatprep.subr.bf16.mxu0 0
  %2265 = vmatpush1.bf16.msra.mxu0 0
  %2266 = vmatprep.mubr.bf16.mxu0 0
  %2267 = vmatmul.mubr.bf16.gmra.mrb[0].mxu0 %v513
  %v2268 = vpop.f32.mrb[0].mxu0
  %v2269 = vadd.f32 %v2220, %v2268
  %v2270 = vpop.f32.mrb[0].mxu0
  %v2271 = vpop.f32.mrb[0].mxu0
  %v2272 = vadd.f32 %v2220, %v2271
  %v2273 = vpop.f32.mrb[0].mxu0
  %2274 = vmatprep.mubr.bf16.mxu0 0
  %2275 = vmatmul.mubr.bf16.gmra.mrb[0].mxu0 %v516
  %v2276 = vpop.f32.mrb[0].mxu0
  %v2277 = vadd.f32 %v2220, %v2276
  %v2278 = vpop.f32.mrb[0].mxu0
  %v2279 = vpop.f32.mrb[0].mxu0
  %v2280 = vadd.f32 %v2220, %v2279
  %v2281 = vpop.f32.mrb[0].mxu0
  %2282 = vdwg.mxu0
  %v2283 = vpack.c.bf16 %v2124, %v2121
  %v2284 = vpack.c.bf16 %v2132, %v2129
  %v2285 = vpack.c.bf16 %v2198, %v2195
  %v2286 = vpack.c.bf16 %v2206, %v2203
  %v2288 = vsel %vm715, %v2283, 0
  %v2291 = vsel %vm715, %v2285, 0
  %2293 = vmatprep.subr.bf16.mxu0 0
  %2294 = vmatpush1.bf16.xpose.msra.mxu0 %v2291
  %2295 = vmatprep.subr.bf16.mxu0 0
  %2296 = vmatpush1.bf16.xpose.msra.mxu0 0
  %2297 = vmatprep.subr.bf16.mxu0 0
  %2298 = vmatpush1.bf16.xpose.msra.mxu0 0
  %2299 = vmatprep.subr.bf16.mxu0 0
  %2300 = vmatpush1.bf16.xpose.msra.mxu0 0
  %2301 = vmatprep.subr.bf16.mxu0 0
  %2302 = vmatpush1.bf16.xpose.msra.mxu0 0
  %2303 = vmatprep.subr.bf16.mxu0 0
  %2304 = vmatpush1.bf16.xpose.msra.mxu0 0
  %2305 = vmatprep.subr.bf16.mxu0 0
  %2306 = vmatpush1.bf16.xpose.msra.mxu0 0
  %2307 = vmatprep.subr.bf16.mxu0 0
  %2308 = vmatpush1.bf16.xpose.msra.mxu0 0
  %2309 = vmatprep.subr.bf16.mxu0 0
  %2310 = vmatpush1.bf16.xpose.msra.mxu0 0
  %2311 = vmatprep.subr.bf16.mxu0 0
  %2312 = vmatpush1.bf16.xpose.msra.mxu0 0
  %2313 = vmatprep.subr.bf16.mxu0 0
  %2314 = vmatpush1.bf16.xpose.msra.mxu0 0
  %2315 = vmatprep.subr.bf16.mxu0 0
  %2316 = vmatpush1.bf16.xpose.msra.mxu0 0
  %2317 = vmatprep.subr.bf16.mxu0 0
  %2318 = vmatpush1.bf16.xpose.msra.mxu0 0
  %2319 = vmatprep.subr.bf16.mxu0 0
  %2320 = vmatpush1.bf16.xpose.msra.mxu0 0
  %2321 = vmatprep.subr.bf16.mxu0 0
  %2322 = vmatpush1.bf16.xpose.msra.mxu0 0
  %2323 = vmatprep.subr.bf16.mxu0 0
  %2324 = vmatpush1.bf16.xpose.msra.mxu0 0
  %2325 = vmatprep.mubr.bf16.mxu0 0
  %2326 = vmatmul.mubr.bf16.gmra.mrb[0].mxu0 %v2288
  %v2327 = vpop.f32.mrb[0].mxu0
  %v2328 = vadd.f32 0.0, %v2327
  %v2329 = vpop.f32.mrb[0].mxu0
  %v2330 = vpop.f32.mrb[0].mxu0
  %v2331 = vadd.f32 0.0, %v2330
  %v2332 = vpop.f32.mrb[0].mxu0
  %2333 = vdwg.mxu0
  %v2335 = vsel %vm715, %v2284, 0
  %v2338 = vsel %vm715, %v2286, 0
  %2340 = vmatprep.subr.bf16.mxu0 0
  %2341 = vmatpush1.bf16.xpose.msra.mxu0 %v2338
  %2342 = vmatprep.subr.bf16.mxu0 0
  %2343 = vmatpush1.bf16.xpose.msra.mxu0 0
  %2344 = vmatprep.subr.bf16.mxu0 0
  %2345 = vmatpush1.bf16.xpose.msra.mxu0 0
  %2346 = vmatprep.subr.bf16.mxu0 0
  %2347 = vmatpush1.bf16.xpose.msra.mxu0 0
  %2348 = vmatprep.subr.bf16.mxu0 0
  %2349 = vmatpush1.bf16.xpose.msra.mxu0 0
  %2350 = vmatprep.subr.bf16.mxu0 0
  %2351 = vmatpush1.bf16.xpose.msra.mxu0 0
  %2352 = vmatprep.subr.bf16.mxu0 0
  %2353 = vmatpush1.bf16.xpose.msra.mxu0 0
  %2354 = vmatprep.subr.bf16.mxu0 0
  %2355 = vmatpush1.bf16.xpose.msra.mxu0 0
  %2356 = vmatprep.subr.bf16.mxu0 0
  %2357 = vmatpush1.bf16.xpose.msra.mxu0 0
  %2358 = vmatprep.subr.bf16.mxu0 0
  %2359 = vmatpush1.bf16.xpose.msra.mxu0 0
  %2360 = vmatprep.subr.bf16.mxu0 0
  %2361 = vmatpush1.bf16.xpose.msra.mxu0 0
  %2362 = vmatprep.subr.bf16.mxu0 0
  %2363 = vmatpush1.bf16.xpose.msra.mxu0 0
  %2364 = vmatprep.subr.bf16.mxu0 0
  %2365 = vmatpush1.bf16.xpose.msra.mxu0 0
  %2366 = vmatprep.subr.bf16.mxu0 0
  %2367 = vmatpush1.bf16.xpose.msra.mxu0 0
  %2368 = vmatprep.subr.bf16.mxu0 0
  %2369 = vmatpush1.bf16.xpose.msra.mxu0 0
  %2370 = vmatprep.subr.bf16.mxu0 0
  %2371 = vmatpush1.bf16.xpose.msra.mxu0 0
  %2372 = vmatprep.mubr.bf16.mxu0 0
  %2373 = vmatmul.mubr.bf16.gmra.mrb[0].mxu0 %v2335
  %v2374 = vpop.f32.mrb[0].mxu0
  %v2375 = vadd.f32 0.0, %v2374
  %v2376 = vpop.f32.mrb[0].mxu0
  %v2377 = vpop.f32.mrb[0].mxu0
  %v2378 = vadd.f32 0.0, %v2377
  %v2379 = vpop.f32.mrb[0].mxu0
  %2380 = vdwg.mxu0
  %v2381 = vmul.f32 %v2328, 0.5
  %v2382 = vmul.f32 %v2331, 0.5
  %v2383 = vmul.f32 %v2375, 0.5
  %v2384 = vmul.f32 %v2378, 0.5
  %v2385 = vsel %vm814, %v2381, -inf
  %2386 = vmax.xlane.f32.xlu0 %v2385
  %v2387 = vpop.xlane.xlu0 %2386
  %v2388 = vsel %vm814, %v2382, -inf
  %2389 = vmax.xlane.f32.xlu0 %v2388
  %v2390 = vpop.xlane.xlu0 %2389
  %v2391 = vsel %vm814, %v2383, -inf
  %2392 = vmax.xlane.f32.xlu0 %v2391
  %v2393 = vpop.xlane.xlu0 %2392
  %v2394 = vsel %vm814, %v2384, -inf
  %2395 = vmax.xlane.f32.xlu0 %v2394
  %v2396 = vpop.xlane.xlu0 %2395
  %v2397 = vsub.f32 %v2381, %v2387
  %v2398 = vsub.f32 %v2382, %v2390
  %v2399 = vsub.f32 %v2383, %v2393
  %v2400 = vsub.f32 %v2384, %v2396
  %v2401 = vmul.f32 %v2397, 1.442695
  %v2402 = vpow.pop %v2401
  %v2403 = vmul.f32 %v2398, 1.442695
  %v2404 = vpow.pop %v2403
  %v2405 = vmul.f32 %v2399, 1.442695
  %v2406 = vpow.pop %v2405
  %v2407 = vmul.f32 %v2400, 1.442695
  %v2408 = vpow.pop %v2407
  %v2409 = vsel %vm814, %v2402, 0.0
  %2410 = vadd.xlane.f32.xlu0 %v2409
  %v2411 = vpop.xlane.xlu0 %2410
  %v2412 = vsel %vm814, %v2404, 0.0
  %2413 = vadd.xlane.f32.xlu0 %v2412
  %v2414 = vpop.xlane.xlu0 %2413
  %v2415 = vsel %vm814, %v2406, 0.0
  %2416 = vadd.xlane.f32.xlu0 %v2415
  %v2417 = vpop.xlane.xlu0 %2416
  %v2418 = vsel %vm814, %v2408, 0.0
  %2419 = vadd.xlane.f32.xlu0 %v2418
  %v2420 = vpop.xlane.xlu0 %2419
  %v2421 = vrcp.pop %v2411
  %v2422 = vrcp.pop %v2414
  %v2423 = vrcp.pop %v2417
  %v2424 = vrcp.pop %v2420
  %v2425 = vmul.f32 %v2402, %v2421
  %v2426 = vmul.f32 %v2404, %v2422
  %v2427 = vmul.f32 %v2406, %v2423
  %v2428 = vmul.f32 %v2408, %v2424
  %v2429 = vpack.c.bf16 %v2426, %v2425
  %v2430 = vpack.c.bf16 %v2428, %v2427
  %v2431 = vpack.c.bf16 %v2272, %v2269
  %v2432 = vpack.c.bf16 %v2280, %v2277
  %v2434 = vsel %vm814, %v2429, 0
  %2436 = vmatprep.subr.bf16.mxu0 0
  %2437 = vmatpush1.bf16.msra.mxu0 %v2431
  %2438 = vmatprep.subr.bf16.mxu0 0
  %2439 = vmatpush1.bf16.msra.mxu0 0
  %2440 = vmatprep.subr.bf16.mxu0 0
  %2441 = vmatpush1.bf16.msra.mxu0 0
  %2442 = vmatprep.subr.bf16.mxu0 0
  %2443 = vmatpush1.bf16.msra.mxu0 0
  %2444 = vmatprep.subr.bf16.mxu0 0
  %2445 = vmatpush1.bf16.msra.mxu0 0
  %2446 = vmatprep.subr.bf16.mxu0 0
  %2447 = vmatpush1.bf16.msra.mxu0 0
  %2448 = vmatprep.subr.bf16.mxu0 0
  %2449 = vmatpush1.bf16.msra.mxu0 0
  %2450 = vmatprep.subr.bf16.mxu0 0
  %2451 = vmatpush1.bf16.msra.mxu0 0
  %2452 = vmatprep.subr.bf16.mxu0 0
  %2453 = vmatpush1.bf16.msra.mxu0 0
  %2454 = vmatprep.subr.bf16.mxu0 0
  %2455 = vmatpush1.bf16.msra.mxu0 0
  %2456 = vmatprep.subr.bf16.mxu0 0
  %2457 = vmatpush1.bf16.msra.mxu0 0
  %2458 = vmatprep.subr.bf16.mxu0 0
  %2459 = vmatpush1.bf16.msra.mxu0 0
  %2460 = vmatprep.subr.bf16.mxu0 0
  %2461 = vmatpush1.bf16.msra.mxu0 0
  %2462 = vmatprep.subr.bf16.mxu0 0
  %2463 = vmatpush1.bf16.msra.mxu0 0
  %2464 = vmatprep.subr.bf16.mxu0 0
  %2465 = vmatpush1.bf16.msra.mxu0 0
  %2466 = vmatprep.subr.bf16.mxu0 0
  %2467 = vmatpush1.bf16.msra.mxu0 0
  %2468 = vmatprep.mubr.bf16.mxu0 0
  %2469 = vmatmul.mubr.bf16.gmra.mrb[0].mxu0 %v2434
  %v2470 = vpop.f32.mrb[0].mxu0
  %v2471 = vadd.f32 0.0, %v2470
  %v2472 = vpop.f32.mrb[0].mxu0
  %v2473 = vpop.f32.mrb[0].mxu0
  %v2474 = vadd.f32 0.0, %v2473
  %v2475 = vpop.f32.mrb[0].mxu0
  %2476 = vdwg.mxu0
  %v2478 = vsel %vm814, %v2430, 0
  %2480 = vmatprep.subr.bf16.mxu0 0
  %2481 = vmatpush1.bf16.msra.mxu0 %v2432
  %2482 = vmatprep.subr.bf16.mxu0 0
  %2483 = vmatpush1.bf16.msra.mxu0 0
  %2484 = vmatprep.subr.bf16.mxu0 0
  %2485 = vmatpush1.bf16.msra.mxu0 0
  %2486 = vmatprep.subr.bf16.mxu0 0
  %2487 = vmatpush1.bf16.msra.mxu0 0
  %2488 = vmatprep.subr.bf16.mxu0 0
  %2489 = vmatpush1.bf16.msra.mxu0 0
  %2490 = vmatprep.subr.bf16.mxu0 0
  %2491 = vmatpush1.bf16.msra.mxu0 0
  %2492 = vmatprep.subr.bf16.mxu0 0
  %2493 = vmatpush1.bf16.msra.mxu0 0
  %2494 = vmatprep.subr.bf16.mxu0 0
  %2495 = vmatpush1.bf16.msra.mxu0 0
  %2496 = vmatprep.subr.bf16.mxu0 0
  %2497 = vmatpush1.bf16.msra.mxu0 0
  %2498 = vmatprep.subr.bf16.mxu0 0
  %2499 = vmatpush1.bf16.msra.mxu0 0
  %2500 = vmatprep.subr.bf16.mxu0 0
  %2501 = vmatpush1.bf16.msra.mxu0 0
  %2502 = vmatprep.subr.bf16.mxu0 0
  %2503 = vmatpush1.bf16.msra.mxu0 0
  %2504 = vmatprep.subr.bf16.mxu0 0
  %2505 = vmatpush1.bf16.msra.mxu0 0
  %2506 = vmatprep.subr.bf16.mxu0 0
  %2507 = vmatpush1.bf16.msra.mxu0 0
  %2508 = vmatprep.subr.bf16.mxu0 0
  %2509 = vmatpush1.bf16.msra.mxu0 0
  %2510 = vmatprep.subr.bf16.mxu0 0
  %2511 = vmatpush1.bf16.msra.mxu0 0
  %2512 = vmatprep.mubr.bf16.mxu0 0
  %2513 = vmatmul.mubr.bf16.gmra.mrb[0].mxu0 %v2478
  %v2514 = vpop.f32.mrb[0].mxu0
  %v2515 = vadd.f32 0.0, %v2514
  %v2516 = vpop.f32.mrb[0].mxu0
  %v2517 = vpop.f32.mrb[0].mxu0
  %v2518 = vadd.f32 0.0, %v2517
  %v2519 = vpop.f32.mrb[0].mxu0
  %2520 = vdwg.mxu0
  %v2521 = vpack.c.bf16 %v2474, %v2471
  %v2522 = vpack.c.bf16 %v2518, %v2515
  %s2523 = scalar_lea.vmem %s21, 6
  %v2524 = vld [vmem:[%s2523] sm:$0x3]
  %v2526 = vsel %vm715, %v2521, 0
  %v2529 = vsel %vm715, %v2522, 0
  %v2532 = vsel %vm1424, %v2524, 0
  %2534 = vmatprep.subr.bf16.mxu0 0
  %2535 = vmatpush1.bf16.msra.mxu0 %v2532
  %2536 = vmatprep.subr.bf16.mxu0 0
  %2537 = vmatpush1.bf16.msra.mxu0 0
  %2538 = vmatprep.subr.bf16.mxu0 0
  %2539 = vmatpush1.bf16.msra.mxu0 0
  %2540 = vmatprep.subr.bf16.mxu0 0
  %2541 = vmatpush1.bf16.msra.mxu0 0
  %2542 = vmatprep.subr.bf16.mxu0 0
  %2543 = vmatpush1.bf16.msra.mxu0 0
  %2544 = vmatprep.subr.bf16.mxu0 0
  %2545 = vmatpush1.bf16.msra.mxu0 0
  %2546 = vmatprep.subr.bf16.mxu0 0
  %2547 = vmatpush1.bf16.msra.mxu0 0
  %2548 = vmatprep.subr.bf16.mxu0 0
  %2549 = vmatpush1.bf16.msra.mxu0 0
  %2550 = vmatprep.subr.bf16.mxu0 0
  %2551 = vmatpush1.bf16.msra.mxu0 0
  %2552 = vmatprep.subr.bf16.mxu0 0
  %2553 = vmatpush1.bf16.msra.mxu0 0
  %2554 = vmatprep.subr.bf16.mxu0 0
  %2555 = vmatpush1.bf16.msra.mxu0 0
  %2556 = vmatprep.subr.bf16.mxu0 0
  %2557 = vmatpush1.bf16.msra.mxu0 0
  %2558 = vmatprep.subr.bf16.mxu0 0
  %2559 = vmatpush1.bf16.msra.mxu0 0
  %2560 = vmatprep.subr.bf16.mxu0 0
  %2561 = vmatpush1.bf16.msra.mxu0 0
  %2562 = vmatprep.subr.bf16.mxu0 0
  %2563 = vmatpush1.bf16.msra.mxu0 0
  %2564 = vmatprep.subr.bf16.mxu0 0
  %2565 = vmatpush1.bf16.msra.mxu0 0
  %2566 = vmatprep.mubr.bf16.mxu0 0
  %2567 = vmatmul.mubr.bf16.gmra.mrb[0].mxu0 %v2526
  %v2568 = vpop.f32.mrb[0].mxu0
  %v2569 = vadd.f32 0.0, %v2568
  %v2570 = vpop.f32.mrb[0].mxu0
  %v2571 = vpop.f32.mrb[0].mxu0
  %v2572 = vadd.f32 0.0, %v2571
  %v2573 = vpop.f32.mrb[0].mxu0
  %2574 = vmatprep.mubr.bf16.mxu0 0
  %2575 = vmatmul.mubr.bf16.gmra.mrb[0].mxu0 %v2529
  %v2576 = vpop.f32.mrb[0].mxu0
  %v2577 = vadd.f32 0.0, %v2576
  %v2578 = vpop.f32.mrb[0].mxu0
  %v2579 = vpop.f32.mrb[0].mxu0
  %v2580 = vadd.f32 0.0, %v2579
  %v2581 = vpop.f32.mrb[0].mxu0
  %2582 = vdwg.mxu0
  %v2583 = vadd.f32 %v2057, %v2569
  %v2584 = vadd.f32 %v2058, %v2572
  %v2585 = vadd.f32 %v2059, %v2577
  %v2586 = vadd.f32 %v2060, %v2580
  %s2587 = scalar_lea.vmem %s9, 64
  %v2588 = vld [vmem:[%s2587] sm:$0xf]
  %v2589 = vld [vmem:[%s2587 + $0x4] sm:$0xf]
  %v2590 = vld [vmem:[%s2587 + $0x8] sm:$0xf]
  %v2591 = vld [vmem:[%s2587 + $0xc] sm:$0xf]
  %s2592 = scalar_lea.vmem %s11, 4
  %v2593 = vld [vmem:[%s2592] sm:$0x1]
  %v2595 = vlaneseq
  %v2596 = vshrl.u32 %v2595, 7
  %v2597 = vsub.s32 0, %v2596
  %v2598 = vrot.slane %v2593, %v2597
  %v2604 = vunpack.c.l.b16 %v2588
  %v2605 = vunpack.c.l.b16 %v2589
  %v2606 = vunpack.c.l.b16 %v2590
  %v2607 = vunpack.c.l.b16 %v2591
  %v2608 = vpack.c.b16 %v2605, %v2604
  %v2609 = vpack.c.b16 %v2607, %v2606
  %2612 = vmatprep.subr.bf16.mxu0 0
  %2613 = vmatpush1.bf16.msra.mxu0 %v2608
  %2614 = vmatprep.subr.bf16.mxu0 0
  %2615 = vmatpush1.bf16.msra.mxu0 %v2609
  %2616 = vmatprep.subr.bf16.mxu0 0
  %2617 = vmatpush1.bf16.msra.mxu0 0
  %2618 = vmatprep.subr.bf16.mxu0 0
  %2619 = vmatpush1.bf16.msra.mxu0 0
  %2620 = vmatprep.subr.bf16.mxu0 0
  %2621 = vmatpush1.bf16.msra.mxu0 0
  %2622 = vmatprep.subr.bf16.mxu0 0
  %2623 = vmatpush1.bf16.msra.mxu0 0
  %2624 = vmatprep.subr.bf16.mxu0 0
  %2625 = vmatpush1.bf16.msra.mxu0 0
  %2626 = vmatprep.subr.bf16.mxu0 0
  %2627 = vmatpush1.bf16.msra.mxu0 0
  %2628 = vmatprep.subr.bf16.mxu0 0
  %2629 = vmatpush1.bf16.msra.mxu0 0
  %2630 = vmatprep.subr.bf16.mxu0 0
  %2631 = vmatpush1.bf16.msra.mxu0 0
  %2632 = vmatprep.subr.bf16.mxu0 0
  %2633 = vmatpush1.bf16.msra.mxu0 0
  %2634 = vmatprep.subr.bf16.mxu0 0
  %2635 = vmatpush1.bf16.msra.mxu0 0
  %2636 = vmatprep.subr.bf16.mxu0 0
  %2637 = vmatpush1.bf16.msra.mxu0 0
  %2638 = vmatprep.subr.bf16.mxu0 0
  %2639 = vmatpush1.bf16.msra.mxu0 0
  %2640 = vmatprep.subr.bf16.mxu0 0
  %2641 = vmatpush1.bf16.msra.mxu0 0
  %2642 = vmatprep.subr.bf16.mxu0 0
  %2643 = vmatpush1.bf16.msra.mxu0 0
  %2644 = vmatprep.mubr.bf16.mxu0 0
  %2645 = vmatmul.mubr.bf16.gmra.mrb[0].mxu0 %v513
  %v2646 = vpop.f32.mrb[0].mxu0
  %v2647 = vadd.f32 %v2598, %v2646
  %v2648 = vpop.f32.mrb[0].mxu0
  %v2649 = vpop.f32.mrb[0].mxu0
  %v2650 = vadd.f32 %v2598, %v2649
  %v2651 = vpop.f32.mrb[0].mxu0
  %2652 = vmatprep.mubr.bf16.mxu0 0
  %2653 = vmatmul.mubr.bf16.gmra.mrb[0].mxu0 %v516
  %v2654 = vpop.f32.mrb[0].mxu0
  %v2655 = vadd.f32 %v2598, %v2654
  %v2656 = vpop.f32.mrb[0].mxu0
  %v2657 = vpop.f32.mrb[0].mxu0
  %v2658 = vadd.f32 %v2598, %v2657
  %v2659 = vpop.f32.mrb[0].mxu0
  %2660 = vdwg.mxu0
  %s2661 = scalar_lea.vmem %s13, 64
  %v2662 = vld [vmem:[%s2661] sm:$0xf]
  %v2663 = vld [vmem:[%s2661 + $0x4] sm:$0xf]
  %v2664 = vld [vmem:[%s2661 + $0x8] sm:$0xf]
  %v2665 = vld [vmem:[%s2661 + $0xc] sm:$0xf]
  %s2666 = scalar_lea.vmem %s15, 4
  %v2667 = vld [vmem:[%s2666] sm:$0x1]
  %v2669 = vlaneseq
  %v2670 = vshrl.u32 %v2669, 7
  %v2671 = vsub.s32 0, %v2670
  %v2672 = vrot.slane %v2667, %v2671
  %v2678 = vunpack.c.l.b16 %v2662
  %v2679 = vunpack.c.l.b16 %v2663
  %v2680 = vunpack.c.l.b16 %v2664
  %v2681 = vunpack.c.l.b16 %v2665
  %v2682 = vpack.c.b16 %v2679, %v2678
  %v2683 = vpack.c.b16 %v2681, %v2680
  %2686 = vmatprep.subr.bf16.mxu0 0
  %2687 = vmatpush1.bf16.msra.mxu0 %v2682
  %2688 = vmatprep.subr.bf16.mxu0 0
  %2689 = vmatpush1.bf16.msra.mxu0 %v2683
  %2690 = vmatprep.subr.bf16.mxu0 0
  %2691 = vmatpush1.bf16.msra.mxu0 0
  %2692 = vmatprep.subr.bf16.mxu0 0
  %2693 = vmatpush1.bf16.msra.mxu0 0
  %2694 = vmatprep.subr.bf16.mxu0 0
  %2695 = vmatpush1.bf16.msra.mxu0 0
  %2696 = vmatprep.subr.bf16.mxu0 0
  %2697 = vmatpush1.bf16.msra.mxu0 0
  %2698 = vmatprep.subr.bf16.mxu0 0
  %2699 = vmatpush1.bf16.msra.mxu0 0
  %2700 = vmatprep.subr.bf16.mxu0 0
  %2701 = vmatpush1.bf16.msra.mxu0 0
  %2702 = vmatprep.subr.bf16.mxu0 0
  %2703 = vmatpush1.bf16.msra.mxu0 0
  %2704 = vmatprep.subr.bf16.mxu0 0
  %2705 = vmatpush1.bf16.msra.mxu0 0
  %2706 = vmatprep.subr.bf16.mxu0 0
  %2707 = vmatpush1.bf16.msra.mxu0 0
  %2708 = vmatprep.subr.bf16.mxu0 0
  %2709 = vmatpush1.bf16.msra.mxu0 0
  %2710 = vmatprep.subr.bf16.mxu0 0
  %2711 = vmatpush1.bf16.msra.mxu0 0
  %2712 = vmatprep.subr.bf16.mxu0 0
  %2713 = vmatpush1.bf16.msra.mxu0 0
  %2714 = vmatprep.subr.bf16.mxu0 0
  %2715 = vmatpush1.bf16.msra.mxu0 0
  %2716 = vmatprep.subr.bf16.mxu0 0
  %2717 = vmatpush1.bf16.msra.mxu0 0
  %2718 = vmatprep.mubr.bf16.mxu0 0
  %2719 = vmatmul.mubr.bf16.gmra.mrb[0].mxu0 %v513
  %v2720 = vpop.f32.mrb[0].mxu0
  %v2721 = vadd.f32 %v2672, %v2720
  %v2722 = vpop.f32.mrb[0].mxu0
  %v2723 = vpop.f32.mrb[0].mxu0
  %v2724 = vadd.f32 %v2672, %v2723
  %v2725 = vpop.f32.mrb[0].mxu0
  %2726 = vmatprep.mubr.bf16.mxu0 0
  %2727 = vmatmul.mubr.bf16.gmra.mrb[0].mxu0 %v516
  %v2728 = vpop.f32.mrb[0].mxu0
  %v2729 = vadd.f32 %v2672, %v2728
  %v2730 = vpop.f32.mrb[0].mxu0
  %v2731 = vpop.f32.mrb[0].mxu0
  %v2732 = vadd.f32 %v2672, %v2731
  %v2733 = vpop.f32.mrb[0].mxu0
  %2734 = vdwg.mxu0
  %s2735 = scalar_lea.vmem %s17, 64
  %v2736 = vld [vmem:[%s2735] sm:$0xf]
  %v2737 = vld [vmem:[%s2735 + $0x4] sm:$0xf]
  %v2738 = vld [vmem:[%s2735 + $0x8] sm:$0xf]
  %v2739 = vld [vmem:[%s2735 + $0xc] sm:$0xf]
  %s2740 = scalar_lea.vmem %s19, 4
  %v2741 = vld [vmem:[%s2740] sm:$0x1]
  %v2743 = vlaneseq
  %v2744 = vshrl.u32 %v2743, 7
  %v2745 = vsub.s32 0, %v2744
  %v2746 = vrot.slane %v2741, %v2745
  %v2752 = vunpack.c.l.b16 %v2736
  %v2753 = vunpack.c.l.b16 %v2737
  %v2754 = vunpack.c.l.b16 %v2738
  %v2755 = vunpack.c.l.b16 %v2739
  %v2756 = vpack.c.b16 %v2753, %v2752
  %v2757 = vpack.c.b16 %v2755, %v2754
  %2760 = vmatprep.subr.bf16.mxu0 0
  %2761 = vmatpush1.bf16.msra.mxu0 %v2756
  %2762 = vmatprep.subr.bf16.mxu0 0
  %2763 = vmatpush1.bf16.msra.mxu0 %v2757
  %2764 = vmatprep.subr.bf16.mxu0 0
  %2765 = vmatpush1.bf16.msra.mxu0 0
  %2766 = vmatprep.subr.bf16.mxu0 0
  %2767 = vmatpush1.bf16.msra.mxu0 0
  %2768 = vmatprep.subr.bf16.mxu0 0
  %2769 = vmatpush1.bf16.msra.mxu0 0
  %2770 = vmatprep.subr.bf16.mxu0 0
  %2771 = vmatpush1.bf16.msra.mxu0 0
  %2772 = vmatprep.subr.bf16.mxu0 0
  %2773 = vmatpush1.bf16.msra.mxu0 0
  %2774 = vmatprep.subr.bf16.mxu0 0
  %2775 = vmatpush1.bf16.msra.mxu0 0
  %2776 = vmatprep.subr.bf16.mxu0 0
  %2777 = vmatpush1.bf16.msra.mxu0 0
  %2778 = vmatprep.subr.bf16.mxu0 0
  %2779 = vmatpush1.bf16.msra.mxu0 0
  %2780 = vmatprep.subr.bf16.mxu0 0
  %2781 = vmatpush1.bf16.msra.mxu0 0
  %2782 = vmatprep.subr.bf16.mxu0 0
  %2783 = vmatpush1.bf16.msra.mxu0 0
  %2784 = vmatprep.subr.bf16.mxu0 0
  %2785 = vmatpush1.bf16.msra.mxu0 0
  %2786 = vmatprep.subr.bf16.mxu0 0
  %2787 = vmatpush1.bf16.msra.mxu0 0
  %2788 = vmatprep.subr.bf16.mxu0 0
  %2789 = vmatpush1.bf16.msra.mxu0 0
  %2790 = vmatprep.subr.bf16.mxu0 0
  %2791 = vmatpush1.bf16.msra.mxu0 0
  %2792 = vmatprep.mubr.bf16.mxu0 0
  %2793 = vmatmul.mubr.bf16.gmra.mrb[0].mxu0 %v513
  %v2794 = vpop.f32.mrb[0].mxu0
  %v2795 = vadd.f32 %v2746, %v2794
  %v2796 = vpop.f32.mrb[0].mxu0
  %v2797 = vpop.f32.mrb[0].mxu0
  %v2798 = vadd.f32 %v2746, %v2797
  %v2799 = vpop.f32.mrb[0].mxu0
  %2800 = vmatprep.mubr.bf16.mxu0 0
  %2801 = vmatmul.mubr.bf16.gmra.mrb[0].mxu0 %v516
  %v2802 = vpop.f32.mrb[0].mxu0
  %v2803 = vadd.f32 %v2746, %v2802
  %v2804 = vpop.f32.mrb[0].mxu0
  %v2805 = vpop.f32.mrb[0].mxu0
  %v2806 = vadd.f32 %v2746, %v2805
  %v2807 = vpop.f32.mrb[0].mxu0
  %2808 = vdwg.mxu0
  %v2809 = vpack.c.bf16 %v2650, %v2647
  %v2810 = vpack.c.bf16 %v2658, %v2655
  %v2811 = vpack.c.bf16 %v2724, %v2721
  %v2812 = vpack.c.bf16 %v2732, %v2729
  %v2814 = vsel %vm715, %v2809, 0
  %v2817 = vsel %vm715, %v2811, 0
  %2819 = vmatprep.subr.bf16.mxu0 0
  %2820 = vmatpush1.bf16.xpose.msra.mxu0 %v2817
  %2821 = vmatprep.subr.bf16.mxu0 0
  %2822 = vmatpush1.bf16.xpose.msra.mxu0 0
  %2823 = vmatprep.subr.bf16.mxu0 0
  %2824 = vmatpush1.bf16.xpose.msra.mxu0 0
  %2825 = vmatprep.subr.bf16.mxu0 0
  %2826 = vmatpush1.bf16.xpose.msra.mxu0 0
  %2827 = vmatprep.subr.bf16.mxu0 0
  %2828 = vmatpush1.bf16.xpose.msra.mxu0 0
  %2829 = vmatprep.subr.bf16.mxu0 0
  %2830 = vmatpush1.bf16.xpose.msra.mxu0 0
  %2831 = vmatprep.subr.bf16.mxu0 0
  %2832 = vmatpush1.bf16.xpose.msra.mxu0 0
  %2833 = vmatprep.subr.bf16.mxu0 0
  %2834 = vmatpush1.bf16.xpose.msra.mxu0 0
  %2835 = vmatprep.subr.bf16.mxu0 0
  %2836 = vmatpush1.bf16.xpose.msra.mxu0 0
  %2837 = vmatprep.subr.bf16.mxu0 0
  %2838 = vmatpush1.bf16.xpose.msra.mxu0 0
  %2839 = vmatprep.subr.bf16.mxu0 0
  %2840 = vmatpush1.bf16.xpose.msra.mxu0 0
  %2841 = vmatprep.subr.bf16.mxu0 0
  %2842 = vmatpush1.bf16.xpose.msra.mxu0 0
  %2843 = vmatprep.subr.bf16.mxu0 0
  %2844 = vmatpush1.bf16.xpose.msra.mxu0 0
  %2845 = vmatprep.subr.bf16.mxu0 0
  %2846 = vmatpush1.bf16.xpose.msra.mxu0 0
  %2847 = vmatprep.subr.bf16.mxu0 0
  %2848 = vmatpush1.bf16.xpose.msra.mxu0 0
  %2849 = vmatprep.subr.bf16.mxu0 0
  %2850 = vmatpush1.bf16.xpose.msra.mxu0 0
  %2851 = vmatprep.mubr.bf16.mxu0 0
  %2852 = vmatmul.mubr.bf16.gmra.mrb[0].mxu0 %v2814
  %v2853 = vpop.f32.mrb[0].mxu0
  %v2854 = vadd.f32 0.0, %v2853
  %v2855 = vpop.f32.mrb[0].mxu0
  %v2856 = vpop.f32.mrb[0].mxu0
  %v2857 = vadd.f32 0.0, %v2856
  %v2858 = vpop.f32.mrb[0].mxu0
  %2859 = vdwg.mxu0
  %v2861 = vsel %vm715, %v2810, 0
  %v2864 = vsel %vm715, %v2812, 0
  %2866 = vmatprep.subr.bf16.mxu0 0
  %2867 = vmatpush1.bf16.xpose.msra.mxu0 %v2864
  %2868 = vmatprep.subr.bf16.mxu0 0
  %2869 = vmatpush1.bf16.xpose.msra.mxu0 0
  %2870 = vmatprep.subr.bf16.mxu0 0
  %2871 = vmatpush1.bf16.xpose.msra.mxu0 0
  %2872 = vmatprep.subr.bf16.mxu0 0
  %2873 = vmatpush1.bf16.xpose.msra.mxu0 0
  %2874 = vmatprep.subr.bf16.mxu0 0
  %2875 = vmatpush1.bf16.xpose.msra.mxu0 0
  %2876 = vmatprep.subr.bf16.mxu0 0
  %2877 = vmatpush1.bf16.xpose.msra.mxu0 0
  %2878 = vmatprep.subr.bf16.mxu0 0
  %2879 = vmatpush1.bf16.xpose.msra.mxu0 0
  %2880 = vmatprep.subr.bf16.mxu0 0
  %2881 = vmatpush1.bf16.xpose.msra.mxu0 0
  %2882 = vmatprep.subr.bf16.mxu0 0
  %2883 = vmatpush1.bf16.xpose.msra.mxu0 0
  %2884 = vmatprep.subr.bf16.mxu0 0
  %2885 = vmatpush1.bf16.xpose.msra.mxu0 0
  %2886 = vmatprep.subr.bf16.mxu0 0
  %2887 = vmatpush1.bf16.xpose.msra.mxu0 0
  %2888 = vmatprep.subr.bf16.mxu0 0
  %2889 = vmatpush1.bf16.xpose.msra.mxu0 0
  %2890 = vmatprep.subr.bf16.mxu0 0
  %2891 = vmatpush1.bf16.xpose.msra.mxu0 0
  %2892 = vmatprep.subr.bf16.mxu0 0
  %2893 = vmatpush1.bf16.xpose.msra.mxu0 0
  %2894 = vmatprep.subr.bf16.mxu0 0
  %2895 = vmatpush1.bf16.xpose.msra.mxu0 0
  %2896 = vmatprep.subr.bf16.mxu0 0
  %2897 = vmatpush1.bf16.xpose.msra.mxu0 0
  %2898 = vmatprep.mubr.bf16.mxu0 0
  %2899 = vmatmul.mubr.bf16.gmra.mrb[0].mxu0 %v2861
  %v2900 = vpop.f32.mrb[0].mxu0
  %v2901 = vadd.f32 0.0, %v2900
  %v2902 = vpop.f32.mrb[0].mxu0
  %v2903 = vpop.f32.mrb[0].mxu0
  %v2904 = vadd.f32 0.0, %v2903
  %v2905 = vpop.f32.mrb[0].mxu0
  %2906 = vdwg.mxu0
  %v2907 = vmul.f32 %v2854, 0.5
  %v2908 = vmul.f32 %v2857, 0.5
  %v2909 = vmul.f32 %v2901, 0.5
  %v2910 = vmul.f32 %v2904, 0.5
  %v2911 = vsel %vm814, %v2907, -inf
  %2912 = vmax.xlane.f32.xlu0 %v2911
  %v2913 = vpop.xlane.xlu0 %2912
  %v2914 = vsel %vm814, %v2908, -inf
  %2915 = vmax.xlane.f32.xlu0 %v2914
  %v2916 = vpop.xlane.xlu0 %2915
  %v2917 = vsel %vm814, %v2909, -inf
  %2918 = vmax.xlane.f32.xlu0 %v2917
  %v2919 = vpop.xlane.xlu0 %2918
  %v2920 = vsel %vm814, %v2910, -inf
  %2921 = vmax.xlane.f32.xlu0 %v2920
  %v2922 = vpop.xlane.xlu0 %2921
  %v2923 = vsub.f32 %v2907, %v2913
  %v2924 = vsub.f32 %v2908, %v2916
  %v2925 = vsub.f32 %v2909, %v2919
  %v2926 = vsub.f32 %v2910, %v2922
  %v2927 = vmul.f32 %v2923, 1.442695
  %v2928 = vpow.pop %v2927
  %v2929 = vmul.f32 %v2924, 1.442695
  %v2930 = vpow.pop %v2929
  %v2931 = vmul.f32 %v2925, 1.442695
  %v2932 = vpow.pop %v2931
  %v2933 = vmul.f32 %v2926, 1.442695
  %v2934 = vpow.pop %v2933
  %v2935 = vsel %vm814, %v2928, 0.0
  %2936 = vadd.xlane.f32.xlu0 %v2935
  %v2937 = vpop.xlane.xlu0 %2936
  %v2938 = vsel %vm814, %v2930, 0.0
  %2939 = vadd.xlane.f32.xlu0 %v2938
  %v2940 = vpop.xlane.xlu0 %2939
  %v2941 = vsel %vm814, %v2932, 0.0
  %2942 = vadd.xlane.f32.xlu0 %v2941
  %v2943 = vpop.xlane.xlu0 %2942
  %v2944 = vsel %vm814, %v2934, 0.0
  %2945 = vadd.xlane.f32.xlu0 %v2944
  %v2946 = vpop.xlane.xlu0 %2945
  %v2947 = vrcp.pop %v2937
  %v2948 = vrcp.pop %v2940
  %v2949 = vrcp.pop %v2943
  %v2950 = vrcp.pop %v2946
  %v2951 = vmul.f32 %v2928, %v2947
  %v2952 = vmul.f32 %v2930, %v2948
  %v2953 = vmul.f32 %v2932, %v2949
  %v2954 = vmul.f32 %v2934, %v2950
  %v2955 = vpack.c.bf16 %v2952, %v2951
  %v2956 = vpack.c.bf16 %v2954, %v2953
  %v2957 = vpack.c.bf16 %v2798, %v2795
  %v2958 = vpack.c.bf16 %v2806, %v2803
  %v2960 = vsel %vm814, %v2955, 0
  %2962 = vmatprep.subr.bf16.mxu0 0
  %2963 = vmatpush1.bf16.msra.mxu0 %v2957
  %2964 = vmatprep.subr.bf16.mxu0 0
  %2965 = vmatpush1.bf16.msra.mxu0 0
  %2966 = vmatprep.subr.bf16.mxu0 0
  %2967 = vmatpush1.bf16.msra.mxu0 0
  %2968 = vmatprep.subr.bf16.mxu0 0
  %2969 = vmatpush1.bf16.msra.mxu0 0
  %2970 = vmatprep.subr.bf16.mxu0 0
  %2971 = vmatpush1.bf16.msra.mxu0 0
  %2972 = vmatprep.subr.bf16.mxu0 0
  %2973 = vmatpush1.bf16.msra.mxu0 0
  %2974 = vmatprep.subr.bf16.mxu0 0
  %2975 = vmatpush1.bf16.msra.mxu0 0
  %2976 = vmatprep.subr.bf16.mxu0 0
  %2977 = vmatpush1.bf16.msra.mxu0 0
  %2978 = vmatprep.subr.bf16.mxu0 0
  %2979 = vmatpush1.bf16.msra.mxu0 0
  %2980 = vmatprep.subr.bf16.mxu0 0
  %2981 = vmatpush1.bf16.msra.mxu0 0
  %2982 = vmatprep.subr.bf16.mxu0 0
  %2983 = vmatpush1.bf16.msra.mxu0 0
  %2984 = vmatprep.subr.bf16.mxu0 0
  %2985 = vmatpush1.bf16.msra.mxu0 0
  %2986 = vmatprep.subr.bf16.mxu0 0
  %2987 = vmatpush1.bf16.msra.mxu0 0
  %2988 = vmatprep.subr.bf16.mxu0 0
  %2989 = vmatpush1.bf16.msra.mxu0 0
  %2990 = vmatprep.subr.bf16.mxu0 0
  %2991 = vmatpush1.bf16.msra.mxu0 0
  %2992 = vmatprep.subr.bf16.mxu0 0
  %2993 = vmatpush1.bf16.msra.mxu0 0
  %2994 = vmatprep.mubr.bf16.mxu0 0
  %2995 = vmatmul.mubr.bf16.gmra.mrb[0].mxu0 %v2960
  %v2996 = vpop.f32.mrb[0].mxu0
  %v2997 = vadd.f32 0.0, %v2996
  %v2998 = vpop.f32.mrb[0].mxu0
  %v2999 = vpop.f32.mrb[0].mxu0
  %v3000 = vadd.f32 0.0, %v2999
  %v3001 = vpop.f32.mrb[0].mxu0
  %3002 = vdwg.mxu0
  %v3004 = vsel %vm814, %v2956, 0
  %3006 = vmatprep.subr.bf16.mxu0 0
  %3007 = vmatpush1.bf16.msra.mxu0 %v2958
  %3008 = vmatprep.subr.bf16.mxu0 0
  %3009 = vmatpush1.bf16.msra.mxu0 0
  %3010 = vmatprep.subr.bf16.mxu0 0
  %3011 = vmatpush1.bf16.msra.mxu0 0
  %3012 = vmatprep.subr.bf16.mxu0 0
  %3013 = vmatpush1.bf16.msra.mxu0 0
  %3014 = vmatprep.subr.bf16.mxu0 0
  %3015 = vmatpush1.bf16.msra.mxu0 0
  %3016 = vmatprep.subr.bf16.mxu0 0
  %3017 = vmatpush1.bf16.msra.mxu0 0
  %3018 = vmatprep.subr.bf16.mxu0 0
  %3019 = vmatpush1.bf16.msra.mxu0 0
  %3020 = vmatprep.subr.bf16.mxu0 0
  %3021 = vmatpush1.bf16.msra.mxu0 0
  %3022 = vmatprep.subr.bf16.mxu0 0
  %3023 = vmatpush1.bf16.msra.mxu0 0
  %3024 = vmatprep.subr.bf16.mxu0 0
  %3025 = vmatpush1.bf16.msra.mxu0 0
  %3026 = vmatprep.subr.bf16.mxu0 0
  %3027 = vmatpush1.bf16.msra.mxu0 0
  %3028 = vmatprep.subr.bf16.mxu0 0
  %3029 = vmatpush1.bf16.msra.mxu0 0
  %3030 = vmatprep.subr.bf16.mxu0 0
  %3031 = vmatpush1.bf16.msra.mxu0 0
  %3032 = vmatprep.subr.bf16.mxu0 0
  %3033 = vmatpush1.bf16.msra.mxu0 0
  %3034 = vmatprep.subr.bf16.mxu0 0
  %3035 = vmatpush1.bf16.msra.mxu0 0
  %3036 = vmatprep.subr.bf16.mxu0 0
  %3037 = vmatpush1.bf16.msra.mxu0 0
  %3038 = vmatprep.mubr.bf16.mxu0 0
  %3039 = vmatmul.mubr.bf16.gmra.mrb[0].mxu0 %v3004
  %v3040 = vpop.f32.mrb[0].mxu0
  %v3041 = vadd.f32 0.0, %v3040
  %v3042 = vpop.f32.mrb[0].mxu0
  %v3043 = vpop.f32.mrb[0].mxu0
  %v3044 = vadd.f32 0.0, %v3043
  %v3045 = vpop.f32.mrb[0].mxu0
  %3046 = vdwg.mxu0
  %v3047 = vpack.c.bf16 %v3000, %v2997
  %v3048 = vpack.c.bf16 %v3044, %v3041
  %s3049 = scalar_lea.vmem %s21, 8
  %v3050 = vld [vmem:[%s3049] sm:$0x3]
  %v3052 = vsel %vm715, %v3047, 0
  %v3055 = vsel %vm715, %v3048, 0
  %v3058 = vsel %vm1424, %v3050, 0
  %3060 = vmatprep.subr.bf16.mxu0 0
  %3061 = vmatpush1.bf16.msra.mxu0 %v3058
  %3062 = vmatprep.subr.bf16.mxu0 0
  %3063 = vmatpush1.bf16.msra.mxu0 0
  %3064 = vmatprep.subr.bf16.mxu0 0
  %3065 = vmatpush1.bf16.msra.mxu0 0
  %3066 = vmatprep.subr.bf16.mxu0 0
  %3067 = vmatpush1.bf16.msra.mxu0 0
  %3068 = vmatprep.subr.bf16.mxu0 0
  %3069 = vmatpush1.bf16.msra.mxu0 0
  %3070 = vmatprep.subr.bf16.mxu0 0
  %3071 = vmatpush1.bf16.msra.mxu0 0
  %3072 = vmatprep.subr.bf16.mxu0 0
  %3073 = vmatpush1.bf16.msra.mxu0 0
  %3074 = vmatprep.subr.bf16.mxu0 0
  %3075 = vmatpush1.bf16.msra.mxu0 0
  %3076 = vmatprep.subr.bf16.mxu0 0
  %3077 = vmatpush1.bf16.msra.mxu0 0
  %3078 = vmatprep.subr.bf16.mxu0 0
  %3079 = vmatpush1.bf16.msra.mxu0 0
  %3080 = vmatprep.subr.bf16.mxu0 0
  %3081 = vmatpush1.bf16.msra.mxu0 0
  %3082 = vmatprep.subr.bf16.mxu0 0
  %3083 = vmatpush1.bf16.msra.mxu0 0
  %3084 = vmatprep.subr.bf16.mxu0 0
  %3085 = vmatpush1.bf16.msra.mxu0 0
  %3086 = vmatprep.subr.bf16.mxu0 0
  %3087 = vmatpush1.bf16.msra.mxu0 0
  %3088 = vmatprep.subr.bf16.mxu0 0
  %3089 = vmatpush1.bf16.msra.mxu0 0
  %3090 = vmatprep.subr.bf16.mxu0 0
  %3091 = vmatpush1.bf16.msra.mxu0 0
  %3092 = vmatprep.mubr.bf16.mxu0 0
  %3093 = vmatmul.mubr.bf16.gmra.mrb[0].mxu0 %v3052
  %v3094 = vpop.f32.mrb[0].mxu0
  %v3095 = vadd.f32 0.0, %v3094
  %v3096 = vpop.f32.mrb[0].mxu0
  %v3097 = vpop.f32.mrb[0].mxu0
  %v3098 = vadd.f32 0.0, %v3097
  %v3099 = vpop.f32.mrb[0].mxu0
  %3100 = vmatprep.mubr.bf16.mxu0 0
  %3101 = vmatmul.mubr.bf16.gmra.mrb[0].mxu0 %v3055
  %v3102 = vpop.f32.mrb[0].mxu0
  %v3103 = vadd.f32 0.0, %v3102
  %v3104 = vpop.f32.mrb[0].mxu0
  %v3105 = vpop.f32.mrb[0].mxu0
  %v3106 = vadd.f32 0.0, %v3105
  %v3107 = vpop.f32.mrb[0].mxu0
  %3108 = vdwg.mxu0
  %v3109 = vadd.f32 %v2583, %v3095
  %v3110 = vadd.f32 %v2584, %v3098
  %v3111 = vadd.f32 %v2585, %v3103
  %v3112 = vadd.f32 %v2586, %v3106
  %s3113 = scalar_lea.vmem %s9, 80
  %v3114 = vld [vmem:[%s3113] sm:$0xf]
  %v3115 = vld [vmem:[%s3113 + $0x4] sm:$0xf]
  %v3116 = vld [vmem:[%s3113 + $0x8] sm:$0xf]
  %v3117 = vld [vmem:[%s3113 + $0xc] sm:$0xf]
  %s3118 = scalar_lea.vmem %s11, 5
  %v3119 = vld [vmem:[%s3118] sm:$0x1]
  %v3121 = vlaneseq
  %v3122 = vshrl.u32 %v3121, 7
  %v3123 = vsub.s32 0, %v3122
  %v3124 = vrot.slane %v3119, %v3123
  %v3130 = vunpack.c.l.b16 %v3114
  %v3131 = vunpack.c.l.b16 %v3115
  %v3132 = vunpack.c.l.b16 %v3116
  %v3133 = vunpack.c.l.b16 %v3117
  %v3134 = vpack.c.b16 %v3131, %v3130
  %v3135 = vpack.c.b16 %v3133, %v3132
  %3138 = vmatprep.subr.bf16.mxu0 0
  %3139 = vmatpush1.bf16.msra.mxu0 %v3134
  %3140 = vmatprep.subr.bf16.mxu0 0
  %3141 = vmatpush1.bf16.msra.mxu0 %v3135
  %3142 = vmatprep.subr.bf16.mxu0 0
  %3143 = vmatpush1.bf16.msra.mxu0 0
  %3144 = vmatprep.subr.bf16.mxu0 0
  %3145 = vmatpush1.bf16.msra.mxu0 0
  %3146 = vmatprep.subr.bf16.mxu0 0
  %3147 = vmatpush1.bf16.msra.mxu0 0
  %3148 = vmatprep.subr.bf16.mxu0 0
  %3149 = vmatpush1.bf16.msra.mxu0 0
  %3150 = vmatprep.subr.bf16.mxu0 0
  %3151 = vmatpush1.bf16.msra.mxu0 0
  %3152 = vmatprep.subr.bf16.mxu0 0
  %3153 = vmatpush1.bf16.msra.mxu0 0
  %3154 = vmatprep.subr.bf16.mxu0 0
  %3155 = vmatpush1.bf16.msra.mxu0 0
  %3156 = vmatprep.subr.bf16.mxu0 0
  %3157 = vmatpush1.bf16.msra.mxu0 0
  %3158 = vmatprep.subr.bf16.mxu0 0
  %3159 = vmatpush1.bf16.msra.mxu0 0
  %3160 = vmatprep.subr.bf16.mxu0 0
  %3161 = vmatpush1.bf16.msra.mxu0 0
  %3162 = vmatprep.subr.bf16.mxu0 0
  %3163 = vmatpush1.bf16.msra.mxu0 0
  %3164 = vmatprep.subr.bf16.mxu0 0
  %3165 = vmatpush1.bf16.msra.mxu0 0
  %3166 = vmatprep.subr.bf16.mxu0 0
  %3167 = vmatpush1.bf16.msra.mxu0 0
  %3168 = vmatprep.subr.bf16.mxu0 0
  %3169 = vmatpush1.bf16.msra.mxu0 0
  %3170 = vmatprep.mubr.bf16.mxu0 0
  %3171 = vmatmul.mubr.bf16.gmra.mrb[0].mxu0 %v513
  %v3172 = vpop.f32.mrb[0].mxu0
  %v3173 = vadd.f32 %v3124, %v3172
  %v3174 = vpop.f32.mrb[0].mxu0
  %v3175 = vpop.f32.mrb[0].mxu0
  %v3176 = vadd.f32 %v3124, %v3175
  %v3177 = vpop.f32.mrb[0].mxu0
  %3178 = vmatprep.mubr.bf16.mxu0 0
  %3179 = vmatmul.mubr.bf16.gmra.mrb[0].mxu0 %v516
  %v3180 = vpop.f32.mrb[0].mxu0
  %v3181 = vadd.f32 %v3124, %v3180
  %v3182 = vpop.f32.mrb[0].mxu0
  %v3183 = vpop.f32.mrb[0].mxu0
  %v3184 = vadd.f32 %v3124, %v3183
  %v3185 = vpop.f32.mrb[0].mxu0
  %3186 = vdwg.mxu0
  %s3187 = scalar_lea.vmem %s13, 80
  %v3188 = vld [vmem:[%s3187] sm:$0xf]
  %v3189 = vld [vmem:[%s3187 + $0x4] sm:$0xf]
  %v3190 = vld [vmem:[%s3187 + $0x8] sm:$0xf]
  %v3191 = vld [vmem:[%s3187 + $0xc] sm:$0xf]
  %s3192 = scalar_lea.vmem %s15, 5
  %v3193 = vld [vmem:[%s3192] sm:$0x1]
  %v3195 = vlaneseq
  %v3196 = vshrl.u32 %v3195, 7
  %v3197 = vsub.s32 0, %v3196
  %v3198 = vrot.slane %v3193, %v3197
  %v3204 = vunpack.c.l.b16 %v3188
  %v3205 = vunpack.c.l.b16 %v3189
  %v3206 = vunpack.c.l.b16 %v3190
  %v3207 = vunpack.c.l.b16 %v3191
  %v3208 = vpack.c.b16 %v3205, %v3204
  %v3209 = vpack.c.b16 %v3207, %v3206
  %3212 = vmatprep.subr.bf16.mxu0 0
  %3213 = vmatpush1.bf16.msra.mxu0 %v3208
  %3214 = vmatprep.subr.bf16.mxu0 0
  %3215 = vmatpush1.bf16.msra.mxu0 %v3209
  %3216 = vmatprep.subr.bf16.mxu0 0
  %3217 = vmatpush1.bf16.msra.mxu0 0
  %3218 = vmatprep.subr.bf16.mxu0 0
  %3219 = vmatpush1.bf16.msra.mxu0 0
  %3220 = vmatprep.subr.bf16.mxu0 0
  %3221 = vmatpush1.bf16.msra.mxu0 0
  %3222 = vmatprep.subr.bf16.mxu0 0
  %3223 = vmatpush1.bf16.msra.mxu0 0
  %3224 = vmatprep.subr.bf16.mxu0 0
  %3225 = vmatpush1.bf16.msra.mxu0 0
  %3226 = vmatprep.subr.bf16.mxu0 0
  %3227 = vmatpush1.bf16.msra.mxu0 0
  %3228 = vmatprep.subr.bf16.mxu0 0
  %3229 = vmatpush1.bf16.msra.mxu0 0
  %3230 = vmatprep.subr.bf16.mxu0 0
  %3231 = vmatpush1.bf16.msra.mxu0 0
  %3232 = vmatprep.subr.bf16.mxu0 0
  %3233 = vmatpush1.bf16.msra.mxu0 0
  %3234 = vmatprep.subr.bf16.mxu0 0
  %3235 = vmatpush1.bf16.msra.mxu0 0
  %3236 = vmatprep.subr.bf16.mxu0 0
  %3237 = vmatpush1.bf16.msra.mxu0 0
  %3238 = vmatprep.subr.bf16.mxu0 0
  %3239 = vmatpush1.bf16.msra.mxu0 0
  %3240 = vmatprep.subr.bf16.mxu0 0
  %3241 = vmatpush1.bf16.msra.mxu0 0
  %3242 = vmatprep.subr.bf16.mxu0 0
  %3243 = vmatpush1.bf16.msra.mxu0 0
  %3244 = vmatprep.mubr.bf16.mxu0 0
  %3245 = vmatmul.mubr.bf16.gmra.mrb[0].mxu0 %v513
  %v3246 = vpop.f32.mrb[0].mxu0
  %v3247 = vadd.f32 %v3198, %v3246
  %v3248 = vpop.f32.mrb[0].mxu0
  %v3249 = vpop.f32.mrb[0].mxu0
  %v3250 = vadd.f32 %v3198, %v3249
  %v3251 = vpop.f32.mrb[0].mxu0
  %3252 = vmatprep.mubr.bf16.mxu0 0
  %3253 = vmatmul.mubr.bf16.gmra.mrb[0].mxu0 %v516
  %v3254 = vpop.f32.mrb[0].mxu0
  %v3255 = vadd.f32 %v3198, %v3254
  %v3256 = vpop.f32.mrb[0].mxu0
  %v3257 = vpop.f32.mrb[0].mxu0
  %v3258 = vadd.f32 %v3198, %v3257
  %v3259 = vpop.f32.mrb[0].mxu0
  %3260 = vdwg.mxu0
  %s3261 = scalar_lea.vmem %s17, 80
  %v3262 = vld [vmem:[%s3261] sm:$0xf]
  %v3263 = vld [vmem:[%s3261 + $0x4] sm:$0xf]
  %v3264 = vld [vmem:[%s3261 + $0x8] sm:$0xf]
  %v3265 = vld [vmem:[%s3261 + $0xc] sm:$0xf]
  %s3266 = scalar_lea.vmem %s19, 5
  %v3267 = vld [vmem:[%s3266] sm:$0x1]
  %v3269 = vlaneseq
  %v3270 = vshrl.u32 %v3269, 7
  %v3271 = vsub.s32 0, %v3270
  %v3272 = vrot.slane %v3267, %v3271
  %v3278 = vunpack.c.l.b16 %v3262
  %v3279 = vunpack.c.l.b16 %v3263
  %v3280 = vunpack.c.l.b16 %v3264
  %v3281 = vunpack.c.l.b16 %v3265
  %v3282 = vpack.c.b16 %v3279, %v3278
  %v3283 = vpack.c.b16 %v3281, %v3280
  %3286 = vmatprep.subr.bf16.mxu0 0
  %3287 = vmatpush1.bf16.msra.mxu0 %v3282
  %3288 = vmatprep.subr.bf16.mxu0 0
  %3289 = vmatpush1.bf16.msra.mxu0 %v3283
  %3290 = vmatprep.subr.bf16.mxu0 0
  %3291 = vmatpush1.bf16.msra.mxu0 0
  %3292 = vmatprep.subr.bf16.mxu0 0
  %3293 = vmatpush1.bf16.msra.mxu0 0
  %3294 = vmatprep.subr.bf16.mxu0 0
  %3295 = vmatpush1.bf16.msra.mxu0 0
  %3296 = vmatprep.subr.bf16.mxu0 0
  %3297 = vmatpush1.bf16.msra.mxu0 0
  %3298 = vmatprep.subr.bf16.mxu0 0
  %3299 = vmatpush1.bf16.msra.mxu0 0
  %3300 = vmatprep.subr.bf16.mxu0 0
  %3301 = vmatpush1.bf16.msra.mxu0 0
  %3302 = vmatprep.subr.bf16.mxu0 0
  %3303 = vmatpush1.bf16.msra.mxu0 0
  %3304 = vmatprep.subr.bf16.mxu0 0
  %3305 = vmatpush1.bf16.msra.mxu0 0
  %3306 = vmatprep.subr.bf16.mxu0 0
  %3307 = vmatpush1.bf16.msra.mxu0 0
  %3308 = vmatprep.subr.bf16.mxu0 0
  %3309 = vmatpush1.bf16.msra.mxu0 0
  %3310 = vmatprep.subr.bf16.mxu0 0
  %3311 = vmatpush1.bf16.msra.mxu0 0
  %3312 = vmatprep.subr.bf16.mxu0 0
  %3313 = vmatpush1.bf16.msra.mxu0 0
  %3314 = vmatprep.subr.bf16.mxu0 0
  %3315 = vmatpush1.bf16.msra.mxu0 0
  %3316 = vmatprep.subr.bf16.mxu0 0
  %3317 = vmatpush1.bf16.msra.mxu0 0
  %3318 = vmatprep.mubr.bf16.mxu0 0
  %3319 = vmatmul.mubr.bf16.gmra.mrb[0].mxu0 %v513
  %v3320 = vpop.f32.mrb[0].mxu0
  %v3321 = vadd.f32 %v3272, %v3320
  %v3322 = vpop.f32.mrb[0].mxu0
  %v3323 = vpop.f32.mrb[0].mxu0
  %v3324 = vadd.f32 %v3272, %v3323
  %v3325 = vpop.f32.mrb[0].mxu0
  %3326 = vmatprep.mubr.bf16.mxu0 0
  %3327 = vmatmul.mubr.bf16.gmra.mrb[0].mxu0 %v516
  %v3328 = vpop.f32.mrb[0].mxu0
  %v3329 = vadd.f32 %v3272, %v3328
  %v3330 = vpop.f32.mrb[0].mxu0
  %v3331 = vpop.f32.mrb[0].mxu0
  %v3332 = vadd.f32 %v3272, %v3331
  %v3333 = vpop.f32.mrb[0].mxu0
  %3334 = vdwg.mxu0
  %v3335 = vpack.c.bf16 %v3176, %v3173
  %v3336 = vpack.c.bf16 %v3184, %v3181
  %v3337 = vpack.c.bf16 %v3250, %v3247
  %v3338 = vpack.c.bf16 %v3258, %v3255
  %v3340 = vsel %vm715, %v3335, 0
  %v3343 = vsel %vm715, %v3337, 0
  %3345 = vmatprep.subr.bf16.mxu0 0
  %3346 = vmatpush1.bf16.xpose.msra.mxu0 %v3343
  %3347 = vmatprep.subr.bf16.mxu0 0
  %3348 = vmatpush1.bf16.xpose.msra.mxu0 0
  %3349 = vmatprep.subr.bf16.mxu0 0
  %3350 = vmatpush1.bf16.xpose.msra.mxu0 0
  %3351 = vmatprep.subr.bf16.mxu0 0
  %3352 = vmatpush1.bf16.xpose.msra.mxu0 0
  %3353 = vmatprep.subr.bf16.mxu0 0
  %3354 = vmatpush1.bf16.xpose.msra.mxu0 0
  %3355 = vmatprep.subr.bf16.mxu0 0
  %3356 = vmatpush1.bf16.xpose.msra.mxu0 0
  %3357 = vmatprep.subr.bf16.mxu0 0
  %3358 = vmatpush1.bf16.xpose.msra.mxu0 0
  %3359 = vmatprep.subr.bf16.mxu0 0
  %3360 = vmatpush1.bf16.xpose.msra.mxu0 0
  %3361 = vmatprep.subr.bf16.mxu0 0
  %3362 = vmatpush1.bf16.xpose.msra.mxu0 0
  %3363 = vmatprep.subr.bf16.mxu0 0
  %3364 = vmatpush1.bf16.xpose.msra.mxu0 0
  %3365 = vmatprep.subr.bf16.mxu0 0
  %3366 = vmatpush1.bf16.xpose.msra.mxu0 0
  %3367 = vmatprep.subr.bf16.mxu0 0
  %3368 = vmatpush1.bf16.xpose.msra.mxu0 0
  %3369 = vmatprep.subr.bf16.mxu0 0
  %3370 = vmatpush1.bf16.xpose.msra.mxu0 0
  %3371 = vmatprep.subr.bf16.mxu0 0
  %3372 = vmatpush1.bf16.xpose.msra.mxu0 0
  %3373 = vmatprep.subr.bf16.mxu0 0
  %3374 = vmatpush1.bf16.xpose.msra.mxu0 0
  %3375 = vmatprep.subr.bf16.mxu0 0
  %3376 = vmatpush1.bf16.xpose.msra.mxu0 0
  %3377 = vmatprep.mubr.bf16.mxu0 0
  %3378 = vmatmul.mubr.bf16.gmra.mrb[0].mxu0 %v3340
  %v3379 = vpop.f32.mrb[0].mxu0
  %v3380 = vadd.f32 0.0, %v3379
  %v3381 = vpop.f32.mrb[0].mxu0
  %v3382 = vpop.f32.mrb[0].mxu0
  %v3383 = vadd.f32 0.0, %v3382
  %v3384 = vpop.f32.mrb[0].mxu0
  %3385 = vdwg.mxu0
  %v3387 = vsel %vm715, %v3336, 0
  %v3390 = vsel %vm715, %v3338, 0
  %3392 = vmatprep.subr.bf16.mxu0 0
  %3393 = vmatpush1.bf16.xpose.msra.mxu0 %v3390
  %3394 = vmatprep.subr.bf16.mxu0 0
  %3395 = vmatpush1.bf16.xpose.msra.mxu0 0
  %3396 = vmatprep.subr.bf16.mxu0 0
  %3397 = vmatpush1.bf16.xpose.msra.mxu0 0
  %3398 = vmatprep.subr.bf16.mxu0 0
  %3399 = vmatpush1.bf16.xpose.msra.mxu0 0
  %3400 = vmatprep.subr.bf16.mxu0 0
  %3401 = vmatpush1.bf16.xpose.msra.mxu0 0
  %3402 = vmatprep.subr.bf16.mxu0 0
  %3403 = vmatpush1.bf16.xpose.msra.mxu0 0
  %3404 = vmatprep.subr.bf16.mxu0 0
  %3405 = vmatpush1.bf16.xpose.msra.mxu0 0
  %3406 = vmatprep.subr.bf16.mxu0 0
  %3407 = vmatpush1.bf16.xpose.msra.mxu0 0
  %3408 = vmatprep.subr.bf16.mxu0 0
  %3409 = vmatpush1.bf16.xpose.msra.mxu0 0
  %3410 = vmatprep.subr.bf16.mxu0 0
  %3411 = vmatpush1.bf16.xpose.msra.mxu0 0
  %3412 = vmatprep.subr.bf16.mxu0 0
  %3413 = vmatpush1.bf16.xpose.msra.mxu0 0
  %3414 = vmatprep.subr.bf16.mxu0 0
  %3415 = vmatpush1.bf16.xpose.msra.mxu0 0
  %3416 = vmatprep.subr.bf16.mxu0 0
  %3417 = vmatpush1.bf16.xpose.msra.mxu0 0
  %3418 = vmatprep.subr.bf16.mxu0 0
  %3419 = vmatpush1.bf16.xpose.msra.mxu0 0
  %3420 = vmatprep.subr.bf16.mxu0 0
  %3421 = vmatpush1.bf16.xpose.msra.mxu0 0
  %3422 = vmatprep.subr.bf16.mxu0 0
  %3423 = vmatpush1.bf16.xpose.msra.mxu0 0
  %3424 = vmatprep.mubr.bf16.mxu0 0
  %3425 = vmatmul.mubr.bf16.gmra.mrb[0].mxu0 %v3387
  %v3426 = vpop.f32.mrb[0].mxu0
  %v3427 = vadd.f32 0.0, %v3426
  %v3428 = vpop.f32.mrb[0].mxu0
  %v3429 = vpop.f32.mrb[0].mxu0
  %v3430 = vadd.f32 0.0, %v3429
  %v3431 = vpop.f32.mrb[0].mxu0
  %3432 = vdwg.mxu0
  %v3433 = vmul.f32 %v3380, 0.5
  %v3434 = vmul.f32 %v3383, 0.5
  %v3435 = vmul.f32 %v3427, 0.5
  %v3436 = vmul.f32 %v3430, 0.5
  %v3437 = vsel %vm814, %v3433, -inf
  %3438 = vmax.xlane.f32.xlu0 %v3437
  %v3439 = vpop.xlane.xlu0 %3438
  %v3440 = vsel %vm814, %v3434, -inf
  %3441 = vmax.xlane.f32.xlu0 %v3440
  %v3442 = vpop.xlane.xlu0 %3441
  %v3443 = vsel %vm814, %v3435, -inf
  %3444 = vmax.xlane.f32.xlu0 %v3443
  %v3445 = vpop.xlane.xlu0 %3444
  %v3446 = vsel %vm814, %v3436, -inf
  %3447 = vmax.xlane.f32.xlu0 %v3446
  %v3448 = vpop.xlane.xlu0 %3447
  %v3449 = vsub.f32 %v3433, %v3439
  %v3450 = vsub.f32 %v3434, %v3442
  %v3451 = vsub.f32 %v3435, %v3445
  %v3452 = vsub.f32 %v3436, %v3448
  %v3453 = vmul.f32 %v3449, 1.442695
  %v3454 = vpow.pop %v3453
  %v3455 = vmul.f32 %v3450, 1.442695
  %v3456 = vpow.pop %v3455
  %v3457 = vmul.f32 %v3451, 1.442695
  %v3458 = vpow.pop %v3457
  %v3459 = vmul.f32 %v3452, 1.442695
  %v3460 = vpow.pop %v3459
  %v3461 = vsel %vm814, %v3454, 0.0
  %3462 = vadd.xlane.f32.xlu0 %v3461
  %v3463 = vpop.xlane.xlu0 %3462
  %v3464 = vsel %vm814, %v3456, 0.0
  %3465 = vadd.xlane.f32.xlu0 %v3464
  %v3466 = vpop.xlane.xlu0 %3465
  %v3467 = vsel %vm814, %v3458, 0.0
  %3468 = vadd.xlane.f32.xlu0 %v3467
  %v3469 = vpop.xlane.xlu0 %3468
  %v3470 = vsel %vm814, %v3460, 0.0
  %3471 = vadd.xlane.f32.xlu0 %v3470
  %v3472 = vpop.xlane.xlu0 %3471
  %v3473 = vrcp.pop %v3463
  %v3474 = vrcp.pop %v3466
  %v3475 = vrcp.pop %v3469
  %v3476 = vrcp.pop %v3472
  %v3477 = vmul.f32 %v3454, %v3473
  %v3478 = vmul.f32 %v3456, %v3474
  %v3479 = vmul.f32 %v3458, %v3475
  %v3480 = vmul.f32 %v3460, %v3476
  %v3481 = vpack.c.bf16 %v3478, %v3477
  %v3482 = vpack.c.bf16 %v3480, %v3479
  %v3483 = vpack.c.bf16 %v3324, %v3321
  %v3484 = vpack.c.bf16 %v3332, %v3329
  %v3486 = vsel %vm814, %v3481, 0
  %3488 = vmatprep.subr.bf16.mxu0 0
  %3489 = vmatpush1.bf16.msra.mxu0 %v3483
  %3490 = vmatprep.subr.bf16.mxu0 0
  %3491 = vmatpush1.bf16.msra.mxu0 0
  %3492 = vmatprep.subr.bf16.mxu0 0
  %3493 = vmatpush1.bf16.msra.mxu0 0
  %3494 = vmatprep.subr.bf16.mxu0 0
  %3495 = vmatpush1.bf16.msra.mxu0 0
  %3496 = vmatprep.subr.bf16.mxu0 0
  %3497 = vmatpush1.bf16.msra.mxu0 0
  %3498 = vmatprep.subr.bf16.mxu0 0
  %3499 = vmatpush1.bf16.msra.mxu0 0
  %3500 = vmatprep.subr.bf16.mxu0 0
  %3501 = vmatpush1.bf16.msra.mxu0 0
  %3502 = vmatprep.subr.bf16.mxu0 0
  %3503 = vmatpush1.bf16.msra.mxu0 0
  %3504 = vmatprep.subr.bf16.mxu0 0
  %3505 = vmatpush1.bf16.msra.mxu0 0
  %3506 = vmatprep.subr.bf16.mxu0 0
  %3507 = vmatpush1.bf16.msra.mxu0 0
  %3508 = vmatprep.subr.bf16.mxu0 0
  %3509 = vmatpush1.bf16.msra.mxu0 0
  %3510 = vmatprep.subr.bf16.mxu0 0
  %3511 = vmatpush1.bf16.msra.mxu0 0
  %3512 = vmatprep.subr.bf16.mxu0 0
  %3513 = vmatpush1.bf16.msra.mxu0 0
  %3514 = vmatprep.subr.bf16.mxu0 0
  %3515 = vmatpush1.bf16.msra.mxu0 0
  %3516 = vmatprep.subr.bf16.mxu0 0
  %3517 = vmatpush1.bf16.msra.mxu0 0
  %3518 = vmatprep.subr.bf16.mxu0 0
  %3519 = vmatpush1.bf16.msra.mxu0 0
  %3520 = vmatprep.mubr.bf16.mxu0 0
  %3521 = vmatmul.mubr.bf16.gmra.mrb[0].mxu0 %v3486
  %v3522 = vpop.f32.mrb[0].mxu0
  %v3523 = vadd.f32 0.0, %v3522
  %v3524 = vpop.f32.mrb[0].mxu0
  %v3525 = vpop.f32.mrb[0].mxu0
  %v3526 = vadd.f32 0.0, %v3525
  %v3527 = vpop.f32.mrb[0].mxu0
  %3528 = vdwg.mxu0
  %v3530 = vsel %vm814, %v3482, 0
  %3532 = vmatprep.subr.bf16.mxu0 0
  %3533 = vmatpush1.bf16.msra.mxu0 %v3484
  %3534 = vmatprep.subr.bf16.mxu0 0
  %3535 = vmatpush1.bf16.msra.mxu0 0
  %3536 = vmatprep.subr.bf16.mxu0 0
  %3537 = vmatpush1.bf16.msra.mxu0 0
  %3538 = vmatprep.subr.bf16.mxu0 0
  %3539 = vmatpush1.bf16.msra.mxu0 0
  %3540 = vmatprep.subr.bf16.mxu0 0
  %3541 = vmatpush1.bf16.msra.mxu0 0
  %3542 = vmatprep.subr.bf16.mxu0 0
  %3543 = vmatpush1.bf16.msra.mxu0 0
  %3544 = vmatprep.subr.bf16.mxu0 0
  %3545 = vmatpush1.bf16.msra.mxu0 0
  %3546 = vmatprep.subr.bf16.mxu0 0
  %3547 = vmatpush1.bf16.msra.mxu0 0
  %3548 = vmatprep.subr.bf16.mxu0 0
  %3549 = vmatpush1.bf16.msra.mxu0 0
  %3550 = vmatprep.subr.bf16.mxu0 0
  %3551 = vmatpush1.bf16.msra.mxu0 0
  %3552 = vmatprep.subr.bf16.mxu0 0
  %3553 = vmatpush1.bf16.msra.mxu0 0
  %3554 = vmatprep.subr.bf16.mxu0 0
  %3555 = vmatpush1.bf16.msra.mxu0 0
  %3556 = vmatprep.subr.bf16.mxu0 0
  %3557 = vmatpush1.bf16.msra.mxu0 0
  %3558 = vmatprep.subr.bf16.mxu0 0
  %3559 = vmatpush1.bf16.msra.mxu0 0
  %3560 = vmatprep.subr.bf16.mxu0 0
  %3561 = vmatpush1.bf16.msra.mxu0 0
  %3562 = vmatprep.subr.bf16.mxu0 0
  %3563 = vmatpush1.bf16.msra.mxu0 0
  %3564 = vmatprep.mubr.bf16.mxu0 0
  %3565 = vmatmul.mubr.bf16.gmra.mrb[0].mxu0 %v3530
  %v3566 = vpop.f32.mrb[0].mxu0
  %v3567 = vadd.f32 0.0, %v3566
  %v3568 = vpop.f32.mrb[0].mxu0
  %v3569 = vpop.f32.mrb[0].mxu0
  %v3570 = vadd.f32 0.0, %v3569
  %v3571 = vpop.f32.mrb[0].mxu0
  %3572 = vdwg.mxu0
  %v3573 = vpack.c.bf16 %v3526, %v3523
  %v3574 = vpack.c.bf16 %v3570, %v3567
  %s3575 = scalar_lea.vmem %s21, 10
  %v3576 = vld [vmem:[%s3575] sm:$0x3]
  %v3578 = vsel %vm715, %v3573, 0
  %v3581 = vsel %vm715, %v3574, 0
  %v3584 = vsel %vm1424, %v3576, 0
  %3586 = vmatprep.subr.bf16.mxu0 0
  %3587 = vmatpush1.bf16.msra.mxu0 %v3584
  %3588 = vmatprep.subr.bf16.mxu0 0
  %3589 = vmatpush1.bf16.msra.mxu0 0
  %3590 = vmatprep.subr.bf16.mxu0 0
  %3591 = vmatpush1.bf16.msra.mxu0 0
  %3592 = vmatprep.subr.bf16.mxu0 0
  %3593 = vmatpush1.bf16.msra.mxu0 0
  %3594 = vmatprep.subr.bf16.mxu0 0
  %3595 = vmatpush1.bf16.msra.mxu0 0
  %3596 = vmatprep.subr.bf16.mxu0 0
  %3597 = vmatpush1.bf16.msra.mxu0 0
  %3598 = vmatprep.subr.bf16.mxu0 0
  %3599 = vmatpush1.bf16.msra.mxu0 0
  %3600 = vmatprep.subr.bf16.mxu0 0
  %3601 = vmatpush1.bf16.msra.mxu0 0
  %3602 = vmatprep.subr.bf16.mxu0 0
  %3603 = vmatpush1.bf16.msra.mxu0 0
  %3604 = vmatprep.subr.bf16.mxu0 0
  %3605 = vmatpush1.bf16.msra.mxu0 0
  %3606 = vmatprep.subr.bf16.mxu0 0
  %3607 = vmatpush1.bf16.msra.mxu0 0
  %3608 = vmatprep.subr.bf16.mxu0 0
  %3609 = vmatpush1.bf16.msra.mxu0 0
  %3610 = vmatprep.subr.bf16.mxu0 0
  %3611 = vmatpush1.bf16.msra.mxu0 0
  %3612 = vmatprep.subr.bf16.mxu0 0
  %3613 = vmatpush1.bf16.msra.mxu0 0
  %3614 = vmatprep.subr.bf16.mxu0 0
  %3615 = vmatpush1.bf16.msra.mxu0 0
  %3616 = vmatprep.subr.bf16.mxu0 0
  %3617 = vmatpush1.bf16.msra.mxu0 0
  %3618 = vmatprep.mubr.bf16.mxu0 0
  %3619 = vmatmul.mubr.bf16.gmra.mrb[0].mxu0 %v3578
  %v3620 = vpop.f32.mrb[0].mxu0
  %v3621 = vadd.f32 0.0, %v3620
  %v3622 = vpop.f32.mrb[0].mxu0
  %v3623 = vpop.f32.mrb[0].mxu0
  %v3624 = vadd.f32 0.0, %v3623
  %v3625 = vpop.f32.mrb[0].mxu0
  %3626 = vmatprep.mubr.bf16.mxu0 0
  %3627 = vmatmul.mubr.bf16.gmra.mrb[0].mxu0 %v3581
  %v3628 = vpop.f32.mrb[0].mxu0
  %v3629 = vadd.f32 0.0, %v3628
  %v3630 = vpop.f32.mrb[0].mxu0
  %v3631 = vpop.f32.mrb[0].mxu0
  %v3632 = vadd.f32 0.0, %v3631
  %v3633 = vpop.f32.mrb[0].mxu0
  %3634 = vdwg.mxu0
  %v3635 = vadd.f32 %v3109, %v3621
  %v3636 = vadd.f32 %v3110, %v3624
  %v3637 = vadd.f32 %v3111, %v3629
  %v3638 = vadd.f32 %v3112, %v3632
  %s3639 = scalar_lea.vmem %s9, 96
  %v3640 = vld [vmem:[%s3639] sm:$0xf]
  %v3641 = vld [vmem:[%s3639 + $0x4] sm:$0xf]
  %v3642 = vld [vmem:[%s3639 + $0x8] sm:$0xf]
  %v3643 = vld [vmem:[%s3639 + $0xc] sm:$0xf]
  %s3644 = scalar_lea.vmem %s11, 6
  %v3645 = vld [vmem:[%s3644] sm:$0x1]
  %v3647 = vlaneseq
  %v3648 = vshrl.u32 %v3647, 7
  %v3649 = vsub.s32 0, %v3648
  %v3650 = vrot.slane %v3645, %v3649
  %v3656 = vunpack.c.l.b16 %v3640
  %v3657 = vunpack.c.l.b16 %v3641
  %v3658 = vunpack.c.l.b16 %v3642
  %v3659 = vunpack.c.l.b16 %v3643
  %v3660 = vpack.c.b16 %v3657, %v3656
  %v3661 = vpack.c.b16 %v3659, %v3658
  %3664 = vmatprep.subr.bf16.mxu0 0
  %3665 = vmatpush1.bf16.msra.mxu0 %v3660
  %3666 = vmatprep.subr.bf16.mxu0 0
  %3667 = vmatpush1.bf16.msra.mxu0 %v3661
  %3668 = vmatprep.subr.bf16.mxu0 0
  %3669 = vmatpush1.bf16.msra.mxu0 0
  %3670 = vmatprep.subr.bf16.mxu0 0
  %3671 = vmatpush1.bf16.msra.mxu0 0
  %3672 = vmatprep.subr.bf16.mxu0 0
  %3673 = vmatpush1.bf16.msra.mxu0 0
  %3674 = vmatprep.subr.bf16.mxu0 0
  %3675 = vmatpush1.bf16.msra.mxu0 0
  %3676 = vmatprep.subr.bf16.mxu0 0
  %3677 = vmatpush1.bf16.msra.mxu0 0
  %3678 = vmatprep.subr.bf16.mxu0 0
  %3679 = vmatpush1.bf16.msra.mxu0 0
  %3680 = vmatprep.subr.bf16.mxu0 0
  %3681 = vmatpush1.bf16.msra.mxu0 0
  %3682 = vmatprep.subr.bf16.mxu0 0
  %3683 = vmatpush1.bf16.msra.mxu0 0
  %3684 = vmatprep.subr.bf16.mxu0 0
  %3685 = vmatpush1.bf16.msra.mxu0 0
  %3686 = vmatprep.subr.bf16.mxu0 0
  %3687 = vmatpush1.bf16.msra.mxu0 0
  %3688 = vmatprep.subr.bf16.mxu0 0
  %3689 = vmatpush1.bf16.msra.mxu0 0
  %3690 = vmatprep.subr.bf16.mxu0 0
  %3691 = vmatpush1.bf16.msra.mxu0 0
  %3692 = vmatprep.subr.bf16.mxu0 0
  %3693 = vmatpush1.bf16.msra.mxu0 0
  %3694 = vmatprep.subr.bf16.mxu0 0
  %3695 = vmatpush1.bf16.msra.mxu0 0
  %3696 = vmatprep.mubr.bf16.mxu0 0
  %3697 = vmatmul.mubr.bf16.gmra.mrb[0].mxu0 %v513
  %v3698 = vpop.f32.mrb[0].mxu0
  %v3699 = vadd.f32 %v3650, %v3698
  %v3700 = vpop.f32.mrb[0].mxu0
  %v3701 = vpop.f32.mrb[0].mxu0
  %v3702 = vadd.f32 %v3650, %v3701
  %v3703 = vpop.f32.mrb[0].mxu0
  %3704 = vmatprep.mubr.bf16.mxu0 0
  %3705 = vmatmul.mubr.bf16.gmra.mrb[0].mxu0 %v516
  %v3706 = vpop.f32.mrb[0].mxu0
  %v3707 = vadd.f32 %v3650, %v3706
  %v3708 = vpop.f32.mrb[0].mxu0
  %v3709 = vpop.f32.mrb[0].mxu0
  %v3710 = vadd.f32 %v3650, %v3709
  %v3711 = vpop.f32.mrb[0].mxu0
  %3712 = vdwg.mxu0
  %s3713 = scalar_lea.vmem %s13, 96
  %v3714 = vld [vmem:[%s3713] sm:$0xf]
  %v3715 = vld [vmem:[%s3713 + $0x4] sm:$0xf]
  %v3716 = vld [vmem:[%s3713 + $0x8] sm:$0xf]
  %v3717 = vld [vmem:[%s3713 + $0xc] sm:$0xf]
  %s3718 = scalar_lea.vmem %s15, 6
  %v3719 = vld [vmem:[%s3718] sm:$0x1]
  %v3721 = vlaneseq
  %v3722 = vshrl.u32 %v3721, 7
  %v3723 = vsub.s32 0, %v3722
  %v3724 = vrot.slane %v3719, %v3723
  %v3730 = vunpack.c.l.b16 %v3714
  %v3731 = vunpack.c.l.b16 %v3715
  %v3732 = vunpack.c.l.b16 %v3716
  %v3733 = vunpack.c.l.b16 %v3717
  %v3734 = vpack.c.b16 %v3731, %v3730
  %v3735 = vpack.c.b16 %v3733, %v3732
  %3738 = vmatprep.subr.bf16.mxu0 0
  %3739 = vmatpush1.bf16.msra.mxu0 %v3734
  %3740 = vmatprep.subr.bf16.mxu0 0
  %3741 = vmatpush1.bf16.msra.mxu0 %v3735
  %3742 = vmatprep.subr.bf16.mxu0 0
  %3743 = vmatpush1.bf16.msra.mxu0 0
  %3744 = vmatprep.subr.bf16.mxu0 0
  %3745 = vmatpush1.bf16.msra.mxu0 0
  %3746 = vmatprep.subr.bf16.mxu0 0
  %3747 = vmatpush1.bf16.msra.mxu0 0
  %3748 = vmatprep.subr.bf16.mxu0 0
  %3749 = vmatpush1.bf16.msra.mxu0 0
  %3750 = vmatprep.subr.bf16.mxu0 0
  %3751 = vmatpush1.bf16.msra.mxu0 0
  %3752 = vmatprep.subr.bf16.mxu0 0
  %3753 = vmatpush1.bf16.msra.mxu0 0
  %3754 = vmatprep.subr.bf16.mxu0 0
  %3755 = vmatpush1.bf16.msra.mxu0 0
  %3756 = vmatprep.subr.bf16.mxu0 0
  %3757 = vmatpush1.bf16.msra.mxu0 0
  %3758 = vmatprep.subr.bf16.mxu0 0
  %3759 = vmatpush1.bf16.msra.mxu0 0
  %3760 = vmatprep.subr.bf16.mxu0 0
  %3761 = vmatpush1.bf16.msra.mxu0 0
  %3762 = vmatprep.subr.bf16.mxu0 0
  %3763 = vmatpush1.bf16.msra.mxu0 0
  %3764 = vmatprep.subr.bf16.mxu0 0
  %3765 = vmatpush1.bf16.msra.mxu0 0
  %3766 = vmatprep.subr.bf16.mxu0 0
  %3767 = vmatpush1.bf16.msra.mxu0 0
  %3768 = vmatprep.subr.bf16.mxu0 0
  %3769 = vmatpush1.bf16.msra.mxu0 0
  %3770 = vmatprep.mubr.bf16.mxu0 0
  %3771 = vmatmul.mubr.bf16.gmra.mrb[0].mxu0 %v513
  %v3772 = vpop.f32.mrb[0].mxu0
  %v3773 = vadd.f32 %v3724, %v3772
  %v3774 = vpop.f32.mrb[0].mxu0
  %v3775 = vpop.f32.mrb[0].mxu0
  %v3776 = vadd.f32 %v3724, %v3775
  %v3777 = vpop.f32.mrb[0].mxu0
  %3778 = vmatprep.mubr.bf16.mxu0 0
  %3779 = vmatmul.mubr.bf16.gmra.mrb[0].mxu0 %v516
  %v3780 = vpop.f32.mrb[0].mxu0
  %v3781 = vadd.f32 %v3724, %v3780
  %v3782 = vpop.f32.mrb[0].mxu0
  %v3783 = vpop.f32.mrb[0].mxu0
  %v3784 = vadd.f32 %v3724, %v3783
  %v3785 = vpop.f32.mrb[0].mxu0
  %3786 = vdwg.mxu0
  %s3787 = scalar_lea.vmem %s17, 96
  %v3788 = vld [vmem:[%s3787] sm:$0xf]
  %v3789 = vld [vmem:[%s3787 + $0x4] sm:$0xf]
  %v3790 = vld [vmem:[%s3787 + $0x8] sm:$0xf]
  %v3791 = vld [vmem:[%s3787 + $0xc] sm:$0xf]
  %s3792 = scalar_lea.vmem %s19, 6
  %v3793 = vld [vmem:[%s3792] sm:$0x1]
  %v3795 = vlaneseq
  %v3796 = vshrl.u32 %v3795, 7
  %v3797 = vsub.s32 0, %v3796
  %v3798 = vrot.slane %v3793, %v3797
  %v3804 = vunpack.c.l.b16 %v3788
  %v3805 = vunpack.c.l.b16 %v3789
  %v3806 = vunpack.c.l.b16 %v3790
  %v3807 = vunpack.c.l.b16 %v3791
  %v3808 = vpack.c.b16 %v3805, %v3804
  %v3809 = vpack.c.b16 %v3807, %v3806
  %3812 = vmatprep.subr.bf16.mxu0 0
  %3813 = vmatpush1.bf16.msra.mxu0 %v3808
  %3814 = vmatprep.subr.bf16.mxu0 0
  %3815 = vmatpush1.bf16.msra.mxu0 %v3809
  %3816 = vmatprep.subr.bf16.mxu0 0
  %3817 = vmatpush1.bf16.msra.mxu0 0
  %3818 = vmatprep.subr.bf16.mxu0 0
  %3819 = vmatpush1.bf16.msra.mxu0 0
  %3820 = vmatprep.subr.bf16.mxu0 0
  %3821 = vmatpush1.bf16.msra.mxu0 0
  %3822 = vmatprep.subr.bf16.mxu0 0
  %3823 = vmatpush1.bf16.msra.mxu0 0
  %3824 = vmatprep.subr.bf16.mxu0 0
  %3825 = vmatpush1.bf16.msra.mxu0 0
  %3826 = vmatprep.subr.bf16.mxu0 0
  %3827 = vmatpush1.bf16.msra.mxu0 0
  %3828 = vmatprep.subr.bf16.mxu0 0
  %3829 = vmatpush1.bf16.msra.mxu0 0
  %3830 = vmatprep.subr.bf16.mxu0 0
  %3831 = vmatpush1.bf16.msra.mxu0 0
  %3832 = vmatprep.subr.bf16.mxu0 0
  %3833 = vmatpush1.bf16.msra.mxu0 0
  %3834 = vmatprep.subr.bf16.mxu0 0
  %3835 = vmatpush1.bf16.msra.mxu0 0
  %3836 = vmatprep.subr.bf16.mxu0 0
  %3837 = vmatpush1.bf16.msra.mxu0 0
  %3838 = vmatprep.subr.bf16.mxu0 0
  %3839 = vmatpush1.bf16.msra.mxu0 0
  %3840 = vmatprep.subr.bf16.mxu0 0
  %3841 = vmatpush1.bf16.msra.mxu0 0
  %3842 = vmatprep.subr.bf16.mxu0 0
  %3843 = vmatpush1.bf16.msra.mxu0 0
  %3844 = vmatprep.mubr.bf16.mxu0 0
  %3845 = vmatmul.mubr.bf16.gmra.mrb[0].mxu0 %v513
  %v3846 = vpop.f32.mrb[0].mxu0
  %v3847 = vadd.f32 %v3798, %v3846
  %v3848 = vpop.f32.mrb[0].mxu0
  %v3849 = vpop.f32.mrb[0].mxu0
  %v3850 = vadd.f32 %v3798, %v3849
  %v3851 = vpop.f32.mrb[0].mxu0
  %3852 = vmatprep.mubr.bf16.mxu0 0
  %3853 = vmatmul.mubr.bf16.gmra.mrb[0].mxu0 %v516
  %v3854 = vpop.f32.mrb[0].mxu0
  %v3855 = vadd.f32 %v3798, %v3854
  %v3856 = vpop.f32.mrb[0].mxu0
  %v3857 = vpop.f32.mrb[0].mxu0
  %v3858 = vadd.f32 %v3798, %v3857
  %v3859 = vpop.f32.mrb[0].mxu0
  %3860 = vdwg.mxu0
  %v3861 = vpack.c.bf16 %v3702, %v3699
  %v3862 = vpack.c.bf16 %v3710, %v3707
  %v3863 = vpack.c.bf16 %v3776, %v3773
  %v3864 = vpack.c.bf16 %v3784, %v3781
  %v3866 = vsel %vm715, %v3861, 0
  %v3869 = vsel %vm715, %v3863, 0
  %3871 = vmatprep.subr.bf16.mxu0 0
  %3872 = vmatpush1.bf16.xpose.msra.mxu0 %v3869
  %3873 = vmatprep.subr.bf16.mxu0 0
  %3874 = vmatpush1.bf16.xpose.msra.mxu0 0
  %3875 = vmatprep.subr.bf16.mxu0 0
  %3876 = vmatpush1.bf16.xpose.msra.mxu0 0
  %3877 = vmatprep.subr.bf16.mxu0 0
  %3878 = vmatpush1.bf16.xpose.msra.mxu0 0
  %3879 = vmatprep.subr.bf16.mxu0 0
  %3880 = vmatpush1.bf16.xpose.msra.mxu0 0
  %3881 = vmatprep.subr.bf16.mxu0 0
  %3882 = vmatpush1.bf16.xpose.msra.mxu0 0
  %3883 = vmatprep.subr.bf16.mxu0 0
  %3884 = vmatpush1.bf16.xpose.msra.mxu0 0
  %3885 = vmatprep.subr.bf16.mxu0 0
  %3886 = vmatpush1.bf16.xpose.msra.mxu0 0
  %3887 = vmatprep.subr.bf16.mxu0 0
  %3888 = vmatpush1.bf16.xpose.msra.mxu0 0
  %3889 = vmatprep.subr.bf16.mxu0 0
  %3890 = vmatpush1.bf16.xpose.msra.mxu0 0
  %3891 = vmatprep.subr.bf16.mxu0 0
  %3892 = vmatpush1.bf16.xpose.msra.mxu0 0
  %3893 = vmatprep.subr.bf16.mxu0 0
  %3894 = vmatpush1.bf16.xpose.msra.mxu0 0
  %3895 = vmatprep.subr.bf16.mxu0 0
  %3896 = vmatpush1.bf16.xpose.msra.mxu0 0
  %3897 = vmatprep.subr.bf16.mxu0 0
  %3898 = vmatpush1.bf16.xpose.msra.mxu0 0
  %3899 = vmatprep.subr.bf16.mxu0 0
  %3900 = vmatpush1.bf16.xpose.msra.mxu0 0
  %3901 = vmatprep.subr.bf16.mxu0 0
  %3902 = vmatpush1.bf16.xpose.msra.mxu0 0
  %3903 = vmatprep.mubr.bf16.mxu0 0
  %3904 = vmatmul.mubr.bf16.gmra.mrb[0].mxu0 %v3866
  %v3905 = vpop.f32.mrb[0].mxu0
  %v3906 = vadd.f32 0.0, %v3905
  %v3907 = vpop.f32.mrb[0].mxu0
  %v3908 = vpop.f32.mrb[0].mxu0
  %v3909 = vadd.f32 0.0, %v3908
  %v3910 = vpop.f32.mrb[0].mxu0
  %3911 = vdwg.mxu0
  %v3913 = vsel %vm715, %v3862, 0
  %v3916 = vsel %vm715, %v3864, 0
  %3918 = vmatprep.subr.bf16.mxu0 0
  %3919 = vmatpush1.bf16.xpose.msra.mxu0 %v3916
  %3920 = vmatprep.subr.bf16.mxu0 0
  %3921 = vmatpush1.bf16.xpose.msra.mxu0 0
  %3922 = vmatprep.subr.bf16.mxu0 0
  %3923 = vmatpush1.bf16.xpose.msra.mxu0 0
  %3924 = vmatprep.subr.bf16.mxu0 0
  %3925 = vmatpush1.bf16.xpose.msra.mxu0 0
  %3926 = vmatprep.subr.bf16.mxu0 0
  %3927 = vmatpush1.bf16.xpose.msra.mxu0 0
  %3928 = vmatprep.subr.bf16.mxu0 0
  %3929 = vmatpush1.bf16.xpose.msra.mxu0 0
  %3930 = vmatprep.subr.bf16.mxu0 0
  %3931 = vmatpush1.bf16.xpose.msra.mxu0 0
  %3932 = vmatprep.subr.bf16.mxu0 0
  %3933 = vmatpush1.bf16.xpose.msra.mxu0 0
  %3934 = vmatprep.subr.bf16.mxu0 0
  %3935 = vmatpush1.bf16.xpose.msra.mxu0 0
  %3936 = vmatprep.subr.bf16.mxu0 0
  %3937 = vmatpush1.bf16.xpose.msra.mxu0 0
  %3938 = vmatprep.subr.bf16.mxu0 0
  %3939 = vmatpush1.bf16.xpose.msra.mxu0 0
  %3940 = vmatprep.subr.bf16.mxu0 0
  %3941 = vmatpush1.bf16.xpose.msra.mxu0 0
  %3942 = vmatprep.subr.bf16.mxu0 0
  %3943 = vmatpush1.bf16.xpose.msra.mxu0 0
  %3944 = vmatprep.subr.bf16.mxu0 0
  %3945 = vmatpush1.bf16.xpose.msra.mxu0 0
  %3946 = vmatprep.subr.bf16.mxu0 0
  %3947 = vmatpush1.bf16.xpose.msra.mxu0 0
  %3948 = vmatprep.subr.bf16.mxu0 0
  %3949 = vmatpush1.bf16.xpose.msra.mxu0 0
  %3950 = vmatprep.mubr.bf16.mxu0 0
  %3951 = vmatmul.mubr.bf16.gmra.mrb[0].mxu0 %v3913
  %v3952 = vpop.f32.mrb[0].mxu0
  %v3953 = vadd.f32 0.0, %v3952
  %v3954 = vpop.f32.mrb[0].mxu0
  %v3955 = vpop.f32.mrb[0].mxu0
  %v3956 = vadd.f32 0.0, %v3955
  %v3957 = vpop.f32.mrb[0].mxu0
  %3958 = vdwg.mxu0
  %v3959 = vmul.f32 %v3906, 0.5
  %v3960 = vmul.f32 %v3909, 0.5
  %v3961 = vmul.f32 %v3953, 0.5
  %v3962 = vmul.f32 %v3956, 0.5
  %v3963 = vsel %vm814, %v3959, -inf
  %3964 = vmax.xlane.f32.xlu0 %v3963
  %v3965 = vpop.xlane.xlu0 %3964
  %v3966 = vsel %vm814, %v3960, -inf
  %3967 = vmax.xlane.f32.xlu0 %v3966
  %v3968 = vpop.xlane.xlu0 %3967
  %v3969 = vsel %vm814, %v3961, -inf
  %3970 = vmax.xlane.f32.xlu0 %v3969
  %v3971 = vpop.xlane.xlu0 %3970
  %v3972 = vsel %vm814, %v3962, -inf
  %3973 = vmax.xlane.f32.xlu0 %v3972
  %v3974 = vpop.xlane.xlu0 %3973
  %v3975 = vsub.f32 %v3959, %v3965
  %v3976 = vsub.f32 %v3960, %v3968
  %v3977 = vsub.f32 %v3961, %v3971
  %v3978 = vsub.f32 %v3962, %v3974
  %v3979 = vmul.f32 %v3975, 1.442695
  %v3980 = vpow.pop %v3979
  %v3981 = vmul.f32 %v3976, 1.442695
  %v3982 = vpow.pop %v3981
  %v3983 = vmul.f32 %v3977, 1.442695
  %v3984 = vpow.pop %v3983
  %v3985 = vmul.f32 %v3978, 1.442695
  %v3986 = vpow.pop %v3985
  %v3987 = vsel %vm814, %v3980, 0.0
  %3988 = vadd.xlane.f32.xlu0 %v3987
  %v3989 = vpop.xlane.xlu0 %3988
  %v3990 = vsel %vm814, %v3982, 0.0
  %3991 = vadd.xlane.f32.xlu0 %v3990
  %v3992 = vpop.xlane.xlu0 %3991
  %v3993 = vsel %vm814, %v3984, 0.0
  %3994 = vadd.xlane.f32.xlu0 %v3993
  %v3995 = vpop.xlane.xlu0 %3994
  %v3996 = vsel %vm814, %v3986, 0.0
  %3997 = vadd.xlane.f32.xlu0 %v3996
  %v3998 = vpop.xlane.xlu0 %3997
  %v3999 = vrcp.pop %v3989
  %v4000 = vrcp.pop %v3992
  %v4001 = vrcp.pop %v3995
  %v4002 = vrcp.pop %v3998
  %v4003 = vmul.f32 %v3980, %v3999
  %v4004 = vmul.f32 %v3982, %v4000
  %v4005 = vmul.f32 %v3984, %v4001
  %v4006 = vmul.f32 %v3986, %v4002
  %v4007 = vpack.c.bf16 %v4004, %v4003
  %v4008 = vpack.c.bf16 %v4006, %v4005
  %v4009 = vpack.c.bf16 %v3850, %v3847
  %v4010 = vpack.c.bf16 %v3858, %v3855
  %v4012 = vsel %vm814, %v4007, 0
  %4014 = vmatprep.subr.bf16.mxu0 0
  %4015 = vmatpush1.bf16.msra.mxu0 %v4009
  %4016 = vmatprep.subr.bf16.mxu0 0
  %4017 = vmatpush1.bf16.msra.mxu0 0
  %4018 = vmatprep.subr.bf16.mxu0 0
  %4019 = vmatpush1.bf16.msra.mxu0 0
  %4020 = vmatprep.subr.bf16.mxu0 0
  %4021 = vmatpush1.bf16.msra.mxu0 0
  %4022 = vmatprep.subr.bf16.mxu0 0
  %4023 = vmatpush1.bf16.msra.mxu0 0
  %4024 = vmatprep.subr.bf16.mxu0 0
  %4025 = vmatpush1.bf16.msra.mxu0 0
  %4026 = vmatprep.subr.bf16.mxu0 0
  %4027 = vmatpush1.bf16.msra.mxu0 0
  %4028 = vmatprep.subr.bf16.mxu0 0
  %4029 = vmatpush1.bf16.msra.mxu0 0
  %4030 = vmatprep.subr.bf16.mxu0 0
  %4031 = vmatpush1.bf16.msra.mxu0 0
  %4032 = vmatprep.subr.bf16.mxu0 0
  %4033 = vmatpush1.bf16.msra.mxu0 0
  %4034 = vmatprep.subr.bf16.mxu0 0
  %4035 = vmatpush1.bf16.msra.mxu0 0
  %4036 = vmatprep.subr.bf16.mxu0 0
  %4037 = vmatpush1.bf16.msra.mxu0 0
  %4038 = vmatprep.subr.bf16.mxu0 0
  %4039 = vmatpush1.bf16.msra.mxu0 0
  %4040 = vmatprep.subr.bf16.mxu0 0
  %4041 = vmatpush1.bf16.msra.mxu0 0
  %4042 = vmatprep.subr.bf16.mxu0 0
  %4043 = vmatpush1.bf16.msra.mxu0 0
  %4044 = vmatprep.subr.bf16.mxu0 0
  %4045 = vmatpush1.bf16.msra.mxu0 0
  %4046 = vmatprep.mubr.bf16.mxu0 0
  %4047 = vmatmul.mubr.bf16.gmra.mrb[0].mxu0 %v4012
  %v4048 = vpop.f32.mrb[0].mxu0
  %v4049 = vadd.f32 0.0, %v4048
  %v4050 = vpop.f32.mrb[0].mxu0
  %v4051 = vpop.f32.mrb[0].mxu0
  %v4052 = vadd.f32 0.0, %v4051
  %v4053 = vpop.f32.mrb[0].mxu0
  %4054 = vdwg.mxu0
  %v4056 = vsel %vm814, %v4008, 0
  %4058 = vmatprep.subr.bf16.mxu0 0
  %4059 = vmatpush1.bf16.msra.mxu0 %v4010
  %4060 = vmatprep.subr.bf16.mxu0 0
  %4061 = vmatpush1.bf16.msra.mxu0 0
  %4062 = vmatprep.subr.bf16.mxu0 0
  %4063 = vmatpush1.bf16.msra.mxu0 0
  %4064 = vmatprep.subr.bf16.mxu0 0
  %4065 = vmatpush1.bf16.msra.mxu0 0
  %4066 = vmatprep.subr.bf16.mxu0 0
  %4067 = vmatpush1.bf16.msra.mxu0 0
  %4068 = vmatprep.subr.bf16.mxu0 0
  %4069 = vmatpush1.bf16.msra.mxu0 0
  %4070 = vmatprep.subr.bf16.mxu0 0
  %4071 = vmatpush1.bf16.msra.mxu0 0
  %4072 = vmatprep.subr.bf16.mxu0 0
  %4073 = vmatpush1.bf16.msra.mxu0 0
  %4074 = vmatprep.subr.bf16.mxu0 0
  %4075 = vmatpush1.bf16.msra.mxu0 0
  %4076 = vmatprep.subr.bf16.mxu0 0
  %4077 = vmatpush1.bf16.msra.mxu0 0
  %4078 = vmatprep.subr.bf16.mxu0 0
  %4079 = vmatpush1.bf16.msra.mxu0 0
  %4080 = vmatprep.subr.bf16.mxu0 0
  %4081 = vmatpush1.bf16.msra.mxu0 0
  %4082 = vmatprep.subr.bf16.mxu0 0
  %4083 = vmatpush1.bf16.msra.mxu0 0
  %4084 = vmatprep.subr.bf16.mxu0 0
  %4085 = vmatpush1.bf16.msra.mxu0 0
  %4086 = vmatprep.subr.bf16.mxu0 0
  %4087 = vmatpush1.bf16.msra.mxu0 0
  %4088 = vmatprep.subr.bf16.mxu0 0
  %4089 = vmatpush1.bf16.msra.mxu0 0
  %4090 = vmatprep.mubr.bf16.mxu0 0
  %4091 = vmatmul.mubr.bf16.gmra.mrb[0].mxu0 %v4056
  %v4092 = vpop.f32.mrb[0].mxu0
  %v4093 = vadd.f32 0.0, %v4092
  %v4094 = vpop.f32.mrb[0].mxu0
  %v4095 = vpop.f32.mrb[0].mxu0
  %v4096 = vadd.f32 0.0, %v4095
  %v4097 = vpop.f32.mrb[0].mxu0
  %4098 = vdwg.mxu0
  %v4099 = vpack.c.bf16 %v4052, %v4049
  %v4100 = vpack.c.bf16 %v4096, %v4093
  %s4101 = scalar_lea.vmem %s21, 12
  %v4102 = vld [vmem:[%s4101] sm:$0x3]
  %v4104 = vsel %vm715, %v4099, 0
  %v4107 = vsel %vm715, %v4100, 0
  %v4110 = vsel %vm1424, %v4102, 0
  %4112 = vmatprep.subr.bf16.mxu0 0
  %4113 = vmatpush1.bf16.msra.mxu0 %v4110
  %4114 = vmatprep.subr.bf16.mxu0 0
  %4115 = vmatpush1.bf16.msra.mxu0 0
  %4116 = vmatprep.subr.bf16.mxu0 0
  %4117 = vmatpush1.bf16.msra.mxu0 0
  %4118 = vmatprep.subr.bf16.mxu0 0
  %4119 = vmatpush1.bf16.msra.mxu0 0
  %4120 = vmatprep.subr.bf16.mxu0 0
  %4121 = vmatpush1.bf16.msra.mxu0 0
  %4122 = vmatprep.subr.bf16.mxu0 0
  %4123 = vmatpush1.bf16.msra.mxu0 0
  %4124 = vmatprep.subr.bf16.mxu0 0
  %4125 = vmatpush1.bf16.msra.mxu0 0
  %4126 = vmatprep.subr.bf16.mxu0 0
  %4127 = vmatpush1.bf16.msra.mxu0 0
  %4128 = vmatprep.subr.bf16.mxu0 0
  %4129 = vmatpush1.bf16.msra.mxu0 0
  %4130 = vmatprep.subr.bf16.mxu0 0
  %4131 = vmatpush1.bf16.msra.mxu0 0
  %4132 = vmatprep.subr.bf16.mxu0 0
  %4133 = vmatpush1.bf16.msra.mxu0 0
  %4134 = vmatprep.subr.bf16.mxu0 0
  %4135 = vmatpush1.bf16.msra.mxu0 0
  %4136 = vmatprep.subr.bf16.mxu0 0
  %4137 = vmatpush1.bf16.msra.mxu0 0
  %4138 = vmatprep.subr.bf16.mxu0 0
  %4139 = vmatpush1.bf16.msra.mxu0 0
  %4140 = vmatprep.subr.bf16.mxu0 0
  %4141 = vmatpush1.bf16.msra.mxu0 0
  %4142 = vmatprep.subr.bf16.mxu0 0
  %4143 = vmatpush1.bf16.msra.mxu0 0
  %4144 = vmatprep.mubr.bf16.mxu0 0
  %4145 = vmatmul.mubr.bf16.gmra.mrb[0].mxu0 %v4104
  %v4146 = vpop.f32.mrb[0].mxu0
  %v4147 = vadd.f32 0.0, %v4146
  %v4148 = vpop.f32.mrb[0].mxu0
  %v4149 = vpop.f32.mrb[0].mxu0
  %v4150 = vadd.f32 0.0, %v4149
  %v4151 = vpop.f32.mrb[0].mxu0
  %4152 = vmatprep.mubr.bf16.mxu0 0
  %4153 = vmatmul.mubr.bf16.gmra.mrb[0].mxu0 %v4107
  %v4154 = vpop.f32.mrb[0].mxu0
  %v4155 = vadd.f32 0.0, %v4154
  %v4156 = vpop.f32.mrb[0].mxu0
  %v4157 = vpop.f32.mrb[0].mxu0
  %v4158 = vadd.f32 0.0, %v4157
  %v4159 = vpop.f32.mrb[0].mxu0
  %4160 = vdwg.mxu0
  %v4161 = vadd.f32 %v3635, %v4147
  %v4162 = vadd.f32 %v3636, %v4150
  %v4163 = vadd.f32 %v3637, %v4155
  %v4164 = vadd.f32 %v3638, %v4158
  %s4165 = scalar_lea.vmem %s9, 112
  %v4166 = vld [vmem:[%s4165] sm:$0xf]
  %v4167 = vld [vmem:[%s4165 + $0x4] sm:$0xf]
  %v4168 = vld [vmem:[%s4165 + $0x8] sm:$0xf]
  %v4169 = vld [vmem:[%s4165 + $0xc] sm:$0xf]
  %s4170 = scalar_lea.vmem %s11, 7
  %v4171 = vld [vmem:[%s4170] sm:$0x1]
  %v4173 = vlaneseq
  %v4174 = vshrl.u32 %v4173, 7
  %v4175 = vsub.s32 0, %v4174
  %v4176 = vrot.slane %v4171, %v4175
  %v4182 = vunpack.c.l.b16 %v4166
  %v4183 = vunpack.c.l.b16 %v4167
  %v4184 = vunpack.c.l.b16 %v4168
  %v4185 = vunpack.c.l.b16 %v4169
  %v4186 = vpack.c.b16 %v4183, %v4182
  %v4187 = vpack.c.b16 %v4185, %v4184
  %4190 = vmatprep.subr.bf16.mxu0 0
  %4191 = vmatpush1.bf16.msra.mxu0 %v4186
  %4192 = vmatprep.subr.bf16.mxu0 0
  %4193 = vmatpush1.bf16.msra.mxu0 %v4187
  %4194 = vmatprep.subr.bf16.mxu0 0
  %4195 = vmatpush1.bf16.msra.mxu0 0
  %4196 = vmatprep.subr.bf16.mxu0 0
  %4197 = vmatpush1.bf16.msra.mxu0 0
  %4198 = vmatprep.subr.bf16.mxu0 0
  %4199 = vmatpush1.bf16.msra.mxu0 0
  %4200 = vmatprep.subr.bf16.mxu0 0
  %4201 = vmatpush1.bf16.msra.mxu0 0
  %4202 = vmatprep.subr.bf16.mxu0 0
  %4203 = vmatpush1.bf16.msra.mxu0 0
  %4204 = vmatprep.subr.bf16.mxu0 0
  %4205 = vmatpush1.bf16.msra.mxu0 0
  %4206 = vmatprep.subr.bf16.mxu0 0
  %4207 = vmatpush1.bf16.msra.mxu0 0
  %4208 = vmatprep.subr.bf16.mxu0 0
  %4209 = vmatpush1.bf16.msra.mxu0 0
  %4210 = vmatprep.subr.bf16.mxu0 0
  %4211 = vmatpush1.bf16.msra.mxu0 0
  %4212 = vmatprep.subr.bf16.mxu0 0
  %4213 = vmatpush1.bf16.msra.mxu0 0
  %4214 = vmatprep.subr.bf16.mxu0 0
  %4215 = vmatpush1.bf16.msra.mxu0 0
  %4216 = vmatprep.subr.bf16.mxu0 0
  %4217 = vmatpush1.bf16.msra.mxu0 0
  %4218 = vmatprep.subr.bf16.mxu0 0
  %4219 = vmatpush1.bf16.msra.mxu0 0
  %4220 = vmatprep.subr.bf16.mxu0 0
  %4221 = vmatpush1.bf16.msra.mxu0 0
  %4222 = vmatprep.mubr.bf16.mxu0 0
  %4223 = vmatmul.mubr.bf16.gmra.mrb[0].mxu0 %v513
  %v4224 = vpop.f32.mrb[0].mxu0
  %v4225 = vadd.f32 %v4176, %v4224
  %v4226 = vpop.f32.mrb[0].mxu0
  %v4227 = vpop.f32.mrb[0].mxu0
  %v4228 = vadd.f32 %v4176, %v4227
  %v4229 = vpop.f32.mrb[0].mxu0
  %4230 = vmatprep.mubr.bf16.mxu0 0
  %4231 = vmatmul.mubr.bf16.gmra.mrb[0].mxu0 %v516
  %v4232 = vpop.f32.mrb[0].mxu0
  %v4233 = vadd.f32 %v4176, %v4232
  %v4234 = vpop.f32.mrb[0].mxu0
  %v4235 = vpop.f32.mrb[0].mxu0
  %v4236 = vadd.f32 %v4176, %v4235
  %v4237 = vpop.f32.mrb[0].mxu0
  %4238 = vdwg.mxu0
  %s4239 = scalar_lea.vmem %s13, 112
  %v4240 = vld [vmem:[%s4239] sm:$0xf]
  %v4241 = vld [vmem:[%s4239 + $0x4] sm:$0xf]
  %v4242 = vld [vmem:[%s4239 + $0x8] sm:$0xf]
  %v4243 = vld [vmem:[%s4239 + $0xc] sm:$0xf]
  %s4244 = scalar_lea.vmem %s15, 7
  %v4245 = vld [vmem:[%s4244] sm:$0x1]
  %v4247 = vlaneseq
  %v4248 = vshrl.u32 %v4247, 7
  %v4249 = vsub.s32 0, %v4248
  %v4250 = vrot.slane %v4245, %v4249
  %v4256 = vunpack.c.l.b16 %v4240
  %v4257 = vunpack.c.l.b16 %v4241
  %v4258 = vunpack.c.l.b16 %v4242
  %v4259 = vunpack.c.l.b16 %v4243
  %v4260 = vpack.c.b16 %v4257, %v4256
  %v4261 = vpack.c.b16 %v4259, %v4258
  %4264 = vmatprep.subr.bf16.mxu0 0
  %4265 = vmatpush1.bf16.msra.mxu0 %v4260
  %4266 = vmatprep.subr.bf16.mxu0 0
  %4267 = vmatpush1.bf16.msra.mxu0 %v4261
  %4268 = vmatprep.subr.bf16.mxu0 0
  %4269 = vmatpush1.bf16.msra.mxu0 0
  %4270 = vmatprep.subr.bf16.mxu0 0
  %4271 = vmatpush1.bf16.msra.mxu0 0
  %4272 = vmatprep.subr.bf16.mxu0 0
  %4273 = vmatpush1.bf16.msra.mxu0 0
  %4274 = vmatprep.subr.bf16.mxu0 0
  %4275 = vmatpush1.bf16.msra.mxu0 0
  %4276 = vmatprep.subr.bf16.mxu0 0
  %4277 = vmatpush1.bf16.msra.mxu0 0
  %4278 = vmatprep.subr.bf16.mxu0 0
  %4279 = vmatpush1.bf16.msra.mxu0 0
  %4280 = vmatprep.subr.bf16.mxu0 0
  %4281 = vmatpush1.bf16.msra.mxu0 0
  %4282 = vmatprep.subr.bf16.mxu0 0
  %4283 = vmatpush1.bf16.msra.mxu0 0
  %4284 = vmatprep.subr.bf16.mxu0 0
  %4285 = vmatpush1.bf16.msra.mxu0 0
  %4286 = vmatprep.subr.bf16.mxu0 0
  %4287 = vmatpush1.bf16.msra.mxu0 0
  %4288 = vmatprep.subr.bf16.mxu0 0
  %4289 = vmatpush1.bf16.msra.mxu0 0
  %4290 = vmatprep.subr.bf16.mxu0 0
  %4291 = vmatpush1.bf16.msra.mxu0 0
  %4292 = vmatprep.subr.bf16.mxu0 0
  %4293 = vmatpush1.bf16.msra.mxu0 0
  %4294 = vmatprep.subr.bf16.mxu0 0
  %4295 = vmatpush1.bf16.msra.mxu0 0
  %4296 = vmatprep.mubr.bf16.mxu0 0
  %4297 = vmatmul.mubr.bf16.gmra.mrb[0].mxu0 %v513
  %v4298 = vpop.f32.mrb[0].mxu0
  %v4299 = vadd.f32 %v4250, %v4298
  %v4300 = vpop.f32.mrb[0].mxu0
  %v4301 = vpop.f32.mrb[0].mxu0
  %v4302 = vadd.f32 %v4250, %v4301
  %v4303 = vpop.f32.mrb[0].mxu0
  %4304 = vmatprep.mubr.bf16.mxu0 0
  %4305 = vmatmul.mubr.bf16.gmra.mrb[0].mxu0 %v516
  %v4306 = vpop.f32.mrb[0].mxu0
  %v4307 = vadd.f32 %v4250, %v4306
  %v4308 = vpop.f32.mrb[0].mxu0
  %v4309 = vpop.f32.mrb[0].mxu0
  %v4310 = vadd.f32 %v4250, %v4309
  %v4311 = vpop.f32.mrb[0].mxu0
  %4312 = vdwg.mxu0
  %s4313 = scalar_lea.vmem %s17, 112
  %v4314 = vld [vmem:[%s4313] sm:$0xf]
  %v4315 = vld [vmem:[%s4313 + $0x4] sm:$0xf]
  %v4316 = vld [vmem:[%s4313 + $0x8] sm:$0xf]
  %v4317 = vld [vmem:[%s4313 + $0xc] sm:$0xf]
  %s4318 = scalar_lea.vmem %s19, 7
  %v4319 = vld [vmem:[%s4318] sm:$0x1]
  %v4321 = vlaneseq
  %v4322 = vshrl.u32 %v4321, 7
  %v4323 = vsub.s32 0, %v4322
  %v4324 = vrot.slane %v4319, %v4323
  %v4330 = vunpack.c.l.b16 %v4314
  %v4331 = vunpack.c.l.b16 %v4315
  %v4332 = vunpack.c.l.b16 %v4316
  %v4333 = vunpack.c.l.b16 %v4317
  %v4334 = vpack.c.b16 %v4331, %v4330
  %v4335 = vpack.c.b16 %v4333, %v4332
  %4338 = vmatprep.subr.bf16.mxu0 0
  %4339 = vmatpush1.bf16.msra.mxu0 %v4334
  %4340 = vmatprep.subr.bf16.mxu0 0
  %4341 = vmatpush1.bf16.msra.mxu0 %v4335
  %4342 = vmatprep.subr.bf16.mxu0 0
  %4343 = vmatpush1.bf16.msra.mxu0 0
  %4344 = vmatprep.subr.bf16.mxu0 0
  %4345 = vmatpush1.bf16.msra.mxu0 0
  %4346 = vmatprep.subr.bf16.mxu0 0
  %4347 = vmatpush1.bf16.msra.mxu0 0
  %4348 = vmatprep.subr.bf16.mxu0 0
  %4349 = vmatpush1.bf16.msra.mxu0 0
  %4350 = vmatprep.subr.bf16.mxu0 0
  %4351 = vmatpush1.bf16.msra.mxu0 0
  %4352 = vmatprep.subr.bf16.mxu0 0
  %4353 = vmatpush1.bf16.msra.mxu0 0
  %4354 = vmatprep.subr.bf16.mxu0 0
  %4355 = vmatpush1.bf16.msra.mxu0 0
  %4356 = vmatprep.subr.bf16.mxu0 0
  %4357 = vmatpush1.bf16.msra.mxu0 0
  %4358 = vmatprep.subr.bf16.mxu0 0
  %4359 = vmatpush1.bf16.msra.mxu0 0
  %4360 = vmatprep.subr.bf16.mxu0 0
  %4361 = vmatpush1.bf16.msra.mxu0 0
  %4362 = vmatprep.subr.bf16.mxu0 0
  %4363 = vmatpush1.bf16.msra.mxu0 0
  %4364 = vmatprep.subr.bf16.mxu0 0
  %4365 = vmatpush1.bf16.msra.mxu0 0
  %4366 = vmatprep.subr.bf16.mxu0 0
  %4367 = vmatpush1.bf16.msra.mxu0 0
  %4368 = vmatprep.subr.bf16.mxu0 0
  %4369 = vmatpush1.bf16.msra.mxu0 0
  %4370 = vmatprep.mubr.bf16.mxu0 0
  %4371 = vmatmul.mubr.bf16.gmra.mrb[0].mxu0 %v513
  %v4372 = vpop.f32.mrb[0].mxu0
  %v4373 = vadd.f32 %v4324, %v4372
  %v4374 = vpop.f32.mrb[0].mxu0
  %v4375 = vpop.f32.mrb[0].mxu0
  %v4376 = vadd.f32 %v4324, %v4375
  %v4377 = vpop.f32.mrb[0].mxu0
  %4378 = vmatprep.mubr.bf16.mxu0 0
  %4379 = vmatmul.mubr.bf16.gmra.mrb[0].mxu0 %v516
  %v4380 = vpop.f32.mrb[0].mxu0
  %v4381 = vadd.f32 %v4324, %v4380
  %v4382 = vpop.f32.mrb[0].mxu0
  %v4383 = vpop.f32.mrb[0].mxu0
  %v4384 = vadd.f32 %v4324, %v4383
  %v4385 = vpop.f32.mrb[0].mxu0
  %4386 = vdwg.mxu0
  %v4387 = vpack.c.bf16 %v4228, %v4225
  %v4388 = vpack.c.bf16 %v4236, %v4233
  %v4389 = vpack.c.bf16 %v4302, %v4299
  %v4390 = vpack.c.bf16 %v4310, %v4307
  %v4392 = vsel %vm715, %v4387, 0
  %v4395 = vsel %vm715, %v4389, 0
  %4397 = vmatprep.subr.bf16.mxu0 0
  %4398 = vmatpush1.bf16.xpose.msra.mxu0 %v4395
  %4399 = vmatprep.subr.bf16.mxu0 0
  %4400 = vmatpush1.bf16.xpose.msra.mxu0 0
  %4401 = vmatprep.subr.bf16.mxu0 0
  %4402 = vmatpush1.bf16.xpose.msra.mxu0 0
  %4403 = vmatprep.subr.bf16.mxu0 0
  %4404 = vmatpush1.bf16.xpose.msra.mxu0 0
  %4405 = vmatprep.subr.bf16.mxu0 0
  %4406 = vmatpush1.bf16.xpose.msra.mxu0 0
  %4407 = vmatprep.subr.bf16.mxu0 0
  %4408 = vmatpush1.bf16.xpose.msra.mxu0 0
  %4409 = vmatprep.subr.bf16.mxu0 0
  %4410 = vmatpush1.bf16.xpose.msra.mxu0 0
  %4411 = vmatprep.subr.bf16.mxu0 0
  %4412 = vmatpush1.bf16.xpose.msra.mxu0 0
  %4413 = vmatprep.subr.bf16.mxu0 0
  %4414 = vmatpush1.bf16.xpose.msra.mxu0 0
  %4415 = vmatprep.subr.bf16.mxu0 0
  %4416 = vmatpush1.bf16.xpose.msra.mxu0 0
  %4417 = vmatprep.subr.bf16.mxu0 0
  %4418 = vmatpush1.bf16.xpose.msra.mxu0 0
  %4419 = vmatprep.subr.bf16.mxu0 0
  %4420 = vmatpush1.bf16.xpose.msra.mxu0 0
  %4421 = vmatprep.subr.bf16.mxu0 0
  %4422 = vmatpush1.bf16.xpose.msra.mxu0 0
  %4423 = vmatprep.subr.bf16.mxu0 0
  %4424 = vmatpush1.bf16.xpose.msra.mxu0 0
  %4425 = vmatprep.subr.bf16.mxu0 0
  %4426 = vmatpush1.bf16.xpose.msra.mxu0 0
  %4427 = vmatprep.subr.bf16.mxu0 0
  %4428 = vmatpush1.bf16.xpose.msra.mxu0 0
  %4429 = vmatprep.mubr.bf16.mxu0 0
  %4430 = vmatmul.mubr.bf16.gmra.mrb[0].mxu0 %v4392
  %v4431 = vpop.f32.mrb[0].mxu0
  %v4432 = vadd.f32 0.0, %v4431
  %v4433 = vpop.f32.mrb[0].mxu0
  %v4434 = vpop.f32.mrb[0].mxu0
  %v4435 = vadd.f32 0.0, %v4434
  %v4436 = vpop.f32.mrb[0].mxu0
  %4437 = vdwg.mxu0
  %v4439 = vsel %vm715, %v4388, 0
  %v4442 = vsel %vm715, %v4390, 0
  %4444 = vmatprep.subr.bf16.mxu0 0
  %4445 = vmatpush1.bf16.xpose.msra.mxu0 %v4442
  %4446 = vmatprep.subr.bf16.mxu0 0
  %4447 = vmatpush1.bf16.xpose.msra.mxu0 0
  %4448 = vmatprep.subr.bf16.mxu0 0
  %4449 = vmatpush1.bf16.xpose.msra.mxu0 0
  %4450 = vmatprep.subr.bf16.mxu0 0
  %4451 = vmatpush1.bf16.xpose.msra.mxu0 0
  %4452 = vmatprep.subr.bf16.mxu0 0
  %4453 = vmatpush1.bf16.xpose.msra.mxu0 0
  %4454 = vmatprep.subr.bf16.mxu0 0
  %4455 = vmatpush1.bf16.xpose.msra.mxu0 0
  %4456 = vmatprep.subr.bf16.mxu0 0
  %4457 = vmatpush1.bf16.xpose.msra.mxu0 0
  %4458 = vmatprep.subr.bf16.mxu0 0
  %4459 = vmatpush1.bf16.xpose.msra.mxu0 0
  %4460 = vmatprep.subr.bf16.mxu0 0
  %4461 = vmatpush1.bf16.xpose.msra.mxu0 0
  %4462 = vmatprep.subr.bf16.mxu0 0
  %4463 = vmatpush1.bf16.xpose.msra.mxu0 0
  %4464 = vmatprep.subr.bf16.mxu0 0
  %4465 = vmatpush1.bf16.xpose.msra.mxu0 0
  %4466 = vmatprep.subr.bf16.mxu0 0
  %4467 = vmatpush1.bf16.xpose.msra.mxu0 0
  %4468 = vmatprep.subr.bf16.mxu0 0
  %4469 = vmatpush1.bf16.xpose.msra.mxu0 0
  %4470 = vmatprep.subr.bf16.mxu0 0
  %4471 = vmatpush1.bf16.xpose.msra.mxu0 0
  %4472 = vmatprep.subr.bf16.mxu0 0
  %4473 = vmatpush1.bf16.xpose.msra.mxu0 0
  %4474 = vmatprep.subr.bf16.mxu0 0
  %4475 = vmatpush1.bf16.xpose.msra.mxu0 0
  %4476 = vmatprep.mubr.bf16.mxu0 0
  %4477 = vmatmul.mubr.bf16.gmra.mrb[0].mxu0 %v4439
  %v4478 = vpop.f32.mrb[0].mxu0
  %v4479 = vadd.f32 0.0, %v4478
  %v4480 = vpop.f32.mrb[0].mxu0
  %v4481 = vpop.f32.mrb[0].mxu0
  %v4482 = vadd.f32 0.0, %v4481
  %v4483 = vpop.f32.mrb[0].mxu0
  %4484 = vdwg.mxu0
  %v4485 = vmul.f32 %v4432, 0.5
  %v4486 = vmul.f32 %v4435, 0.5
  %v4487 = vmul.f32 %v4479, 0.5
  %v4488 = vmul.f32 %v4482, 0.5
  %v4489 = vsel %vm814, %v4485, -inf
  %4490 = vmax.xlane.f32.xlu0 %v4489
  %v4491 = vpop.xlane.xlu0 %4490
  %v4492 = vsel %vm814, %v4486, -inf
  %4493 = vmax.xlane.f32.xlu0 %v4492
  %v4494 = vpop.xlane.xlu0 %4493
  %v4495 = vsel %vm814, %v4487, -inf
  %4496 = vmax.xlane.f32.xlu0 %v4495
  %v4497 = vpop.xlane.xlu0 %4496
  %v4498 = vsel %vm814, %v4488, -inf
  %4499 = vmax.xlane.f32.xlu0 %v4498
  %v4500 = vpop.xlane.xlu0 %4499
  %v4501 = vsub.f32 %v4485, %v4491
  %v4502 = vsub.f32 %v4486, %v4494
  %v4503 = vsub.f32 %v4487, %v4497
  %v4504 = vsub.f32 %v4488, %v4500
  %v4505 = vmul.f32 %v4501, 1.442695
  %v4506 = vpow.pop %v4505
  %v4507 = vmul.f32 %v4502, 1.442695
  %v4508 = vpow.pop %v4507
  %v4509 = vmul.f32 %v4503, 1.442695
  %v4510 = vpow.pop %v4509
  %v4511 = vmul.f32 %v4504, 1.442695
  %v4512 = vpow.pop %v4511
  %v4513 = vsel %vm814, %v4506, 0.0
  %4514 = vadd.xlane.f32.xlu0 %v4513
  %v4515 = vpop.xlane.xlu0 %4514
  %v4516 = vsel %vm814, %v4508, 0.0
  %4517 = vadd.xlane.f32.xlu0 %v4516
  %v4518 = vpop.xlane.xlu0 %4517
  %v4519 = vsel %vm814, %v4510, 0.0
  %4520 = vadd.xlane.f32.xlu0 %v4519
  %v4521 = vpop.xlane.xlu0 %4520
  %v4522 = vsel %vm814, %v4512, 0.0
  %4523 = vadd.xlane.f32.xlu0 %v4522
  %v4524 = vpop.xlane.xlu0 %4523
  %v4525 = vrcp.pop %v4515
  %v4526 = vrcp.pop %v4518
  %v4527 = vrcp.pop %v4521
  %v4528 = vrcp.pop %v4524
  %v4529 = vmul.f32 %v4506, %v4525
  %v4530 = vmul.f32 %v4508, %v4526
  %v4531 = vmul.f32 %v4510, %v4527
  %v4532 = vmul.f32 %v4512, %v4528
  %v4533 = vpack.c.bf16 %v4530, %v4529
  %v4534 = vpack.c.bf16 %v4532, %v4531
  %v4535 = vpack.c.bf16 %v4376, %v4373
  %v4536 = vpack.c.bf16 %v4384, %v4381
  %v4538 = vsel %vm814, %v4533, 0
  %4540 = vmatprep.subr.bf16.mxu0 0
  %4541 = vmatpush1.bf16.msra.mxu0 %v4535
  %4542 = vmatprep.subr.bf16.mxu0 0
  %4543 = vmatpush1.bf16.msra.mxu0 0
  %4544 = vmatprep.subr.bf16.mxu0 0
  %4545 = vmatpush1.bf16.msra.mxu0 0
  %4546 = vmatprep.subr.bf16.mxu0 0
  %4547 = vmatpush1.bf16.msra.mxu0 0
  %4548 = vmatprep.subr.bf16.mxu0 0
  %4549 = vmatpush1.bf16.msra.mxu0 0
  %4550 = vmatprep.subr.bf16.mxu0 0
  %4551 = vmatpush1.bf16.msra.mxu0 0
  %4552 = vmatprep.subr.bf16.mxu0 0
  %4553 = vmatpush1.bf16.msra.mxu0 0
  %4554 = vmatprep.subr.bf16.mxu0 0
  %4555 = vmatpush1.bf16.msra.mxu0 0
  %4556 = vmatprep.subr.bf16.mxu0 0
  %4557 = vmatpush1.bf16.msra.mxu0 0
  %4558 = vmatprep.subr.bf16.mxu0 0
  %4559 = vmatpush1.bf16.msra.mxu0 0
  %4560 = vmatprep.subr.bf16.mxu0 0
  %4561 = vmatpush1.bf16.msra.mxu0 0
  %4562 = vmatprep.subr.bf16.mxu0 0
  %4563 = vmatpush1.bf16.msra.mxu0 0
  %4564 = vmatprep.subr.bf16.mxu0 0
  %4565 = vmatpush1.bf16.msra.mxu0 0
  %4566 = vmatprep.subr.bf16.mxu0 0
  %4567 = vmatpush1.bf16.msra.mxu0 0
  %4568 = vmatprep.subr.bf16.mxu0 0
  %4569 = vmatpush1.bf16.msra.mxu0 0
  %4570 = vmatprep.subr.bf16.mxu0 0
  %4571 = vmatpush1.bf16.msra.mxu0 0
  %4572 = vmatprep.mubr.bf16.mxu0 0
  %4573 = vmatmul.mubr.bf16.gmra.mrb[0].mxu0 %v4538
  %v4574 = vpop.f32.mrb[0].mxu0
  %v4575 = vadd.f32 0.0, %v4574
  %v4576 = vpop.f32.mrb[0].mxu0
  %v4577 = vpop.f32.mrb[0].mxu0
  %v4578 = vadd.f32 0.0, %v4577
  %v4579 = vpop.f32.mrb[0].mxu0
  %4580 = vdwg.mxu0
  %v4582 = vsel %vm814, %v4534, 0
  %4584 = vmatprep.subr.bf16.mxu0 0
  %4585 = vmatpush1.bf16.msra.mxu0 %v4536
  %4586 = vmatprep.subr.bf16.mxu0 0
  %4587 = vmatpush1.bf16.msra.mxu0 0
  %4588 = vmatprep.subr.bf16.mxu0 0
  %4589 = vmatpush1.bf16.msra.mxu0 0
  %4590 = vmatprep.subr.bf16.mxu0 0
  %4591 = vmatpush1.bf16.msra.mxu0 0
  %4592 = vmatprep.subr.bf16.mxu0 0
  %4593 = vmatpush1.bf16.msra.mxu0 0
  %4594 = vmatprep.subr.bf16.mxu0 0
  %4595 = vmatpush1.bf16.msra.mxu0 0
  %4596 = vmatprep.subr.bf16.mxu0 0
  %4597 = vmatpush1.bf16.msra.mxu0 0
  %4598 = vmatprep.subr.bf16.mxu0 0
  %4599 = vmatpush1.bf16.msra.mxu0 0
  %4600 = vmatprep.subr.bf16.mxu0 0
  %4601 = vmatpush1.bf16.msra.mxu0 0
  %4602 = vmatprep.subr.bf16.mxu0 0
  %4603 = vmatpush1.bf16.msra.mxu0 0
  %4604 = vmatprep.subr.bf16.mxu0 0
  %4605 = vmatpush1.bf16.msra.mxu0 0
  %4606 = vmatprep.subr.bf16.mxu0 0
  %4607 = vmatpush1.bf16.msra.mxu0 0
  %4608 = vmatprep.subr.bf16.mxu0 0
  %4609 = vmatpush1.bf16.msra.mxu0 0
  %4610 = vmatprep.subr.bf16.mxu0 0
  %4611 = vmatpush1.bf16.msra.mxu0 0
  %4612 = vmatprep.subr.bf16.mxu0 0
  %4613 = vmatpush1.bf16.msra.mxu0 0
  %4614 = vmatprep.subr.bf16.mxu0 0
  %4615 = vmatpush1.bf16.msra.mxu0 0
  %4616 = vmatprep.mubr.bf16.mxu0 0
  %4617 = vmatmul.mubr.bf16.gmra.mrb[0].mxu0 %v4582
  %v4618 = vpop.f32.mrb[0].mxu0
  %v4619 = vadd.f32 0.0, %v4618
  %v4620 = vpop.f32.mrb[0].mxu0
  %v4621 = vpop.f32.mrb[0].mxu0
  %v4622 = vadd.f32 0.0, %v4621
  %v4623 = vpop.f32.mrb[0].mxu0
  %4624 = vdwg.mxu0
  %v4625 = vpack.c.bf16 %v4578, %v4575
  %v4626 = vpack.c.bf16 %v4622, %v4619
  %s4627 = scalar_lea.vmem %s21, 14
  %v4628 = vld [vmem:[%s4627] sm:$0x3]
  %v4630 = vsel %vm715, %v4625, 0
  %v4633 = vsel %vm715, %v4626, 0
  %v4636 = vsel %vm1424, %v4628, 0
  %4638 = vmatprep.subr.bf16.mxu0 0
  %4639 = vmatpush1.bf16.msra.mxu0 %v4636
  %4640 = vmatprep.subr.bf16.mxu0 0
  %4641 = vmatpush1.bf16.msra.mxu0 0
  %4642 = vmatprep.subr.bf16.mxu0 0
  %4643 = vmatpush1.bf16.msra.mxu0 0
  %4644 = vmatprep.subr.bf16.mxu0 0
  %4645 = vmatpush1.bf16.msra.mxu0 0
  %4646 = vmatprep.subr.bf16.mxu0 0
  %4647 = vmatpush1.bf16.msra.mxu0 0
  %4648 = vmatprep.subr.bf16.mxu0 0
  %4649 = vmatpush1.bf16.msra.mxu0 0
  %4650 = vmatprep.subr.bf16.mxu0 0
  %4651 = vmatpush1.bf16.msra.mxu0 0
  %4652 = vmatprep.subr.bf16.mxu0 0
  %4653 = vmatpush1.bf16.msra.mxu0 0
  %4654 = vmatprep.subr.bf16.mxu0 0
  %4655 = vmatpush1.bf16.msra.mxu0 0
  %4656 = vmatprep.subr.bf16.mxu0 0
  %4657 = vmatpush1.bf16.msra.mxu0 0
  %4658 = vmatprep.subr.bf16.mxu0 0
  %4659 = vmatpush1.bf16.msra.mxu0 0
  %4660 = vmatprep.subr.bf16.mxu0 0
  %4661 = vmatpush1.bf16.msra.mxu0 0
  %4662 = vmatprep.subr.bf16.mxu0 0
  %4663 = vmatpush1.bf16.msra.mxu0 0
  %4664 = vmatprep.subr.bf16.mxu0 0
  %4665 = vmatpush1.bf16.msra.mxu0 0
  %4666 = vmatprep.subr.bf16.mxu0 0
  %4667 = vmatpush1.bf16.msra.mxu0 0
  %4668 = vmatprep.subr.bf16.mxu0 0
  %4669 = vmatpush1.bf16.msra.mxu0 0
  %4670 = vmatprep.mubr.bf16.mxu0 0
  %4671 = vmatmul.mubr.bf16.gmra.mrb[0].mxu0 %v4630
  %v4672 = vpop.f32.mrb[0].mxu0
  %v4673 = vadd.f32 0.0, %v4672
  %v4674 = vpop.f32.mrb[0].mxu0
  %v4675 = vpop.f32.mrb[0].mxu0
  %v4676 = vadd.f32 0.0, %v4675
  %v4677 = vpop.f32.mrb[0].mxu0
  %4678 = vmatprep.mubr.bf16.mxu0 0
  %4679 = vmatmul.mubr.bf16.gmra.mrb[0].mxu0 %v4633
  %v4680 = vpop.f32.mrb[0].mxu0
  %v4681 = vadd.f32 0.0, %v4680
  %v4682 = vpop.f32.mrb[0].mxu0
  %v4683 = vpop.f32.mrb[0].mxu0
  %v4684 = vadd.f32 0.0, %v4683
  %v4685 = vpop.f32.mrb[0].mxu0
  %4686 = vdwg.mxu0
  %v4687 = vadd.f32 %v4161, %v4673
  %v4688 = vadd.f32 %v4162, %v4676
  %v4689 = vadd.f32 %v4163, %v4681
  %v4690 = vadd.f32 %v4164, %v4684
  %v4691 = vld [vmem:[%s23] sm:$0x1]
  %v4693 = vlaneseq
  %v4694 = vshrl.u32 %v4693, 7
  %v4695 = vsub.s32 0, %v4694
  %v4696 = vrot.slane %v4691, %v4695
  %v4698 = vadd.f32 %v4687, %v4696
  %v4699 = vadd.f32 %v4688, %v4696
  %v4700 = vadd.f32 %v4689, %v4696
  %v4701 = vadd.f32 %v4690, %v4696
  %v4702 = vadd.f32 %v482, %v4698
  %v4703 = vadd.f32 %v483, %v4699
  %v4704 = vadd.f32 %v484, %v4700
  %v4705 = vadd.f32 %v485, %v4701
  %v4706 = vld [vmem:[%s25] sm:$0x1]
  %v4707 = vld [vmem:[%s25 + $0x1] sm:$0x1]
  %v4708 = vsel %vm511, %v4702, 0.0
  %4709 = vadd.xlane.f32.xlu0 %v4708
  %v4710 = vpop.xlane.xlu0 %4709
  %v4711 = vsel %vm511, %v4703, 0.0
  %4712 = vadd.xlane.f32.xlu0 %v4711
  %v4713 = vpop.xlane.xlu0 %4712
  %v4714 = vsel %vm511, %v4704, 0.0
  %4715 = vadd.xlane.f32.xlu0 %v4714
  %v4716 = vpop.xlane.xlu0 %4715
  %v4717 = vsel %vm511, %v4705, 0.0
  %4718 = vadd.xlane.f32.xlu0 %v4717
  %v4719 = vpop.xlane.xlu0 %4718
  %v4720 = vrcp.pop 32.0
  %v4721 = vmul.f32 %v4710, %v4720
  %v4722 = vmul.f32 %v4713, %v4720
  %v4723 = vmul.f32 %v4716, %v4720
  %v4724 = vmul.f32 %v4719, %v4720
  %v4725 = vsub.f32 %v4702, %v4721
  %v4726 = vsub.f32 %v4703, %v4722
  %v4727 = vsub.f32 %v4704, %v4723
  %v4728 = vsub.f32 %v4705, %v4724
  %v4729 = vmul.f32 %v4725, %v4725
  %v4730 = vmul.f32 %v4726, %v4726
  %v4731 = vmul.f32 %v4727, %v4727
  %v4732 = vmul.f32 %v4728, %v4728
  %v4733 = vsel %vm511, %v4729, 0.0
  %4734 = vadd.xlane.f32.xlu0 %v4733
  %v4735 = vpop.xlane.xlu0 %4734
  %v4736 = vsel %vm511, %v4730, 0.0
  %4737 = vadd.xlane.f32.xlu0 %v4736
  %v4738 = vpop.xlane.xlu0 %4737
  %v4739 = vsel %vm511, %v4731, 0.0
  %4740 = vadd.xlane.f32.xlu0 %v4739
  %v4741 = vpop.xlane.xlu0 %4740
  %v4742 = vsel %vm511, %v4732, 0.0
  %4743 = vadd.xlane.f32.xlu0 %v4742
  %v4744 = vpop.xlane.xlu0 %4743
  %v4745 = vmul.f32 %v4735, %v4720
  %v4746 = vmul.f32 %v4738, %v4720
  %v4747 = vmul.f32 %v4741, %v4720
  %v4748 = vmul.f32 %v4744, %v4720
  %v4749 = vadd.f32 %v4745, 1e-05
  %v4750 = vadd.f32 %v4746, 1e-05
  %v4751 = vadd.f32 %v4747, 1e-05
  %v4752 = vadd.f32 %v4748, 1e-05
  %v4753 = vrsqrt.pop %v4749
  %v4754 = vrsqrt.pop %v4750
  %v4755 = vrsqrt.pop %v4751
  %v4756 = vrsqrt.pop %v4752
  %v4757 = vmul.f32 %v4725, %v4753
  %v4758 = vmul.f32 %v4726, %v4754
  %v4759 = vmul.f32 %v4727, %v4755
  %v4760 = vmul.f32 %v4728, %v4756
  %v4761 = vlaneseq
  %v4762 = vshrl.u32 %v4761, 7
  %v4763 = vsub.s32 0, %v4762
  %v4764 = vrot.slane %v4706, %v4763
  %v4765 = vmul.f32 %v4757, %v4764
  %v4766 = vmul.f32 %v4758, %v4764
  %v4767 = vmul.f32 %v4759, %v4764
  %v4768 = vmul.f32 %v4760, %v4764
  %v4769 = vlaneseq
  %v4770 = vshrl.u32 %v4769, 7
  %v4771 = vsub.s32 0, %v4770
  %v4772 = vrot.slane %v4707, %v4771
  %v4773 = vadd.f32 %v4765, %v4772
  %v4774 = vadd.f32 %v4766, %v4772
  %v4775 = vadd.f32 %v4767, %v4772
  %v4776 = vadd.f32 %v4768, %v4772
  %v4777 = vpack.c.bf16 %v4774, %v4773
  %v4778 = vpack.c.bf16 %v4776, %v4775
  %v4779 = vld [vmem:[%s27] sm:$0xf]
  %v4780 = vld [vmem:[%s27 + $0x4] sm:$0xf]
  %v4781 = vld [vmem:[%s27 + $0x8] sm:$0xf]
  %v4782 = vld [vmem:[%s27 + $0xc] sm:$0xf]
  %v4783 = vld [vmem:[%s29] sm:$0x1]
  %v4785 = vlaneseq
  %v4786 = vshrl.u32 %v4785, 7
  %v4787 = vsub.s32 0, %v4786
  %v4788 = vrot.slane %v4783, %v4787
  %v4794 = vunpack.c.l.b16 %v4779
  %v4795 = vunpack.c.l.b16 %v4780
  %v4796 = vunpack.c.l.b16 %v4781
  %v4797 = vunpack.c.l.b16 %v4782
  %v4798 = vpack.c.b16 %v4795, %v4794
  %v4799 = vpack.c.b16 %v4797, %v4796
  %v4803 = vsel %vm511, %v4777, 0
  %v4806 = vsel %vm511, %v4778, 0
  %4808 = vmatprep.subr.bf16.mxu0 0
  %4809 = vmatpush1.bf16.msra.mxu0 %v4798
  %4810 = vmatprep.subr.bf16.mxu0 0
  %4811 = vmatpush1.bf16.msra.mxu0 %v4799
  %4812 = vmatprep.subr.bf16.mxu0 0
  %4813 = vmatpush1.bf16.msra.mxu0 0
  %4814 = vmatprep.subr.bf16.mxu0 0
  %4815 = vmatpush1.bf16.msra.mxu0 0
  %4816 = vmatprep.subr.bf16.mxu0 0
  %4817 = vmatpush1.bf16.msra.mxu0 0
  %4818 = vmatprep.subr.bf16.mxu0 0
  %4819 = vmatpush1.bf16.msra.mxu0 0
  %4820 = vmatprep.subr.bf16.mxu0 0
  %4821 = vmatpush1.bf16.msra.mxu0 0
  %4822 = vmatprep.subr.bf16.mxu0 0
  %4823 = vmatpush1.bf16.msra.mxu0 0
  %4824 = vmatprep.subr.bf16.mxu0 0
  %4825 = vmatpush1.bf16.msra.mxu0 0
  %4826 = vmatprep.subr.bf16.mxu0 0
  %4827 = vmatpush1.bf16.msra.mxu0 0
  %4828 = vmatprep.subr.bf16.mxu0 0
  %4829 = vmatpush1.bf16.msra.mxu0 0
  %4830 = vmatprep.subr.bf16.mxu0 0
  %4831 = vmatpush1.bf16.msra.mxu0 0
  %4832 = vmatprep.subr.bf16.mxu0 0
  %4833 = vmatpush1.bf16.msra.mxu0 0
  %4834 = vmatprep.subr.bf16.mxu0 0
  %4835 = vmatpush1.bf16.msra.mxu0 0
  %4836 = vmatprep.subr.bf16.mxu0 0
  %4837 = vmatpush1.bf16.msra.mxu0 0
  %4838 = vmatprep.subr.bf16.mxu0 0
  %4839 = vmatpush1.bf16.msra.mxu0 0
  %4840 = vmatprep.mubr.bf16.mxu0 0
  %4841 = vmatmul.mubr.bf16.gmra.mrb[0].mxu0 %v4803
  %v4842 = vpop.f32.mrb[0].mxu0
  %v4843 = vadd.f32 %v4788, %v4842
  %v4844 = vpop.f32.mrb[0].mxu0
  %v4845 = vpop.f32.mrb[0].mxu0
  %v4846 = vadd.f32 %v4788, %v4845
  %v4847 = vpop.f32.mrb[0].mxu0
  %4848 = vmatprep.mubr.bf16.mxu0 0
  %4849 = vmatmul.mubr.bf16.gmra.mrb[0].mxu0 %v4806
  %v4850 = vpop.f32.mrb[0].mxu0
  %v4851 = vadd.f32 %v4788, %v4850
  %v4852 = vpop.f32.mrb[0].mxu0
  %v4853 = vpop.f32.mrb[0].mxu0
  %v4854 = vadd.f32 %v4788, %v4853
  %v4855 = vpop.f32.mrb[0].mxu0
  %4856 = vdwg.mxu0
  %v4857 = vmul.f32 %v4843, 0.5
  %v4858 = vmul.f32 %v4846, 0.5
  %v4859 = vmul.f32 %v4851, 0.5
  %v4860 = vmul.f32 %v4854, 0.5
  %v4861 = vmul.f32 %v4843, 0.044715
  %v4862 = vmul.f32 %v4846, 0.044715
  %v4863 = vmul.f32 %v4851, 0.044715
  %v4864 = vmul.f32 %v4854, 0.044715
  %v4865 = vmul.f32 %v4861, %v4843
  %v4866 = vmul.f32 %v4862, %v4846
  %v4867 = vmul.f32 %v4863, %v4851
  %v4868 = vmul.f32 %v4864, %v4854
  %v4869 = vmul.f32 %v4865, %v4843
  %v4870 = vmul.f32 %v4866, %v4846
  %v4871 = vmul.f32 %v4867, %v4851
  %v4872 = vmul.f32 %v4868, %v4854
  %v4873 = vadd.f32 %v4843, %v4869
  %v4874 = vadd.f32 %v4846, %v4870
  %v4875 = vadd.f32 %v4851, %v4871
  %v4876 = vadd.f32 %v4854, %v4872
  %v4877 = vmul.f32 %v4873, 0.7978846
  %v4878 = vmul.f32 %v4874, 0.7978846
  %v4879 = vmul.f32 %v4875, 0.7978846
  %v4880 = vmul.f32 %v4876, 0.7978846
  %v4881 = vtanh.pop %v4877
  %v4882 = vtanh.pop %v4878
  %v4883 = vtanh.pop %v4879
  %v4884 = vtanh.pop %v4880
  %v4885 = vadd.f32 %v4881, 1.0
  %v4886 = vadd.f32 %v4882, 1.0
  %v4887 = vadd.f32 %v4883, 1.0
  %v4888 = vadd.f32 %v4884, 1.0
  %v4889 = vmul.f32 %v4857, %v4885
  %v4890 = vmul.f32 %v4858, %v4886
  %v4891 = vmul.f32 %v4859, %v4887
  %v4892 = vmul.f32 %v4860, %v4888
  %v4893 = vpack.c.bf16 %v4890, %v4889
  %v4894 = vpack.c.bf16 %v4892, %v4891
  %v4895 = vld [vmem:[%s31] sm:$0xf]
  %v4896 = vld [vmem:[%s31 + $0x4] sm:$0xf]
  %v4897 = vld [vmem:[%s31 + $0x8] sm:$0xf]
  %v4898 = vld [vmem:[%s31 + $0xc] sm:$0xf]
  %v4899 = vld [vmem:[%s31 + $0x10] sm:$0xf]
  %v4900 = vld [vmem:[%s31 + $0x14] sm:$0xf]
  %v4901 = vld [vmem:[%s31 + $0x18] sm:$0xf]
  %v4902 = vld [vmem:[%s31 + $0x1c] sm:$0xf]
  %v4903 = vld [vmem:[%s31 + $0x20] sm:$0xf]
  %v4904 = vld [vmem:[%s31 + $0x24] sm:$0xf]
  %v4905 = vld [vmem:[%s31 + $0x28] sm:$0xf]
  %v4906 = vld [vmem:[%s31 + $0x2c] sm:$0xf]
  %v4907 = vld [vmem:[%s31 + $0x30] sm:$0xf]
  %v4908 = vld [vmem:[%s31 + $0x34] sm:$0xf]
  %v4909 = vld [vmem:[%s31 + $0x38] sm:$0xf]
  %v4910 = vld [vmem:[%s31 + $0x3c] sm:$0xf]
  %v4911 = vld [vmem:[%s33] sm:$0x1]
  %v4913 = vlaneseq
  %v4914 = vshrl.u32 %v4913, 7
  %v4915 = vsub.s32 0, %v4914
  %v4916 = vrot.slane %v4911, %v4915
  %v4934 = vunpack.c.l.b16 %v4895
  %v4935 = vunpack.c.l.b16 %v4896
  %v4936 = vunpack.c.l.b16 %v4897
  %v4937 = vunpack.c.l.b16 %v4898
  %v4938 = vunpack.c.l.b16 %v4899
  %v4939 = vunpack.c.l.b16 %v4900
  %v4940 = vunpack.c.l.b16 %v4901
  %v4941 = vunpack.c.l.b16 %v4902
  %v4942 = vunpack.c.l.b16 %v4903
  %v4943 = vunpack.c.l.b16 %v4904
  %v4944 = vunpack.c.l.b16 %v4905
  %v4945 = vunpack.c.l.b16 %v4906
  %v4946 = vunpack.c.l.b16 %v4907
  %v4947 = vunpack.c.l.b16 %v4908
  %v4948 = vunpack.c.l.b16 %v4909
  %v4949 = vunpack.c.l.b16 %v4910
  %v4950 = vpack.c.b16 %v4935, %v4934
  %v4951 = vpack.c.b16 %v4937, %v4936
  %v4952 = vpack.c.b16 %v4939, %v4938
  %v4953 = vpack.c.b16 %v4941, %v4940
  %v4954 = vpack.c.b16 %v4943, %v4942
  %v4955 = vpack.c.b16 %v4945, %v4944
  %v4956 = vpack.c.b16 %v4947, %v4946
  %v4957 = vpack.c.b16 %v4949, %v4948
  %4966 = vmatprep.subr.bf16.mxu0 0
  %4967 = vmatpush1.bf16.msra.mxu0 %v4950
  %4968 = vmatprep.subr.bf16.mxu0 0
  %4969 = vmatpush1.bf16.msra.mxu0 %v4951
  %4970 = vmatprep.subr.bf16.mxu0 0
  %4971 = vmatpush1.bf16.msra.mxu0 %v4952
  %4972 = vmatprep.subr.bf16.mxu0 0
  %4973 = vmatpush1.bf16.msra.mxu0 %v4953
  %4974 = vmatprep.subr.bf16.mxu0 0
  %4975 = vmatpush1.bf16.msra.mxu0 %v4954
  %4976 = vmatprep.subr.bf16.mxu0 0
  %4977 = vmatpush1.bf16.msra.mxu0 %v4955
  %4978 = vmatprep.subr.bf16.mxu0 0
  %4979 = vmatpush1.bf16.msra.mxu0 %v4956
  %4980 = vmatprep.subr.bf16.mxu0 0
  %4981 = vmatpush1.bf16.msra.mxu0 %v4957
  %4982 = vmatprep.subr.bf16.mxu0 0
  %4983 = vmatpush1.bf16.msra.mxu0 0
  %4984 = vmatprep.subr.bf16.mxu0 0
  %4985 = vmatpush1.bf16.msra.mxu0 0
  %4986 = vmatprep.subr.bf16.mxu0 0
  %4987 = vmatpush1.bf16.msra.mxu0 0
  %4988 = vmatprep.subr.bf16.mxu0 0
  %4989 = vmatpush1.bf16.msra.mxu0 0
  %4990 = vmatprep.subr.bf16.mxu0 0
  %4991 = vmatpush1.bf16.msra.mxu0 0
  %4992 = vmatprep.subr.bf16.mxu0 0
  %4993 = vmatpush1.bf16.msra.mxu0 0
  %4994 = vmatprep.subr.bf16.mxu0 0
  %4995 = vmatpush1.bf16.msra.mxu0 0
  %4996 = vmatprep.subr.bf16.mxu0 0
  %4997 = vmatpush1.bf16.msra.mxu0 0
  %4998 = vmatprep.mubr.bf16.mxu0 0
  %4999 = vmatmul.mubr.bf16.gmra.mrb[0].mxu0 %v4893
  %v5000 = vpop.f32.mrb[0].mxu0
  %v5001 = vadd.f32 %v4916, %v5000
  %v5002 = vpop.f32.mrb[0].mxu0
  %v5003 = vpop.f32.mrb[0].mxu0
  %v5004 = vadd.f32 %v4916, %v5003
  %v5005 = vpop.f32.mrb[0].mxu0
  %5006 = vmatprep.mubr.bf16.mxu0 0
  %5007 = vmatmul.mubr.bf16.gmra.mrb[0].mxu0 %v4894
  %v5008 = vpop.f32.mrb[0].mxu0
  %v5009 = vadd.f32 %v4916, %v5008
  %v5010 = vpop.f32.mrb[0].mxu0
  %v5011 = vpop.f32.mrb[0].mxu0
  %v5012 = vadd.f32 %v4916, %v5011
  %v5013 = vpop.f32.mrb[0].mxu0
  %5014 = vdwg.mxu0
  %v5015 = vadd.f32 %v4773, %v5001
  %v5016 = vadd.f32 %v4774, %v5004
  %v5017 = vadd.f32 %v4775, %v5009
  %v5018 = vadd.f32 %v4776, %v5012
  %v5019 = vld [vmem:[%s35] sm:$0x1]
  %v5020 = vld [vmem:[%s35 + $0x1] sm:$0x1]
  %v5021 = vsel %vm511, %v5015, 0.0
  %5022 = vadd.xlane.f32.xlu0 %v5021
  %v5023 = vpop.xlane.xlu0 %5022
  %v5024 = vsel %vm511, %v5016, 0.0
  %5025 = vadd.xlane.f32.xlu0 %v5024
  %v5026 = vpop.xlane.xlu0 %5025
  %v5027 = vsel %vm511, %v5017, 0.0
  %5028 = vadd.xlane.f32.xlu0 %v5027
  %v5029 = vpop.xlane.xlu0 %5028
  %v5030 = vsel %vm511, %v5018, 0.0
  %5031 = vadd.xlane.f32.xlu0 %v5030
  %v5032 = vpop.xlane.xlu0 %5031
  %v5033 = vmul.f32 %v5023, %v4720
  %v5034 = vmul.f32 %v5026, %v4720
  %v5035 = vmul.f32 %v5029, %v4720
  %v5036 = vmul.f32 %v5032, %v4720
  %v5037 = vsub.f32 %v5015, %v5033
  %v5038 = vsub.f32 %v5016, %v5034
  %v5039 = vsub.f32 %v5017, %v5035
  %v5040 = vsub.f32 %v5018, %v5036
  %v5041 = vmul.f32 %v5037, %v5037
  %v5042 = vmul.f32 %v5038, %v5038
  %v5043 = vmul.f32 %v5039, %v5039
  %v5044 = vmul.f32 %v5040, %v5040
  %v5045 = vsel %vm511, %v5041, 0.0
  %5046 = vadd.xlane.f32.xlu0 %v5045
  %v5047 = vpop.xlane.xlu0 %5046
  %v5048 = vsel %vm511, %v5042, 0.0
  %5049 = vadd.xlane.f32.xlu0 %v5048
  %v5050 = vpop.xlane.xlu0 %5049
  %v5051 = vsel %vm511, %v5043, 0.0
  %5052 = vadd.xlane.f32.xlu0 %v5051
  %v5053 = vpop.xlane.xlu0 %5052
  %v5054 = vsel %vm511, %v5044, 0.0
  %5055 = vadd.xlane.f32.xlu0 %v5054
  %v5056 = vpop.xlane.xlu0 %5055
  %v5057 = vmul.f32 %v5047, %v4720
  %v5058 = vmul.f32 %v5050, %v4720
  %v5059 = vmul.f32 %v5053, %v4720
  %v5060 = vmul.f32 %v5056, %v4720
  %v5061 = vadd.f32 %v5057, 1e-05
  %v5062 = vadd.f32 %v5058, 1e-05
  %v5063 = vadd.f32 %v5059, 1e-05
  %v5064 = vadd.f32 %v5060, 1e-05
  %v5065 = vrsqrt.pop %v5061
  %v5066 = vrsqrt.pop %v5062
  %v5067 = vrsqrt.pop %v5063
  %v5068 = vrsqrt.pop %v5064
  %v5069 = vmul.f32 %v5037, %v5065
  %v5070 = vmul.f32 %v5038, %v5066
  %v5071 = vmul.f32 %v5039, %v5067
  %v5072 = vmul.f32 %v5040, %v5068
  %v5073 = vlaneseq
  %v5074 = vshrl.u32 %v5073, 7
  %v5075 = vsub.s32 0, %v5074
  %v5076 = vrot.slane %v5019, %v5075
  %v5077 = vmul.f32 %v5069, %v5076
  %v5078 = vmul.f32 %v5070, %v5076
  %v5079 = vmul.f32 %v5071, %v5076
  %v5080 = vmul.f32 %v5072, %v5076
  %v5081 = vlaneseq
  %v5082 = vshrl.u32 %v5081, 7
  %v5083 = vsub.s32 0, %v5082
  %v5084 = vrot.slane %v5020, %v5083
  %v5085 = vadd.f32 %v5077, %v5084
  %v5086 = vadd.f32 %v5078, %v5084
  %v5087 = vadd.f32 %v5079, %v5084
  %v5088 = vadd.f32 %v5080, %v5084
  %v5089 = vpack.c.bf16 %v5086, %v5085
  %v5090 = vpack.c.bf16 %v5088, %v5087
  %v5091 = vld [vmem:[%s37] sm:$0xf]
  %v5092 = vld [vmem:[%s37 + $0x4] sm:$0xf]
  %v5093 = vld [vmem:[%s37 + $0x8] sm:$0xf]
  %v5094 = vld [vmem:[%s37 + $0xc] sm:$0xf]
  %v5095 = vld [vmem:[%s39] sm:$0x1]
  %v5097 = vlaneseq
  %v5098 = vshrl.u32 %v5097, 7
  %v5099 = vsub.s32 0, %v5098
  %v5100 = vrot.slane %v5095, %v5099
  %v5106 = vunpack.c.l.b16 %v5091
  %v5107 = vunpack.c.l.b16 %v5092
  %v5108 = vunpack.c.l.b16 %v5093
  %v5109 = vunpack.c.l.b16 %v5094
  %v5110 = vpack.c.b16 %v5107, %v5106
  %v5111 = vpack.c.b16 %v5109, %v5108
  %v5115 = vsel %vm511, %v5089, 0
  %v5118 = vsel %vm511, %v5090, 0
  %5120 = vmatprep.subr.bf16.mxu0 0
  %5121 = vmatpush1.bf16.msra.mxu0 %v5110
  %5122 = vmatprep.subr.bf16.mxu0 0
  %5123 = vmatpush1.bf16.msra.mxu0 %v5111
  %5124 = vmatprep.subr.bf16.mxu0 0
  %5125 = vmatpush1.bf16.msra.mxu0 0
  %5126 = vmatprep.subr.bf16.mxu0 0
  %5127 = vmatpush1.bf16.msra.mxu0 0
  %5128 = vmatprep.subr.bf16.mxu0 0
  %5129 = vmatpush1.bf16.msra.mxu0 0
  %5130 = vmatprep.subr.bf16.mxu0 0
  %5131 = vmatpush1.bf16.msra.mxu0 0
  %5132 = vmatprep.subr.bf16.mxu0 0
  %5133 = vmatpush1.bf16.msra.mxu0 0
  %5134 = vmatprep.subr.bf16.mxu0 0
  %5135 = vmatpush1.bf16.msra.mxu0 0
  %5136 = vmatprep.subr.bf16.mxu0 0
  %5137 = vmatpush1.bf16.msra.mxu0 0
  %5138 = vmatprep.subr.bf16.mxu0 0
  %5139 = vmatpush1.bf16.msra.mxu0 0
  %5140 = vmatprep.subr.bf16.mxu0 0
  %5141 = vmatpush1.bf16.msra.mxu0 0
  %5142 = vmatprep.subr.bf16.mxu0 0
  %5143 = vmatpush1.bf16.msra.mxu0 0
  %5144 = vmatprep.subr.bf16.mxu0 0
  %5145 = vmatpush1.bf16.msra.mxu0 0
  %5146 = vmatprep.subr.bf16.mxu0 0
  %5147 = vmatpush1.bf16.msra.mxu0 0
  %5148 = vmatprep.subr.bf16.mxu0 0
  %5149 = vmatpush1.bf16.msra.mxu0 0
  %5150 = vmatprep.subr.bf16.mxu0 0
  %5151 = vmatpush1.bf16.msra.mxu0 0
  %5152 = vmatprep.mubr.bf16.mxu0 0
  %5153 = vmatmul.mubr.bf16.gmra.mrb[0].mxu0 %v5115
  %v5154 = vpop.f32.mrb[0].mxu0
  %v5155 = vadd.f32 %v5100, %v5154
  %v5156 = vpop.f32.mrb[0].mxu0
  %v5157 = vpop.f32.mrb[0].mxu0
  %v5158 = vadd.f32 %v5100, %v5157
  %v5159 = vpop.f32.mrb[0].mxu0
  %5160 = vmatprep.mubr.bf16.mxu0 0
  %5161 = vmatmul.mubr.bf16.gmra.mrb[0].mxu0 %v5118
  %v5162 = vpop.f32.mrb[0].mxu0
  %v5163 = vadd.f32 %v5100, %v5162
  %v5164 = vpop.f32.mrb[0].mxu0
  %v5165 = vpop.f32.mrb[0].mxu0
  %v5166 = vadd.f32 %v5100, %v5165
  %v5167 = vpop.f32.mrb[0].mxu0
  %5168 = vdwg.mxu0
  %v5169 = vld [vmem:[%s41] sm:$0xf]
  %v5170 = vld [vmem:[%s41 + $0x4] sm:$0xf]
  %v5171 = vld [vmem:[%s41 + $0x8] sm:$0xf]
  %v5172 = vld [vmem:[%s41 + $0xc] sm:$0xf]
  %v5173 = vld [vmem:[%s43] sm:$0x1]
  %v5175 = vlaneseq
  %v5176 = vshrl.u32 %v5175, 7
  %v5177 = vsub.s32 0, %v5176
  %v5178 = vrot.slane %v5173, %v5177
  %v5184 = vunpack.c.l.b16 %v5169
  %v5185 = vunpack.c.l.b16 %v5170
  %v5186 = vunpack.c.l.b16 %v5171
  %v5187 = vunpack.c.l.b16 %v5172
  %v5188 = vpack.c.b16 %v5185, %v5184
  %v5189 = vpack.c.b16 %v5187, %v5186
  %5192 = vmatprep.subr.bf16.mxu0 0
  %5193 = vmatpush1.bf16.msra.mxu0 %v5188
  %5194 = vmatprep.subr.bf16.mxu0 0
  %5195 = vmatpush1.bf16.msra.mxu0 %v5189
  %5196 = vmatprep.subr.bf16.mxu0 0
  %5197 = vmatpush1.bf16.msra.mxu0 0
  %5198 = vmatprep.subr.bf16.mxu0 0
  %5199 = vmatpush1.bf16.msra.mxu0 0
  %5200 = vmatprep.subr.bf16.mxu0 0
  %5201 = vmatpush1.bf16.msra.mxu0 0
  %5202 = vmatprep.subr.bf16.mxu0 0
  %5203 = vmatpush1.bf16.msra.mxu0 0
  %5204 = vmatprep.subr.bf16.mxu0 0
  %5205 = vmatpush1.bf16.msra.mxu0 0
  %5206 = vmatprep.subr.bf16.mxu0 0
  %5207 = vmatpush1.bf16.msra.mxu0 0
  %5208 = vmatprep.subr.bf16.mxu0 0
  %5209 = vmatpush1.bf16.msra.mxu0 0
  %5210 = vmatprep.subr.bf16.mxu0 0
  %5211 = vmatpush1.bf16.msra.mxu0 0
  %5212 = vmatprep.subr.bf16.mxu0 0
  %5213 = vmatpush1.bf16.msra.mxu0 0
  %5214 = vmatprep.subr.bf16.mxu0 0
  %5215 = vmatpush1.bf16.msra.mxu0 0
  %5216 = vmatprep.subr.bf16.mxu0 0
  %5217 = vmatpush1.bf16.msra.mxu0 0
  %5218 = vmatprep.subr.bf16.mxu0 0
  %5219 = vmatpush1.bf16.msra.mxu0 0
  %5220 = vmatprep.subr.bf16.mxu0 0
  %5221 = vmatpush1.bf16.msra.mxu0 0
  %5222 = vmatprep.subr.bf16.mxu0 0
  %5223 = vmatpush1.bf16.msra.mxu0 0
  %5224 = vmatprep.mubr.bf16.mxu0 0
  %5225 = vmatmul.mubr.bf16.gmra.mrb[0].mxu0 %v5115
  %v5226 = vpop.f32.mrb[0].mxu0
  %v5227 = vadd.f32 %v5178, %v5226
  %v5228 = vpop.f32.mrb[0].mxu0
  %v5229 = vpop.f32.mrb[0].mxu0
  %v5230 = vadd.f32 %v5178, %v5229
  %v5231 = vpop.f32.mrb[0].mxu0
  %5232 = vmatprep.mubr.bf16.mxu0 0
  %5233 = vmatmul.mubr.bf16.gmra.mrb[0].mxu0 %v5118
  %v5234 = vpop.f32.mrb[0].mxu0
  %v5235 = vadd.f32 %v5178, %v5234
  %v5236 = vpop.f32.mrb[0].mxu0
  %v5237 = vpop.f32.mrb[0].mxu0
  %v5238 = vadd.f32 %v5178, %v5237
  %v5239 = vpop.f32.mrb[0].mxu0
  %5240 = vdwg.mxu0
  %v5241 = vld [vmem:[%s45] sm:$0xf]
  %v5242 = vld [vmem:[%s45 + $0x4] sm:$0xf]
  %v5243 = vld [vmem:[%s45 + $0x8] sm:$0xf]
  %v5244 = vld [vmem:[%s45 + $0xc] sm:$0xf]
  %v5245 = vld [vmem:[%s47] sm:$0x1]
  %v5247 = vlaneseq
  %v5248 = vshrl.u32 %v5247, 7
  %v5249 = vsub.s32 0, %v5248
  %v5250 = vrot.slane %v5245, %v5249
  %v5256 = vunpack.c.l.b16 %v5241
  %v5257 = vunpack.c.l.b16 %v5242
  %v5258 = vunpack.c.l.b16 %v5243
  %v5259 = vunpack.c.l.b16 %v5244
  %v5260 = vpack.c.b16 %v5257, %v5256
  %v5261 = vpack.c.b16 %v5259, %v5258
  %5264 = vmatprep.subr.bf16.mxu0 0
  %5265 = vmatpush1.bf16.msra.mxu0 %v5260
  %5266 = vmatprep.subr.bf16.mxu0 0
  %5267 = vmatpush1.bf16.msra.mxu0 %v5261
  %5268 = vmatprep.subr.bf16.mxu0 0
  %5269 = vmatpush1.bf16.msra.mxu0 0
  %5270 = vmatprep.subr.bf16.mxu0 0
  %5271 = vmatpush1.bf16.msra.mxu0 0
  %5272 = vmatprep.subr.bf16.mxu0 0
  %5273 = vmatpush1.bf16.msra.mxu0 0
  %5274 = vmatprep.subr.bf16.mxu0 0
  %5275 = vmatpush1.bf16.msra.mxu0 0
  %5276 = vmatprep.subr.bf16.mxu0 0
  %5277 = vmatpush1.bf16.msra.mxu0 0
  %5278 = vmatprep.subr.bf16.mxu0 0
  %5279 = vmatpush1.bf16.msra.mxu0 0
  %5280 = vmatprep.subr.bf16.mxu0 0
  %5281 = vmatpush1.bf16.msra.mxu0 0
  %5282 = vmatprep.subr.bf16.mxu0 0
  %5283 = vmatpush1.bf16.msra.mxu0 0
  %5284 = vmatprep.subr.bf16.mxu0 0
  %5285 = vmatpush1.bf16.msra.mxu0 0
  %5286 = vmatprep.subr.bf16.mxu0 0
  %5287 = vmatpush1.bf16.msra.mxu0 0
  %5288 = vmatprep.subr.bf16.mxu0 0
  %5289 = vmatpush1.bf16.msra.mxu0 0
  %5290 = vmatprep.subr.bf16.mxu0 0
  %5291 = vmatpush1.bf16.msra.mxu0 0
  %5292 = vmatprep.subr.bf16.mxu0 0
  %5293 = vmatpush1.bf16.msra.mxu0 0
  %5294 = vmatprep.subr.bf16.mxu0 0
  %5295 = vmatpush1.bf16.msra.mxu0 0
  %5296 = vmatprep.mubr.bf16.mxu0 0
  %5297 = vmatmul.mubr.bf16.gmra.mrb[0].mxu0 %v5115
  %v5298 = vpop.f32.mrb[0].mxu0
  %v5299 = vadd.f32 %v5250, %v5298
  %v5300 = vpop.f32.mrb[0].mxu0
  %v5301 = vpop.f32.mrb[0].mxu0
  %v5302 = vadd.f32 %v5250, %v5301
  %v5303 = vpop.f32.mrb[0].mxu0
  %5304 = vmatprep.mubr.bf16.mxu0 0
  %5305 = vmatmul.mubr.bf16.gmra.mrb[0].mxu0 %v5118
  %v5306 = vpop.f32.mrb[0].mxu0
  %v5307 = vadd.f32 %v5250, %v5306
  %v5308 = vpop.f32.mrb[0].mxu0
  %v5309 = vpop.f32.mrb[0].mxu0
  %v5310 = vadd.f32 %v5250, %v5309
  %v5311 = vpop.f32.mrb[0].mxu0
  %5312 = vdwg.mxu0
  %v5313 = vpack.c.bf16 %v5158, %v5155
  %v5314 = vpack.c.bf16 %v5166, %v5163
  %v5315 = vpack.c.bf16 %v5230, %v5227
  %v5316 = vpack.c.bf16 %v5238, %v5235
  %v5318 = vsel %vm715, %v5313, 0
  %v5321 = vsel %vm715, %v5315, 0
  %5323 = vmatprep.subr.bf16.mxu0 0
  %5324 = vmatpush1.bf16.xpose.msra.mxu0 %v5321
  %5325 = vmatprep.subr.bf16.mxu0 0
  %5326 = vmatpush1.bf16.xpose.msra.mxu0 0
  %5327 = vmatprep.subr.bf16.mxu0 0
  %5328 = vmatpush1.bf16.xpose.msra.mxu0 0
  %5329 = vmatprep.subr.bf16.mxu0 0
  %5330 = vmatpush1.bf16.xpose.msra.mxu0 0
  %5331 = vmatprep.subr.bf16.mxu0 0
  %5332 = vmatpush1.bf16.xpose.msra.mxu0 0
  %5333 = vmatprep.subr.bf16.mxu0 0
  %5334 = vmatpush1.bf16.xpose.msra.mxu0 0
  %5335 = vmatprep.subr.bf16.mxu0 0
  %5336 = vmatpush1.bf16.xpose.msra.mxu0 0
  %5337 = vmatprep.subr.bf16.mxu0 0
  %5338 = vmatpush1.bf16.xpose.msra.mxu0 0
  %5339 = vmatprep.subr.bf16.mxu0 0
  %5340 = vmatpush1.bf16.xpose.msra.mxu0 0
  %5341 = vmatprep.subr.bf16.mxu0 0
  %5342 = vmatpush1.bf16.xpose.msra.mxu0 0
  %5343 = vmatprep.subr.bf16.mxu0 0
  %5344 = vmatpush1.bf16.xpose.msra.mxu0 0
  %5345 = vmatprep.subr.bf16.mxu0 0
  %5346 = vmatpush1.bf16.xpose.msra.mxu0 0
  %5347 = vmatprep.subr.bf16.mxu0 0
  %5348 = vmatpush1.bf16.xpose.msra.mxu0 0
  %5349 = vmatprep.subr.bf16.mxu0 0
  %5350 = vmatpush1.bf16.xpose.msra.mxu0 0
  %5351 = vmatprep.subr.bf16.mxu0 0
  %5352 = vmatpush1.bf16.xpose.msra.mxu0 0
  %5353 = vmatprep.subr.bf16.mxu0 0
  %5354 = vmatpush1.bf16.xpose.msra.mxu0 0
  %5355 = vmatprep.mubr.bf16.mxu0 0
  %5356 = vmatmul.mubr.bf16.gmra.mrb[0].mxu0 %v5318
  %v5357 = vpop.f32.mrb[0].mxu0
  %v5358 = vadd.f32 0.0, %v5357
  %v5359 = vpop.f32.mrb[0].mxu0
  %v5360 = vpop.f32.mrb[0].mxu0
  %v5361 = vadd.f32 0.0, %v5360
  %v5362 = vpop.f32.mrb[0].mxu0
  %5363 = vdwg.mxu0
  %v5365 = vsel %vm715, %v5314, 0
  %v5368 = vsel %vm715, %v5316, 0
  %5370 = vmatprep.subr.bf16.mxu0 0
  %5371 = vmatpush1.bf16.xpose.msra.mxu0 %v5368
  %5372 = vmatprep.subr.bf16.mxu0 0
  %5373 = vmatpush1.bf16.xpose.msra.mxu0 0
  %5374 = vmatprep.subr.bf16.mxu0 0
  %5375 = vmatpush1.bf16.xpose.msra.mxu0 0
  %5376 = vmatprep.subr.bf16.mxu0 0
  %5377 = vmatpush1.bf16.xpose.msra.mxu0 0
  %5378 = vmatprep.subr.bf16.mxu0 0
  %5379 = vmatpush1.bf16.xpose.msra.mxu0 0
  %5380 = vmatprep.subr.bf16.mxu0 0
  %5381 = vmatpush1.bf16.xpose.msra.mxu0 0
  %5382 = vmatprep.subr.bf16.mxu0 0
  %5383 = vmatpush1.bf16.xpose.msra.mxu0 0
  %5384 = vmatprep.subr.bf16.mxu0 0
  %5385 = vmatpush1.bf16.xpose.msra.mxu0 0
  %5386 = vmatprep.subr.bf16.mxu0 0
  %5387 = vmatpush1.bf16.xpose.msra.mxu0 0
  %5388 = vmatprep.subr.bf16.mxu0 0
  %5389 = vmatpush1.bf16.xpose.msra.mxu0 0
  %5390 = vmatprep.subr.bf16.mxu0 0
  %5391 = vmatpush1.bf16.xpose.msra.mxu0 0
  %5392 = vmatprep.subr.bf16.mxu0 0
  %5393 = vmatpush1.bf16.xpose.msra.mxu0 0
  %5394 = vmatprep.subr.bf16.mxu0 0
  %5395 = vmatpush1.bf16.xpose.msra.mxu0 0
  %5396 = vmatprep.subr.bf16.mxu0 0
  %5397 = vmatpush1.bf16.xpose.msra.mxu0 0
  %5398 = vmatprep.subr.bf16.mxu0 0
  %5399 = vmatpush1.bf16.xpose.msra.mxu0 0
  %5400 = vmatprep.subr.bf16.mxu0 0
  %5401 = vmatpush1.bf16.xpose.msra.mxu0 0
  %5402 = vmatprep.mubr.bf16.mxu0 0
  %5403 = vmatmul.mubr.bf16.gmra.mrb[0].mxu0 %v5365
  %v5404 = vpop.f32.mrb[0].mxu0
  %v5405 = vadd.f32 0.0, %v5404
  %v5406 = vpop.f32.mrb[0].mxu0
  %v5407 = vpop.f32.mrb[0].mxu0
  %v5408 = vadd.f32 0.0, %v5407
  %v5409 = vpop.f32.mrb[0].mxu0
  %5410 = vdwg.mxu0
  %v5411 = vmul.f32 %v5358, 0.5
  %v5412 = vmul.f32 %v5361, 0.5
  %v5413 = vmul.f32 %v5405, 0.5
  %v5414 = vmul.f32 %v5408, 0.5
  %v5415 = vsel %vm814, %v5411, -inf
  %5416 = vmax.xlane.f32.xlu0 %v5415
  %v5417 = vpop.xlane.xlu0 %5416
  %v5418 = vsel %vm814, %v5412, -inf
  %5419 = vmax.xlane.f32.xlu0 %v5418
  %v5420 = vpop.xlane.xlu0 %5419
  %v5421 = vsel %vm814, %v5413, -inf
  %5422 = vmax.xlane.f32.xlu0 %v5421
  %v5423 = vpop.xlane.xlu0 %5422
  %v5424 = vsel %vm814, %v5414, -inf
  %5425 = vmax.xlane.f32.xlu0 %v5424
  %v5426 = vpop.xlane.xlu0 %5425
  %v5427 = vsub.f32 %v5411, %v5417
  %v5428 = vsub.f32 %v5412, %v5420
  %v5429 = vsub.f32 %v5413, %v5423
  %v5430 = vsub.f32 %v5414, %v5426
  %v5431 = vmul.f32 %v5427, 1.442695
  %v5432 = vpow.pop %v5431
  %v5433 = vmul.f32 %v5428, 1.442695
  %v5434 = vpow.pop %v5433
  %v5435 = vmul.f32 %v5429, 1.442695
  %v5436 = vpow.pop %v5435
  %v5437 = vmul.f32 %v5430, 1.442695
  %v5438 = vpow.pop %v5437
  %v5439 = vsel %vm814, %v5432, 0.0
  %5440 = vadd.xlane.f32.xlu0 %v5439
  %v5441 = vpop.xlane.xlu0 %5440
  %v5442 = vsel %vm814, %v5434, 0.0
  %5443 = vadd.xlane.f32.xlu0 %v5442
  %v5444 = vpop.xlane.xlu0 %5443
  %v5445 = vsel %vm814, %v5436, 0.0
  %5446 = vadd.xlane.f32.xlu0 %v5445
  %v5447 = vpop.xlane.xlu0 %5446
  %v5448 = vsel %vm814, %v5438, 0.0
  %5449 = vadd.xlane.f32.xlu0 %v5448
  %v5450 = vpop.xlane.xlu0 %5449
  %v5451 = vrcp.pop %v5441
  %v5452 = vrcp.pop %v5444
  %v5453 = vrcp.pop %v5447
  %v5454 = vrcp.pop %v5450
  %v5455 = vmul.f32 %v5432, %v5451
  %v5456 = vmul.f32 %v5434, %v5452
  %v5457 = vmul.f32 %v5436, %v5453
  %v5458 = vmul.f32 %v5438, %v5454
  %v5459 = vpack.c.bf16 %v5456, %v5455
  %v5460 = vpack.c.bf16 %v5458, %v5457
  %v5461 = vpack.c.bf16 %v5302, %v5299
  %v5462 = vpack.c.bf16 %v5310, %v5307
  %v5464 = vsel %vm814, %v5459, 0
  %5466 = vmatprep.subr.bf16.mxu0 0
  %5467 = vmatpush1.bf16.msra.mxu0 %v5461
  %5468 = vmatprep.subr.bf16.mxu0 0
  %5469 = vmatpush1.bf16.msra.mxu0 0
  %5470 = vmatprep.subr.bf16.mxu0 0
  %5471 = vmatpush1.bf16.msra.mxu0 0
  %5472 = vmatprep.subr.bf16.mxu0 0
  %5473 = vmatpush1.bf16.msra.mxu0 0
  %5474 = vmatprep.subr.bf16.mxu0 0
  %5475 = vmatpush1.bf16.msra.mxu0 0
  %5476 = vmatprep.subr.bf16.mxu0 0
  %5477 = vmatpush1.bf16.msra.mxu0 0
  %5478 = vmatprep.subr.bf16.mxu0 0
  %5479 = vmatpush1.bf16.msra.mxu0 0
  %5480 = vmatprep.subr.bf16.mxu0 0
  %5481 = vmatpush1.bf16.msra.mxu0 0
  %5482 = vmatprep.subr.bf16.mxu0 0
  %5483 = vmatpush1.bf16.msra.mxu0 0
  %5484 = vmatprep.subr.bf16.mxu0 0
  %5485 = vmatpush1.bf16.msra.mxu0 0
  %5486 = vmatprep.subr.bf16.mxu0 0
  %5487 = vmatpush1.bf16.msra.mxu0 0
  %5488 = vmatprep.subr.bf16.mxu0 0
  %5489 = vmatpush1.bf16.msra.mxu0 0
  %5490 = vmatprep.subr.bf16.mxu0 0
  %5491 = vmatpush1.bf16.msra.mxu0 0
  %5492 = vmatprep.subr.bf16.mxu0 0
  %5493 = vmatpush1.bf16.msra.mxu0 0
  %5494 = vmatprep.subr.bf16.mxu0 0
  %5495 = vmatpush1.bf16.msra.mxu0 0
  %5496 = vmatprep.subr.bf16.mxu0 0
  %5497 = vmatpush1.bf16.msra.mxu0 0
  %5498 = vmatprep.mubr.bf16.mxu0 0
  %5499 = vmatmul.mubr.bf16.gmra.mrb[0].mxu0 %v5464
  %v5500 = vpop.f32.mrb[0].mxu0
  %v5501 = vadd.f32 0.0, %v5500
  %v5502 = vpop.f32.mrb[0].mxu0
  %v5503 = vpop.f32.mrb[0].mxu0
  %v5504 = vadd.f32 0.0, %v5503
  %v5505 = vpop.f32.mrb[0].mxu0
  %5506 = vdwg.mxu0
  %v5508 = vsel %vm814, %v5460, 0
  %5510 = vmatprep.subr.bf16.mxu0 0
  %5511 = vmatpush1.bf16.msra.mxu0 %v5462
  %5512 = vmatprep.subr.bf16.mxu0 0
  %5513 = vmatpush1.bf16.msra.mxu0 0
  %5514 = vmatprep.subr.bf16.mxu0 0
  %5515 = vmatpush1.bf16.msra.mxu0 0
  %5516 = vmatprep.subr.bf16.mxu0 0
  %5517 = vmatpush1.bf16.msra.mxu0 0
  %5518 = vmatprep.subr.bf16.mxu0 0
  %5519 = vmatpush1.bf16.msra.mxu0 0
  %5520 = vmatprep.subr.bf16.mxu0 0
  %5521 = vmatpush1.bf16.msra.mxu0 0
  %5522 = vmatprep.subr.bf16.mxu0 0
  %5523 = vmatpush1.bf16.msra.mxu0 0
  %5524 = vmatprep.subr.bf16.mxu0 0
  %5525 = vmatpush1.bf16.msra.mxu0 0
  %5526 = vmatprep.subr.bf16.mxu0 0
  %5527 = vmatpush1.bf16.msra.mxu0 0
  %5528 = vmatprep.subr.bf16.mxu0 0
  %5529 = vmatpush1.bf16.msra.mxu0 0
  %5530 = vmatprep.subr.bf16.mxu0 0
  %5531 = vmatpush1.bf16.msra.mxu0 0
  %5532 = vmatprep.subr.bf16.mxu0 0
  %5533 = vmatpush1.bf16.msra.mxu0 0
  %5534 = vmatprep.subr.bf16.mxu0 0
  %5535 = vmatpush1.bf16.msra.mxu0 0
  %5536 = vmatprep.subr.bf16.mxu0 0
  %5537 = vmatpush1.bf16.msra.mxu0 0
  %5538 = vmatprep.subr.bf16.mxu0 0
  %5539 = vmatpush1.bf16.msra.mxu0 0
  %5540 = vmatprep.subr.bf16.mxu0 0
  %5541 = vmatpush1.bf16.msra.mxu0 0
  %5542 = vmatprep.mubr.bf16.mxu0 0
  %5543 = vmatmul.mubr.bf16.gmra.mrb[0].mxu0 %v5508
  %v5544 = vpop.f32.mrb[0].mxu0
  %v5545 = vadd.f32 0.0, %v5544
  %v5546 = vpop.f32.mrb[0].mxu0
  %v5547 = vpop.f32.mrb[0].mxu0
  %v5548 = vadd.f32 0.0, %v5547
  %v5549 = vpop.f32.mrb[0].mxu0
  %5550 = vdwg.mxu0
  %v5551 = vpack.c.bf16 %v5504, %v5501
  %v5552 = vpack.c.bf16 %v5548, %v5545
  %v5553 = vld [vmem:[%s49] sm:$0x3]
  %s5554 = scalar_lea.vmem %s37, 16
  %v5555 = vld [vmem:[%s5554] sm:$0xf]
  %v5556 = vld [vmem:[%s5554 + $0x4] sm:$0xf]
  %v5557 = vld [vmem:[%s5554 + $0x8] sm:$0xf]
  %v5558 = vld [vmem:[%s5554 + $0xc] sm:$0xf]
  %s5559 = scalar_lea.vmem %s39, 1
  %v5560 = vld [vmem:[%s5559] sm:$0x1]
  %v5562 = vlaneseq
  %v5563 = vshrl.u32 %v5562, 7
  %v5564 = vsub.s32 0, %v5563
  %v5565 = vrot.slane %v5560, %v5564
  %v5571 = vunpack.c.l.b16 %v5555
  %v5572 = vunpack.c.l.b16 %v5556
  %v5573 = vunpack.c.l.b16 %v5557
  %v5574 = vunpack.c.l.b16 %v5558
  %v5575 = vpack.c.b16 %v5572, %v5571
  %v5576 = vpack.c.b16 %v5574, %v5573
  %5579 = vmatprep.subr.bf16.mxu0 0
  %5580 = vmatpush1.bf16.msra.mxu0 %v5575
  %5581 = vmatprep.subr.bf16.mxu0 0
  %5582 = vmatpush1.bf16.msra.mxu0 %v5576
  %5583 = vmatprep.subr.bf16.mxu0 0
  %5584 = vmatpush1.bf16.msra.mxu0 0
  %5585 = vmatprep.subr.bf16.mxu0 0
  %5586 = vmatpush1.bf16.msra.mxu0 0
  %5587 = vmatprep.subr.bf16.mxu0 0
  %5588 = vmatpush1.bf16.msra.mxu0 0
  %5589 = vmatprep.subr.bf16.mxu0 0
  %5590 = vmatpush1.bf16.msra.mxu0 0
  %5591 = vmatprep.subr.bf16.mxu0 0
  %5592 = vmatpush1.bf16.msra.mxu0 0
  %5593 = vmatprep.subr.bf16.mxu0 0
  %5594 = vmatpush1.bf16.msra.mxu0 0
  %5595 = vmatprep.subr.bf16.mxu0 0
  %5596 = vmatpush1.bf16.msra.mxu0 0
  %5597 = vmatprep.subr.bf16.mxu0 0
  %5598 = vmatpush1.bf16.msra.mxu0 0
  %5599 = vmatprep.subr.bf16.mxu0 0
  %5600 = vmatpush1.bf16.msra.mxu0 0
  %5601 = vmatprep.subr.bf16.mxu0 0
  %5602 = vmatpush1.bf16.msra.mxu0 0
  %5603 = vmatprep.subr.bf16.mxu0 0
  %5604 = vmatpush1.bf16.msra.mxu0 0
  %5605 = vmatprep.subr.bf16.mxu0 0
  %5606 = vmatpush1.bf16.msra.mxu0 0
  %5607 = vmatprep.subr.bf16.mxu0 0
  %5608 = vmatpush1.bf16.msra.mxu0 0
  %5609 = vmatprep.subr.bf16.mxu0 0
  %5610 = vmatpush1.bf16.msra.mxu0 0
  %5611 = vmatprep.mubr.bf16.mxu0 0
  %5612 = vmatmul.mubr.bf16.gmra.mrb[0].mxu0 %v5115
  %v5613 = vpop.f32.mrb[0].mxu0
  %v5614 = vadd.f32 %v5565, %v5613
  %v5615 = vpop.f32.mrb[0].mxu0
  %v5616 = vpop.f32.mrb[0].mxu0
  %v5617 = vadd.f32 %v5565, %v5616
  %v5618 = vpop.f32.mrb[0].mxu0
  %5619 = vmatprep.mubr.bf16.mxu0 0
  %5620 = vmatmul.mubr.bf16.gmra.mrb[0].mxu0 %v5118
  %v5621 = vpop.f32.mrb[0].mxu0
  %v5622 = vadd.f32 %v5565, %v5621
  %v5623 = vpop.f32.mrb[0].mxu0
  %v5624 = vpop.f32.mrb[0].mxu0
  %v5625 = vadd.f32 %v5565, %v5624
  %v5626 = vpop.f32.mrb[0].mxu0
  %5627 = vdwg.mxu0
  %s5628 = scalar_lea.vmem %s41, 16
  %v5629 = vld [vmem:[%s5628] sm:$0xf]
  %v5630 = vld [vmem:[%s5628 + $0x4] sm:$0xf]
  %v5631 = vld [vmem:[%s5628 + $0x8] sm:$0xf]
  %v5632 = vld [vmem:[%s5628 + $0xc] sm:$0xf]
  %s5633 = scalar_lea.vmem %s43, 1
  %v5634 = vld [vmem:[%s5633] sm:$0x1]
  %v5636 = vlaneseq
  %v5637 = vshrl.u32 %v5636, 7
  %v5638 = vsub.s32 0, %v5637
  %v5639 = vrot.slane %v5634, %v5638
  %v5645 = vunpack.c.l.b16 %v5629
  %v5646 = vunpack.c.l.b16 %v5630
  %v5647 = vunpack.c.l.b16 %v5631
  %v5648 = vunpack.c.l.b16 %v5632
  %v5649 = vpack.c.b16 %v5646, %v5645
  %v5650 = vpack.c.b16 %v5648, %v5647
  %5653 = vmatprep.subr.bf16.mxu0 0
  %5654 = vmatpush1.bf16.msra.mxu0 %v5649
  %5655 = vmatprep.subr.bf16.mxu0 0
  %5656 = vmatpush1.bf16.msra.mxu0 %v5650
  %5657 = vmatprep.subr.bf16.mxu0 0
  %5658 = vmatpush1.bf16.msra.mxu0 0
  %5659 = vmatprep.subr.bf16.mxu0 0
  %5660 = vmatpush1.bf16.msra.mxu0 0
  %5661 = vmatprep.subr.bf16.mxu0 0
  %5662 = vmatpush1.bf16.msra.mxu0 0
  %5663 = vmatprep.subr.bf16.mxu0 0
  %5664 = vmatpush1.bf16.msra.mxu0 0
  %5665 = vmatprep.subr.bf16.mxu0 0
  %5666 = vmatpush1.bf16.msra.mxu0 0
  %5667 = vmatprep.subr.bf16.mxu0 0
  %5668 = vmatpush1.bf16.msra.mxu0 0
  %5669 = vmatprep.subr.bf16.mxu0 0
  %5670 = vmatpush1.bf16.msra.mxu0 0
  %5671 = vmatprep.subr.bf16.mxu0 0
  %5672 = vmatpush1.bf16.msra.mxu0 0
  %5673 = vmatprep.subr.bf16.mxu0 0
  %5674 = vmatpush1.bf16.msra.mxu0 0
  %5675 = vmatprep.subr.bf16.mxu0 0
  %5676 = vmatpush1.bf16.msra.mxu0 0
  %5677 = vmatprep.subr.bf16.mxu0 0
  %5678 = vmatpush1.bf16.msra.mxu0 0
  %5679 = vmatprep.subr.bf16.mxu0 0
  %5680 = vmatpush1.bf16.msra.mxu0 0
  %5681 = vmatprep.subr.bf16.mxu0 0
  %5682 = vmatpush1.bf16.msra.mxu0 0
  %5683 = vmatprep.subr.bf16.mxu0 0
  %5684 = vmatpush1.bf16.msra.mxu0 0
  %5685 = vmatprep.mubr.bf16.mxu0 0
  %5686 = vmatmul.mubr.bf16.gmra.mrb[0].mxu0 %v5115
  %v5687 = vpop.f32.mrb[0].mxu0
  %v5688 = vadd.f32 %v5639, %v5687
  %v5689 = vpop.f32.mrb[0].mxu0
  %v5690 = vpop.f32.mrb[0].mxu0
  %v5691 = vadd.f32 %v5639, %v5690
  %v5692 = vpop.f32.mrb[0].mxu0
  %5693 = vmatprep.mubr.bf16.mxu0 0
  %5694 = vmatmul.mubr.bf16.gmra.mrb[0].mxu0 %v5118
  %v5695 = vpop.f32.mrb[0].mxu0
  %v5696 = vadd.f32 %v5639, %v5695
  %v5697 = vpop.f32.mrb[0].mxu0
  %v5698 = vpop.f32.mrb[0].mxu0
  %v5699 = vadd.f32 %v5639, %v5698
  %v5700 = vpop.f32.mrb[0].mxu0
  %5701 = vdwg.mxu0
  %s5702 = scalar_lea.vmem %s45, 16
  %v5703 = vld [vmem:[%s5702] sm:$0xf]
  %v5704 = vld [vmem:[%s5702 + $0x4] sm:$0xf]
  %v5705 = vld [vmem:[%s5702 + $0x8] sm:$0xf]
  %v5706 = vld [vmem:[%s5702 + $0xc] sm:$0xf]
  %s5707 = scalar_lea.vmem %s47, 1
  %v5708 = vld [vmem:[%s5707] sm:$0x1]
  %v5710 = vlaneseq
  %v5711 = vshrl.u32 %v5710, 7
  %v5712 = vsub.s32 0, %v5711
  %v5713 = vrot.slane %v5708, %v5712
  %v5719 = vunpack.c.l.b16 %v5703
  %v5720 = vunpack.c.l.b16 %v5704
  %v5721 = vunpack.c.l.b16 %v5705
  %v5722 = vunpack.c.l.b16 %v5706
  %v5723 = vpack.c.b16 %v5720, %v5719
  %v5724 = vpack.c.b16 %v5722, %v5721
  %5727 = vmatprep.subr.bf16.mxu0 0
  %5728 = vmatpush1.bf16.msra.mxu0 %v5723
  %5729 = vmatprep.subr.bf16.mxu0 0
  %5730 = vmatpush1.bf16.msra.mxu0 %v5724
  %5731 = vmatprep.subr.bf16.mxu0 0
  %5732 = vmatpush1.bf16.msra.mxu0 0
  %5733 = vmatprep.subr.bf16.mxu0 0
  %5734 = vmatpush1.bf16.msra.mxu0 0
  %5735 = vmatprep.subr.bf16.mxu0 0
  %5736 = vmatpush1.bf16.msra.mxu0 0
  %5737 = vmatprep.subr.bf16.mxu0 0
  %5738 = vmatpush1.bf16.msra.mxu0 0
  %5739 = vmatprep.subr.bf16.mxu0 0
  %5740 = vmatpush1.bf16.msra.mxu0 0
  %5741 = vmatprep.subr.bf16.mxu0 0
  %5742 = vmatpush1.bf16.msra.mxu0 0
  %5743 = vmatprep.subr.bf16.mxu0 0
  %5744 = vmatpush1.bf16.msra.mxu0 0
  %5745 = vmatprep.subr.bf16.mxu0 0
  %5746 = vmatpush1.bf16.msra.mxu0 0
  %5747 = vmatprep.subr.bf16.mxu0 0
  %5748 = vmatpush1.bf16.msra.mxu0 0
  %5749 = vmatprep.subr.bf16.mxu0 0
  %5750 = vmatpush1.bf16.msra.mxu0 0
  %5751 = vmatprep.subr.bf16.mxu0 0
  %5752 = vmatpush1.bf16.msra.mxu0 0
  %5753 = vmatprep.subr.bf16.mxu0 0
  %5754 = vmatpush1.bf16.msra.mxu0 0
  %5755 = vmatprep.subr.bf16.mxu0 0
  %5756 = vmatpush1.bf16.msra.mxu0 0
  %5757 = vmatprep.subr.bf16.mxu0 0
  %5758 = vmatpush1.bf16.msra.mxu0 0
  %5759 = vmatprep.mubr.bf16.mxu0 0
  %5760 = vmatmul.mubr.bf16.gmra.mrb[0].mxu0 %v5115
  %v5761 = vpop.f32.mrb[0].mxu0
  %v5762 = vadd.f32 %v5713, %v5761
  %v5763 = vpop.f32.mrb[0].mxu0
  %v5764 = vpop.f32.mrb[0].mxu0
  %v5765 = vadd.f32 %v5713, %v5764
  %v5766 = vpop.f32.mrb[0].mxu0
  %5767 = vmatprep.mubr.bf16.mxu0 0
  %5768 = vmatmul.mubr.bf16.gmra.mrb[0].mxu0 %v5118
  %v5769 = vpop.f32.mrb[0].mxu0
  %v5770 = vadd.f32 %v5713, %v5769
  %v5771 = vpop.f32.mrb[0].mxu0
  %v5772 = vpop.f32.mrb[0].mxu0
  %v5773 = vadd.f32 %v5713, %v5772
  %v5774 = vpop.f32.mrb[0].mxu0
  %5775 = vdwg.mxu0
  %v5776 = vpack.c.bf16 %v5617, %v5614
  %v5777 = vpack.c.bf16 %v5625, %v5622
  %v5778 = vpack.c.bf16 %v5691, %v5688
  %v5779 = vpack.c.bf16 %v5699, %v5696
  %v5781 = vsel %vm715, %v5776, 0
  %v5784 = vsel %vm715, %v5778, 0
  %5786 = vmatprep.subr.bf16.mxu0 0
  %5787 = vmatpush1.bf16.xpose.msra.mxu0 %v5784
  %5788 = vmatprep.subr.bf16.mxu0 0
  %5789 = vmatpush1.bf16.xpose.msra.mxu0 0
  %5790 = vmatprep.subr.bf16.mxu0 0
  %5791 = vmatpush1.bf16.xpose.msra.mxu0 0
  %5792 = vmatprep.subr.bf16.mxu0 0
  %5793 = vmatpush1.bf16.xpose.msra.mxu0 0
  %5794 = vmatprep.subr.bf16.mxu0 0
  %5795 = vmatpush1.bf16.xpose.msra.mxu0 0
  %5796 = vmatprep.subr.bf16.mxu0 0
  %5797 = vmatpush1.bf16.xpose.msra.mxu0 0
  %5798 = vmatprep.subr.bf16.mxu0 0
  %5799 = vmatpush1.bf16.xpose.msra.mxu0 0
  %5800 = vmatprep.subr.bf16.mxu0 0
  %5801 = vmatpush1.bf16.xpose.msra.mxu0 0
  %5802 = vmatprep.subr.bf16.mxu0 0
  %5803 = vmatpush1.bf16.xpose.msra.mxu0 0
  %5804 = vmatprep.subr.bf16.mxu0 0
  %5805 = vmatpush1.bf16.xpose.msra.mxu0 0
  %5806 = vmatprep.subr.bf16.mxu0 0
  %5807 = vmatpush1.bf16.xpose.msra.mxu0 0
  %5808 = vmatprep.subr.bf16.mxu0 0
  %5809 = vmatpush1.bf16.xpose.msra.mxu0 0
  %5810 = vmatprep.subr.bf16.mxu0 0
  %5811 = vmatpush1.bf16.xpose.msra.mxu0 0
  %5812 = vmatprep.subr.bf16.mxu0 0
  %5813 = vmatpush1.bf16.xpose.msra.mxu0 0
  %5814 = vmatprep.subr.bf16.mxu0 0
  %5815 = vmatpush1.bf16.xpose.msra.mxu0 0
  %5816 = vmatprep.subr.bf16.mxu0 0
  %5817 = vmatpush1.bf16.xpose.msra.mxu0 0
  %5818 = vmatprep.mubr.bf16.mxu0 0
  %5819 = vmatmul.mubr.bf16.gmra.mrb[0].mxu0 %v5781
  %v5820 = vpop.f32.mrb[0].mxu0
  %v5821 = vadd.f32 0.0, %v5820
  %v5822 = vpop.f32.mrb[0].mxu0
  %v5823 = vpop.f32.mrb[0].mxu0
  %v5824 = vadd.f32 0.0, %v5823
  %v5825 = vpop.f32.mrb[0].mxu0
  %5826 = vdwg.mxu0
  %v5828 = vsel %vm715, %v5777, 0
  %v5831 = vsel %vm715, %v5779, 0
  %5833 = vmatprep.subr.bf16.mxu0 0
  %5834 = vmatpush1.bf16.xpose.msra.mxu0 %v5831
  %5835 = vmatprep.subr.bf16.mxu0 0
  %5836 = vmatpush1.bf16.xpose.msra.mxu0 0
  %5837 = vmatprep.subr.bf16.mxu0 0
  %5838 = vmatpush1.bf16.xpose.msra.mxu0 0
  %5839 = vmatprep.subr.bf16.mxu0 0
  %5840 = vmatpush1.bf16.xpose.msra.mxu0 0
  %5841 = vmatprep.subr.bf16.mxu0 0
  %5842 = vmatpush1.bf16.xpose.msra.mxu0 0
  %5843 = vmatprep.subr.bf16.mxu0 0
  %5844 = vmatpush1.bf16.xpose.msra.mxu0 0
  %5845 = vmatprep.subr.bf16.mxu0 0
  %5846 = vmatpush1.bf16.xpose.msra.mxu0 0
  %5847 = vmatprep.subr.bf16.mxu0 0
  %5848 = vmatpush1.bf16.xpose.msra.mxu0 0
  %5849 = vmatprep.subr.bf16.mxu0 0
  %5850 = vmatpush1.bf16.xpose.msra.mxu0 0
  %5851 = vmatprep.subr.bf16.mxu0 0
  %5852 = vmatpush1.bf16.xpose.msra.mxu0 0
  %5853 = vmatprep.subr.bf16.mxu0 0
  %5854 = vmatpush1.bf16.xpose.msra.mxu0 0
  %5855 = vmatprep.subr.bf16.mxu0 0
  %5856 = vmatpush1.bf16.xpose.msra.mxu0 0
  %5857 = vmatprep.subr.bf16.mxu0 0
  %5858 = vmatpush1.bf16.xpose.msra.mxu0 0
  %5859 = vmatprep.subr.bf16.mxu0 0
  %5860 = vmatpush1.bf16.xpose.msra.mxu0 0
  %5861 = vmatprep.subr.bf16.mxu0 0
  %5862 = vmatpush1.bf16.xpose.msra.mxu0 0
  %5863 = vmatprep.subr.bf16.mxu0 0
  %5864 = vmatpush1.bf16.xpose.msra.mxu0 0
  %5865 = vmatprep.mubr.bf16.mxu0 0
  %5866 = vmatmul.mubr.bf16.gmra.mrb[0].mxu0 %v5828
  %v5867 = vpop.f32.mrb[0].mxu0
  %v5868 = vadd.f32 0.0, %v5867
  %v5869 = vpop.f32.mrb[0].mxu0
  %v5870 = vpop.f32.mrb[0].mxu0
  %v5871 = vadd.f32 0.0, %v5870
  %v5872 = vpop.f32.mrb[0].mxu0
  %5873 = vdwg.mxu0
  %v5874 = vmul.f32 %v5821, 0.5
  %v5875 = vmul.f32 %v5824, 0.5
  %v5876 = vmul.f32 %v5868, 0.5
  %v5877 = vmul.f32 %v5871, 0.5
  %v5878 = vsel %vm814, %v5874, -inf
  %5879 = vmax.xlane.f32.xlu0 %v5878
  %v5880 = vpop.xlane.xlu0 %5879
  %v5881 = vsel %vm814, %v5875, -inf
  %5882 = vmax.xlane.f32.xlu0 %v5881
  %v5883 = vpop.xlane.xlu0 %5882
  %v5884 = vsel %vm814, %v5876, -inf
  %5885 = vmax.xlane.f32.xlu0 %v5884
  %v5886 = vpop.xlane.xlu0 %5885
  %v5887 = vsel %vm814, %v5877, -inf
  %5888 = vmax.xlane.f32.xlu0 %v5887
  %v5889 = vpop.xlane.xlu0 %5888
  %v5890 = vsub.f32 %v5874, %v5880
  %v5891 = vsub.f32 %v5875, %v5883
  %v5892 = vsub.f32 %v5876, %v5886
  %v5893 = vsub.f32 %v5877, %v5889
  %v5894 = vmul.f32 %v5890, 1.442695
  %v5895 = vpow.pop %v5894
  %v5896 = vmul.f32 %v5891, 1.442695
  %v5897 = vpow.pop %v5896
  %v5898 = vmul.f32 %v5892, 1.442695
  %v5899 = vpow.pop %v5898
  %v5900 = vmul.f32 %v5893, 1.442695
  %v5901 = vpow.pop %v5900
  %v5902 = vsel %vm814, %v5895, 0.0
  %5903 = vadd.xlane.f32.xlu0 %v5902
  %v5904 = vpop.xlane.xlu0 %5903
  %v5905 = vsel %vm814, %v5897, 0.0
  %5906 = vadd.xlane.f32.xlu0 %v5905
  %v5907 = vpop.xlane.xlu0 %5906
  %v5908 = vsel %vm814, %v5899, 0.0
  %5909 = vadd.xlane.f32.xlu0 %v5908
  %v5910 = vpop.xlane.xlu0 %5909
  %v5911 = vsel %vm814, %v5901, 0.0
  %5912 = vadd.xlane.f32.xlu0 %v5911
  %v5913 = vpop.xlane.xlu0 %5912
  %v5914 = vrcp.pop %v5904
  %v5915 = vrcp.pop %v5907
  %v5916 = vrcp.pop %v5910
  %v5917 = vrcp.pop %v5913
  %v5918 = vmul.f32 %v5895, %v5914
  %v5919 = vmul.f32 %v5897, %v5915
  %v5920 = vmul.f32 %v5899, %v5916
  %v5921 = vmul.f32 %v5901, %v5917
  %v5922 = vpack.c.bf16 %v5919, %v5918
  %v5923 = vpack.c.bf16 %v5921, %v5920
  %v5924 = vpack.c.bf16 %v5765, %v5762
  %v5925 = vpack.c.bf16 %v5773, %v5770
  %v5927 = vsel %vm814, %v5922, 0
  %5929 = vmatprep.subr.bf16.mxu0 0
  %5930 = vmatpush1.bf16.msra.mxu0 %v5924
  %5931 = vmatprep.subr.bf16.mxu0 0
  %5932 = vmatpush1.bf16.msra.mxu0 0
  %5933 = vmatprep.subr.bf16.mxu0 0
  %5934 = vmatpush1.bf16.msra.mxu0 0
  %5935 = vmatprep.subr.bf16.mxu0 0
  %5936 = vmatpush1.bf16.msra.mxu0 0
  %5937 = vmatprep.subr.bf16.mxu0 0
  %5938 = vmatpush1.bf16.msra.mxu0 0
  %5939 = vmatprep.subr.bf16.mxu0 0
  %5940 = vmatpush1.bf16.msra.mxu0 0
  %5941 = vmatprep.subr.bf16.mxu0 0
  %5942 = vmatpush1.bf16.msra.mxu0 0
  %5943 = vmatprep.subr.bf16.mxu0 0
  %5944 = vmatpush1.bf16.msra.mxu0 0
  %5945 = vmatprep.subr.bf16.mxu0 0
  %5946 = vmatpush1.bf16.msra.mxu0 0
  %5947 = vmatprep.subr.bf16.mxu0 0
  %5948 = vmatpush1.bf16.msra.mxu0 0
  %5949 = vmatprep.subr.bf16.mxu0 0
  %5950 = vmatpush1.bf16.msra.mxu0 0
  %5951 = vmatprep.subr.bf16.mxu0 0
  %5952 = vmatpush1.bf16.msra.mxu0 0
  %5953 = vmatprep.subr.bf16.mxu0 0
  %5954 = vmatpush1.bf16.msra.mxu0 0
  %5955 = vmatprep.subr.bf16.mxu0 0
  %5956 = vmatpush1.bf16.msra.mxu0 0
  %5957 = vmatprep.subr.bf16.mxu0 0
  %5958 = vmatpush1.bf16.msra.mxu0 0
  %5959 = vmatprep.subr.bf16.mxu0 0
  %5960 = vmatpush1.bf16.msra.mxu0 0
  %5961 = vmatprep.mubr.bf16.mxu0 0
  %5962 = vmatmul.mubr.bf16.gmra.mrb[0].mxu0 %v5927
  %v5963 = vpop.f32.mrb[0].mxu0
  %v5964 = vadd.f32 0.0, %v5963
  %v5965 = vpop.f32.mrb[0].mxu0
  %v5966 = vpop.f32.mrb[0].mxu0
  %v5967 = vadd.f32 0.0, %v5966
  %v5968 = vpop.f32.mrb[0].mxu0
  %5969 = vdwg.mxu0
  %v5971 = vsel %vm814, %v5923, 0
  %5973 = vmatprep.subr.bf16.mxu0 0
  %5974 = vmatpush1.bf16.msra.mxu0 %v5925
  %5975 = vmatprep.subr.bf16.mxu0 0
  %5976 = vmatpush1.bf16.msra.mxu0 0
  %5977 = vmatprep.subr.bf16.mxu0 0
  %5978 = vmatpush1.bf16.msra.mxu0 0
  %5979 = vmatprep.subr.bf16.mxu0 0
  %5980 = vmatpush1.bf16.msra.mxu0 0
  %5981 = vmatprep.subr.bf16.mxu0 0
  %5982 = vmatpush1.bf16.msra.mxu0 0
  %5983 = vmatprep.subr.bf16.mxu0 0
  %5984 = vmatpush1.bf16.msra.mxu0 0
  %5985 = vmatprep.subr.bf16.mxu0 0
  %5986 = vmatpush1.bf16.msra.mxu0 0
  %5987 = vmatprep.subr.bf16.mxu0 0
  %5988 = vmatpush1.bf16.msra.mxu0 0
  %5989 = vmatprep.subr.bf16.mxu0 0
  %5990 = vmatpush1.bf16.msra.mxu0 0
  %5991 = vmatprep.subr.bf16.mxu0 0
  %5992 = vmatpush1.bf16.msra.mxu0 0
  %5993 = vmatprep.subr.bf16.mxu0 0
  %5994 = vmatpush1.bf16.msra.mxu0 0
  %5995 = vmatprep.subr.bf16.mxu0 0
  %5996 = vmatpush1.bf16.msra.mxu0 0
  %5997 = vmatprep.subr.bf16.mxu0 0
  %5998 = vmatpush1.bf16.msra.mxu0 0
  %5999 = vmatprep.subr.bf16.mxu0 0
  %6000 = vmatpush1.bf16.msra.mxu0 0
  %6001 = vmatprep.subr.bf16.mxu0 0
  %6002 = vmatpush1.bf16.msra.mxu0 0
  %6003 = vmatprep.subr.bf16.mxu0 0
  %6004 = vmatpush1.bf16.msra.mxu0 0
  %6005 = vmatprep.mubr.bf16.mxu0 0
  %6006 = vmatmul.mubr.bf16.gmra.mrb[0].mxu0 %v5971
  %v6007 = vpop.f32.mrb[0].mxu0
  %v6008 = vadd.f32 0.0, %v6007
  %v6009 = vpop.f32.mrb[0].mxu0
  %v6010 = vpop.f32.mrb[0].mxu0
  %v6011 = vadd.f32 0.0, %v6010
  %v6012 = vpop.f32.mrb[0].mxu0
  %6013 = vdwg.mxu0
  %v6014 = vpack.c.bf16 %v5967, %v5964
  %v6015 = vpack.c.bf16 %v6011, %v6008
  %s6016 = scalar_lea.vmem %s49, 2
  %v6017 = vld [vmem:[%s6016] sm:$0x3]
  %v6019 = vsel %vm715, %v6014, 0
  %v6022 = vsel %vm715, %v6015, 0
  %v6025 = vsel %vm1424, %v6017, 0
  %6027 = vmatprep.subr.bf16.mxu0 0
  %6028 = vmatpush1.bf16.msra.mxu0 %v6025
  %6029 = vmatprep.subr.bf16.mxu0 0
  %6030 = vmatpush1.bf16.msra.mxu0 0
  %6031 = vmatprep.subr.bf16.mxu0 0
  %6032 = vmatpush1.bf16.msra.mxu0 0
  %6033 = vmatprep.subr.bf16.mxu0 0
  %6034 = vmatpush1.bf16.msra.mxu0 0
  %6035 = vmatprep.subr.bf16.mxu0 0
  %6036 = vmatpush1.bf16.msra.mxu0 0
  %6037 = vmatprep.subr.bf16.mxu0 0
  %6038 = vmatpush1.bf16.msra.mxu0 0
  %6039 = vmatprep.subr.bf16.mxu0 0
  %6040 = vmatpush1.bf16.msra.mxu0 0
  %6041 = vmatprep.subr.bf16.mxu0 0
  %6042 = vmatpush1.bf16.msra.mxu0 0
  %6043 = vmatprep.subr.bf16.mxu0 0
  %6044 = vmatpush1.bf16.msra.mxu0 0
  %6045 = vmatprep.subr.bf16.mxu0 0
  %6046 = vmatpush1.bf16.msra.mxu0 0
  %6047 = vmatprep.subr.bf16.mxu0 0
  %6048 = vmatpush1.bf16.msra.mxu0 0
  %6049 = vmatprep.subr.bf16.mxu0 0
  %6050 = vmatpush1.bf16.msra.mxu0 0
  %6051 = vmatprep.subr.bf16.mxu0 0
  %6052 = vmatpush1.bf16.msra.mxu0 0
  %6053 = vmatprep.subr.bf16.mxu0 0
  %6054 = vmatpush1.bf16.msra.mxu0 0
  %6055 = vmatprep.subr.bf16.mxu0 0
  %6056 = vmatpush1.bf16.msra.mxu0 0
  %6057 = vmatprep.subr.bf16.mxu0 0
  %6058 = vmatpush1.bf16.msra.mxu0 0
  %6059 = vmatprep.mubr.bf16.mxu0 0
  %6060 = vmatmul.mubr.bf16.gmra.mrb[0].mxu0 %v6019
  %v6061 = vpop.f32.mrb[0].mxu0
  %v6062 = vadd.f32 0.0, %v6061
  %v6063 = vpop.f32.mrb[0].mxu0
  %v6064 = vpop.f32.mrb[0].mxu0
  %v6065 = vadd.f32 0.0, %v6064
  %v6066 = vpop.f32.mrb[0].mxu0
  %6067 = vmatprep.mubr.bf16.mxu0 0
  %6068 = vmatmul.mubr.bf16.gmra.mrb[0].mxu0 %v6022
  %v6069 = vpop.f32.mrb[0].mxu0
  %v6070 = vadd.f32 0.0, %v6069
  %v6071 = vpop.f32.mrb[0].mxu0
  %v6072 = vpop.f32.mrb[0].mxu0
  %v6073 = vadd.f32 0.0, %v6072
  %v6074 = vpop.f32.mrb[0].mxu0
  %6075 = vdwg.mxu0
  %v6077 = vsel %vm715, %v5551, 0
  %v6080 = vsel %vm715, %v5552, 0
  %v6083 = vsel %vm1424, %v5553, 0
  %6085 = vmatprep.subr.bf16.mxu0 0
  %6086 = vmatpush1.bf16.msra.mxu0 %v6083
  %6087 = vmatprep.subr.bf16.mxu0 0
  %6088 = vmatpush1.bf16.msra.mxu0 0
  %6089 = vmatprep.subr.bf16.mxu0 0
  %6090 = vmatpush1.bf16.msra.mxu0 0
  %6091 = vmatprep.subr.bf16.mxu0 0
  %6092 = vmatpush1.bf16.msra.mxu0 0
  %6093 = vmatprep.subr.bf16.mxu0 0
  %6094 = vmatpush1.bf16.msra.mxu0 0
  %6095 = vmatprep.subr.bf16.mxu0 0
  %6096 = vmatpush1.bf16.msra.mxu0 0
  %6097 = vmatprep.subr.bf16.mxu0 0
  %6098 = vmatpush1.bf16.msra.mxu0 0
  %6099 = vmatprep.subr.bf16.mxu0 0
  %6100 = vmatpush1.bf16.msra.mxu0 0
  %6101 = vmatprep.subr.bf16.mxu0 0
  %6102 = vmatpush1.bf16.msra.mxu0 0
  %6103 = vmatprep.subr.bf16.mxu0 0
  %6104 = vmatpush1.bf16.msra.mxu0 0
  %6105 = vmatprep.subr.bf16.mxu0 0
  %6106 = vmatpush1.bf16.msra.mxu0 0
  %6107 = vmatprep.subr.bf16.mxu0 0
  %6108 = vmatpush1.bf16.msra.mxu0 0
  %6109 = vmatprep.subr.bf16.mxu0 0
  %6110 = vmatpush1.bf16.msra.mxu0 0
  %6111 = vmatprep.subr.bf16.mxu0 0
  %6112 = vmatpush1.bf16.msra.mxu0 0
  %6113 = vmatprep.subr.bf16.mxu0 0
  %6114 = vmatpush1.bf16.msra.mxu0 0
  %6115 = vmatprep.subr.bf16.mxu0 0
  %6116 = vmatpush1.bf16.msra.mxu0 0
  %6117 = vmatprep.mubr.bf16.mxu0 0
  %6118 = vmatmul.mubr.bf16.gmra.mrb[0].mxu0 %v6077
  %v6119 = vpop.f32.mrb[0].mxu0
  %v6120 = vadd.f32 %v6062, %v6119
  %v6121 = vpop.f32.mrb[0].mxu0
  %v6122 = vpop.f32.mrb[0].mxu0
  %v6123 = vadd.f32 %v6065, %v6122
  %v6124 = vpop.f32.mrb[0].mxu0
  %6125 = vmatprep.mubr.bf16.mxu0 0
  %6126 = vmatmul.mubr.bf16.gmra.mrb[0].mxu0 %v6080
  %v6127 = vpop.f32.mrb[0].mxu0
  %v6128 = vadd.f32 %v6070, %v6127
  %v6129 = vpop.f32.mrb[0].mxu0
  %v6130 = vpop.f32.mrb[0].mxu0
  %v6131 = vadd.f32 %v6073, %v6130
  %v6132 = vpop.f32.mrb[0].mxu0
  %6133 = vdwg.mxu0
  %s6134 = scalar_lea.vmem %s37, 32
  %v6135 = vld [vmem:[%s6134] sm:$0xf]
  %v6136 = vld [vmem:[%s6134 + $0x4] sm:$0xf]
  %v6137 = vld [vmem:[%s6134 + $0x8] sm:$0xf]
  %v6138 = vld [vmem:[%s6134 + $0xc] sm:$0xf]
  %s6139 = scalar_lea.vmem %s39, 2
  %v6140 = vld [vmem:[%s6139] sm:$0x1]
  %v6142 = vlaneseq
  %v6143 = vshrl.u32 %v6142, 7
  %v6144 = vsub.s32 0, %v6143
  %v6145 = vrot.slane %v6140, %v6144
  %v6151 = vunpack.c.l.b16 %v6135
  %v6152 = vunpack.c.l.b16 %v6136
  %v6153 = vunpack.c.l.b16 %v6137
  %v6154 = vunpack.c.l.b16 %v6138
  %v6155 = vpack.c.b16 %v6152, %v6151
  %v6156 = vpack.c.b16 %v6154, %v6153
  %6159 = vmatprep.subr.bf16.mxu0 0
  %6160 = vmatpush1.bf16.msra.mxu0 %v6155
  %6161 = vmatprep.subr.bf16.mxu0 0
  %6162 = vmatpush1.bf16.msra.mxu0 %v6156
  %6163 = vmatprep.subr.bf16.mxu0 0
  %6164 = vmatpush1.bf16.msra.mxu0 0
  %6165 = vmatprep.subr.bf16.mxu0 0
  %6166 = vmatpush1.bf16.msra.mxu0 0
  %6167 = vmatprep.subr.bf16.mxu0 0
  %6168 = vmatpush1.bf16.msra.mxu0 0
  %6169 = vmatprep.subr.bf16.mxu0 0
  %6170 = vmatpush1.bf16.msra.mxu0 0
  %6171 = vmatprep.subr.bf16.mxu0 0
  %6172 = vmatpush1.bf16.msra.mxu0 0
  %6173 = vmatprep.subr.bf16.mxu0 0
  %6174 = vmatpush1.bf16.msra.mxu0 0
  %6175 = vmatprep.subr.bf16.mxu0 0
  %6176 = vmatpush1.bf16.msra.mxu0 0
  %6177 = vmatprep.subr.bf16.mxu0 0
  %6178 = vmatpush1.bf16.msra.mxu0 0
  %6179 = vmatprep.subr.bf16.mxu0 0
  %6180 = vmatpush1.bf16.msra.mxu0 0
  %6181 = vmatprep.subr.bf16.mxu0 0
  %6182 = vmatpush1.bf16.msra.mxu0 0
  %6183 = vmatprep.subr.bf16.mxu0 0
  %6184 = vmatpush1.bf16.msra.mxu0 0
  %6185 = vmatprep.subr.bf16.mxu0 0
  %6186 = vmatpush1.bf16.msra.mxu0 0
  %6187 = vmatprep.subr.bf16.mxu0 0
  %6188 = vmatpush1.bf16.msra.mxu0 0
  %6189 = vmatprep.subr.bf16.mxu0 0
  %6190 = vmatpush1.bf16.msra.mxu0 0
  %6191 = vmatprep.mubr.bf16.mxu0 0
  %6192 = vmatmul.mubr.bf16.gmra.mrb[0].mxu0 %v5115
  %v6193 = vpop.f32.mrb[0].mxu0
  %v6194 = vadd.f32 %v6145, %v6193
  %v6195 = vpop.f32.mrb[0].mxu0
  %v6196 = vpop.f32.mrb[0].mxu0
  %v6197 = vadd.f32 %v6145, %v6196
  %v6198 = vpop.f32.mrb[0].mxu0
  %6199 = vmatprep.mubr.bf16.mxu0 0
  %6200 = vmatmul.mubr.bf16.gmra.mrb[0].mxu0 %v5118
  %v6201 = vpop.f32.mrb[0].mxu0
  %v6202 = vadd.f32 %v6145, %v6201
  %v6203 = vpop.f32.mrb[0].mxu0
  %v6204 = vpop.f32.mrb[0].mxu0
  %v6205 = vadd.f32 %v6145, %v6204
  %v6206 = vpop.f32.mrb[0].mxu0
  %6207 = vdwg.mxu0
  %s6208 = scalar_lea.vmem %s41, 32
  %v6209 = vld [vmem:[%s6208] sm:$0xf]
  %v6210 = vld [vmem:[%s6208 + $0x4] sm:$0xf]
  %v6211 = vld [vmem:[%s6208 + $0x8] sm:$0xf]
  %v6212 = vld [vmem:[%s6208 + $0xc] sm:$0xf]
  %s6213 = scalar_lea.vmem %s43, 2
  %v6214 = vld [vmem:[%s6213] sm:$0x1]
  %v6216 = vlaneseq
  %v6217 = vshrl.u32 %v6216, 7
  %v6218 = vsub.s32 0, %v6217
  %v6219 = vrot.slane %v6214, %v6218
  %v6225 = vunpack.c.l.b16 %v6209
  %v6226 = vunpack.c.l.b16 %v6210
  %v6227 = vunpack.c.l.b16 %v6211
  %v6228 = vunpack.c.l.b16 %v6212
  %v6229 = vpack.c.b16 %v6226, %v6225
  %v6230 = vpack.c.b16 %v6228, %v6227
  %6233 = vmatprep.subr.bf16.mxu0 0
  %6234 = vmatpush1.bf16.msra.mxu0 %v6229
  %6235 = vmatprep.subr.bf16.mxu0 0
  %6236 = vmatpush1.bf16.msra.mxu0 %v6230
  %6237 = vmatprep.subr.bf16.mxu0 0
  %6238 = vmatpush1.bf16.msra.mxu0 0
  %6239 = vmatprep.subr.bf16.mxu0 0
  %6240 = vmatpush1.bf16.msra.mxu0 0
  %6241 = vmatprep.subr.bf16.mxu0 0
  %6242 = vmatpush1.bf16.msra.mxu0 0
  %6243 = vmatprep.subr.bf16.mxu0 0
  %6244 = vmatpush1.bf16.msra.mxu0 0
  %6245 = vmatprep.subr.bf16.mxu0 0
  %6246 = vmatpush1.bf16.msra.mxu0 0
  %6247 = vmatprep.subr.bf16.mxu0 0
  %6248 = vmatpush1.bf16.msra.mxu0 0
  %6249 = vmatprep.subr.bf16.mxu0 0
  %6250 = vmatpush1.bf16.msra.mxu0 0
  %6251 = vmatprep.subr.bf16.mxu0 0
  %6252 = vmatpush1.bf16.msra.mxu0 0
  %6253 = vmatprep.subr.bf16.mxu0 0
  %6254 = vmatpush1.bf16.msra.mxu0 0
  %6255 = vmatprep.subr.bf16.mxu0 0
  %6256 = vmatpush1.bf16.msra.mxu0 0
  %6257 = vmatprep.subr.bf16.mxu0 0
  %6258 = vmatpush1.bf16.msra.mxu0 0
  %6259 = vmatprep.subr.bf16.mxu0 0
  %6260 = vmatpush1.bf16.msra.mxu0 0
  %6261 = vmatprep.subr.bf16.mxu0 0
  %6262 = vmatpush1.bf16.msra.mxu0 0
  %6263 = vmatprep.subr.bf16.mxu0 0
  %6264 = vmatpush1.bf16.msra.mxu0 0
  %6265 = vmatprep.mubr.bf16.mxu0 0
  %6266 = vmatmul.mubr.bf16.gmra.mrb[0].mxu0 %v5115
  %v6267 = vpop.f32.mrb[0].mxu0
  %v6268 = vadd.f32 %v6219, %v6267
  %v6269 = vpop.f32.mrb[0].mxu0
  %v6270 = vpop.f32.mrb[0].mxu0
  %v6271 = vadd.f32 %v6219, %v6270
  %v6272 = vpop.f32.mrb[0].mxu0
  %6273 = vmatprep.mubr.bf16.mxu0 0
  %6274 = vmatmul.mubr.bf16.gmra.mrb[0].mxu0 %v5118
  %v6275 = vpop.f32.mrb[0].mxu0
  %v6276 = vadd.f32 %v6219, %v6275
  %v6277 = vpop.f32.mrb[0].mxu0
  %v6278 = vpop.f32.mrb[0].mxu0
  %v6279 = vadd.f32 %v6219, %v6278
  %v6280 = vpop.f32.mrb[0].mxu0
  %6281 = vdwg.mxu0
  %s6282 = scalar_lea.vmem %s45, 32
  %v6283 = vld [vmem:[%s6282] sm:$0xf]
  %v6284 = vld [vmem:[%s6282 + $0x4] sm:$0xf]
  %v6285 = vld [vmem:[%s6282 + $0x8] sm:$0xf]
  %v6286 = vld [vmem:[%s6282 + $0xc] sm:$0xf]
  %s6287 = scalar_lea.vmem %s47, 2
  %v6288 = vld [vmem:[%s6287] sm:$0x1]
  %v6290 = vlaneseq
  %v6291 = vshrl.u32 %v6290, 7
  %v6292 = vsub.s32 0, %v6291
  %v6293 = vrot.slane %v6288, %v6292
  %v6299 = vunpack.c.l.b16 %v6283
  %v6300 = vunpack.c.l.b16 %v6284
  %v6301 = vunpack.c.l.b16 %v6285
  %v6302 = vunpack.c.l.b16 %v6286
  %v6303 = vpack.c.b16 %v6300, %v6299
  %v6304 = vpack.c.b16 %v6302, %v6301
  %6307 = vmatprep.subr.bf16.mxu0 0
  %6308 = vmatpush1.bf16.msra.mxu0 %v6303
  %6309 = vmatprep.subr.bf16.mxu0 0
  %6310 = vmatpush1.bf16.msra.mxu0 %v6304
  %6311 = vmatprep.subr.bf16.mxu0 0
  %6312 = vmatpush1.bf16.msra.mxu0 0
  %6313 = vmatprep.subr.bf16.mxu0 0
  %6314 = vmatpush1.bf16.msra.mxu0 0
  %6315 = vmatprep.subr.bf16.mxu0 0
  %6316 = vmatpush1.bf16.msra.mxu0 0
  %6317 = vmatprep.subr.bf16.mxu0 0
  %6318 = vmatpush1.bf16.msra.mxu0 0
  %6319 = vmatprep.subr.bf16.mxu0 0
  %6320 = vmatpush1.bf16.msra.mxu0 0
  %6321 = vmatprep.subr.bf16.mxu0 0
  %6322 = vmatpush1.bf16.msra.mxu0 0
  %6323 = vmatprep.subr.bf16.mxu0 0
  %6324 = vmatpush1.bf16.msra.mxu0 0
  %6325 = vmatprep.subr.bf16.mxu0 0
  %6326 = vmatpush1.bf16.msra.mxu0 0
  %6327 = vmatprep.subr.bf16.mxu0 0
  %6328 = vmatpush1.bf16.msra.mxu0 0
  %6329 = vmatprep.subr.bf16.mxu0 0
  %6330 = vmatpush1.bf16.msra.mxu0 0
  %6331 = vmatprep.subr.bf16.mxu0 0
  %6332 = vmatpush1.bf16.msra.mxu0 0
  %6333 = vmatprep.subr.bf16.mxu0 0
  %6334 = vmatpush1.bf16.msra.mxu0 0
  %6335 = vmatprep.subr.bf16.mxu0 0
  %6336 = vmatpush1.bf16.msra.mxu0 0
  %6337 = vmatprep.subr.bf16.mxu0 0
  %6338 = vmatpush1.bf16.msra.mxu0 0
  %6339 = vmatprep.mubr.bf16.mxu0 0
  %6340 = vmatmul.mubr.bf16.gmra.mrb[0].mxu0 %v5115
  %v6341 = vpop.f32.mrb[0].mxu0
  %v6342 = vadd.f32 %v6293, %v6341
  %v6343 = vpop.f32.mrb[0].mxu0
  %v6344 = vpop.f32.mrb[0].mxu0
  %v6345 = vadd.f32 %v6293, %v6344
  %v6346 = vpop.f32.mrb[0].mxu0
  %6347 = vmatprep.mubr.bf16.mxu0 0
  %6348 = vmatmul.mubr.bf16.gmra.mrb[0].mxu0 %v5118
  %v6349 = vpop.f32.mrb[0].mxu0
  %v6350 = vadd.f32 %v6293, %v6349
  %v6351 = vpop.f32.mrb[0].mxu0
  %v6352 = vpop.f32.mrb[0].mxu0
  %v6353 = vadd.f32 %v6293, %v6352
  %v6354 = vpop.f32.mrb[0].mxu0
  %6355 = vdwg.mxu0
  %v6356 = vpack.c.bf16 %v6197, %v6194
  %v6357 = vpack.c.bf16 %v6205, %v6202
  %v6358 = vpack.c.bf16 %v6271, %v6268
  %v6359 = vpack.c.bf16 %v6279, %v6276
  %v6361 = vsel %vm715, %v6356, 0
  %v6364 = vsel %vm715, %v6358, 0
  %6366 = vmatprep.subr.bf16.mxu0 0
  %6367 = vmatpush1.bf16.xpose.msra.mxu0 %v6364
  %6368 = vmatprep.subr.bf16.mxu0 0
  %6369 = vmatpush1.bf16.xpose.msra.mxu0 0
  %6370 = vmatprep.subr.bf16.mxu0 0
  %6371 = vmatpush1.bf16.xpose.msra.mxu0 0
  %6372 = vmatprep.subr.bf16.mxu0 0
  %6373 = vmatpush1.bf16.xpose.msra.mxu0 0
  %6374 = vmatprep.subr.bf16.mxu0 0
  %6375 = vmatpush1.bf16.xpose.msra.mxu0 0
  %6376 = vmatprep.subr.bf16.mxu0 0
  %6377 = vmatpush1.bf16.xpose.msra.mxu0 0
  %6378 = vmatprep.subr.bf16.mxu0 0
  %6379 = vmatpush1.bf16.xpose.msra.mxu0 0
  %6380 = vmatprep.subr.bf16.mxu0 0
  %6381 = vmatpush1.bf16.xpose.msra.mxu0 0
  %6382 = vmatprep.subr.bf16.mxu0 0
  %6383 = vmatpush1.bf16.xpose.msra.mxu0 0
  %6384 = vmatprep.subr.bf16.mxu0 0
  %6385 = vmatpush1.bf16.xpose.msra.mxu0 0
  %6386 = vmatprep.subr.bf16.mxu0 0
  %6387 = vmatpush1.bf16.xpose.msra.mxu0 0
  %6388 = vmatprep.subr.bf16.mxu0 0
  %6389 = vmatpush1.bf16.xpose.msra.mxu0 0
  %6390 = vmatprep.subr.bf16.mxu0 0
  %6391 = vmatpush1.bf16.xpose.msra.mxu0 0
  %6392 = vmatprep.subr.bf16.mxu0 0
  %6393 = vmatpush1.bf16.xpose.msra.mxu0 0
  %6394 = vmatprep.subr.bf16.mxu0 0
  %6395 = vmatpush1.bf16.xpose.msra.mxu0 0
  %6396 = vmatprep.subr.bf16.mxu0 0
  %6397 = vmatpush1.bf16.xpose.msra.mxu0 0
  %6398 = vmatprep.mubr.bf16.mxu0 0
  %6399 = vmatmul.mubr.bf16.gmra.mrb[0].mxu0 %v6361
  %v6400 = vpop.f32.mrb[0].mxu0
  %v6401 = vadd.f32 0.0, %v6400
  %v6402 = vpop.f32.mrb[0].mxu0
  %v6403 = vpop.f32.mrb[0].mxu0
  %v6404 = vadd.f32 0.0, %v6403
  %v6405 = vpop.f32.mrb[0].mxu0
  %6406 = vdwg.mxu0
  %v6408 = vsel %vm715, %v6357, 0
  %v6411 = vsel %vm715, %v6359, 0
  %6413 = vmatprep.subr.bf16.mxu0 0
  %6414 = vmatpush1.bf16.xpose.msra.mxu0 %v6411
  %6415 = vmatprep.subr.bf16.mxu0 0
  %6416 = vmatpush1.bf16.xpose.msra.mxu0 0
  %6417 = vmatprep.subr.bf16.mxu0 0
  %6418 = vmatpush1.bf16.xpose.msra.mxu0 0
  %6419 = vmatprep.subr.bf16.mxu0 0
  %6420 = vmatpush1.bf16.xpose.msra.mxu0 0
  %6421 = vmatprep.subr.bf16.mxu0 0
  %6422 = vmatpush1.bf16.xpose.msra.mxu0 0
  %6423 = vmatprep.subr.bf16.mxu0 0
  %6424 = vmatpush1.bf16.xpose.msra.mxu0 0
  %6425 = vmatprep.subr.bf16.mxu0 0
  %6426 = vmatpush1.bf16.xpose.msra.mxu0 0
  %6427 = vmatprep.subr.bf16.mxu0 0
  %6428 = vmatpush1.bf16.xpose.msra.mxu0 0
  %6429 = vmatprep.subr.bf16.mxu0 0
  %6430 = vmatpush1.bf16.xpose.msra.mxu0 0
  %6431 = vmatprep.subr.bf16.mxu0 0
  %6432 = vmatpush1.bf16.xpose.msra.mxu0 0
  %6433 = vmatprep.subr.bf16.mxu0 0
  %6434 = vmatpush1.bf16.xpose.msra.mxu0 0
  %6435 = vmatprep.subr.bf16.mxu0 0
  %6436 = vmatpush1.bf16.xpose.msra.mxu0 0
  %6437 = vmatprep.subr.bf16.mxu0 0
  %6438 = vmatpush1.bf16.xpose.msra.mxu0 0
  %6439 = vmatprep.subr.bf16.mxu0 0
  %6440 = vmatpush1.bf16.xpose.msra.mxu0 0
  %6441 = vmatprep.subr.bf16.mxu0 0
  %6442 = vmatpush1.bf16.xpose.msra.mxu0 0
  %6443 = vmatprep.subr.bf16.mxu0 0
  %6444 = vmatpush1.bf16.xpose.msra.mxu0 0
  %6445 = vmatprep.mubr.bf16.mxu0 0
  %6446 = vmatmul.mubr.bf16.gmra.mrb[0].mxu0 %v6408
  %v6447 = vpop.f32.mrb[0].mxu0
  %v6448 = vadd.f32 0.0, %v6447
  %v6449 = vpop.f32.mrb[0].mxu0
  %v6450 = vpop.f32.mrb[0].mxu0
  %v6451 = vadd.f32 0.0, %v6450
  %v6452 = vpop.f32.mrb[0].mxu0
  %6453 = vdwg.mxu0
  %v6454 = vmul.f32 %v6401, 0.5
  %v6455 = vmul.f32 %v6404, 0.5
  %v6456 = vmul.f32 %v6448, 0.5
  %v6457 = vmul.f32 %v6451, 0.5
  %v6458 = vsel %vm814, %v6454, -inf
  %6459 = vmax.xlane.f32.xlu0 %v6458
  %v6460 = vpop.xlane.xlu0 %6459
  %v6461 = vsel %vm814, %v6455, -inf
  %6462 = vmax.xlane.f32.xlu0 %v6461
  %v6463 = vpop.xlane.xlu0 %6462
  %v6464 = vsel %vm814, %v6456, -inf
  %6465 = vmax.xlane.f32.xlu0 %v6464
  %v6466 = vpop.xlane.xlu0 %6465
  %v6467 = vsel %vm814, %v6457, -inf
  %6468 = vmax.xlane.f32.xlu0 %v6467
  %v6469 = vpop.xlane.xlu0 %6468
  %v6470 = vsub.f32 %v6454, %v6460
  %v6471 = vsub.f32 %v6455, %v6463
  %v6472 = vsub.f32 %v6456, %v6466
  %v6473 = vsub.f32 %v6457, %v6469
  %v6474 = vmul.f32 %v6470, 1.442695
  %v6475 = vpow.pop %v6474
  %v6476 = vmul.f32 %v6471, 1.442695
  %v6477 = vpow.pop %v6476
  %v6478 = vmul.f32 %v6472, 1.442695
  %v6479 = vpow.pop %v6478
  %v6480 = vmul.f32 %v6473, 1.442695
  %v6481 = vpow.pop %v6480
  %v6482 = vsel %vm814, %v6475, 0.0
  %6483 = vadd.xlane.f32.xlu0 %v6482
  %v6484 = vpop.xlane.xlu0 %6483
  %v6485 = vsel %vm814, %v6477, 0.0
  %6486 = vadd.xlane.f32.xlu0 %v6485
  %v6487 = vpop.xlane.xlu0 %6486
  %v6488 = vsel %vm814, %v6479, 0.0
  %6489 = vadd.xlane.f32.xlu0 %v6488
  %v6490 = vpop.xlane.xlu0 %6489
  %v6491 = vsel %vm814, %v6481, 0.0
  %6492 = vadd.xlane.f32.xlu0 %v6491
  %v6493 = vpop.xlane.xlu0 %6492
  %v6494 = vrcp.pop %v6484
  %v6495 = vrcp.pop %v6487
  %v6496 = vrcp.pop %v6490
  %v6497 = vrcp.pop %v6493
  %v6498 = vmul.f32 %v6475, %v6494
  %v6499 = vmul.f32 %v6477, %v6495
  %v6500 = vmul.f32 %v6479, %v6496
  %v6501 = vmul.f32 %v6481, %v6497
  %v6502 = vpack.c.bf16 %v6499, %v6498
  %v6503 = vpack.c.bf16 %v6501, %v6500
  %v6504 = vpack.c.bf16 %v6345, %v6342
  %v6505 = vpack.c.bf16 %v6353, %v6350
  %v6507 = vsel %vm814, %v6502, 0
  %6509 = vmatprep.subr.bf16.mxu0 0
  %6510 = vmatpush1.bf16.msra.mxu0 %v6504
  %6511 = vmatprep.subr.bf16.mxu0 0
  %6512 = vmatpush1.bf16.msra.mxu0 0
  %6513 = vmatprep.subr.bf16.mxu0 0
  %6514 = vmatpush1.bf16.msra.mxu0 0
  %6515 = vmatprep.subr.bf16.mxu0 0
  %6516 = vmatpush1.bf16.msra.mxu0 0
  %6517 = vmatprep.subr.bf16.mxu0 0
  %6518 = vmatpush1.bf16.msra.mxu0 0
  %6519 = vmatprep.subr.bf16.mxu0 0
  %6520 = vmatpush1.bf16.msra.mxu0 0
  %6521 = vmatprep.subr.bf16.mxu0 0
  %6522 = vmatpush1.bf16.msra.mxu0 0
  %6523 = vmatprep.subr.bf16.mxu0 0
  %6524 = vmatpush1.bf16.msra.mxu0 0
  %6525 = vmatprep.subr.bf16.mxu0 0
  %6526 = vmatpush1.bf16.msra.mxu0 0
  %6527 = vmatprep.subr.bf16.mxu0 0
  %6528 = vmatpush1.bf16.msra.mxu0 0
  %6529 = vmatprep.subr.bf16.mxu0 0
  %6530 = vmatpush1.bf16.msra.mxu0 0
  %6531 = vmatprep.subr.bf16.mxu0 0
  %6532 = vmatpush1.bf16.msra.mxu0 0
  %6533 = vmatprep.subr.bf16.mxu0 0
  %6534 = vmatpush1.bf16.msra.mxu0 0
  %6535 = vmatprep.subr.bf16.mxu0 0
  %6536 = vmatpush1.bf16.msra.mxu0 0
  %6537 = vmatprep.subr.bf16.mxu0 0
  %6538 = vmatpush1.bf16.msra.mxu0 0
  %6539 = vmatprep.subr.bf16.mxu0 0
  %6540 = vmatpush1.bf16.msra.mxu0 0
  %6541 = vmatprep.mubr.bf16.mxu0 0
  %6542 = vmatmul.mubr.bf16.gmra.mrb[0].mxu0 %v6507
  %v6543 = vpop.f32.mrb[0].mxu0
  %v6544 = vadd.f32 0.0, %v6543
  %v6545 = vpop.f32.mrb[0].mxu0
  %v6546 = vpop.f32.mrb[0].mxu0
  %v6547 = vadd.f32 0.0, %v6546
  %v6548 = vpop.f32.mrb[0].mxu0
  %6549 = vdwg.mxu0
  %v6551 = vsel %vm814, %v6503, 0
  %6553 = vmatprep.subr.bf16.mxu0 0
  %6554 = vmatpush1.bf16.msra.mxu0 %v6505
  %6555 = vmatprep.subr.bf16.mxu0 0
  %6556 = vmatpush1.bf16.msra.mxu0 0
  %6557 = vmatprep.subr.bf16.mxu0 0
  %6558 = vmatpush1.bf16.msra.mxu0 0
  %6559 = vmatprep.subr.bf16.mxu0 0
  %6560 = vmatpush1.bf16.msra.mxu0 0
  %6561 = vmatprep.subr.bf16.mxu0 0
  %6562 = vmatpush1.bf16.msra.mxu0 0
  %6563 = vmatprep.subr.bf16.mxu0 0
  %6564 = vmatpush1.bf16.msra.mxu0 0
  %6565 = vmatprep.subr.bf16.mxu0 0
  %6566 = vmatpush1.bf16.msra.mxu0 0
  %6567 = vmatprep.subr.bf16.mxu0 0
  %6568 = vmatpush1.bf16.msra.mxu0 0
  %6569 = vmatprep.subr.bf16.mxu0 0
  %6570 = vmatpush1.bf16.msra.mxu0 0
  %6571 = vmatprep.subr.bf16.mxu0 0
  %6572 = vmatpush1.bf16.msra.mxu0 0
  %6573 = vmatprep.subr.bf16.mxu0 0
  %6574 = vmatpush1.bf16.msra.mxu0 0
  %6575 = vmatprep.subr.bf16.mxu0 0
  %6576 = vmatpush1.bf16.msra.mxu0 0
  %6577 = vmatprep.subr.bf16.mxu0 0
  %6578 = vmatpush1.bf16.msra.mxu0 0
  %6579 = vmatprep.subr.bf16.mxu0 0
  %6580 = vmatpush1.bf16.msra.mxu0 0
  %6581 = vmatprep.subr.bf16.mxu0 0
  %6582 = vmatpush1.bf16.msra.mxu0 0
  %6583 = vmatprep.subr.bf16.mxu0 0
  %6584 = vmatpush1.bf16.msra.mxu0 0
  %6585 = vmatprep.mubr.bf16.mxu0 0
  %6586 = vmatmul.mubr.bf16.gmra.mrb[0].mxu0 %v6551
  %v6587 = vpop.f32.mrb[0].mxu0
  %v6588 = vadd.f32 0.0, %v6587
  %v6589 = vpop.f32.mrb[0].mxu0
  %v6590 = vpop.f32.mrb[0].mxu0
  %v6591 = vadd.f32 0.0, %v6590
  %v6592 = vpop.f32.mrb[0].mxu0
  %6593 = vdwg.mxu0
  %v6594 = vpack.c.bf16 %v6547, %v6544
  %v6595 = vpack.c.bf16 %v6591, %v6588
  %s6596 = scalar_lea.vmem %s49, 4
  %v6597 = vld [vmem:[%s6596] sm:$0x3]
  %v6599 = vsel %vm715, %v6594, 0
  %v6602 = vsel %vm715, %v6595, 0
  %v6605 = vsel %vm1424, %v6597, 0
  %6607 = vmatprep.subr.bf16.mxu0 0
  %6608 = vmatpush1.bf16.msra.mxu0 %v6605
  %6609 = vmatprep.subr.bf16.mxu0 0
  %6610 = vmatpush1.bf16.msra.mxu0 0
  %6611 = vmatprep.subr.bf16.mxu0 0
  %6612 = vmatpush1.bf16.msra.mxu0 0
  %6613 = vmatprep.subr.bf16.mxu0 0
  %6614 = vmatpush1.bf16.msra.mxu0 0
  %6615 = vmatprep.subr.bf16.mxu0 0
  %6616 = vmatpush1.bf16.msra.mxu0 0
  %6617 = vmatprep.subr.bf16.mxu0 0
  %6618 = vmatpush1.bf16.msra.mxu0 0
  %6619 = vmatprep.subr.bf16.mxu0 0
  %6620 = vmatpush1.bf16.msra.mxu0 0
  %6621 = vmatprep.subr.bf16.mxu0 0
  %6622 = vmatpush1.bf16.msra.mxu0 0
  %6623 = vmatprep.subr.bf16.mxu0 0
  %6624 = vmatpush1.bf16.msra.mxu0 0
  %6625 = vmatprep.subr.bf16.mxu0 0
  %6626 = vmatpush1.bf16.msra.mxu0 0
  %6627 = vmatprep.subr.bf16.mxu0 0
  %6628 = vmatpush1.bf16.msra.mxu0 0
  %6629 = vmatprep.subr.bf16.mxu0 0
  %6630 = vmatpush1.bf16.msra.mxu0 0
  %6631 = vmatprep.subr.bf16.mxu0 0
  %6632 = vmatpush1.bf16.msra.mxu0 0
  %6633 = vmatprep.subr.bf16.mxu0 0
  %6634 = vmatpush1.bf16.msra.mxu0 0
  %6635 = vmatprep.subr.bf16.mxu0 0
  %6636 = vmatpush1.bf16.msra.mxu0 0
  %6637 = vmatprep.subr.bf16.mxu0 0
  %6638 = vmatpush1.bf16.msra.mxu0 0
  %6639 = vmatprep.mubr.bf16.mxu0 0
  %6640 = vmatmul.mubr.bf16.gmra.mrb[0].mxu0 %v6599
  %v6641 = vpop.f32.mrb[0].mxu0
  %v6642 = vadd.f32 0.0, %v6641
  %v6643 = vpop.f32.mrb[0].mxu0
  %v6644 = vpop.f32.mrb[0].mxu0
  %v6645 = vadd.f32 0.0, %v6644
  %v6646 = vpop.f32.mrb[0].mxu0
  %6647 = vmatprep.mubr.bf16.mxu0 0
  %6648 = vmatmul.mubr.bf16.gmra.mrb[0].mxu0 %v6602
  %v6649 = vpop.f32.mrb[0].mxu0
  %v6650 = vadd.f32 0.0, %v6649
  %v6651 = vpop.f32.mrb[0].mxu0
  %v6652 = vpop.f32.mrb[0].mxu0
  %v6653 = vadd.f32 0.0, %v6652
  %v6654 = vpop.f32.mrb[0].mxu0
  %6655 = vdwg.mxu0
  %v6656 = vadd.f32 %v6120, %v6642
  %v6657 = vadd.f32 %v6123, %v6645
  %v6658 = vadd.f32 %v6128, %v6650
  %v6659 = vadd.f32 %v6131, %v6653
  %s6660 = scalar_lea.vmem %s37, 48
  %v6661 = vld [vmem:[%s6660] sm:$0xf]
  %v6662 = vld [vmem:[%s6660 + $0x4] sm:$0xf]
  %v6663 = vld [vmem:[%s6660 + $0x8] sm:$0xf]
  %v6664 = vld [vmem:[%s6660 + $0xc] sm:$0xf]
  %s6665 = scalar_lea.vmem %s39, 3
  %v6666 = vld [vmem:[%s6665] sm:$0x1]
  %v6668 = vlaneseq
  %v6669 = vshrl.u32 %v6668, 7
  %v6670 = vsub.s32 0, %v6669
  %v6671 = vrot.slane %v6666, %v6670
  %v6677 = vunpack.c.l.b16 %v6661
  %v6678 = vunpack.c.l.b16 %v6662
  %v6679 = vunpack.c.l.b16 %v6663
  %v6680 = vunpack.c.l.b16 %v6664
  %v6681 = vpack.c.b16 %v6678, %v6677
  %v6682 = vpack.c.b16 %v6680, %v6679
  %6685 = vmatprep.subr.bf16.mxu0 0
  %6686 = vmatpush1.bf16.msra.mxu0 %v6681
  %6687 = vmatprep.subr.bf16.mxu0 0
  %6688 = vmatpush1.bf16.msra.mxu0 %v6682
  %6689 = vmatprep.subr.bf16.mxu0 0
  %6690 = vmatpush1.bf16.msra.mxu0 0
  %6691 = vmatprep.subr.bf16.mxu0 0
  %6692 = vmatpush1.bf16.msra.mxu0 0
  %6693 = vmatprep.subr.bf16.mxu0 0
  %6694 = vmatpush1.bf16.msra.mxu0 0
  %6695 = vmatprep.subr.bf16.mxu0 0
  %6696 = vmatpush1.bf16.msra.mxu0 0
  %6697 = vmatprep.subr.bf16.mxu0 0
  %6698 = vmatpush1.bf16.msra.mxu0 0
  %6699 = vmatprep.subr.bf16.mxu0 0
  %6700 = vmatpush1.bf16.msra.mxu0 0
  %6701 = vmatprep.subr.bf16.mxu0 0
  %6702 = vmatpush1.bf16.msra.mxu0 0
  %6703 = vmatprep.subr.bf16.mxu0 0
  %6704 = vmatpush1.bf16.msra.mxu0 0
  %6705 = vmatprep.subr.bf16.mxu0 0
  %6706 = vmatpush1.bf16.msra.mxu0 0
  %6707 = vmatprep.subr.bf16.mxu0 0
  %6708 = vmatpush1.bf16.msra.mxu0 0
  %6709 = vmatprep.subr.bf16.mxu0 0
  %6710 = vmatpush1.bf16.msra.mxu0 0
  %6711 = vmatprep.subr.bf16.mxu0 0
  %6712 = vmatpush1.bf16.msra.mxu0 0
  %6713 = vmatprep.subr.bf16.mxu0 0
  %6714 = vmatpush1.bf16.msra.mxu0 0
  %6715 = vmatprep.subr.bf16.mxu0 0
  %6716 = vmatpush1.bf16.msra.mxu0 0
  %6717 = vmatprep.mubr.bf16.mxu0 0
  %6718 = vmatmul.mubr.bf16.gmra.mrb[0].mxu0 %v5115
  %v6719 = vpop.f32.mrb[0].mxu0
  %v6720 = vadd.f32 %v6671, %v6719
  %v6721 = vpop.f32.mrb[0].mxu0
  %v6722 = vpop.f32.mrb[0].mxu0
  %v6723 = vadd.f32 %v6671, %v6722
  %v6724 = vpop.f32.mrb[0].mxu0
  %6725 = vmatprep.mubr.bf16.mxu0 0
  %6726 = vmatmul.mubr.bf16.gmra.mrb[0].mxu0 %v5118
  %v6727 = vpop.f32.mrb[0].mxu0
  %v6728 = vadd.f32 %v6671, %v6727
  %v6729 = vpop.f32.mrb[0].mxu0
  %v6730 = vpop.f32.mrb[0].mxu0
  %v6731 = vadd.f32 %v6671, %v6730
  %v6732 = vpop.f32.mrb[0].mxu0
  %6733 = vdwg.mxu0
  %s6734 = scalar_lea.vmem %s41, 48
  %v6735 = vld [vmem:[%s6734] sm:$0xf]
  %v6736 = vld [vmem:[%s6734 + $0x4] sm:$0xf]
  %v6737 = vld [vmem:[%s6734 + $0x8] sm:$0xf]
  %v6738 = vld [vmem:[%s6734 + $0xc] sm:$0xf]
  %s6739 = scalar_lea.vmem %s43, 3
  %v6740 = vld [vmem:[%s6739] sm:$0x1]
  %v6742 = vlaneseq
  %v6743 = vshrl.u32 %v6742, 7
  %v6744 = vsub.s32 0, %v6743
  %v6745 = vrot.slane %v6740, %v6744
  %v6751 = vunpack.c.l.b16 %v6735
  %v6752 = vunpack.c.l.b16 %v6736
  %v6753 = vunpack.c.l.b16 %v6737
  %v6754 = vunpack.c.l.b16 %v6738
  %v6755 = vpack.c.b16 %v6752, %v6751
  %v6756 = vpack.c.b16 %v6754, %v6753
  %6759 = vmatprep.subr.bf16.mxu0 0
  %6760 = vmatpush1.bf16.msra.mxu0 %v6755
  %6761 = vmatprep.subr.bf16.mxu0 0
  %6762 = vmatpush1.bf16.msra.mxu0 %v6756
  %6763 = vmatprep.subr.bf16.mxu0 0
  %6764 = vmatpush1.bf16.msra.mxu0 0
  %6765 = vmatprep.subr.bf16.mxu0 0
  %6766 = vmatpush1.bf16.msra.mxu0 0
  %6767 = vmatprep.subr.bf16.mxu0 0
  %6768 = vmatpush1.bf16.msra.mxu0 0
  %6769 = vmatprep.subr.bf16.mxu0 0
  %6770 = vmatpush1.bf16.msra.mxu0 0
  %6771 = vmatprep.subr.bf16.mxu0 0
  %6772 = vmatpush1.bf16.msra.mxu0 0
  %6773 = vmatprep.subr.bf16.mxu0 0
  %6774 = vmatpush1.bf16.msra.mxu0 0
  %6775 = vmatprep.subr.bf16.mxu0 0
  %6776 = vmatpush1.bf16.msra.mxu0 0
  %6777 = vmatprep.subr.bf16.mxu0 0
  %6778 = vmatpush1.bf16.msra.mxu0 0
  %6779 = vmatprep.subr.bf16.mxu0 0
  %6780 = vmatpush1.bf16.msra.mxu0 0
  %6781 = vmatprep.subr.bf16.mxu0 0
  %6782 = vmatpush1.bf16.msra.mxu0 0
  %6783 = vmatprep.subr.bf16.mxu0 0
  %6784 = vmatpush1.bf16.msra.mxu0 0
  %6785 = vmatprep.subr.bf16.mxu0 0
  %6786 = vmatpush1.bf16.msra.mxu0 0
  %6787 = vmatprep.subr.bf16.mxu0 0
  %6788 = vmatpush1.bf16.msra.mxu0 0
  %6789 = vmatprep.subr.bf16.mxu0 0
  %6790 = vmatpush1.bf16.msra.mxu0 0
  %6791 = vmatprep.mubr.bf16.mxu0 0
  %6792 = vmatmul.mubr.bf16.gmra.mrb[0].mxu0 %v5115
  %v6793 = vpop.f32.mrb[0].mxu0
  %v6794 = vadd.f32 %v6745, %v6793
  %v6795 = vpop.f32.mrb[0].mxu0
  %v6796 = vpop.f32.mrb[0].mxu0
  %v6797 = vadd.f32 %v6745, %v6796
  %v6798 = vpop.f32.mrb[0].mxu0
  %6799 = vmatprep.mubr.bf16.mxu0 0
  %6800 = vmatmul.mubr.bf16.gmra.mrb[0].mxu0 %v5118
  %v6801 = vpop.f32.mrb[0].mxu0
  %v6802 = vadd.f32 %v6745, %v6801
  %v6803 = vpop.f32.mrb[0].mxu0
  %v6804 = vpop.f32.mrb[0].mxu0
  %v6805 = vadd.f32 %v6745, %v6804
  %v6806 = vpop.f32.mrb[0].mxu0
  %6807 = vdwg.mxu0
  %s6808 = scalar_lea.vmem %s45, 48
  %v6809 = vld [vmem:[%s6808] sm:$0xf]
  %v6810 = vld [vmem:[%s6808 + $0x4] sm:$0xf]
  %v6811 = vld [vmem:[%s6808 + $0x8] sm:$0xf]
  %v6812 = vld [vmem:[%s6808 + $0xc] sm:$0xf]
  %s6813 = scalar_lea.vmem %s47, 3
  %v6814 = vld [vmem:[%s6813] sm:$0x1]
  %v6816 = vlaneseq
  %v6817 = vshrl.u32 %v6816, 7
  %v6818 = vsub.s32 0, %v6817
  %v6819 = vrot.slane %v6814, %v6818
  %v6825 = vunpack.c.l.b16 %v6809
  %v6826 = vunpack.c.l.b16 %v6810
  %v6827 = vunpack.c.l.b16 %v6811
  %v6828 = vunpack.c.l.b16 %v6812
  %v6829 = vpack.c.b16 %v6826, %v6825
  %v6830 = vpack.c.b16 %v6828, %v6827
  %6833 = vmatprep.subr.bf16.mxu0 0
  %6834 = vmatpush1.bf16.msra.mxu0 %v6829
  %6835 = vmatprep.subr.bf16.mxu0 0
  %6836 = vmatpush1.bf16.msra.mxu0 %v6830
  %6837 = vmatprep.subr.bf16.mxu0 0
  %6838 = vmatpush1.bf16.msra.mxu0 0
  %6839 = vmatprep.subr.bf16.mxu0 0
  %6840 = vmatpush1.bf16.msra.mxu0 0
  %6841 = vmatprep.subr.bf16.mxu0 0
  %6842 = vmatpush1.bf16.msra.mxu0 0
  %6843 = vmatprep.subr.bf16.mxu0 0
  %6844 = vmatpush1.bf16.msra.mxu0 0
  %6845 = vmatprep.subr.bf16.mxu0 0
  %6846 = vmatpush1.bf16.msra.mxu0 0
  %6847 = vmatprep.subr.bf16.mxu0 0
  %6848 = vmatpush1.bf16.msra.mxu0 0
  %6849 = vmatprep.subr.bf16.mxu0 0
  %6850 = vmatpush1.bf16.msra.mxu0 0
  %6851 = vmatprep.subr.bf16.mxu0 0
  %6852 = vmatpush1.bf16.msra.mxu0 0
  %6853 = vmatprep.subr.bf16.mxu0 0
  %6854 = vmatpush1.bf16.msra.mxu0 0
  %6855 = vmatprep.subr.bf16.mxu0 0
  %6856 = vmatpush1.bf16.msra.mxu0 0
  %6857 = vmatprep.subr.bf16.mxu0 0
  %6858 = vmatpush1.bf16.msra.mxu0 0
  %6859 = vmatprep.subr.bf16.mxu0 0
  %6860 = vmatpush1.bf16.msra.mxu0 0
  %6861 = vmatprep.subr.bf16.mxu0 0
  %6862 = vmatpush1.bf16.msra.mxu0 0
  %6863 = vmatprep.subr.bf16.mxu0 0
  %6864 = vmatpush1.bf16.msra.mxu0 0
  %6865 = vmatprep.mubr.bf16.mxu0 0
  %6866 = vmatmul.mubr.bf16.gmra.mrb[0].mxu0 %v5115
  %v6867 = vpop.f32.mrb[0].mxu0
  %v6868 = vadd.f32 %v6819, %v6867
  %v6869 = vpop.f32.mrb[0].mxu0
  %v6870 = vpop.f32.mrb[0].mxu0
  %v6871 = vadd.f32 %v6819, %v6870
  %v6872 = vpop.f32.mrb[0].mxu0
  %6873 = vmatprep.mubr.bf16.mxu0 0
  %6874 = vmatmul.mubr.bf16.gmra.mrb[0].mxu0 %v5118
  %v6875 = vpop.f32.mrb[0].mxu0
  %v6876 = vadd.f32 %v6819, %v6875
  %v6877 = vpop.f32.mrb[0].mxu0
  %v6878 = vpop.f32.mrb[0].mxu0
  %v6879 = vadd.f32 %v6819, %v6878
  %v6880 = vpop.f32.mrb[0].mxu0
  %6881 = vdwg.mxu0
  %v6882 = vpack.c.bf16 %v6723, %v6720
  %v6883 = vpack.c.bf16 %v6731, %v6728
  %v6884 = vpack.c.bf16 %v6797, %v6794
  %v6885 = vpack.c.bf16 %v6805, %v6802
  %v6887 = vsel %vm715, %v6882, 0
  %v6890 = vsel %vm715, %v6884, 0
  %6892 = vmatprep.subr.bf16.mxu0 0
  %6893 = vmatpush1.bf16.xpose.msra.mxu0 %v6890
  %6894 = vmatprep.subr.bf16.mxu0 0
  %6895 = vmatpush1.bf16.xpose.msra.mxu0 0
  %6896 = vmatprep.subr.bf16.mxu0 0
  %6897 = vmatpush1.bf16.xpose.msra.mxu0 0
  %6898 = vmatprep.subr.bf16.mxu0 0
  %6899 = vmatpush1.bf16.xpose.msra.mxu0 0
  %6900 = vmatprep.subr.bf16.mxu0 0
  %6901 = vmatpush1.bf16.xpose.msra.mxu0 0
  %6902 = vmatprep.subr.bf16.mxu0 0
  %6903 = vmatpush1.bf16.xpose.msra.mxu0 0
  %6904 = vmatprep.subr.bf16.mxu0 0
  %6905 = vmatpush1.bf16.xpose.msra.mxu0 0
  %6906 = vmatprep.subr.bf16.mxu0 0
  %6907 = vmatpush1.bf16.xpose.msra.mxu0 0
  %6908 = vmatprep.subr.bf16.mxu0 0
  %6909 = vmatpush1.bf16.xpose.msra.mxu0 0
  %6910 = vmatprep.subr.bf16.mxu0 0
  %6911 = vmatpush1.bf16.xpose.msra.mxu0 0
  %6912 = vmatprep.subr.bf16.mxu0 0
  %6913 = vmatpush1.bf16.xpose.msra.mxu0 0
  %6914 = vmatprep.subr.bf16.mxu0 0
  %6915 = vmatpush1.bf16.xpose.msra.mxu0 0
  %6916 = vmatprep.subr.bf16.mxu0 0
  %6917 = vmatpush1.bf16.xpose.msra.mxu0 0
  %6918 = vmatprep.subr.bf16.mxu0 0
  %6919 = vmatpush1.bf16.xpose.msra.mxu0 0
  %6920 = vmatprep.subr.bf16.mxu0 0
  %6921 = vmatpush1.bf16.xpose.msra.mxu0 0
  %6922 = vmatprep.subr.bf16.mxu0 0
  %6923 = vmatpush1.bf16.xpose.msra.mxu0 0
  %6924 = vmatprep.mubr.bf16.mxu0 0
  %6925 = vmatmul.mubr.bf16.gmra.mrb[0].mxu0 %v6887
  %v6926 = vpop.f32.mrb[0].mxu0
  %v6927 = vadd.f32 0.0, %v6926
  %v6928 = vpop.f32.mrb[0].mxu0
  %v6929 = vpop.f32.mrb[0].mxu0
  %v6930 = vadd.f32 0.0, %v6929
  %v6931 = vpop.f32.mrb[0].mxu0
  %6932 = vdwg.mxu0
  %v6934 = vsel %vm715, %v6883, 0
  %v6937 = vsel %vm715, %v6885, 0
  %6939 = vmatprep.subr.bf16.mxu0 0
  %6940 = vmatpush1.bf16.xpose.msra.mxu0 %v6937
  %6941 = vmatprep.subr.bf16.mxu0 0
  %6942 = vmatpush1.bf16.xpose.msra.mxu0 0
  %6943 = vmatprep.subr.bf16.mxu0 0
  %6944 = vmatpush1.bf16.xpose.msra.mxu0 0
  %6945 = vmatprep.subr.bf16.mxu0 0
  %6946 = vmatpush1.bf16.xpose.msra.mxu0 0
  %6947 = vmatprep.subr.bf16.mxu0 0
  %6948 = vmatpush1.bf16.xpose.msra.mxu0 0
  %6949 = vmatprep.subr.bf16.mxu0 0
  %6950 = vmatpush1.bf16.xpose.msra.mxu0 0
  %6951 = vmatprep.subr.bf16.mxu0 0
  %6952 = vmatpush1.bf16.xpose.msra.mxu0 0
  %6953 = vmatprep.subr.bf16.mxu0 0
  %6954 = vmatpush1.bf16.xpose.msra.mxu0 0
  %6955 = vmatprep.subr.bf16.mxu0 0
  %6956 = vmatpush1.bf16.xpose.msra.mxu0 0
  %6957 = vmatprep.subr.bf16.mxu0 0
  %6958 = vmatpush1.bf16.xpose.msra.mxu0 0
  %6959 = vmatprep.subr.bf16.mxu0 0
  %6960 = vmatpush1.bf16.xpose.msra.mxu0 0
  %6961 = vmatprep.subr.bf16.mxu0 0
  %6962 = vmatpush1.bf16.xpose.msra.mxu0 0
  %6963 = vmatprep.subr.bf16.mxu0 0
  %6964 = vmatpush1.bf16.xpose.msra.mxu0 0
  %6965 = vmatprep.subr.bf16.mxu0 0
  %6966 = vmatpush1.bf16.xpose.msra.mxu0 0
  %6967 = vmatprep.subr.bf16.mxu0 0
  %6968 = vmatpush1.bf16.xpose.msra.mxu0 0
  %6969 = vmatprep.subr.bf16.mxu0 0
  %6970 = vmatpush1.bf16.xpose.msra.mxu0 0
  %6971 = vmatprep.mubr.bf16.mxu0 0
  %6972 = vmatmul.mubr.bf16.gmra.mrb[0].mxu0 %v6934
  %v6973 = vpop.f32.mrb[0].mxu0
  %v6974 = vadd.f32 0.0, %v6973
  %v6975 = vpop.f32.mrb[0].mxu0
  %v6976 = vpop.f32.mrb[0].mxu0
  %v6977 = vadd.f32 0.0, %v6976
  %v6978 = vpop.f32.mrb[0].mxu0
  %6979 = vdwg.mxu0
  %v6980 = vmul.f32 %v6927, 0.5
  %v6981 = vmul.f32 %v6930, 0.5
  %v6982 = vmul.f32 %v6974, 0.5
  %v6983 = vmul.f32 %v6977, 0.5
  %v6984 = vsel %vm814, %v6980, -inf
  %6985 = vmax.xlane.f32.xlu0 %v6984
  %v6986 = vpop.xlane.xlu0 %6985
  %v6987 = vsel %vm814, %v6981, -inf
  %6988 = vmax.xlane.f32.xlu0 %v6987
  %v6989 = vpop.xlane.xlu0 %6988
  %v6990 = vsel %vm814, %v6982, -inf
  %6991 = vmax.xlane.f32.xlu0 %v6990
  %v6992 = vpop.xlane.xlu0 %6991
  %v6993 = vsel %vm814, %v6983, -inf
  %6994 = vmax.xlane.f32.xlu0 %v6993
  %v6995 = vpop.xlane.xlu0 %6994
  %v6996 = vsub.f32 %v6980, %v6986
  %v6997 = vsub.f32 %v6981, %v6989
  %v6998 = vsub.f32 %v6982, %v6992
  %v6999 = vsub.f32 %v6983, %v6995
  %v7000 = vmul.f32 %v6996, 1.442695
  %v7001 = vpow.pop %v7000
  %v7002 = vmul.f32 %v6997, 1.442695
  %v7003 = vpow.pop %v7002
  %v7004 = vmul.f32 %v6998, 1.442695
  %v7005 = vpow.pop %v7004
  %v7006 = vmul.f32 %v6999, 1.442695
  %v7007 = vpow.pop %v7006
  %v7008 = vsel %vm814, %v7001, 0.0
  %7009 = vadd.xlane.f32.xlu0 %v7008
  %v7010 = vpop.xlane.xlu0 %7009
  %v7011 = vsel %vm814, %v7003, 0.0
  %7012 = vadd.xlane.f32.xlu0 %v7011
  %v7013 = vpop.xlane.xlu0 %7012
  %v7014 = vsel %vm814, %v7005, 0.0
  %7015 = vadd.xlane.f32.xlu0 %v7014
  %v7016 = vpop.xlane.xlu0 %7015
  %v7017 = vsel %vm814, %v7007, 0.0
  %7018 = vadd.xlane.f32.xlu0 %v7017
  %v7019 = vpop.xlane.xlu0 %7018
  %v7020 = vrcp.pop %v7010
  %v7021 = vrcp.pop %v7013
  %v7022 = vrcp.pop %v7016
  %v7023 = vrcp.pop %v7019
  %v7024 = vmul.f32 %v7001, %v7020
  %v7025 = vmul.f32 %v7003, %v7021
  %v7026 = vmul.f32 %v7005, %v7022
  %v7027 = vmul.f32 %v7007, %v7023
  %v7028 = vpack.c.bf16 %v7025, %v7024
  %v7029 = vpack.c.bf16 %v7027, %v7026
  %v7030 = vpack.c.bf16 %v6871, %v6868
  %v7031 = vpack.c.bf16 %v6879, %v6876
  %v7033 = vsel %vm814, %v7028, 0
  %7035 = vmatprep.subr.bf16.mxu0 0
  %7036 = vmatpush1.bf16.msra.mxu0 %v7030
  %7037 = vmatprep.subr.bf16.mxu0 0
  %7038 = vmatpush1.bf16.msra.mxu0 0
  %7039 = vmatprep.subr.bf16.mxu0 0
  %7040 = vmatpush1.bf16.msra.mxu0 0
  %7041 = vmatprep.subr.bf16.mxu0 0
  %7042 = vmatpush1.bf16.msra.mxu0 0
  %7043 = vmatprep.subr.bf16.mxu0 0
  %7044 = vmatpush1.bf16.msra.mxu0 0
  %7045 = vmatprep.subr.bf16.mxu0 0
  %7046 = vmatpush1.bf16.msra.mxu0 0
  %7047 = vmatprep.subr.bf16.mxu0 0
  %7048 = vmatpush1.bf16.msra.mxu0 0
  %7049 = vmatprep.subr.bf16.mxu0 0
  %7050 = vmatpush1.bf16.msra.mxu0 0
  %7051 = vmatprep.subr.bf16.mxu0 0
  %7052 = vmatpush1.bf16.msra.mxu0 0
  %7053 = vmatprep.subr.bf16.mxu0 0
  %7054 = vmatpush1.bf16.msra.mxu0 0
  %7055 = vmatprep.subr.bf16.mxu0 0
  %7056 = vmatpush1.bf16.msra.mxu0 0
  %7057 = vmatprep.subr.bf16.mxu0 0
  %7058 = vmatpush1.bf16.msra.mxu0 0
  %7059 = vmatprep.subr.bf16.mxu0 0
  %7060 = vmatpush1.bf16.msra.mxu0 0
  %7061 = vmatprep.subr.bf16.mxu0 0
  %7062 = vmatpush1.bf16.msra.mxu0 0
  %7063 = vmatprep.subr.bf16.mxu0 0
  %7064 = vmatpush1.bf16.msra.mxu0 0
  %7065 = vmatprep.subr.bf16.mxu0 0
  %7066 = vmatpush1.bf16.msra.mxu0 0
  %7067 = vmatprep.mubr.bf16.mxu0 0
  %7068 = vmatmul.mubr.bf16.gmra.mrb[0].mxu0 %v7033
  %v7069 = vpop.f32.mrb[0].mxu0
  %v7070 = vadd.f32 0.0, %v7069
  %v7071 = vpop.f32.mrb[0].mxu0
  %v7072 = vpop.f32.mrb[0].mxu0
  %v7073 = vadd.f32 0.0, %v7072
  %v7074 = vpop.f32.mrb[0].mxu0
  %7075 = vdwg.mxu0
  %v7077 = vsel %vm814, %v7029, 0
  %7079 = vmatprep.subr.bf16.mxu0 0
  %7080 = vmatpush1.bf16.msra.mxu0 %v7031
  %7081 = vmatprep.subr.bf16.mxu0 0
  %7082 = vmatpush1.bf16.msra.mxu0 0
  %7083 = vmatprep.subr.bf16.mxu0 0
  %7084 = vmatpush1.bf16.msra.mxu0 0
  %7085 = vmatprep.subr.bf16.mxu0 0
  %7086 = vmatpush1.bf16.msra.mxu0 0
  %7087 = vmatprep.subr.bf16.mxu0 0
  %7088 = vmatpush1.bf16.msra.mxu0 0
  %7089 = vmatprep.subr.bf16.mxu0 0
  %7090 = vmatpush1.bf16.msra.mxu0 0
  %7091 = vmatprep.subr.bf16.mxu0 0
  %7092 = vmatpush1.bf16.msra.mxu0 0
  %7093 = vmatprep.subr.bf16.mxu0 0
  %7094 = vmatpush1.bf16.msra.mxu0 0
  %7095 = vmatprep.subr.bf16.mxu0 0
  %7096 = vmatpush1.bf16.msra.mxu0 0
  %7097 = vmatprep.subr.bf16.mxu0 0
  %7098 = vmatpush1.bf16.msra.mxu0 0
  %7099 = vmatprep.subr.bf16.mxu0 0
  %7100 = vmatpush1.bf16.msra.mxu0 0
  %7101 = vmatprep.subr.bf16.mxu0 0
  %7102 = vmatpush1.bf16.msra.mxu0 0
  %7103 = vmatprep.subr.bf16.mxu0 0
  %7104 = vmatpush1.bf16.msra.mxu0 0
  %7105 = vmatprep.subr.bf16.mxu0 0
  %7106 = vmatpush1.bf16.msra.mxu0 0
  %7107 = vmatprep.subr.bf16.mxu0 0
  %7108 = vmatpush1.bf16.msra.mxu0 0
  %7109 = vmatprep.subr.bf16.mxu0 0
  %7110 = vmatpush1.bf16.msra.mxu0 0
  %7111 = vmatprep.mubr.bf16.mxu0 0
  %7112 = vmatmul.mubr.bf16.gmra.mrb[0].mxu0 %v7077
  %v7113 = vpop.f32.mrb[0].mxu0
  %v7114 = vadd.f32 0.0, %v7113
  %v7115 = vpop.f32.mrb[0].mxu0
  %v7116 = vpop.f32.mrb[0].mxu0
  %v7117 = vadd.f32 0.0, %v7116
  %v7118 = vpop.f32.mrb[0].mxu0
  %7119 = vdwg.mxu0
  %v7120 = vpack.c.bf16 %v7073, %v7070
  %v7121 = vpack.c.bf16 %v7117, %v7114
  %s7122 = scalar_lea.vmem %s49, 6
  %v7123 = vld [vmem:[%s7122] sm:$0x3]
  %v7125 = vsel %vm715, %v7120, 0
  %v7128 = vsel %vm715, %v7121, 0
  %v7131 = vsel %vm1424, %v7123, 0
  %7133 = vmatprep.subr.bf16.mxu0 0
  %7134 = vmatpush1.bf16.msra.mxu0 %v7131
  %7135 = vmatprep.subr.bf16.mxu0 0
  %7136 = vmatpush1.bf16.msra.mxu0 0
  %7137 = vmatprep.subr.bf16.mxu0 0
  %7138 = vmatpush1.bf16.msra.mxu0 0
  %7139 = vmatprep.subr.bf16.mxu0 0
  %7140 = vmatpush1.bf16.msra.mxu0 0
  %7141 = vmatprep.subr.bf16.mxu0 0
  %7142 = vmatpush1.bf16.msra.mxu0 0
  %7143 = vmatprep.subr.bf16.mxu0 0
  %7144 = vmatpush1.bf16.msra.mxu0 0
  %7145 = vmatprep.subr.bf16.mxu0 0
  %7146 = vmatpush1.bf16.msra.mxu0 0
  %7147 = vmatprep.subr.bf16.mxu0 0
  %7148 = vmatpush1.bf16.msra.mxu0 0
  %7149 = vmatprep.subr.bf16.mxu0 0
  %7150 = vmatpush1.bf16.msra.mxu0 0
  %7151 = vmatprep.subr.bf16.mxu0 0
  %7152 = vmatpush1.bf16.msra.mxu0 0
  %7153 = vmatprep.subr.bf16.mxu0 0
  %7154 = vmatpush1.bf16.msra.mxu0 0
  %7155 = vmatprep.subr.bf16.mxu0 0
  %7156 = vmatpush1.bf16.msra.mxu0 0
  %7157 = vmatprep.subr.bf16.mxu0 0
  %7158 = vmatpush1.bf16.msra.mxu0 0
  %7159 = vmatprep.subr.bf16.mxu0 0
  %7160 = vmatpush1.bf16.msra.mxu0 0
  %7161 = vmatprep.subr.bf16.mxu0 0
  %7162 = vmatpush1.bf16.msra.mxu0 0
  %7163 = vmatprep.subr.bf16.mxu0 0
  %7164 = vmatpush1.bf16.msra.mxu0 0
  %7165 = vmatprep.mubr.bf16.mxu0 0
  %7166 = vmatmul.mubr.bf16.gmra.mrb[0].mxu0 %v7125
  %v7167 = vpop.f32.mrb[0].mxu0
  %v7168 = vadd.f32 0.0, %v7167
  %v7169 = vpop.f32.mrb[0].mxu0
  %v7170 = vpop.f32.mrb[0].mxu0
  %v7171 = vadd.f32 0.0, %v7170
  %v7172 = vpop.f32.mrb[0].mxu0
  %7173 = vmatprep.mubr.bf16.mxu0 0
  %7174 = vmatmul.mubr.bf16.gmra.mrb[0].mxu0 %v7128
  %v7175 = vpop.f32.mrb[0].mxu0
  %v7176 = vadd.f32 0.0, %v7175
  %v7177 = vpop.f32.mrb[0].mxu0
  %v7178 = vpop.f32.mrb[0].mxu0
  %v7179 = vadd.f32 0.0, %v7178
  %v7180 = vpop.f32.mrb[0].mxu0
  %7181 = vdwg.mxu0
  %v7182 = vadd.f32 %v6656, %v7168
  %v7183 = vadd.f32 %v6657, %v7171
  %v7184 = vadd.f32 %v6658, %v7176
  %v7185 = vadd.f32 %v6659, %v7179
  %s7186 = scalar_lea.vmem %s37, 64
  %v7187 = vld [vmem:[%s7186] sm:$0xf]
  %v7188 = vld [vmem:[%s7186 + $0x4] sm:$0xf]
  %v7189 = vld [vmem:[%s7186 + $0x8] sm:$0xf]
  %v7190 = vld [vmem:[%s7186 + $0xc] sm:$0xf]
  %s7191 = scalar_lea.vmem %s39, 4
  %v7192 = vld [vmem:[%s7191] sm:$0x1]
  %v7194 = vlaneseq
  %v7195 = vshrl.u32 %v7194, 7
  %v7196 = vsub.s32 0, %v7195
  %v7197 = vrot.slane %v7192, %v7196
  %v7203 = vunpack.c.l.b16 %v7187
  %v7204 = vunpack.c.l.b16 %v7188
  %v7205 = vunpack.c.l.b16 %v7189
  %v7206 = vunpack.c.l.b16 %v7190
  %v7207 = vpack.c.b16 %v7204, %v7203
  %v7208 = vpack.c.b16 %v7206, %v7205
  %7211 = vmatprep.subr.bf16.mxu0 0
  %7212 = vmatpush1.bf16.msra.mxu0 %v7207
  %7213 = vmatprep.subr.bf16.mxu0 0
  %7214 = vmatpush1.bf16.msra.mxu0 %v7208
  %7215 = vmatprep.subr.bf16.mxu0 0
  %7216 = vmatpush1.bf16.msra.mxu0 0
  %7217 = vmatprep.subr.bf16.mxu0 0
  %7218 = vmatpush1.bf16.msra.mxu0 0
  %7219 = vmatprep.subr.bf16.mxu0 0
  %7220 = vmatpush1.bf16.msra.mxu0 0
  %7221 = vmatprep.subr.bf16.mxu0 0
  %7222 = vmatpush1.bf16.msra.mxu0 0
  %7223 = vmatprep.subr.bf16.mxu0 0
  %7224 = vmatpush1.bf16.msra.mxu0 0
  %7225 = vmatprep.subr.bf16.mxu0 0
  %7226 = vmatpush1.bf16.msra.mxu0 0
  %7227 = vmatprep.subr.bf16.mxu0 0
  %7228 = vmatpush1.bf16.msra.mxu0 0
  %7229 = vmatprep.subr.bf16.mxu0 0
  %7230 = vmatpush1.bf16.msra.mxu0 0
  %7231 = vmatprep.subr.bf16.mxu0 0
  %7232 = vmatpush1.bf16.msra.mxu0 0
  %7233 = vmatprep.subr.bf16.mxu0 0
  %7234 = vmatpush1.bf16.msra.mxu0 0
  %7235 = vmatprep.subr.bf16.mxu0 0
  %7236 = vmatpush1.bf16.msra.mxu0 0
  %7237 = vmatprep.subr.bf16.mxu0 0
  %7238 = vmatpush1.bf16.msra.mxu0 0
  %7239 = vmatprep.subr.bf16.mxu0 0
  %7240 = vmatpush1.bf16.msra.mxu0 0
  %7241 = vmatprep.subr.bf16.mxu0 0
  %7242 = vmatpush1.bf16.msra.mxu0 0
  %7243 = vmatprep.mubr.bf16.mxu0 0
  %7244 = vmatmul.mubr.bf16.gmra.mrb[0].mxu0 %v5115
  %v7245 = vpop.f32.mrb[0].mxu0
  %v7246 = vadd.f32 %v7197, %v7245
  %v7247 = vpop.f32.mrb[0].mxu0
  %v7248 = vpop.f32.mrb[0].mxu0
  %v7249 = vadd.f32 %v7197, %v7248
  %v7250 = vpop.f32.mrb[0].mxu0
  %7251 = vmatprep.mubr.bf16.mxu0 0
  %7252 = vmatmul.mubr.bf16.gmra.mrb[0].mxu0 %v5118
  %v7253 = vpop.f32.mrb[0].mxu0
  %v7254 = vadd.f32 %v7197, %v7253
  %v7255 = vpop.f32.mrb[0].mxu0
  %v7256 = vpop.f32.mrb[0].mxu0
  %v7257 = vadd.f32 %v7197, %v7256
  %v7258 = vpop.f32.mrb[0].mxu0
  %7259 = vdwg.mxu0
  %s7260 = scalar_lea.vmem %s41, 64
  %v7261 = vld [vmem:[%s7260] sm:$0xf]
  %v7262 = vld [vmem:[%s7260 + $0x4] sm:$0xf]
  %v7263 = vld [vmem:[%s7260 + $0x8] sm:$0xf]
  %v7264 = vld [vmem:[%s7260 + $0xc] sm:$0xf]
  %s7265 = scalar_lea.vmem %s43, 4
  %v7266 = vld [vmem:[%s7265] sm:$0x1]
  %v7268 = vlaneseq
  %v7269 = vshrl.u32 %v7268, 7
  %v7270 = vsub.s32 0, %v7269
  %v7271 = vrot.slane %v7266, %v7270
  %v7277 = vunpack.c.l.b16 %v7261
  %v7278 = vunpack.c.l.b16 %v7262
  %v7279 = vunpack.c.l.b16 %v7263
  %v7280 = vunpack.c.l.b16 %v7264
  %v7281 = vpack.c.b16 %v7278, %v7277
  %v7282 = vpack.c.b16 %v7280, %v7279
  %7285 = vmatprep.subr.bf16.mxu0 0
  %7286 = vmatpush1.bf16.msra.mxu0 %v7281
  %7287 = vmatprep.subr.bf16.mxu0 0
  %7288 = vmatpush1.bf16.msra.mxu0 %v7282
  %7289 = vmatprep.subr.bf16.mxu0 0
  %7290 = vmatpush1.bf16.msra.mxu0 0
  %7291 = vmatprep.subr.bf16.mxu0 0
  %7292 = vmatpush1.bf16.msra.mxu0 0
  %7293 = vmatprep.subr.bf16.mxu0 0
  %7294 = vmatpush1.bf16.msra.mxu0 0
  %7295 = vmatprep.subr.bf16.mxu0 0
  %7296 = vmatpush1.bf16.msra.mxu0 0
  %7297 = vmatprep.subr.bf16.mxu0 0
  %7298 = vmatpush1.bf16.msra.mxu0 0
  %7299 = vmatprep.subr.bf16.mxu0 0
  %7300 = vmatpush1.bf16.msra.mxu0 0
  %7301 = vmatprep.subr.bf16.mxu0 0
  %7302 = vmatpush1.bf16.msra.mxu0 0
  %7303 = vmatprep.subr.bf16.mxu0 0
  %7304 = vmatpush1.bf16.msra.mxu0 0
  %7305 = vmatprep.subr.bf16.mxu0 0
  %7306 = vmatpush1.bf16.msra.mxu0 0
  %7307 = vmatprep.subr.bf16.mxu0 0
  %7308 = vmatpush1.bf16.msra.mxu0 0
  %7309 = vmatprep.subr.bf16.mxu0 0
  %7310 = vmatpush1.bf16.msra.mxu0 0
  %7311 = vmatprep.subr.bf16.mxu0 0
  %7312 = vmatpush1.bf16.msra.mxu0 0
  %7313 = vmatprep.subr.bf16.mxu0 0
  %7314 = vmatpush1.bf16.msra.mxu0 0
  %7315 = vmatprep.subr.bf16.mxu0 0
  %7316 = vmatpush1.bf16.msra.mxu0 0
  %7317 = vmatprep.mubr.bf16.mxu0 0
  %7318 = vmatmul.mubr.bf16.gmra.mrb[0].mxu0 %v5115
  %v7319 = vpop.f32.mrb[0].mxu0
  %v7320 = vadd.f32 %v7271, %v7319
  %v7321 = vpop.f32.mrb[0].mxu0
  %v7322 = vpop.f32.mrb[0].mxu0
  %v7323 = vadd.f32 %v7271, %v7322
  %v7324 = vpop.f32.mrb[0].mxu0
  %7325 = vmatprep.mubr.bf16.mxu0 0
  %7326 = vmatmul.mubr.bf16.gmra.mrb[0].mxu0 %v5118
  %v7327 = vpop.f32.mrb[0].mxu0
  %v7328 = vadd.f32 %v7271, %v7327
  %v7329 = vpop.f32.mrb[0].mxu0
  %v7330 = vpop.f32.mrb[0].mxu0
  %v7331 = vadd.f32 %v7271, %v7330
  %v7332 = vpop.f32.mrb[0].mxu0
  %7333 = vdwg.mxu0
  %s7334 = scalar_lea.vmem %s45, 64
  %v7335 = vld [vmem:[%s7334] sm:$0xf]
  %v7336 = vld [vmem:[%s7334 + $0x4] sm:$0xf]
  %v7337 = vld [vmem:[%s7334 + $0x8] sm:$0xf]
  %v7338 = vld [vmem:[%s7334 + $0xc] sm:$0xf]
  %s7339 = scalar_lea.vmem %s47, 4
  %v7340 = vld [vmem:[%s7339] sm:$0x1]
  %v7342 = vlaneseq
  %v7343 = vshrl.u32 %v7342, 7
  %v7344 = vsub.s32 0, %v7343
  %v7345 = vrot.slane %v7340, %v7344
  %v7351 = vunpack.c.l.b16 %v7335
  %v7352 = vunpack.c.l.b16 %v7336
  %v7353 = vunpack.c.l.b16 %v7337
  %v7354 = vunpack.c.l.b16 %v7338
  %v7355 = vpack.c.b16 %v7352, %v7351
  %v7356 = vpack.c.b16 %v7354, %v7353
  %7359 = vmatprep.subr.bf16.mxu0 0
  %7360 = vmatpush1.bf16.msra.mxu0 %v7355
  %7361 = vmatprep.subr.bf16.mxu0 0
  %7362 = vmatpush1.bf16.msra.mxu0 %v7356
  %7363 = vmatprep.subr.bf16.mxu0 0
  %7364 = vmatpush1.bf16.msra.mxu0 0
  %7365 = vmatprep.subr.bf16.mxu0 0
  %7366 = vmatpush1.bf16.msra.mxu0 0
  %7367 = vmatprep.subr.bf16.mxu0 0
  %7368 = vmatpush1.bf16.msra.mxu0 0
  %7369 = vmatprep.subr.bf16.mxu0 0
  %7370 = vmatpush1.bf16.msra.mxu0 0
  %7371 = vmatprep.subr.bf16.mxu0 0
  %7372 = vmatpush1.bf16.msra.mxu0 0
  %7373 = vmatprep.subr.bf16.mxu0 0
  %7374 = vmatpush1.bf16.msra.mxu0 0
  %7375 = vmatprep.subr.bf16.mxu0 0
  %7376 = vmatpush1.bf16.msra.mxu0 0
  %7377 = vmatprep.subr.bf16.mxu0 0
  %7378 = vmatpush1.bf16.msra.mxu0 0
  %7379 = vmatprep.subr.bf16.mxu0 0
  %7380 = vmatpush1.bf16.msra.mxu0 0
  %7381 = vmatprep.subr.bf16.mxu0 0
  %7382 = vmatpush1.bf16.msra.mxu0 0
  %7383 = vmatprep.subr.bf16.mxu0 0
  %7384 = vmatpush1.bf16.msra.mxu0 0
  %7385 = vmatprep.subr.bf16.mxu0 0
  %7386 = vmatpush1.bf16.msra.mxu0 0
  %7387 = vmatprep.subr.bf16.mxu0 0
  %7388 = vmatpush1.bf16.msra.mxu0 0
  %7389 = vmatprep.subr.bf16.mxu0 0
  %7390 = vmatpush1.bf16.msra.mxu0 0
  %7391 = vmatprep.mubr.bf16.mxu0 0
  %7392 = vmatmul.mubr.bf16.gmra.mrb[0].mxu0 %v5115
  %v7393 = vpop.f32.mrb[0].mxu0
  %v7394 = vadd.f32 %v7345, %v7393
  %v7395 = vpop.f32.mrb[0].mxu0
  %v7396 = vpop.f32.mrb[0].mxu0
  %v7397 = vadd.f32 %v7345, %v7396
  %v7398 = vpop.f32.mrb[0].mxu0
  %7399 = vmatprep.mubr.bf16.mxu0 0
  %7400 = vmatmul.mubr.bf16.gmra.mrb[0].mxu0 %v5118
  %v7401 = vpop.f32.mrb[0].mxu0
  %v7402 = vadd.f32 %v7345, %v7401
  %v7403 = vpop.f32.mrb[0].mxu0
  %v7404 = vpop.f32.mrb[0].mxu0
  %v7405 = vadd.f32 %v7345, %v7404
  %v7406 = vpop.f32.mrb[0].mxu0
  %7407 = vdwg.mxu0
  %v7408 = vpack.c.bf16 %v7249, %v7246
  %v7409 = vpack.c.bf16 %v7257, %v7254
  %v7410 = vpack.c.bf16 %v7323, %v7320
  %v7411 = vpack.c.bf16 %v7331, %v7328
  %v7413 = vsel %vm715, %v7408, 0
  %v7416 = vsel %vm715, %v7410, 0
  %7418 = vmatprep.subr.bf16.mxu0 0
  %7419 = vmatpush1.bf16.xpose.msra.mxu0 %v7416
  %7420 = vmatprep.subr.bf16.mxu0 0
  %7421 = vmatpush1.bf16.xpose.msra.mxu0 0
  %7422 = vmatprep.subr.bf16.mxu0 0
  %7423 = vmatpush1.bf16.xpose.msra.mxu0 0
  %7424 = vmatprep.subr.bf16.mxu0 0
  %7425 = vmatpush1.bf16.xpose.msra.mxu0 0
  %7426 = vmatprep.subr.bf16.mxu0 0
  %7427 = vmatpush1.bf16.xpose.msra.mxu0 0
  %7428 = vmatprep.subr.bf16.mxu0 0
  %7429 = vmatpush1.bf16.xpose.msra.mxu0 0
  %7430 = vmatprep.subr.bf16.mxu0 0
  %7431 = vmatpush1.bf16.xpose.msra.mxu0 0
  %7432 = vmatprep.subr.bf16.mxu0 0
  %7433 = vmatpush1.bf16.xpose.msra.mxu0 0
  %7434 = vmatprep.subr.bf16.mxu0 0
  %7435 = vmatpush1.bf16.xpose.msra.mxu0 0
  %7436 = vmatprep.subr.bf16.mxu0 0
  %7437 = vmatpush1.bf16.xpose.msra.mxu0 0
  %7438 = vmatprep.subr.bf16.mxu0 0
  %7439 = vmatpush1.bf16.xpose.msra.mxu0 0
  %7440 = vmatprep.subr.bf16.mxu0 0
  %7441 = vmatpush1.bf16.xpose.msra.mxu0 0
  %7442 = vmatprep.subr.bf16.mxu0 0
  %7443 = vmatpush1.bf16.xpose.msra.mxu0 0
  %7444 = vmatprep.subr.bf16.mxu0 0
  %7445 = vmatpush1.bf16.xpose.msra.mxu0 0
  %7446 = vmatprep.subr.bf16.mxu0 0
  %7447 = vmatpush1.bf16.xpose.msra.mxu0 0
  %7448 = vmatprep.subr.bf16.mxu0 0
  %7449 = vmatpush1.bf16.xpose.msra.mxu0 0
  %7450 = vmatprep.mubr.bf16.mxu0 0
  %7451 = vmatmul.mubr.bf16.gmra.mrb[0].mxu0 %v7413
  %v7452 = vpop.f32.mrb[0].mxu0
  %v7453 = vadd.f32 0.0, %v7452
  %v7454 = vpop.f32.mrb[0].mxu0
  %v7455 = vpop.f32.mrb[0].mxu0
  %v7456 = vadd.f32 0.0, %v7455
  %v7457 = vpop.f32.mrb[0].mxu0
  %7458 = vdwg.mxu0
  %v7460 = vsel %vm715, %v7409, 0
  %v7463 = vsel %vm715, %v7411, 0
  %7465 = vmatprep.subr.bf16.mxu0 0
  %7466 = vmatpush1.bf16.xpose.msra.mxu0 %v7463
  %7467 = vmatprep.subr.bf16.mxu0 0
  %7468 = vmatpush1.bf16.xpose.msra.mxu0 0
  %7469 = vmatprep.subr.bf16.mxu0 0
  %7470 = vmatpush1.bf16.xpose.msra.mxu0 0
  %7471 = vmatprep.subr.bf16.mxu0 0
  %7472 = vmatpush1.bf16.xpose.msra.mxu0 0
  %7473 = vmatprep.subr.bf16.mxu0 0
  %7474 = vmatpush1.bf16.xpose.msra.mxu0 0
  %7475 = vmatprep.subr.bf16.mxu0 0
  %7476 = vmatpush1.bf16.xpose.msra.mxu0 0
  %7477 = vmatprep.subr.bf16.mxu0 0
  %7478 = vmatpush1.bf16.xpose.msra.mxu0 0
  %7479 = vmatprep.subr.bf16.mxu0 0
  %7480 = vmatpush1.bf16.xpose.msra.mxu0 0
  %7481 = vmatprep.subr.bf16.mxu0 0
  %7482 = vmatpush1.bf16.xpose.msra.mxu0 0
  %7483 = vmatprep.subr.bf16.mxu0 0
  %7484 = vmatpush1.bf16.xpose.msra.mxu0 0
  %7485 = vmatprep.subr.bf16.mxu0 0
  %7486 = vmatpush1.bf16.xpose.msra.mxu0 0
  %7487 = vmatprep.subr.bf16.mxu0 0
  %7488 = vmatpush1.bf16.xpose.msra.mxu0 0
  %7489 = vmatprep.subr.bf16.mxu0 0
  %7490 = vmatpush1.bf16.xpose.msra.mxu0 0
  %7491 = vmatprep.subr.bf16.mxu0 0
  %7492 = vmatpush1.bf16.xpose.msra.mxu0 0
  %7493 = vmatprep.subr.bf16.mxu0 0
  %7494 = vmatpush1.bf16.xpose.msra.mxu0 0
  %7495 = vmatprep.subr.bf16.mxu0 0
  %7496 = vmatpush1.bf16.xpose.msra.mxu0 0
  %7497 = vmatprep.mubr.bf16.mxu0 0
  %7498 = vmatmul.mubr.bf16.gmra.mrb[0].mxu0 %v7460
  %v7499 = vpop.f32.mrb[0].mxu0
  %v7500 = vadd.f32 0.0, %v7499
  %v7501 = vpop.f32.mrb[0].mxu0
  %v7502 = vpop.f32.mrb[0].mxu0
  %v7503 = vadd.f32 0.0, %v7502
  %v7504 = vpop.f32.mrb[0].mxu0
  %7505 = vdwg.mxu0
  %v7506 = vmul.f32 %v7453, 0.5
  %v7507 = vmul.f32 %v7456, 0.5
  %v7508 = vmul.f32 %v7500, 0.5
  %v7509 = vmul.f32 %v7503, 0.5
  %v7510 = vsel %vm814, %v7506, -inf
  %7511 = vmax.xlane.f32.xlu0 %v7510
  %v7512 = vpop.xlane.xlu0 %7511
  %v7513 = vsel %vm814, %v7507, -inf
  %7514 = vmax.xlane.f32.xlu0 %v7513
  %v7515 = vpop.xlane.xlu0 %7514
  %v7516 = vsel %vm814, %v7508, -inf
  %7517 = vmax.xlane.f32.xlu0 %v7516
  %v7518 = vpop.xlane.xlu0 %7517
  %v7519 = vsel %vm814, %v7509, -inf
  %7520 = vmax.xlane.f32.xlu0 %v7519
  %v7521 = vpop.xlane.xlu0 %7520
  %v7522 = vsub.f32 %v7506, %v7512
  %v7523 = vsub.f32 %v7507, %v7515
  %v7524 = vsub.f32 %v7508, %v7518
  %v7525 = vsub.f32 %v7509, %v7521
  %v7526 = vmul.f32 %v7522, 1.442695
  %v7527 = vpow.pop %v7526
  %v7528 = vmul.f32 %v7523, 1.442695
  %v7529 = vpow.pop %v7528
  %v7530 = vmul.f32 %v7524, 1.442695
  %v7531 = vpow.pop %v7530
  %v7532 = vmul.f32 %v7525, 1.442695
  %v7533 = vpow.pop %v7532
  %v7534 = vsel %vm814, %v7527, 0.0
  %7535 = vadd.xlane.f32.xlu0 %v7534
  %v7536 = vpop.xlane.xlu0 %7535
  %v7537 = vsel %vm814, %v7529, 0.0
  %7538 = vadd.xlane.f32.xlu0 %v7537
  %v7539 = vpop.xlane.xlu0 %7538
  %v7540 = vsel %vm814, %v7531, 0.0
  %7541 = vadd.xlane.f32.xlu0 %v7540
  %v7542 = vpop.xlane.xlu0 %7541
  %v7543 = vsel %vm814, %v7533, 0.0
  %7544 = vadd.xlane.f32.xlu0 %v7543
  %v7545 = vpop.xlane.xlu0 %7544
  %v7546 = vrcp.pop %v7536
  %v7547 = vrcp.pop %v7539
  %v7548 = vrcp.pop %v7542
  %v7549 = vrcp.pop %v7545
  %v7550 = vmul.f32 %v7527, %v7546
  %v7551 = vmul.f32 %v7529, %v7547
  %v7552 = vmul.f32 %v7531, %v7548
  %v7553 = vmul.f32 %v7533, %v7549
  %v7554 = vpack.c.bf16 %v7551, %v7550
  %v7555 = vpack.c.bf16 %v7553, %v7552
  %v7556 = vpack.c.bf16 %v7397, %v7394
  %v7557 = vpack.c.bf16 %v7405, %v7402
  %v7559 = vsel %vm814, %v7554, 0
  %7561 = vmatprep.subr.bf16.mxu0 0
  %7562 = vmatpush1.bf16.msra.mxu0 %v7556
  %7563 = vmatprep.subr.bf16.mxu0 0
  %7564 = vmatpush1.bf16.msra.mxu0 0
  %7565 = vmatprep.subr.bf16.mxu0 0
  %7566 = vmatpush1.bf16.msra.mxu0 0
  %7567 = vmatprep.subr.bf16.mxu0 0
  %7568 = vmatpush1.bf16.msra.mxu0 0
  %7569 = vmatprep.subr.bf16.mxu0 0
  %7570 = vmatpush1.bf16.msra.mxu0 0
  %7571 = vmatprep.subr.bf16.mxu0 0
  %7572 = vmatpush1.bf16.msra.mxu0 0
  %7573 = vmatprep.subr.bf16.mxu0 0
  %7574 = vmatpush1.bf16.msra.mxu0 0
  %7575 = vmatprep.subr.bf16.mxu0 0
  %7576 = vmatpush1.bf16.msra.mxu0 0
  %7577 = vmatprep.subr.bf16.mxu0 0
  %7578 = vmatpush1.bf16.msra.mxu0 0
  %7579 = vmatprep.subr.bf16.mxu0 0
  %7580 = vmatpush1.bf16.msra.mxu0 0
  %7581 = vmatprep.subr.bf16.mxu0 0
  %7582 = vmatpush1.bf16.msra.mxu0 0
  %7583 = vmatprep.subr.bf16.mxu0 0
  %7584 = vmatpush1.bf16.msra.mxu0 0
  %7585 = vmatprep.subr.bf16.mxu0 0
  %7586 = vmatpush1.bf16.msra.mxu0 0
  %7587 = vmatprep.subr.bf16.mxu0 0
  %7588 = vmatpush1.bf16.msra.mxu0 0
  %7589 = vmatprep.subr.bf16.mxu0 0
  %7590 = vmatpush1.bf16.msra.mxu0 0
  %7591 = vmatprep.subr.bf16.mxu0 0
  %7592 = vmatpush1.bf16.msra.mxu0 0
  %7593 = vmatprep.mubr.bf16.mxu0 0
  %7594 = vmatmul.mubr.bf16.gmra.mrb[0].mxu0 %v7559
  %v7595 = vpop.f32.mrb[0].mxu0
  %v7596 = vadd.f32 0.0, %v7595
  %v7597 = vpop.f32.mrb[0].mxu0
  %v7598 = vpop.f32.mrb[0].mxu0
  %v7599 = vadd.f32 0.0, %v7598
  %v7600 = vpop.f32.mrb[0].mxu0
  %7601 = vdwg.mxu0
  %v7603 = vsel %vm814, %v7555, 0
  %7605 = vmatprep.subr.bf16.mxu0 0
  %7606 = vmatpush1.bf16.msra.mxu0 %v7557
  %7607 = vmatprep.subr.bf16.mxu0 0
  %7608 = vmatpush1.bf16.msra.mxu0 0
  %7609 = vmatprep.subr.bf16.mxu0 0
  %7610 = vmatpush1.bf16.msra.mxu0 0
  %7611 = vmatprep.subr.bf16.mxu0 0
  %7612 = vmatpush1.bf16.msra.mxu0 0
  %7613 = vmatprep.subr.bf16.mxu0 0
  %7614 = vmatpush1.bf16.msra.mxu0 0
  %7615 = vmatprep.subr.bf16.mxu0 0
  %7616 = vmatpush1.bf16.msra.mxu0 0
  %7617 = vmatprep.subr.bf16.mxu0 0
  %7618 = vmatpush1.bf16.msra.mxu0 0
  %7619 = vmatprep.subr.bf16.mxu0 0
  %7620 = vmatpush1.bf16.msra.mxu0 0
  %7621 = vmatprep.subr.bf16.mxu0 0
  %7622 = vmatpush1.bf16.msra.mxu0 0
  %7623 = vmatprep.subr.bf16.mxu0 0
  %7624 = vmatpush1.bf16.msra.mxu0 0
  %7625 = vmatprep.subr.bf16.mxu0 0
  %7626 = vmatpush1.bf16.msra.mxu0 0
  %7627 = vmatprep.subr.bf16.mxu0 0
  %7628 = vmatpush1.bf16.msra.mxu0 0
  %7629 = vmatprep.subr.bf16.mxu0 0
  %7630 = vmatpush1.bf16.msra.mxu0 0
  %7631 = vmatprep.subr.bf16.mxu0 0
  %7632 = vmatpush1.bf16.msra.mxu0 0
  %7633 = vmatprep.subr.bf16.mxu0 0
  %7634 = vmatpush1.bf16.msra.mxu0 0
  %7635 = vmatprep.subr.bf16.mxu0 0
  %7636 = vmatpush1.bf16.msra.mxu0 0
  %7637 = vmatprep.mubr.bf16.mxu0 0
  %7638 = vmatmul.mubr.bf16.gmra.mrb[0].mxu0 %v7603
  %v7639 = vpop.f32.mrb[0].mxu0
  %v7640 = vadd.f32 0.0, %v7639
  %v7641 = vpop.f32.mrb[0].mxu0
  %v7642 = vpop.f32.mrb[0].mxu0
  %v7643 = vadd.f32 0.0, %v7642
  %v7644 = vpop.f32.mrb[0].mxu0
  %7645 = vdwg.mxu0
  %v7646 = vpack.c.bf16 %v7599, %v7596
  %v7647 = vpack.c.bf16 %v7643, %v7640
  %s7648 = scalar_lea.vmem %s49, 8
  %v7649 = vld [vmem:[%s7648] sm:$0x3]
  %v7651 = vsel %vm715, %v7646, 0
  %v7654 = vsel %vm715, %v7647, 0
  %v7657 = vsel %vm1424, %v7649, 0
  %7659 = vmatprep.subr.bf16.mxu0 0
  %7660 = vmatpush1.bf16.msra.mxu0 %v7657
  %7661 = vmatprep.subr.bf16.mxu0 0
  %7662 = vmatpush1.bf16.msra.mxu0 0
  %7663 = vmatprep.subr.bf16.mxu0 0
  %7664 = vmatpush1.bf16.msra.mxu0 0
  %7665 = vmatprep.subr.bf16.mxu0 0
  %7666 = vmatpush1.bf16.msra.mxu0 0
  %7667 = vmatprep.subr.bf16.mxu0 0
  %7668 = vmatpush1.bf16.msra.mxu0 0
  %7669 = vmatprep.subr.bf16.mxu0 0
  %7670 = vmatpush1.bf16.msra.mxu0 0
  %7671 = vmatprep.subr.bf16.mxu0 0
  %7672 = vmatpush1.bf16.msra.mxu0 0
  %7673 = vmatprep.subr.bf16.mxu0 0
  %7674 = vmatpush1.bf16.msra.mxu0 0
  %7675 = vmatprep.subr.bf16.mxu0 0
  %7676 = vmatpush1.bf16.msra.mxu0 0
  %7677 = vmatprep.subr.bf16.mxu0 0
  %7678 = vmatpush1.bf16.msra.mxu0 0
  %7679 = vmatprep.subr.bf16.mxu0 0
  %7680 = vmatpush1.bf16.msra.mxu0 0
  %7681 = vmatprep.subr.bf16.mxu0 0
  %7682 = vmatpush1.bf16.msra.mxu0 0
  %7683 = vmatprep.subr.bf16.mxu0 0
  %7684 = vmatpush1.bf16.msra.mxu0 0
  %7685 = vmatprep.subr.bf16.mxu0 0
  %7686 = vmatpush1.bf16.msra.mxu0 0
  %7687 = vmatprep.subr.bf16.mxu0 0
  %7688 = vmatpush1.bf16.msra.mxu0 0
  %7689 = vmatprep.subr.bf16.mxu0 0
  %7690 = vmatpush1.bf16.msra.mxu0 0
  %7691 = vmatprep.mubr.bf16.mxu0 0
  %7692 = vmatmul.mubr.bf16.gmra.mrb[0].mxu0 %v7651
  %v7693 = vpop.f32.mrb[0].mxu0
  %v7694 = vadd.f32 0.0, %v7693
  %v7695 = vpop.f32.mrb[0].mxu0
  %v7696 = vpop.f32.mrb[0].mxu0
  %v7697 = vadd.f32 0.0, %v7696
  %v7698 = vpop.f32.mrb[0].mxu0
  %7699 = vmatprep.mubr.bf16.mxu0 0
  %7700 = vmatmul.mubr.bf16.gmra.mrb[0].mxu0 %v7654
  %v7701 = vpop.f32.mrb[0].mxu0
  %v7702 = vadd.f32 0.0, %v7701
  %v7703 = vpop.f32.mrb[0].mxu0
  %v7704 = vpop.f32.mrb[0].mxu0
  %v7705 = vadd.f32 0.0, %v7704
  %v7706 = vpop.f32.mrb[0].mxu0
  %7707 = vdwg.mxu0
  %v7708 = vadd.f32 %v7182, %v7694
  %v7709 = vadd.f32 %v7183, %v7697
  %v7710 = vadd.f32 %v7184, %v7702
  %v7711 = vadd.f32 %v7185, %v7705
  %s7712 = scalar_lea.vmem %s37, 80
  %v7713 = vld [vmem:[%s7712] sm:$0xf]
  %v7714 = vld [vmem:[%s7712 + $0x4] sm:$0xf]
  %v7715 = vld [vmem:[%s7712 + $0x8] sm:$0xf]
  %v7716 = vld [vmem:[%s7712 + $0xc] sm:$0xf]
  %s7717 = scalar_lea.vmem %s39, 5
  %v7718 = vld [vmem:[%s7717] sm:$0x1]
  %v7720 = vlaneseq
  %v7721 = vshrl.u32 %v7720, 7
  %v7722 = vsub.s32 0, %v7721
  %v7723 = vrot.slane %v7718, %v7722
  %v7729 = vunpack.c.l.b16 %v7713
  %v7730 = vunpack.c.l.b16 %v7714
  %v7731 = vunpack.c.l.b16 %v7715
  %v7732 = vunpack.c.l.b16 %v7716
  %v7733 = vpack.c.b16 %v7730, %v7729
  %v7734 = vpack.c.b16 %v7732, %v7731
  %7737 = vmatprep.subr.bf16.mxu0 0
  %7738 = vmatpush1.bf16.msra.mxu0 %v7733
  %7739 = vmatprep.subr.bf16.mxu0 0
  %7740 = vmatpush1.bf16.msra.mxu0 %v7734
  %7741 = vmatprep.subr.bf16.mxu0 0
  %7742 = vmatpush1.bf16.msra.mxu0 0
  %7743 = vmatprep.subr.bf16.mxu0 0
  %7744 = vmatpush1.bf16.msra.mxu0 0
  %7745 = vmatprep.subr.bf16.mxu0 0
  %7746 = vmatpush1.bf16.msra.mxu0 0
  %7747 = vmatprep.subr.bf16.mxu0 0
  %7748 = vmatpush1.bf16.msra.mxu0 0
  %7749 = vmatprep.subr.bf16.mxu0 0
  %7750 = vmatpush1.bf16.msra.mxu0 0
  %7751 = vmatprep.subr.bf16.mxu0 0
  %7752 = vmatpush1.bf16.msra.mxu0 0
  %7753 = vmatprep.subr.bf16.mxu0 0
  %7754 = vmatpush1.bf16.msra.mxu0 0
  %7755 = vmatprep.subr.bf16.mxu0 0
  %7756 = vmatpush1.bf16.msra.mxu0 0
  %7757 = vmatprep.subr.bf16.mxu0 0
  %7758 = vmatpush1.bf16.msra.mxu0 0
  %7759 = vmatprep.subr.bf16.mxu0 0
  %7760 = vmatpush1.bf16.msra.mxu0 0
  %7761 = vmatprep.subr.bf16.mxu0 0
  %7762 = vmatpush1.bf16.msra.mxu0 0
  %7763 = vmatprep.subr.bf16.mxu0 0
  %7764 = vmatpush1.bf16.msra.mxu0 0
  %7765 = vmatprep.subr.bf16.mxu0 0
  %7766 = vmatpush1.bf16.msra.mxu0 0
  %7767 = vmatprep.subr.bf16.mxu0 0
  %7768 = vmatpush1.bf16.msra.mxu0 0
  %7769 = vmatprep.mubr.bf16.mxu0 0
  %7770 = vmatmul.mubr.bf16.gmra.mrb[0].mxu0 %v5115
  %v7771 = vpop.f32.mrb[0].mxu0
  %v7772 = vadd.f32 %v7723, %v7771
  %v7773 = vpop.f32.mrb[0].mxu0
  %v7774 = vpop.f32.mrb[0].mxu0
  %v7775 = vadd.f32 %v7723, %v7774
  %v7776 = vpop.f32.mrb[0].mxu0
  %7777 = vmatprep.mubr.bf16.mxu0 0
  %7778 = vmatmul.mubr.bf16.gmra.mrb[0].mxu0 %v5118
  %v7779 = vpop.f32.mrb[0].mxu0
  %v7780 = vadd.f32 %v7723, %v7779
  %v7781 = vpop.f32.mrb[0].mxu0
  %v7782 = vpop.f32.mrb[0].mxu0
  %v7783 = vadd.f32 %v7723, %v7782
  %v7784 = vpop.f32.mrb[0].mxu0
  %7785 = vdwg.mxu0
  %s7786 = scalar_lea.vmem %s41, 80
  %v7787 = vld [vmem:[%s7786] sm:$0xf]
  %v7788 = vld [vmem:[%s7786 + $0x4] sm:$0xf]
  %v7789 = vld [vmem:[%s7786 + $0x8] sm:$0xf]
  %v7790 = vld [vmem:[%s7786 + $0xc] sm:$0xf]
  %s7791 = scalar_lea.vmem %s43, 5
  %v7792 = vld [vmem:[%s7791] sm:$0x1]
  %v7794 = vlaneseq
  %v7795 = vshrl.u32 %v7794, 7
  %v7796 = vsub.s32 0, %v7795
  %v7797 = vrot.slane %v7792, %v7796
  %v7803 = vunpack.c.l.b16 %v7787
  %v7804 = vunpack.c.l.b16 %v7788
  %v7805 = vunpack.c.l.b16 %v7789
  %v7806 = vunpack.c.l.b16 %v7790
  %v7807 = vpack.c.b16 %v7804, %v7803
  %v7808 = vpack.c.b16 %v7806, %v7805
  %7811 = vmatprep.subr.bf16.mxu0 0
  %7812 = vmatpush1.bf16.msra.mxu0 %v7807
  %7813 = vmatprep.subr.bf16.mxu0 0
  %7814 = vmatpush1.bf16.msra.mxu0 %v7808
  %7815 = vmatprep.subr.bf16.mxu0 0
  %7816 = vmatpush1.bf16.msra.mxu0 0
  %7817 = vmatprep.subr.bf16.mxu0 0
  %7818 = vmatpush1.bf16.msra.mxu0 0
  %7819 = vmatprep.subr.bf16.mxu0 0
  %7820 = vmatpush1.bf16.msra.mxu0 0
  %7821 = vmatprep.subr.bf16.mxu0 0
  %7822 = vmatpush1.bf16.msra.mxu0 0
  %7823 = vmatprep.subr.bf16.mxu0 0
  %7824 = vmatpush1.bf16.msra.mxu0 0
  %7825 = vmatprep.subr.bf16.mxu0 0
  %7826 = vmatpush1.bf16.msra.mxu0 0
  %7827 = vmatprep.subr.bf16.mxu0 0
  %7828 = vmatpush1.bf16.msra.mxu0 0
  %7829 = vmatprep.subr.bf16.mxu0 0
  %7830 = vmatpush1.bf16.msra.mxu0 0
  %7831 = vmatprep.subr.bf16.mxu0 0
  %7832 = vmatpush1.bf16.msra.mxu0 0
  %7833 = vmatprep.subr.bf16.mxu0 0
  %7834 = vmatpush1.bf16.msra.mxu0 0
  %7835 = vmatprep.subr.bf16.mxu0 0
  %7836 = vmatpush1.bf16.msra.mxu0 0
  %7837 = vmatprep.subr.bf16.mxu0 0
  %7838 = vmatpush1.bf16.msra.mxu0 0
  %7839 = vmatprep.subr.bf16.mxu0 0
  %7840 = vmatpush1.bf16.msra.mxu0 0
  %7841 = vmatprep.subr.bf16.mxu0 0
  %7842 = vmatpush1.bf16.msra.mxu0 0
  %7843 = vmatprep.mubr.bf16.mxu0 0
  %7844 = vmatmul.mubr.bf16.gmra.mrb[0].mxu0 %v5115
  %v7845 = vpop.f32.mrb[0].mxu0
  %v7846 = vadd.f32 %v7797, %v7845
  %v7847 = vpop.f32.mrb[0].mxu0
  %v7848 = vpop.f32.mrb[0].mxu0
  %v7849 = vadd.f32 %v7797, %v7848
  %v7850 = vpop.f32.mrb[0].mxu0
  %7851 = vmatprep.mubr.bf16.mxu0 0
  %7852 = vmatmul.mubr.bf16.gmra.mrb[0].mxu0 %v5118
  %v7853 = vpop.f32.mrb[0].mxu0
  %v7854 = vadd.f32 %v7797, %v7853
  %v7855 = vpop.f32.mrb[0].mxu0
  %v7856 = vpop.f32.mrb[0].mxu0
  %v7857 = vadd.f32 %v7797, %v7856
  %v7858 = vpop.f32.mrb[0].mxu0
  %7859 = vdwg.mxu0
  %s7860 = scalar_lea.vmem %s45, 80
  %v7861 = vld [vmem:[%s7860] sm:$0xf]
  %v7862 = vld [vmem:[%s7860 + $0x4] sm:$0xf]
  %v7863 = vld [vmem:[%s7860 + $0x8] sm:$0xf]
  %v7864 = vld [vmem:[%s7860 + $0xc] sm:$0xf]
  %s7865 = scalar_lea.vmem %s47, 5
  %v7866 = vld [vmem:[%s7865] sm:$0x1]
  %v7868 = vlaneseq
  %v7869 = vshrl.u32 %v7868, 7
  %v7870 = vsub.s32 0, %v7869
  %v7871 = vrot.slane %v7866, %v7870
  %v7877 = vunpack.c.l.b16 %v7861
  %v7878 = vunpack.c.l.b16 %v7862
  %v7879 = vunpack.c.l.b16 %v7863
  %v7880 = vunpack.c.l.b16 %v7864
  %v7881 = vpack.c.b16 %v7878, %v7877
  %v7882 = vpack.c.b16 %v7880, %v7879
  %7885 = vmatprep.subr.bf16.mxu0 0
  %7886 = vmatpush1.bf16.msra.mxu0 %v7881
  %7887 = vmatprep.subr.bf16.mxu0 0
  %7888 = vmatpush1.bf16.msra.mxu0 %v7882
  %7889 = vmatprep.subr.bf16.mxu0 0
  %7890 = vmatpush1.bf16.msra.mxu0 0
  %7891 = vmatprep.subr.bf16.mxu0 0
  %7892 = vmatpush1.bf16.msra.mxu0 0
  %7893 = vmatprep.subr.bf16.mxu0 0
  %7894 = vmatpush1.bf16.msra.mxu0 0
  %7895 = vmatprep.subr.bf16.mxu0 0
  %7896 = vmatpush1.bf16.msra.mxu0 0
  %7897 = vmatprep.subr.bf16.mxu0 0
  %7898 = vmatpush1.bf16.msra.mxu0 0
  %7899 = vmatprep.subr.bf16.mxu0 0
  %7900 = vmatpush1.bf16.msra.mxu0 0
  %7901 = vmatprep.subr.bf16.mxu0 0
  %7902 = vmatpush1.bf16.msra.mxu0 0
  %7903 = vmatprep.subr.bf16.mxu0 0
  %7904 = vmatpush1.bf16.msra.mxu0 0
  %7905 = vmatprep.subr.bf16.mxu0 0
  %7906 = vmatpush1.bf16.msra.mxu0 0
  %7907 = vmatprep.subr.bf16.mxu0 0
  %7908 = vmatpush1.bf16.msra.mxu0 0
  %7909 = vmatprep.subr.bf16.mxu0 0
  %7910 = vmatpush1.bf16.msra.mxu0 0
  %7911 = vmatprep.subr.bf16.mxu0 0
  %7912 = vmatpush1.bf16.msra.mxu0 0
  %7913 = vmatprep.subr.bf16.mxu0 0
  %7914 = vmatpush1.bf16.msra.mxu0 0
  %7915 = vmatprep.subr.bf16.mxu0 0
  %7916 = vmatpush1.bf16.msra.mxu0 0
  %7917 = vmatprep.mubr.bf16.mxu0 0
  %7918 = vmatmul.mubr.bf16.gmra.mrb[0].mxu0 %v5115
  %v7919 = vpop.f32.mrb[0].mxu0
  %v7920 = vadd.f32 %v7871, %v7919
  %v7921 = vpop.f32.mrb[0].mxu0
  %v7922 = vpop.f32.mrb[0].mxu0
  %v7923 = vadd.f32 %v7871, %v7922
  %v7924 = vpop.f32.mrb[0].mxu0
  %7925 = vmatprep.mubr.bf16.mxu0 0
  %7926 = vmatmul.mubr.bf16.gmra.mrb[0].mxu0 %v5118
  %v7927 = vpop.f32.mrb[0].mxu0
  %v7928 = vadd.f32 %v7871, %v7927
  %v7929 = vpop.f32.mrb[0].mxu0
  %v7930 = vpop.f32.mrb[0].mxu0
  %v7931 = vadd.f32 %v7871, %v7930
  %v7932 = vpop.f32.mrb[0].mxu0
  %7933 = vdwg.mxu0
  %v7934 = vpack.c.bf16 %v7775, %v7772
  %v7935 = vpack.c.bf16 %v7783, %v7780
  %v7936 = vpack.c.bf16 %v7849, %v7846
  %v7937 = vpack.c.bf16 %v7857, %v7854
  %v7939 = vsel %vm715, %v7934, 0
  %v7942 = vsel %vm715, %v7936, 0
  %7944 = vmatprep.subr.bf16.mxu0 0
  %7945 = vmatpush1.bf16.xpose.msra.mxu0 %v7942
  %7946 = vmatprep.subr.bf16.mxu0 0
  %7947 = vmatpush1.bf16.xpose.msra.mxu0 0
  %7948 = vmatprep.subr.bf16.mxu0 0
  %7949 = vmatpush1.bf16.xpose.msra.mxu0 0
  %7950 = vmatprep.subr.bf16.mxu0 0
  %7951 = vmatpush1.bf16.xpose.msra.mxu0 0
  %7952 = vmatprep.subr.bf16.mxu0 0
  %7953 = vmatpush1.bf16.xpose.msra.mxu0 0
  %7954 = vmatprep.subr.bf16.mxu0 0
  %7955 = vmatpush1.bf16.xpose.msra.mxu0 0
  %7956 = vmatprep.subr.bf16.mxu0 0
  %7957 = vmatpush1.bf16.xpose.msra.mxu0 0
  %7958 = vmatprep.subr.bf16.mxu0 0
  %7959 = vmatpush1.bf16.xpose.msra.mxu0 0
  %7960 = vmatprep.subr.bf16.mxu0 0
  %7961 = vmatpush1.bf16.xpose.msra.mxu0 0
  %7962 = vmatprep.subr.bf16.mxu0 0
  %7963 = vmatpush1.bf16.xpose.msra.mxu0 0
  %7964 = vmatprep.subr.bf16.mxu0 0
  %7965 = vmatpush1.bf16.xpose.msra.mxu0 0
  %7966 = vmatprep.subr.bf16.mxu0 0
  %7967 = vmatpush1.bf16.xpose.msra.mxu0 0
  %7968 = vmatprep.subr.bf16.mxu0 0
  %7969 = vmatpush1.bf16.xpose.msra.mxu0 0
  %7970 = vmatprep.subr.bf16.mxu0 0
  %7971 = vmatpush1.bf16.xpose.msra.mxu0 0
  %7972 = vmatprep.subr.bf16.mxu0 0
  %7973 = vmatpush1.bf16.xpose.msra.mxu0 0
  %7974 = vmatprep.subr.bf16.mxu0 0
  %7975 = vmatpush1.bf16.xpose.msra.mxu0 0
  %7976 = vmatprep.mubr.bf16.mxu0 0
  %7977 = vmatmul.mubr.bf16.gmra.mrb[0].mxu0 %v7939
  %v7978 = vpop.f32.mrb[0].mxu0
  %v7979 = vadd.f32 0.0, %v7978
  %v7980 = vpop.f32.mrb[0].mxu0
  %v7981 = vpop.f32.mrb[0].mxu0
  %v7982 = vadd.f32 0.0, %v7981
  %v7983 = vpop.f32.mrb[0].mxu0
  %7984 = vdwg.mxu0
  %v7986 = vsel %vm715, %v7935, 0
  %v7989 = vsel %vm715, %v7937, 0
  %7991 = vmatprep.subr.bf16.mxu0 0
  %7992 = vmatpush1.bf16.xpose.msra.mxu0 %v7989
  %7993 = vmatprep.subr.bf16.mxu0 0
  %7994 = vmatpush1.bf16.xpose.msra.mxu0 0
  %7995 = vmatprep.subr.bf16.mxu0 0
  %7996 = vmatpush1.bf16.xpose.msra.mxu0 0
  %7997 = vmatprep.subr.bf16.mxu0 0
  %7998 = vmatpush1.bf16.xpose.msra.mxu0 0
  %7999 = vmatprep.subr.bf16.mxu0 0
  %8000 = vmatpush1.bf16.xpose.msra.mxu0 0
  %8001 = vmatprep.subr.bf16.mxu0 0
  %8002 = vmatpush1.bf16.xpose.msra.mxu0 0
  %8003 = vmatprep.subr.bf16.mxu0 0
  %8004 = vmatpush1.bf16.xpose.msra.mxu0 0
  %8005 = vmatprep.subr.bf16.mxu0 0
  %8006 = vmatpush1.bf16.xpose.msra.mxu0 0
  %8007 = vmatprep.subr.bf16.mxu0 0
  %8008 = vmatpush1.bf16.xpose.msra.mxu0 0
  %8009 = vmatprep.subr.bf16.mxu0 0
  %8010 = vmatpush1.bf16.xpose.msra.mxu0 0
  %8011 = vmatprep.subr.bf16.mxu0 0
  %8012 = vmatpush1.bf16.xpose.msra.mxu0 0
  %8013 = vmatprep.subr.bf16.mxu0 0
  %8014 = vmatpush1.bf16.xpose.msra.mxu0 0
  %8015 = vmatprep.subr.bf16.mxu0 0
  %8016 = vmatpush1.bf16.xpose.msra.mxu0 0
  %8017 = vmatprep.subr.bf16.mxu0 0
  %8018 = vmatpush1.bf16.xpose.msra.mxu0 0
  %8019 = vmatprep.subr.bf16.mxu0 0
  %8020 = vmatpush1.bf16.xpose.msra.mxu0 0
  %8021 = vmatprep.subr.bf16.mxu0 0
  %8022 = vmatpush1.bf16.xpose.msra.mxu0 0
  %8023 = vmatprep.mubr.bf16.mxu0 0
  %8024 = vmatmul.mubr.bf16.gmra.mrb[0].mxu0 %v7986
  %v8025 = vpop.f32.mrb[0].mxu0
  %v8026 = vadd.f32 0.0, %v8025
  %v8027 = vpop.f32.mrb[0].mxu0
  %v8028 = vpop.f32.mrb[0].mxu0
  %v8029 = vadd.f32 0.0, %v8028
  %v8030 = vpop.f32.mrb[0].mxu0
  %8031 = vdwg.mxu0
  %v8032 = vmul.f32 %v7979, 0.5
  %v8033 = vmul.f32 %v7982, 0.5
  %v8034 = vmul.f32 %v8026, 0.5
  %v8035 = vmul.f32 %v8029, 0.5
  %v8036 = vsel %vm814, %v8032, -inf
  %8037 = vmax.xlane.f32.xlu0 %v8036
  %v8038 = vpop.xlane.xlu0 %8037
  %v8039 = vsel %vm814, %v8033, -inf
  %8040 = vmax.xlane.f32.xlu0 %v8039
  %v8041 = vpop.xlane.xlu0 %8040
  %v8042 = vsel %vm814, %v8034, -inf
  %8043 = vmax.xlane.f32.xlu0 %v8042
  %v8044 = vpop.xlane.xlu0 %8043
  %v8045 = vsel %vm814, %v8035, -inf
  %8046 = vmax.xlane.f32.xlu0 %v8045
  %v8047 = vpop.xlane.xlu0 %8046
  %v8048 = vsub.f32 %v8032, %v8038
  %v8049 = vsub.f32 %v8033, %v8041
  %v8050 = vsub.f32 %v8034, %v8044
  %v8051 = vsub.f32 %v8035, %v8047
  %v8052 = vmul.f32 %v8048, 1.442695
  %v8053 = vpow.pop %v8052
  %v8054 = vmul.f32 %v8049, 1.442695
  %v8055 = vpow.pop %v8054
  %v8056 = vmul.f32 %v8050, 1.442695
  %v8057 = vpow.pop %v8056
  %v8058 = vmul.f32 %v8051, 1.442695
  %v8059 = vpow.pop %v8058
  %v8060 = vsel %vm814, %v8053, 0.0
  %8061 = vadd.xlane.f32.xlu0 %v8060
  %v8062 = vpop.xlane.xlu0 %8061
  %v8063 = vsel %vm814, %v8055, 0.0
  %8064 = vadd.xlane.f32.xlu0 %v8063
  %v8065 = vpop.xlane.xlu0 %8064
  %v8066 = vsel %vm814, %v8057, 0.0
  %8067 = vadd.xlane.f32.xlu0 %v8066
  %v8068 = vpop.xlane.xlu0 %8067
  %v8069 = vsel %vm814, %v8059, 0.0
  %8070 = vadd.xlane.f32.xlu0 %v8069
  %v8071 = vpop.xlane.xlu0 %8070
  %v8072 = vrcp.pop %v8062
  %v8073 = vrcp.pop %v8065
  %v8074 = vrcp.pop %v8068
  %v8075 = vrcp.pop %v8071
  %v8076 = vmul.f32 %v8053, %v8072
  %v8077 = vmul.f32 %v8055, %v8073
  %v8078 = vmul.f32 %v8057, %v8074
  %v8079 = vmul.f32 %v8059, %v8075
  %v8080 = vpack.c.bf16 %v8077, %v8076
  %v8081 = vpack.c.bf16 %v8079, %v8078
  %v8082 = vpack.c.bf16 %v7923, %v7920
  %v8083 = vpack.c.bf16 %v7931, %v7928
  %v8085 = vsel %vm814, %v8080, 0
  %8087 = vmatprep.subr.bf16.mxu0 0
  %8088 = vmatpush1.bf16.msra.mxu0 %v8082
  %8089 = vmatprep.subr.bf16.mxu0 0
  %8090 = vmatpush1.bf16.msra.mxu0 0
  %8091 = vmatprep.subr.bf16.mxu0 0
  %8092 = vmatpush1.bf16.msra.mxu0 0
  %8093 = vmatprep.subr.bf16.mxu0 0
  %8094 = vmatpush1.bf16.msra.mxu0 0
  %8095 = vmatprep.subr.bf16.mxu0 0
  %8096 = vmatpush1.bf16.msra.mxu0 0
  %8097 = vmatprep.subr.bf16.mxu0 0
  %8098 = vmatpush1.bf16.msra.mxu0 0
  %8099 = vmatprep.subr.bf16.mxu0 0
  %8100 = vmatpush1.bf16.msra.mxu0 0
  %8101 = vmatprep.subr.bf16.mxu0 0
  %8102 = vmatpush1.bf16.msra.mxu0 0
  %8103 = vmatprep.subr.bf16.mxu0 0
  %8104 = vmatpush1.bf16.msra.mxu0 0
  %8105 = vmatprep.subr.bf16.mxu0 0
  %8106 = vmatpush1.bf16.msra.mxu0 0
  %8107 = vmatprep.subr.bf16.mxu0 0
  %8108 = vmatpush1.bf16.msra.mxu0 0
  %8109 = vmatprep.subr.bf16.mxu0 0
  %8110 = vmatpush1.bf16.msra.mxu0 0
  %8111 = vmatprep.subr.bf16.mxu0 0
  %8112 = vmatpush1.bf16.msra.mxu0 0
  %8113 = vmatprep.subr.bf16.mxu0 0
  %8114 = vmatpush1.bf16.msra.mxu0 0
  %8115 = vmatprep.subr.bf16.mxu0 0
  %8116 = vmatpush1.bf16.msra.mxu0 0
  %8117 = vmatprep.subr.bf16.mxu0 0
  %8118 = vmatpush1.bf16.msra.mxu0 0
  %8119 = vmatprep.mubr.bf16.mxu0 0
  %8120 = vmatmul.mubr.bf16.gmra.mrb[0].mxu0 %v8085
  %v8121 = vpop.f32.mrb[0].mxu0
  %v8122 = vadd.f32 0.0, %v8121
  %v8123 = vpop.f32.mrb[0].mxu0
  %v8124 = vpop.f32.mrb[0].mxu0
  %v8125 = vadd.f32 0.0, %v8124
  %v8126 = vpop.f32.mrb[0].mxu0
  %8127 = vdwg.mxu0
  %v8129 = vsel %vm814, %v8081, 0
  %8131 = vmatprep.subr.bf16.mxu0 0
  %8132 = vmatpush1.bf16.msra.mxu0 %v8083
  %8133 = vmatprep.subr.bf16.mxu0 0
  %8134 = vmatpush1.bf16.msra.mxu0 0
  %8135 = vmatprep.subr.bf16.mxu0 0
  %8136 = vmatpush1.bf16.msra.mxu0 0
  %8137 = vmatprep.subr.bf16.mxu0 0
  %8138 = vmatpush1.bf16.msra.mxu0 0
  %8139 = vmatprep.subr.bf16.mxu0 0
  %8140 = vmatpush1.bf16.msra.mxu0 0
  %8141 = vmatprep.subr.bf16.mxu0 0
  %8142 = vmatpush1.bf16.msra.mxu0 0
  %8143 = vmatprep.subr.bf16.mxu0 0
  %8144 = vmatpush1.bf16.msra.mxu0 0
  %8145 = vmatprep.subr.bf16.mxu0 0
  %8146 = vmatpush1.bf16.msra.mxu0 0
  %8147 = vmatprep.subr.bf16.mxu0 0
  %8148 = vmatpush1.bf16.msra.mxu0 0
  %8149 = vmatprep.subr.bf16.mxu0 0
  %8150 = vmatpush1.bf16.msra.mxu0 0
  %8151 = vmatprep.subr.bf16.mxu0 0
  %8152 = vmatpush1.bf16.msra.mxu0 0
  %8153 = vmatprep.subr.bf16.mxu0 0
  %8154 = vmatpush1.bf16.msra.mxu0 0
  %8155 = vmatprep.subr.bf16.mxu0 0
  %8156 = vmatpush1.bf16.msra.mxu0 0
  %8157 = vmatprep.subr.bf16.mxu0 0
  %8158 = vmatpush1.bf16.msra.mxu0 0
  %8159 = vmatprep.subr.bf16.mxu0 0
  %8160 = vmatpush1.bf16.msra.mxu0 0
  %8161 = vmatprep.subr.bf16.mxu0 0
  %8162 = vmatpush1.bf16.msra.mxu0 0
  %8163 = vmatprep.mubr.bf16.mxu0 0
  %8164 = vmatmul.mubr.bf16.gmra.mrb[0].mxu0 %v8129
  %v8165 = vpop.f32.mrb[0].mxu0
  %v8166 = vadd.f32 0.0, %v8165
  %v8167 = vpop.f32.mrb[0].mxu0
  %v8168 = vpop.f32.mrb[0].mxu0
  %v8169 = vadd.f32 0.0, %v8168
  %v8170 = vpop.f32.mrb[0].mxu0
  %8171 = vdwg.mxu0
  %v8172 = vpack.c.bf16 %v8125, %v8122
  %v8173 = vpack.c.bf16 %v8169, %v8166
  %s8174 = scalar_lea.vmem %s49, 10
  %v8175 = vld [vmem:[%s8174] sm:$0x3]
  %v8177 = vsel %vm715, %v8172, 0
  %v8180 = vsel %vm715, %v8173, 0
  %v8183 = vsel %vm1424, %v8175, 0
  %8185 = vmatprep.subr.bf16.mxu0 0
  %8186 = vmatpush1.bf16.msra.mxu0 %v8183
  %8187 = vmatprep.subr.bf16.mxu0 0
  %8188 = vmatpush1.bf16.msra.mxu0 0
  %8189 = vmatprep.subr.bf16.mxu0 0
  %8190 = vmatpush1.bf16.msra.mxu0 0
  %8191 = vmatprep.subr.bf16.mxu0 0
  %8192 = vmatpush1.bf16.msra.mxu0 0
  %8193 = vmatprep.subr.bf16.mxu0 0
  %8194 = vmatpush1.bf16.msra.mxu0 0
  %8195 = vmatprep.subr.bf16.mxu0 0
  %8196 = vmatpush1.bf16.msra.mxu0 0
  %8197 = vmatprep.subr.bf16.mxu0 0
  %8198 = vmatpush1.bf16.msra.mxu0 0
  %8199 = vmatprep.subr.bf16.mxu0 0
  %8200 = vmatpush1.bf16.msra.mxu0 0
  %8201 = vmatprep.subr.bf16.mxu0 0
  %8202 = vmatpush1.bf16.msra.mxu0 0
  %8203 = vmatprep.subr.bf16.mxu0 0
  %8204 = vmatpush1.bf16.msra.mxu0 0
  %8205 = vmatprep.subr.bf16.mxu0 0
  %8206 = vmatpush1.bf16.msra.mxu0 0
  %8207 = vmatprep.subr.bf16.mxu0 0
  %8208 = vmatpush1.bf16.msra.mxu0 0
  %8209 = vmatprep.subr.bf16.mxu0 0
  %8210 = vmatpush1.bf16.msra.mxu0 0
  %8211 = vmatprep.subr.bf16.mxu0 0
  %8212 = vmatpush1.bf16.msra.mxu0 0
  %8213 = vmatprep.subr.bf16.mxu0 0
  %8214 = vmatpush1.bf16.msra.mxu0 0
  %8215 = vmatprep.subr.bf16.mxu0 0
  %8216 = vmatpush1.bf16.msra.mxu0 0
  %8217 = vmatprep.mubr.bf16.mxu0 0
  %8218 = vmatmul.mubr.bf16.gmra.mrb[0].mxu0 %v8177
  %v8219 = vpop.f32.mrb[0].mxu0
  %v8220 = vadd.f32 0.0, %v8219
  %v8221 = vpop.f32.mrb[0].mxu0
  %v8222 = vpop.f32.mrb[0].mxu0
  %v8223 = vadd.f32 0.0, %v8222
  %v8224 = vpop.f32.mrb[0].mxu0
  %8225 = vmatprep.mubr.bf16.mxu0 0
  %8226 = vmatmul.mubr.bf16.gmra.mrb[0].mxu0 %v8180
  %v8227 = vpop.f32.mrb[0].mxu0
  %v8228 = vadd.f32 0.0, %v8227
  %v8229 = vpop.f32.mrb[0].mxu0
  %v8230 = vpop.f32.mrb[0].mxu0
  %v8231 = vadd.f32 0.0, %v8230
  %v8232 = vpop.f32.mrb[0].mxu0
  %8233 = vdwg.mxu0
  %v8234 = vadd.f32 %v7708, %v8220
  %v8235 = vadd.f32 %v7709, %v8223
  %v8236 = vadd.f32 %v7710, %v8228
  %v8237 = vadd.f32 %v7711, %v8231
  %s8238 = scalar_lea.vmem %s37, 96
  %v8239 = vld [vmem:[%s8238] sm:$0xf]
  %v8240 = vld [vmem:[%s8238 + $0x4] sm:$0xf]
  %v8241 = vld [vmem:[%s8238 + $0x8] sm:$0xf]
  %v8242 = vld [vmem:[%s8238 + $0xc] sm:$0xf]
  %s8243 = scalar_lea.vmem %s39, 6
  %v8244 = vld [vmem:[%s8243] sm:$0x1]
  %v8246 = vlaneseq
  %v8247 = vshrl.u32 %v8246, 7
  %v8248 = vsub.s32 0, %v8247
  %v8249 = vrot.slane %v8244, %v8248
  %v8255 = vunpack.c.l.b16 %v8239
  %v8256 = vunpack.c.l.b16 %v8240
  %v8257 = vunpack.c.l.b16 %v8241
  %v8258 = vunpack.c.l.b16 %v8242
  %v8259 = vpack.c.b16 %v8256, %v8255
  %v8260 = vpack.c.b16 %v8258, %v8257
  %8263 = vmatprep.subr.bf16.mxu0 0
  %8264 = vmatpush1.bf16.msra.mxu0 %v8259
  %8265 = vmatprep.subr.bf16.mxu0 0
  %8266 = vmatpush1.bf16.msra.mxu0 %v8260
  %8267 = vmatprep.subr.bf16.mxu0 0
  %8268 = vmatpush1.bf16.msra.mxu0 0
  %8269 = vmatprep.subr.bf16.mxu0 0
  %8270 = vmatpush1.bf16.msra.mxu0 0
  %8271 = vmatprep.subr.bf16.mxu0 0
  %8272 = vmatpush1.bf16.msra.mxu0 0
  %8273 = vmatprep.subr.bf16.mxu0 0
  %8274 = vmatpush1.bf16.msra.mxu0 0
  %8275 = vmatprep.subr.bf16.mxu0 0
  %8276 = vmatpush1.bf16.msra.mxu0 0
  %8277 = vmatprep.subr.bf16.mxu0 0
  %8278 = vmatpush1.bf16.msra.mxu0 0
  %8279 = vmatprep.subr.bf16.mxu0 0
  %8280 = vmatpush1.bf16.msra.mxu0 0
  %8281 = vmatprep.subr.bf16.mxu0 0
  %8282 = vmatpush1.bf16.msra.mxu0 0
  %8283 = vmatprep.subr.bf16.mxu0 0
  %8284 = vmatpush1.bf16.msra.mxu0 0
  %8285 = vmatprep.subr.bf16.mxu0 0
  %8286 = vmatpush1.bf16.msra.mxu0 0
  %8287 = vmatprep.subr.bf16.mxu0 0
  %8288 = vmatpush1.bf16.msra.mxu0 0
  %8289 = vmatprep.subr.bf16.mxu0 0
  %8290 = vmatpush1.bf16.msra.mxu0 0
  %8291 = vmatprep.subr.bf16.mxu0 0
  %8292 = vmatpush1.bf16.msra.mxu0 0
  %8293 = vmatprep.subr.bf16.mxu0 0
  %8294 = vmatpush1.bf16.msra.mxu0 0
  %8295 = vmatprep.mubr.bf16.mxu0 0
  %8296 = vmatmul.mubr.bf16.gmra.mrb[0].mxu0 %v5115
  %v8297 = vpop.f32.mrb[0].mxu0
  %v8298 = vadd.f32 %v8249, %v8297
  %v8299 = vpop.f32.mrb[0].mxu0
  %v8300 = vpop.f32.mrb[0].mxu0
  %v8301 = vadd.f32 %v8249, %v8300
  %v8302 = vpop.f32.mrb[0].mxu0
  %8303 = vmatprep.mubr.bf16.mxu0 0
  %8304 = vmatmul.mubr.bf16.gmra.mrb[0].mxu0 %v5118
  %v8305 = vpop.f32.mrb[0].mxu0
  %v8306 = vadd.f32 %v8249, %v8305
  %v8307 = vpop.f32.mrb[0].mxu0
  %v8308 = vpop.f32.mrb[0].mxu0
  %v8309 = vadd.f32 %v8249, %v8308
  %v8310 = vpop.f32.mrb[0].mxu0
  %8311 = vdwg.mxu0
  %s8312 = scalar_lea.vmem %s41, 96
  %v8313 = vld [vmem:[%s8312] sm:$0xf]
  %v8314 = vld [vmem:[%s8312 + $0x4] sm:$0xf]
  %v8315 = vld [vmem:[%s8312 + $0x8] sm:$0xf]
  %v8316 = vld [vmem:[%s8312 + $0xc] sm:$0xf]
  %s8317 = scalar_lea.vmem %s43, 6
  %v8318 = vld [vmem:[%s8317] sm:$0x1]
  %v8320 = vlaneseq
  %v8321 = vshrl.u32 %v8320, 7
  %v8322 = vsub.s32 0, %v8321
  %v8323 = vrot.slane %v8318, %v8322
  %v8329 = vunpack.c.l.b16 %v8313
  %v8330 = vunpack.c.l.b16 %v8314
  %v8331 = vunpack.c.l.b16 %v8315
  %v8332 = vunpack.c.l.b16 %v8316
  %v8333 = vpack.c.b16 %v8330, %v8329
  %v8334 = vpack.c.b16 %v8332, %v8331
  %8337 = vmatprep.subr.bf16.mxu0 0
  %8338 = vmatpush1.bf16.msra.mxu0 %v8333
  %8339 = vmatprep.subr.bf16.mxu0 0
  %8340 = vmatpush1.bf16.msra.mxu0 %v8334
  %8341 = vmatprep.subr.bf16.mxu0 0
  %8342 = vmatpush1.bf16.msra.mxu0 0
  %8343 = vmatprep.subr.bf16.mxu0 0
  %8344 = vmatpush1.bf16.msra.mxu0 0
  %8345 = vmatprep.subr.bf16.mxu0 0
  %8346 = vmatpush1.bf16.msra.mxu0 0
  %8347 = vmatprep.subr.bf16.mxu0 0
  %8348 = vmatpush1.bf16.msra.mxu0 0
  %8349 = vmatprep.subr.bf16.mxu0 0
  %8350 = vmatpush1.bf16.msra.mxu0 0
  %8351 = vmatprep.subr.bf16.mxu0 0
  %8352 = vmatpush1.bf16.msra.mxu0 0
  %8353 = vmatprep.subr.bf16.mxu0 0
  %8354 = vmatpush1.bf16.msra.mxu0 0
  %8355 = vmatprep.subr.bf16.mxu0 0
  %8356 = vmatpush1.bf16.msra.mxu0 0
  %8357 = vmatprep.subr.bf16.mxu0 0
  %8358 = vmatpush1.bf16.msra.mxu0 0
  %8359 = vmatprep.subr.bf16.mxu0 0
  %8360 = vmatpush1.bf16.msra.mxu0 0
  %8361 = vmatprep.subr.bf16.mxu0 0
  %8362 = vmatpush1.bf16.msra.mxu0 0
  %8363 = vmatprep.subr.bf16.mxu0 0
  %8364 = vmatpush1.bf16.msra.mxu0 0
  %8365 = vmatprep.subr.bf16.mxu0 0
  %8366 = vmatpush1.bf16.msra.mxu0 0
  %8367 = vmatprep.subr.bf16.mxu0 0
  %8368 = vmatpush1.bf16.msra.mxu0 0
  %8369 = vmatprep.mubr.bf16.mxu0 0
  %8370 = vmatmul.mubr.bf16.gmra.mrb[0].mxu0 %v5115
  %v8371 = vpop.f32.mrb[0].mxu0
  %v8372 = vadd.f32 %v8323, %v8371
  %v8373 = vpop.f32.mrb[0].mxu0
  %v8374 = vpop.f32.mrb[0].mxu0
  %v8375 = vadd.f32 %v8323, %v8374
  %v8376 = vpop.f32.mrb[0].mxu0
  %8377 = vmatprep.mubr.bf16.mxu0 0
  %8378 = vmatmul.mubr.bf16.gmra.mrb[0].mxu0 %v5118
  %v8379 = vpop.f32.mrb[0].mxu0
  %v8380 = vadd.f32 %v8323, %v8379
  %v8381 = vpop.f32.mrb[0].mxu0
  %v8382 = vpop.f32.mrb[0].mxu0
  %v8383 = vadd.f32 %v8323, %v8382
  %v8384 = vpop.f32.mrb[0].mxu0
  %8385 = vdwg.mxu0
  %s8386 = scalar_lea.vmem %s45, 96
  %v8387 = vld [vmem:[%s8386] sm:$0xf]
  %v8388 = vld [vmem:[%s8386 + $0x4] sm:$0xf]
  %v8389 = vld [vmem:[%s8386 + $0x8] sm:$0xf]
  %v8390 = vld [vmem:[%s8386 + $0xc] sm:$0xf]
  %s8391 = scalar_lea.vmem %s47, 6
  %v8392 = vld [vmem:[%s8391] sm:$0x1]
  %v8394 = vlaneseq
  %v8395 = vshrl.u32 %v8394, 7
  %v8396 = vsub.s32 0, %v8395
  %v8397 = vrot.slane %v8392, %v8396
  %v8403 = vunpack.c.l.b16 %v8387
  %v8404 = vunpack.c.l.b16 %v8388
  %v8405 = vunpack.c.l.b16 %v8389
  %v8406 = vunpack.c.l.b16 %v8390
  %v8407 = vpack.c.b16 %v8404, %v8403
  %v8408 = vpack.c.b16 %v8406, %v8405
  %8411 = vmatprep.subr.bf16.mxu0 0
  %8412 = vmatpush1.bf16.msra.mxu0 %v8407
  %8413 = vmatprep.subr.bf16.mxu0 0
  %8414 = vmatpush1.bf16.msra.mxu0 %v8408
  %8415 = vmatprep.subr.bf16.mxu0 0
  %8416 = vmatpush1.bf16.msra.mxu0 0
  %8417 = vmatprep.subr.bf16.mxu0 0
  %8418 = vmatpush1.bf16.msra.mxu0 0
  %8419 = vmatprep.subr.bf16.mxu0 0
  %8420 = vmatpush1.bf16.msra.mxu0 0
  %8421 = vmatprep.subr.bf16.mxu0 0
  %8422 = vmatpush1.bf16.msra.mxu0 0
  %8423 = vmatprep.subr.bf16.mxu0 0
  %8424 = vmatpush1.bf16.msra.mxu0 0
  %8425 = vmatprep.subr.bf16.mxu0 0
  %8426 = vmatpush1.bf16.msra.mxu0 0
  %8427 = vmatprep.subr.bf16.mxu0 0
  %8428 = vmatpush1.bf16.msra.mxu0 0
  %8429 = vmatprep.subr.bf16.mxu0 0
  %8430 = vmatpush1.bf16.msra.mxu0 0
  %8431 = vmatprep.subr.bf16.mxu0 0
  %8432 = vmatpush1.bf16.msra.mxu0 0
  %8433 = vmatprep.subr.bf16.mxu0 0
  %8434 = vmatpush1.bf16.msra.mxu0 0
  %8435 = vmatprep.subr.bf16.mxu0 0
  %8436 = vmatpush1.bf16.msra.mxu0 0
  %8437 = vmatprep.subr.bf16.mxu0 0
  %8438 = vmatpush1.bf16.msra.mxu0 0
  %8439 = vmatprep.subr.bf16.mxu0 0
  %8440 = vmatpush1.bf16.msra.mxu0 0
  %8441 = vmatprep.subr.bf16.mxu0 0
  %8442 = vmatpush1.bf16.msra.mxu0 0
  %8443 = vmatprep.mubr.bf16.mxu0 0
  %8444 = vmatmul.mubr.bf16.gmra.mrb[0].mxu0 %v5115
  %v8445 = vpop.f32.mrb[0].mxu0
  %v8446 = vadd.f32 %v8397, %v8445
  %v8447 = vpop.f32.mrb[0].mxu0
  %v8448 = vpop.f32.mrb[0].mxu0
  %v8449 = vadd.f32 %v8397, %v8448
  %v8450 = vpop.f32.mrb[0].mxu0
  %8451 = vmatprep.mubr.bf16.mxu0 0
  %8452 = vmatmul.mubr.bf16.gmra.mrb[0].mxu0 %v5118
  %v8453 = vpop.f32.mrb[0].mxu0
  %v8454 = vadd.f32 %v8397, %v8453
  %v8455 = vpop.f32.mrb[0].mxu0
  %v8456 = vpop.f32.mrb[0].mxu0
  %v8457 = vadd.f32 %v8397, %v8456
  %v8458 = vpop.f32.mrb[0].mxu0
  %8459 = vdwg.mxu0
  %v8460 = vpack.c.bf16 %v8301, %v8298
  %v8461 = vpack.c.bf16 %v8309, %v8306
  %v8462 = vpack.c.bf16 %v8375, %v8372
  %v8463 = vpack.c.bf16 %v8383, %v8380
  %v8465 = vsel %vm715, %v8460, 0
  %v8468 = vsel %vm715, %v8462, 0
  %8470 = vmatprep.subr.bf16.mxu0 0
  %8471 = vmatpush1.bf16.xpose.msra.mxu0 %v8468
  %8472 = vmatprep.subr.bf16.mxu0 0
  %8473 = vmatpush1.bf16.xpose.msra.mxu0 0
  %8474 = vmatprep.subr.bf16.mxu0 0
  %8475 = vmatpush1.bf16.xpose.msra.mxu0 0
  %8476 = vmatprep.subr.bf16.mxu0 0
  %8477 = vmatpush1.bf16.xpose.msra.mxu0 0
  %8478 = vmatprep.subr.bf16.mxu0 0
  %8479 = vmatpush1.bf16.xpose.msra.mxu0 0
  %8480 = vmatprep.subr.bf16.mxu0 0
  %8481 = vmatpush1.bf16.xpose.msra.mxu0 0
  %8482 = vmatprep.subr.bf16.mxu0 0
  %8483 = vmatpush1.bf16.xpose.msra.mxu0 0
  %8484 = vmatprep.subr.bf16.mxu0 0
  %8485 = vmatpush1.bf16.xpose.msra.mxu0 0
  %8486 = vmatprep.subr.bf16.mxu0 0
  %8487 = vmatpush1.bf16.xpose.msra.mxu0 0
  %8488 = vmatprep.subr.bf16.mxu0 0
  %8489 = vmatpush1.bf16.xpose.msra.mxu0 0
  %8490 = vmatprep.subr.bf16.mxu0 0
  %8491 = vmatpush1.bf16.xpose.msra.mxu0 0
  %8492 = vmatprep.subr.bf16.mxu0 0
  %8493 = vmatpush1.bf16.xpose.msra.mxu0 0
  %8494 = vmatprep.subr.bf16.mxu0 0
  %8495 = vmatpush1.bf16.xpose.msra.mxu0 0
  %8496 = vmatprep.subr.bf16.mxu0 0
  %8497 = vmatpush1.bf16.xpose.msra.mxu0 0
  %8498 = vmatprep.subr.bf16.mxu0 0
  %8499 = vmatpush1.bf16.xpose.msra.mxu0 0
  %8500 = vmatprep.subr.bf16.mxu0 0
  %8501 = vmatpush1.bf16.xpose.msra.mxu0 0
  %8502 = vmatprep.mubr.bf16.mxu0 0
  %8503 = vmatmul.mubr.bf16.gmra.mrb[0].mxu0 %v8465
  %v8504 = vpop.f32.mrb[0].mxu0
  %v8505 = vadd.f32 0.0, %v8504
  %v8506 = vpop.f32.mrb[0].mxu0
  %v8507 = vpop.f32.mrb[0].mxu0
  %v8508 = vadd.f32 0.0, %v8507
  %v8509 = vpop.f32.mrb[0].mxu0
  %8510 = vdwg.mxu0
  %v8512 = vsel %vm715, %v8461, 0
  %v8515 = vsel %vm715, %v8463, 0
  %8517 = vmatprep.subr.bf16.mxu0 0
  %8518 = vmatpush1.bf16.xpose.msra.mxu0 %v8515
  %8519 = vmatprep.subr.bf16.mxu0 0
  %8520 = vmatpush1.bf16.xpose.msra.mxu0 0
  %8521 = vmatprep.subr.bf16.mxu0 0
  %8522 = vmatpush1.bf16.xpose.msra.mxu0 0
  %8523 = vmatprep.subr.bf16.mxu0 0
  %8524 = vmatpush1.bf16.xpose.msra.mxu0 0
  %8525 = vmatprep.subr.bf16.mxu0 0
  %8526 = vmatpush1.bf16.xpose.msra.mxu0 0
  %8527 = vmatprep.subr.bf16.mxu0 0
  %8528 = vmatpush1.bf16.xpose.msra.mxu0 0
  %8529 = vmatprep.subr.bf16.mxu0 0
  %8530 = vmatpush1.bf16.xpose.msra.mxu0 0
  %8531 = vmatprep.subr.bf16.mxu0 0
  %8532 = vmatpush1.bf16.xpose.msra.mxu0 0
  %8533 = vmatprep.subr.bf16.mxu0 0
  %8534 = vmatpush1.bf16.xpose.msra.mxu0 0
  %8535 = vmatprep.subr.bf16.mxu0 0
  %8536 = vmatpush1.bf16.xpose.msra.mxu0 0
  %8537 = vmatprep.subr.bf16.mxu0 0
  %8538 = vmatpush1.bf16.xpose.msra.mxu0 0
  %8539 = vmatprep.subr.bf16.mxu0 0
  %8540 = vmatpush1.bf16.xpose.msra.mxu0 0
  %8541 = vmatprep.subr.bf16.mxu0 0
  %8542 = vmatpush1.bf16.xpose.msra.mxu0 0
  %8543 = vmatprep.subr.bf16.mxu0 0
  %8544 = vmatpush1.bf16.xpose.msra.mxu0 0
  %8545 = vmatprep.subr.bf16.mxu0 0
  %8546 = vmatpush1.bf16.xpose.msra.mxu0 0
  %8547 = vmatprep.subr.bf16.mxu0 0
  %8548 = vmatpush1.bf16.xpose.msra.mxu0 0
  %8549 = vmatprep.mubr.bf16.mxu0 0
  %8550 = vmatmul.mubr.bf16.gmra.mrb[0].mxu0 %v8512
  %v8551 = vpop.f32.mrb[0].mxu0
  %v8552 = vadd.f32 0.0, %v8551
  %v8553 = vpop.f32.mrb[0].mxu0
  %v8554 = vpop.f32.mrb[0].mxu0
  %v8555 = vadd.f32 0.0, %v8554
  %v8556 = vpop.f32.mrb[0].mxu0
  %8557 = vdwg.mxu0
  %v8558 = vmul.f32 %v8505, 0.5
  %v8559 = vmul.f32 %v8508, 0.5
  %v8560 = vmul.f32 %v8552, 0.5
  %v8561 = vmul.f32 %v8555, 0.5
  %v8562 = vsel %vm814, %v8558, -inf
  %8563 = vmax.xlane.f32.xlu0 %v8562
  %v8564 = vpop.xlane.xlu0 %8563
  %v8565 = vsel %vm814, %v8559, -inf
  %8566 = vmax.xlane.f32.xlu0 %v8565
  %v8567 = vpop.xlane.xlu0 %8566
  %v8568 = vsel %vm814, %v8560, -inf
  %8569 = vmax.xlane.f32.xlu0 %v8568
  %v8570 = vpop.xlane.xlu0 %8569
  %v8571 = vsel %vm814, %v8561, -inf
  %8572 = vmax.xlane.f32.xlu0 %v8571
  %v8573 = vpop.xlane.xlu0 %8572
  %v8574 = vsub.f32 %v8558, %v8564
  %v8575 = vsub.f32 %v8559, %v8567
  %v8576 = vsub.f32 %v8560, %v8570
  %v8577 = vsub.f32 %v8561, %v8573
  %v8578 = vmul.f32 %v8574, 1.442695
  %v8579 = vpow.pop %v8578
  %v8580 = vmul.f32 %v8575, 1.442695
  %v8581 = vpow.pop %v8580
  %v8582 = vmul.f32 %v8576, 1.442695
  %v8583 = vpow.pop %v8582
  %v8584 = vmul.f32 %v8577, 1.442695
  %v8585 = vpow.pop %v8584
  %v8586 = vsel %vm814, %v8579, 0.0
  %8587 = vadd.xlane.f32.xlu0 %v8586
  %v8588 = vpop.xlane.xlu0 %8587
  %v8589 = vsel %vm814, %v8581, 0.0
  %8590 = vadd.xlane.f32.xlu0 %v8589
  %v8591 = vpop.xlane.xlu0 %8590
  %v8592 = vsel %vm814, %v8583, 0.0
  %8593 = vadd.xlane.f32.xlu0 %v8592
  %v8594 = vpop.xlane.xlu0 %8593
  %v8595 = vsel %vm814, %v8585, 0.0
  %8596 = vadd.xlane.f32.xlu0 %v8595
  %v8597 = vpop.xlane.xlu0 %8596
  %v8598 = vrcp.pop %v8588
  %v8599 = vrcp.pop %v8591
  %v8600 = vrcp.pop %v8594
  %v8601 = vrcp.pop %v8597
  %v8602 = vmul.f32 %v8579, %v8598
  %v8603 = vmul.f32 %v8581, %v8599
  %v8604 = vmul.f32 %v8583, %v8600
  %v8605 = vmul.f32 %v8585, %v8601
  %v8606 = vpack.c.bf16 %v8603, %v8602
  %v8607 = vpack.c.bf16 %v8605, %v8604
  %v8608 = vpack.c.bf16 %v8449, %v8446
  %v8609 = vpack.c.bf16 %v8457, %v8454
  %v8611 = vsel %vm814, %v8606, 0
  %8613 = vmatprep.subr.bf16.mxu0 0
  %8614 = vmatpush1.bf16.msra.mxu0 %v8608
  %8615 = vmatprep.subr.bf16.mxu0 0
  %8616 = vmatpush1.bf16.msra.mxu0 0
  %8617 = vmatprep.subr.bf16.mxu0 0
  %8618 = vmatpush1.bf16.msra.mxu0 0
  %8619 = vmatprep.subr.bf16.mxu0 0
  %8620 = vmatpush1.bf16.msra.mxu0 0
  %8621 = vmatprep.subr.bf16.mxu0 0
  %8622 = vmatpush1.bf16.msra.mxu0 0
  %8623 = vmatprep.subr.bf16.mxu0 0
  %8624 = vmatpush1.bf16.msra.mxu0 0
  %8625 = vmatprep.subr.bf16.mxu0 0
  %8626 = vmatpush1.bf16.msra.mxu0 0
  %8627 = vmatprep.subr.bf16.mxu0 0
  %8628 = vmatpush1.bf16.msra.mxu0 0
  %8629 = vmatprep.subr.bf16.mxu0 0
  %8630 = vmatpush1.bf16.msra.mxu0 0
  %8631 = vmatprep.subr.bf16.mxu0 0
  %8632 = vmatpush1.bf16.msra.mxu0 0
  %8633 = vmatprep.subr.bf16.mxu0 0
  %8634 = vmatpush1.bf16.msra.mxu0 0
  %8635 = vmatprep.subr.bf16.mxu0 0
  %8636 = vmatpush1.bf16.msra.mxu0 0
  %8637 = vmatprep.subr.bf16.mxu0 0
  %8638 = vmatpush1.bf16.msra.mxu0 0
  %8639 = vmatprep.subr.bf16.mxu0 0
  %8640 = vmatpush1.bf16.msra.mxu0 0
  %8641 = vmatprep.subr.bf16.mxu0 0
  %8642 = vmatpush1.bf16.msra.mxu0 0
  %8643 = vmatprep.subr.bf16.mxu0 0
  %8644 = vmatpush1.bf16.msra.mxu0 0
  %8645 = vmatprep.mubr.bf16.mxu0 0
  %8646 = vmatmul.mubr.bf16.gmra.mrb[0].mxu0 %v8611
  %v8647 = vpop.f32.mrb[0].mxu0
  %v8648 = vadd.f32 0.0, %v8647
  %v8649 = vpop.f32.mrb[0].mxu0
  %v8650 = vpop.f32.mrb[0].mxu0
  %v8651 = vadd.f32 0.0, %v8650
  %v8652 = vpop.f32.mrb[0].mxu0
  %8653 = vdwg.mxu0
  %v8655 = vsel %vm814, %v8607, 0
  %8657 = vmatprep.subr.bf16.mxu0 0
  %8658 = vmatpush1.bf16.msra.mxu0 %v8609
  %8659 = vmatprep.subr.bf16.mxu0 0
  %8660 = vmatpush1.bf16.msra.mxu0 0
  %8661 = vmatprep.subr.bf16.mxu0 0
  %8662 = vmatpush1.bf16.msra.mxu0 0
  %8663 = vmatprep.subr.bf16.mxu0 0
  %8664 = vmatpush1.bf16.msra.mxu0 0
  %8665 = vmatprep.subr.bf16.mxu0 0
  %8666 = vmatpush1.bf16.msra.mxu0 0
  %8667 = vmatprep.subr.bf16.mxu0 0
  %8668 = vmatpush1.bf16.msra.mxu0 0
  %8669 = vmatprep.subr.bf16.mxu0 0
  %8670 = vmatpush1.bf16.msra.mxu0 0
  %8671 = vmatprep.subr.bf16.mxu0 0
  %8672 = vmatpush1.bf16.msra.mxu0 0
  %8673 = vmatprep.subr.bf16.mxu0 0
  %8674 = vmatpush1.bf16.msra.mxu0 0
  %8675 = vmatprep.subr.bf16.mxu0 0
  %8676 = vmatpush1.bf16.msra.mxu0 0
  %8677 = vmatprep.subr.bf16.mxu0 0
  %8678 = vmatpush1.bf16.msra.mxu0 0
  %8679 = vmatprep.subr.bf16.mxu0 0
  %8680 = vmatpush1.bf16.msra.mxu0 0
  %8681 = vmatprep.subr.bf16.mxu0 0
  %8682 = vmatpush1.bf16.msra.mxu0 0
  %8683 = vmatprep.subr.bf16.mxu0 0
  %8684 = vmatpush1.bf16.msra.mxu0 0
  %8685 = vmatprep.subr.bf16.mxu0 0
  %8686 = vmatpush1.bf16.msra.mxu0 0
  %8687 = vmatprep.subr.bf16.mxu0 0
  %8688 = vmatpush1.bf16.msra.mxu0 0
  %8689 = vmatprep.mubr.bf16.mxu0 0
  %8690 = vmatmul.mubr.bf16.gmra.mrb[0].mxu0 %v8655
  %v8691 = vpop.f32.mrb[0].mxu0
  %v8692 = vadd.f32 0.0, %v8691
  %v8693 = vpop.f32.mrb[0].mxu0
  %v8694 = vpop.f32.mrb[0].mxu0
  %v8695 = vadd.f32 0.0, %v8694
  %v8696 = vpop.f32.mrb[0].mxu0
  %8697 = vdwg.mxu0
  %v8698 = vpack.c.bf16 %v8651, %v8648
  %v8699 = vpack.c.bf16 %v8695, %v8692
  %s8700 = scalar_lea.vmem %s49, 12
  %v8701 = vld [vmem:[%s8700] sm:$0x3]
  %v8703 = vsel %vm715, %v8698, 0
  %v8706 = vsel %vm715, %v8699, 0
  %v8709 = vsel %vm1424, %v8701, 0
  %8711 = vmatprep.subr.bf16.mxu0 0
  %8712 = vmatpush1.bf16.msra.mxu0 %v8709
  %8713 = vmatprep.subr.bf16.mxu0 0
  %8714 = vmatpush1.bf16.msra.mxu0 0
  %8715 = vmatprep.subr.bf16.mxu0 0
  %8716 = vmatpush1.bf16.msra.mxu0 0
  %8717 = vmatprep.subr.bf16.mxu0 0
  %8718 = vmatpush1.bf16.msra.mxu0 0
  %8719 = vmatprep.subr.bf16.mxu0 0
  %8720 = vmatpush1.bf16.msra.mxu0 0
  %8721 = vmatprep.subr.bf16.mxu0 0
  %8722 = vmatpush1.bf16.msra.mxu0 0
  %8723 = vmatprep.subr.bf16.mxu0 0
  %8724 = vmatpush1.bf16.msra.mxu0 0
  %8725 = vmatprep.subr.bf16.mxu0 0
  %8726 = vmatpush1.bf16.msra.mxu0 0
  %8727 = vmatprep.subr.bf16.mxu0 0
  %8728 = vmatpush1.bf16.msra.mxu0 0
  %8729 = vmatprep.subr.bf16.mxu0 0
  %8730 = vmatpush1.bf16.msra.mxu0 0
  %8731 = vmatprep.subr.bf16.mxu0 0
  %8732 = vmatpush1.bf16.msra.mxu0 0
  %8733 = vmatprep.subr.bf16.mxu0 0
  %8734 = vmatpush1.bf16.msra.mxu0 0
  %8735 = vmatprep.subr.bf16.mxu0 0
  %8736 = vmatpush1.bf16.msra.mxu0 0
  %8737 = vmatprep.subr.bf16.mxu0 0
  %8738 = vmatpush1.bf16.msra.mxu0 0
  %8739 = vmatprep.subr.bf16.mxu0 0
  %8740 = vmatpush1.bf16.msra.mxu0 0
  %8741 = vmatprep.subr.bf16.mxu0 0
  %8742 = vmatpush1.bf16.msra.mxu0 0
  %8743 = vmatprep.mubr.bf16.mxu0 0
  %8744 = vmatmul.mubr.bf16.gmra.mrb[0].mxu0 %v8703
  %v8745 = vpop.f32.mrb[0].mxu0
  %v8746 = vadd.f32 0.0, %v8745
  %v8747 = vpop.f32.mrb[0].mxu0
  %v8748 = vpop.f32.mrb[0].mxu0
  %v8749 = vadd.f32 0.0, %v8748
  %v8750 = vpop.f32.mrb[0].mxu0
  %8751 = vmatprep.mubr.bf16.mxu0 0
  %8752 = vmatmul.mubr.bf16.gmra.mrb[0].mxu0 %v8706
  %v8753 = vpop.f32.mrb[0].mxu0
  %v8754 = vadd.f32 0.0, %v8753
  %v8755 = vpop.f32.mrb[0].mxu0
  %v8756 = vpop.f32.mrb[0].mxu0
  %v8757 = vadd.f32 0.0, %v8756
  %v8758 = vpop.f32.mrb[0].mxu0
  %8759 = vdwg.mxu0
  %v8760 = vadd.f32 %v8234, %v8746
  %v8761 = vadd.f32 %v8235, %v8749
  %v8762 = vadd.f32 %v8236, %v8754
  %v8763 = vadd.f32 %v8237, %v8757
  %s8764 = scalar_lea.vmem %s37, 112
  %v8765 = vld [vmem:[%s8764] sm:$0xf]
  %v8766 = vld [vmem:[%s8764 + $0x4] sm:$0xf]
  %v8767 = vld [vmem:[%s8764 + $0x8] sm:$0xf]
  %v8768 = vld [vmem:[%s8764 + $0xc] sm:$0xf]
  %s8769 = scalar_lea.vmem %s39, 7
  %v8770 = vld [vmem:[%s8769] sm:$0x1]
  %v8772 = vlaneseq
  %v8773 = vshrl.u32 %v8772, 7
  %v8774 = vsub.s32 0, %v8773
  %v8775 = vrot.slane %v8770, %v8774
  %v8781 = vunpack.c.l.b16 %v8765
  %v8782 = vunpack.c.l.b16 %v8766
  %v8783 = vunpack.c.l.b16 %v8767
  %v8784 = vunpack.c.l.b16 %v8768
  %v8785 = vpack.c.b16 %v8782, %v8781
  %v8786 = vpack.c.b16 %v8784, %v8783
  %8789 = vmatprep.subr.bf16.mxu0 0
  %8790 = vmatpush1.bf16.msra.mxu0 %v8785
  %8791 = vmatprep.subr.bf16.mxu0 0
  %8792 = vmatpush1.bf16.msra.mxu0 %v8786
  %8793 = vmatprep.subr.bf16.mxu0 0
  %8794 = vmatpush1.bf16.msra.mxu0 0
  %8795 = vmatprep.subr.bf16.mxu0 0
  %8796 = vmatpush1.bf16.msra.mxu0 0
  %8797 = vmatprep.subr.bf16.mxu0 0
  %8798 = vmatpush1.bf16.msra.mxu0 0
  %8799 = vmatprep.subr.bf16.mxu0 0
  %8800 = vmatpush1.bf16.msra.mxu0 0
  %8801 = vmatprep.subr.bf16.mxu0 0
  %8802 = vmatpush1.bf16.msra.mxu0 0
  %8803 = vmatprep.subr.bf16.mxu0 0
  %8804 = vmatpush1.bf16.msra.mxu0 0
  %8805 = vmatprep.subr.bf16.mxu0 0
  %8806 = vmatpush1.bf16.msra.mxu0 0
  %8807 = vmatprep.subr.bf16.mxu0 0
  %8808 = vmatpush1.bf16.msra.mxu0 0
  %8809 = vmatprep.subr.bf16.mxu0 0
  %8810 = vmatpush1.bf16.msra.mxu0 0
  %8811 = vmatprep.subr.bf16.mxu0 0
  %8812 = vmatpush1.bf16.msra.mxu0 0
  %8813 = vmatprep.subr.bf16.mxu0 0
  %8814 = vmatpush1.bf16.msra.mxu0 0
  %8815 = vmatprep.subr.bf16.mxu0 0
  %8816 = vmatpush1.bf16.msra.mxu0 0
  %8817 = vmatprep.subr.bf16.mxu0 0
  %8818 = vmatpush1.bf16.msra.mxu0 0
  %8819 = vmatprep.subr.bf16.mxu0 0
  %8820 = vmatpush1.bf16.msra.mxu0 0
  %8821 = vmatprep.mubr.bf16.mxu0 0
  %8822 = vmatmul.mubr.bf16.gmra.mrb[0].mxu0 %v5115
  %v8823 = vpop.f32.mrb[0].mxu0
  %v8824 = vadd.f32 %v8775, %v8823
  %v8825 = vpop.f32.mrb[0].mxu0
  %v8826 = vpop.f32.mrb[0].mxu0
  %v8827 = vadd.f32 %v8775, %v8826
  %v8828 = vpop.f32.mrb[0].mxu0
  %8829 = vmatprep.mubr.bf16.mxu0 0
  %8830 = vmatmul.mubr.bf16.gmra.mrb[0].mxu0 %v5118
  %v8831 = vpop.f32.mrb[0].mxu0
  %v8832 = vadd.f32 %v8775, %v8831
  %v8833 = vpop.f32.mrb[0].mxu0
  %v8834 = vpop.f32.mrb[0].mxu0
  %v8835 = vadd.f32 %v8775, %v8834
  %v8836 = vpop.f32.mrb[0].mxu0
  %8837 = vdwg.mxu0
  %s8838 = scalar_lea.vmem %s41, 112
  %v8839 = vld [vmem:[%s8838] sm:$0xf]
  %v8840 = vld [vmem:[%s8838 + $0x4] sm:$0xf]
  %v8841 = vld [vmem:[%s8838 + $0x8] sm:$0xf]
  %v8842 = vld [vmem:[%s8838 + $0xc] sm:$0xf]
  %s8843 = scalar_lea.vmem %s43, 7
  %v8844 = vld [vmem:[%s8843] sm:$0x1]
  %v8846 = vlaneseq
  %v8847 = vshrl.u32 %v8846, 7
  %v8848 = vsub.s32 0, %v8847
  %v8849 = vrot.slane %v8844, %v8848
  %v8855 = vunpack.c.l.b16 %v8839
  %v8856 = vunpack.c.l.b16 %v8840
  %v8857 = vunpack.c.l.b16 %v8841
  %v8858 = vunpack.c.l.b16 %v8842
  %v8859 = vpack.c.b16 %v8856, %v8855
  %v8860 = vpack.c.b16 %v8858, %v8857
  %8863 = vmatprep.subr.bf16.mxu0 0
  %8864 = vmatpush1.bf16.msra.mxu0 %v8859
  %8865 = vmatprep.subr.bf16.mxu0 0
  %8866 = vmatpush1.bf16.msra.mxu0 %v8860
  %8867 = vmatprep.subr.bf16.mxu0 0
  %8868 = vmatpush1.bf16.msra.mxu0 0
  %8869 = vmatprep.subr.bf16.mxu0 0
  %8870 = vmatpush1.bf16.msra.mxu0 0
  %8871 = vmatprep.subr.bf16.mxu0 0
  %8872 = vmatpush1.bf16.msra.mxu0 0
  %8873 = vmatprep.subr.bf16.mxu0 0
  %8874 = vmatpush1.bf16.msra.mxu0 0
  %8875 = vmatprep.subr.bf16.mxu0 0
  %8876 = vmatpush1.bf16.msra.mxu0 0
  %8877 = vmatprep.subr.bf16.mxu0 0
  %8878 = vmatpush1.bf16.msra.mxu0 0
  %8879 = vmatprep.subr.bf16.mxu0 0
  %8880 = vmatpush1.bf16.msra.mxu0 0
  %8881 = vmatprep.subr.bf16.mxu0 0
  %8882 = vmatpush1.bf16.msra.mxu0 0
  %8883 = vmatprep.subr.bf16.mxu0 0
  %8884 = vmatpush1.bf16.msra.mxu0 0
  %8885 = vmatprep.subr.bf16.mxu0 0
  %8886 = vmatpush1.bf16.msra.mxu0 0
  %8887 = vmatprep.subr.bf16.mxu0 0
  %8888 = vmatpush1.bf16.msra.mxu0 0
  %8889 = vmatprep.subr.bf16.mxu0 0
  %8890 = vmatpush1.bf16.msra.mxu0 0
  %8891 = vmatprep.subr.bf16.mxu0 0
  %8892 = vmatpush1.bf16.msra.mxu0 0
  %8893 = vmatprep.subr.bf16.mxu0 0
  %8894 = vmatpush1.bf16.msra.mxu0 0
  %8895 = vmatprep.mubr.bf16.mxu0 0
  %8896 = vmatmul.mubr.bf16.gmra.mrb[0].mxu0 %v5115
  %v8897 = vpop.f32.mrb[0].mxu0
  %v8898 = vadd.f32 %v8849, %v8897
  %v8899 = vpop.f32.mrb[0].mxu0
  %v8900 = vpop.f32.mrb[0].mxu0
  %v8901 = vadd.f32 %v8849, %v8900
  %v8902 = vpop.f32.mrb[0].mxu0
  %8903 = vmatprep.mubr.bf16.mxu0 0
  %8904 = vmatmul.mubr.bf16.gmra.mrb[0].mxu0 %v5118
  %v8905 = vpop.f32.mrb[0].mxu0
  %v8906 = vadd.f32 %v8849, %v8905
  %v8907 = vpop.f32.mrb[0].mxu0
  %v8908 = vpop.f32.mrb[0].mxu0
  %v8909 = vadd.f32 %v8849, %v8908
  %v8910 = vpop.f32.mrb[0].mxu0
  %8911 = vdwg.mxu0
  %s8912 = scalar_lea.vmem %s45, 112
  %v8913 = vld [vmem:[%s8912] sm:$0xf]
  %v8914 = vld [vmem:[%s8912 + $0x4] sm:$0xf]
  %v8915 = vld [vmem:[%s8912 + $0x8] sm:$0xf]
  %v8916 = vld [vmem:[%s8912 + $0xc] sm:$0xf]
  %s8917 = scalar_lea.vmem %s47, 7
  %v8918 = vld [vmem:[%s8917] sm:$0x1]
  %v8920 = vlaneseq
  %v8921 = vshrl.u32 %v8920, 7
  %v8922 = vsub.s32 0, %v8921
  %v8923 = vrot.slane %v8918, %v8922
  %v8929 = vunpack.c.l.b16 %v8913
  %v8930 = vunpack.c.l.b16 %v8914
  %v8931 = vunpack.c.l.b16 %v8915
  %v8932 = vunpack.c.l.b16 %v8916
  %v8933 = vpack.c.b16 %v8930, %v8929
  %v8934 = vpack.c.b16 %v8932, %v8931
  %8937 = vmatprep.subr.bf16.mxu0 0
  %8938 = vmatpush1.bf16.msra.mxu0 %v8933
  %8939 = vmatprep.subr.bf16.mxu0 0
  %8940 = vmatpush1.bf16.msra.mxu0 %v8934
  %8941 = vmatprep.subr.bf16.mxu0 0
  %8942 = vmatpush1.bf16.msra.mxu0 0
  %8943 = vmatprep.subr.bf16.mxu0 0
  %8944 = vmatpush1.bf16.msra.mxu0 0
  %8945 = vmatprep.subr.bf16.mxu0 0
  %8946 = vmatpush1.bf16.msra.mxu0 0
  %8947 = vmatprep.subr.bf16.mxu0 0
  %8948 = vmatpush1.bf16.msra.mxu0 0
  %8949 = vmatprep.subr.bf16.mxu0 0
  %8950 = vmatpush1.bf16.msra.mxu0 0
  %8951 = vmatprep.subr.bf16.mxu0 0
  %8952 = vmatpush1.bf16.msra.mxu0 0
  %8953 = vmatprep.subr.bf16.mxu0 0
  %8954 = vmatpush1.bf16.msra.mxu0 0
  %8955 = vmatprep.subr.bf16.mxu0 0
  %8956 = vmatpush1.bf16.msra.mxu0 0
  %8957 = vmatprep.subr.bf16.mxu0 0
  %8958 = vmatpush1.bf16.msra.mxu0 0
  %8959 = vmatprep.subr.bf16.mxu0 0
  %8960 = vmatpush1.bf16.msra.mxu0 0
  %8961 = vmatprep.subr.bf16.mxu0 0
  %8962 = vmatpush1.bf16.msra.mxu0 0
  %8963 = vmatprep.subr.bf16.mxu0 0
  %8964 = vmatpush1.bf16.msra.mxu0 0
  %8965 = vmatprep.subr.bf16.mxu0 0
  %8966 = vmatpush1.bf16.msra.mxu0 0
  %8967 = vmatprep.subr.bf16.mxu0 0
  %8968 = vmatpush1.bf16.msra.mxu0 0
  %8969 = vmatprep.mubr.bf16.mxu0 0
  %8970 = vmatmul.mubr.bf16.gmra.mrb[0].mxu0 %v5115
  %v8971 = vpop.f32.mrb[0].mxu0
  %v8972 = vadd.f32 %v8923, %v8971
  %v8973 = vpop.f32.mrb[0].mxu0
  %v8974 = vpop.f32.mrb[0].mxu0
  %v8975 = vadd.f32 %v8923, %v8974
  %v8976 = vpop.f32.mrb[0].mxu0
  %8977 = vmatprep.mubr.bf16.mxu0 0
  %8978 = vmatmul.mubr.bf16.gmra.mrb[0].mxu0 %v5118
  %v8979 = vpop.f32.mrb[0].mxu0
  %v8980 = vadd.f32 %v8923, %v8979
  %v8981 = vpop.f32.mrb[0].mxu0
  %v8982 = vpop.f32.mrb[0].mxu0
  %v8983 = vadd.f32 %v8923, %v8982
  %v8984 = vpop.f32.mrb[0].mxu0
  %8985 = vdwg.mxu0
  %v8986 = vpack.c.bf16 %v8827, %v8824
  %v8987 = vpack.c.bf16 %v8835, %v8832
  %v8988 = vpack.c.bf16 %v8901, %v8898
  %v8989 = vpack.c.bf16 %v8909, %v8906
  %v8991 = vsel %vm715, %v8986, 0
  %v8994 = vsel %vm715, %v8988, 0
  %8996 = vmatprep.subr.bf16.mxu0 0
  %8997 = vmatpush1.bf16.xpose.msra.mxu0 %v8994
  %8998 = vmatprep.subr.bf16.mxu0 0
  %8999 = vmatpush1.bf16.xpose.msra.mxu0 0
  %9000 = vmatprep.subr.bf16.mxu0 0
  %9001 = vmatpush1.bf16.xpose.msra.mxu0 0
  %9002 = vmatprep.subr.bf16.mxu0 0
  %9003 = vmatpush1.bf16.xpose.msra.mxu0 0
  %9004 = vmatprep.subr.bf16.mxu0 0
  %9005 = vmatpush1.bf16.xpose.msra.mxu0 0
  %9006 = vmatprep.subr.bf16.mxu0 0
  %9007 = vmatpush1.bf16.xpose.msra.mxu0 0
  %9008 = vmatprep.subr.bf16.mxu0 0
  %9009 = vmatpush1.bf16.xpose.msra.mxu0 0
  %9010 = vmatprep.subr.bf16.mxu0 0
  %9011 = vmatpush1.bf16.xpose.msra.mxu0 0
  %9012 = vmatprep.subr.bf16.mxu0 0
  %9013 = vmatpush1.bf16.xpose.msra.mxu0 0
  %9014 = vmatprep.subr.bf16.mxu0 0
  %9015 = vmatpush1.bf16.xpose.msra.mxu0 0
  %9016 = vmatprep.subr.bf16.mxu0 0
  %9017 = vmatpush1.bf16.xpose.msra.mxu0 0
  %9018 = vmatprep.subr.bf16.mxu0 0
  %9019 = vmatpush1.bf16.xpose.msra.mxu0 0
  %9020 = vmatprep.subr.bf16.mxu0 0
  %9021 = vmatpush1.bf16.xpose.msra.mxu0 0
  %9022 = vmatprep.subr.bf16.mxu0 0
  %9023 = vmatpush1.bf16.xpose.msra.mxu0 0
  %9024 = vmatprep.subr.bf16.mxu0 0
  %9025 = vmatpush1.bf16.xpose.msra.mxu0 0
  %9026 = vmatprep.subr.bf16.mxu0 0
  %9027 = vmatpush1.bf16.xpose.msra.mxu0 0
  %9028 = vmatprep.mubr.bf16.mxu0 0
  %9029 = vmatmul.mubr.bf16.gmra.mrb[0].mxu0 %v8991
  %v9030 = vpop.f32.mrb[0].mxu0
  %v9031 = vadd.f32 0.0, %v9030
  %v9032 = vpop.f32.mrb[0].mxu0
  %v9033 = vpop.f32.mrb[0].mxu0
  %v9034 = vadd.f32 0.0, %v9033
  %v9035 = vpop.f32.mrb[0].mxu0
  %9036 = vdwg.mxu0
  %v9038 = vsel %vm715, %v8987, 0
  %v9041 = vsel %vm715, %v8989, 0
  %9043 = vmatprep.subr.bf16.mxu0 0
  %9044 = vmatpush1.bf16.xpose.msra.mxu0 %v9041
  %9045 = vmatprep.subr.bf16.mxu0 0
  %9046 = vmatpush1.bf16.xpose.msra.mxu0 0
  %9047 = vmatprep.subr.bf16.mxu0 0
  %9048 = vmatpush1.bf16.xpose.msra.mxu0 0
  %9049 = vmatprep.subr.bf16.mxu0 0
  %9050 = vmatpush1.bf16.xpose.msra.mxu0 0
  %9051 = vmatprep.subr.bf16.mxu0 0
  %9052 = vmatpush1.bf16.xpose.msra.mxu0 0
  %9053 = vmatprep.subr.bf16.mxu0 0
  %9054 = vmatpush1.bf16.xpose.msra.mxu0 0
  %9055 = vmatprep.subr.bf16.mxu0 0
  %9056 = vmatpush1.bf16.xpose.msra.mxu0 0
  %9057 = vmatprep.subr.bf16.mxu0 0
  %9058 = vmatpush1.bf16.xpose.msra.mxu0 0
  %9059 = vmatprep.subr.bf16.mxu0 0
  %9060 = vmatpush1.bf16.xpose.msra.mxu0 0
  %9061 = vmatprep.subr.bf16.mxu0 0
  %9062 = vmatpush1.bf16.xpose.msra.mxu0 0
  %9063 = vmatprep.subr.bf16.mxu0 0
  %9064 = vmatpush1.bf16.xpose.msra.mxu0 0
  %9065 = vmatprep.subr.bf16.mxu0 0
  %9066 = vmatpush1.bf16.xpose.msra.mxu0 0
  %9067 = vmatprep.subr.bf16.mxu0 0
  %9068 = vmatpush1.bf16.xpose.msra.mxu0 0
  %9069 = vmatprep.subr.bf16.mxu0 0
  %9070 = vmatpush1.bf16.xpose.msra.mxu0 0
  %9071 = vmatprep.subr.bf16.mxu0 0
  %9072 = vmatpush1.bf16.xpose.msra.mxu0 0
  %9073 = vmatprep.subr.bf16.mxu0 0
  %9074 = vmatpush1.bf16.xpose.msra.mxu0 0
  %9075 = vmatprep.mubr.bf16.mxu0 0
  %9076 = vmatmul.mubr.bf16.gmra.mrb[0].mxu0 %v9038
  %v9077 = vpop.f32.mrb[0].mxu0
  %v9078 = vadd.f32 0.0, %v9077
  %v9079 = vpop.f32.mrb[0].mxu0
  %v9080 = vpop.f32.mrb[0].mxu0
  %v9081 = vadd.f32 0.0, %v9080
  %v9082 = vpop.f32.mrb[0].mxu0
  %9083 = vdwg.mxu0
  %v9084 = vmul.f32 %v9031, 0.5
  %v9085 = vmul.f32 %v9034, 0.5
  %v9086 = vmul.f32 %v9078, 0.5
  %v9087 = vmul.f32 %v9081, 0.5
  %v9088 = vsel %vm814, %v9084, -inf
  %9089 = vmax.xlane.f32.xlu0 %v9088
  %v9090 = vpop.xlane.xlu0 %9089
  %v9091 = vsel %vm814, %v9085, -inf
  %9092 = vmax.xlane.f32.xlu0 %v9091
  %v9093 = vpop.xlane.xlu0 %9092
  %v9094 = vsel %vm814, %v9086, -inf
  %9095 = vmax.xlane.f32.xlu0 %v9094
  %v9096 = vpop.xlane.xlu0 %9095
  %v9097 = vsel %vm814, %v9087, -inf
  %9098 = vmax.xlane.f32.xlu0 %v9097
  %v9099 = vpop.xlane.xlu0 %9098
  %v9100 = vsub.f32 %v9084, %v9090
  %v9101 = vsub.f32 %v9085, %v9093
  %v9102 = vsub.f32 %v9086, %v9096
  %v9103 = vsub.f32 %v9087, %v9099
  %v9104 = vmul.f32 %v9100, 1.442695
  %v9105 = vpow.pop %v9104
  %v9106 = vmul.f32 %v9101, 1.442695
  %v9107 = vpow.pop %v9106
  %v9108 = vmul.f32 %v9102, 1.442695
  %v9109 = vpow.pop %v9108
  %v9110 = vmul.f32 %v9103, 1.442695
  %v9111 = vpow.pop %v9110
  %v9112 = vsel %vm814, %v9105, 0.0
  %9113 = vadd.xlane.f32.xlu0 %v9112
  %v9114 = vpop.xlane.xlu0 %9113
  %v9115 = vsel %vm814, %v9107, 0.0
  %9116 = vadd.xlane.f32.xlu0 %v9115
  %v9117 = vpop.xlane.xlu0 %9116
  %v9118 = vsel %vm814, %v9109, 0.0
  %9119 = vadd.xlane.f32.xlu0 %v9118
  %v9120 = vpop.xlane.xlu0 %9119
  %v9121 = vsel %vm814, %v9111, 0.0
  %9122 = vadd.xlane.f32.xlu0 %v9121
  %v9123 = vpop.xlane.xlu0 %9122
  %v9124 = vrcp.pop %v9114
  %v9125 = vrcp.pop %v9117
  %v9126 = vrcp.pop %v9120
  %v9127 = vrcp.pop %v9123
  %v9128 = vmul.f32 %v9105, %v9124
  %v9129 = vmul.f32 %v9107, %v9125
  %v9130 = vmul.f32 %v9109, %v9126
  %v9131 = vmul.f32 %v9111, %v9127
  %v9132 = vpack.c.bf16 %v9129, %v9128
  %v9133 = vpack.c.bf16 %v9131, %v9130
  %v9134 = vpack.c.bf16 %v8975, %v8972
  %v9135 = vpack.c.bf16 %v8983, %v8980
  %v9137 = vsel %vm814, %v9132, 0
  %9139 = vmatprep.subr.bf16.mxu0 0
  %9140 = vmatpush1.bf16.msra.mxu0 %v9134
  %9141 = vmatprep.subr.bf16.mxu0 0
  %9142 = vmatpush1.bf16.msra.mxu0 0
  %9143 = vmatprep.subr.bf16.mxu0 0
  %9144 = vmatpush1.bf16.msra.mxu0 0
  %9145 = vmatprep.subr.bf16.mxu0 0
  %9146 = vmatpush1.bf16.msra.mxu0 0
  %9147 = vmatprep.subr.bf16.mxu0 0
  %9148 = vmatpush1.bf16.msra.mxu0 0
  %9149 = vmatprep.subr.bf16.mxu0 0
  %9150 = vmatpush1.bf16.msra.mxu0 0
  %9151 = vmatprep.subr.bf16.mxu0 0
  %9152 = vmatpush1.bf16.msra.mxu0 0
  %9153 = vmatprep.subr.bf16.mxu0 0
  %9154 = vmatpush1.bf16.msra.mxu0 0
  %9155 = vmatprep.subr.bf16.mxu0 0
  %9156 = vmatpush1.bf16.msra.mxu0 0
  %9157 = vmatprep.subr.bf16.mxu0 0
  %9158 = vmatpush1.bf16.msra.mxu0 0
  %9159 = vmatprep.subr.bf16.mxu0 0
  %9160 = vmatpush1.bf16.msra.mxu0 0
  %9161 = vmatprep.subr.bf16.mxu0 0
  %9162 = vmatpush1.bf16.msra.mxu0 0
  %9163 = vmatprep.subr.bf16.mxu0 0
  %9164 = vmatpush1.bf16.msra.mxu0 0
  %9165 = vmatprep.subr.bf16.mxu0 0
  %9166 = vmatpush1.bf16.msra.mxu0 0
  %9167 = vmatprep.subr.bf16.mxu0 0
  %9168 = vmatpush1.bf16.msra.mxu0 0
  %9169 = vmatprep.subr.bf16.mxu0 0
  %9170 = vmatpush1.bf16.msra.mxu0 0
  %9171 = vmatprep.mubr.bf16.mxu0 0
  %9172 = vmatmul.mubr.bf16.gmra.mrb[0].mxu0 %v9137
  %v9173 = vpop.f32.mrb[0].mxu0
  %v9174 = vadd.f32 0.0, %v9173
  %v9175 = vpop.f32.mrb[0].mxu0
  %v9176 = vpop.f32.mrb[0].mxu0
  %v9177 = vadd.f32 0.0, %v9176
  %v9178 = vpop.f32.mrb[0].mxu0
  %9179 = vdwg.mxu0
  %v9181 = vsel %vm814, %v9133, 0
  %9183 = vmatprep.subr.bf16.mxu0 0
  %9184 = vmatpush1.bf16.msra.mxu0 %v9135
  %9185 = vmatprep.subr.bf16.mxu0 0
  %9186 = vmatpush1.bf16.msra.mxu0 0
  %9187 = vmatprep.subr.bf16.mxu0 0
  %9188 = vmatpush1.bf16.msra.mxu0 0
  %9189 = vmatprep.subr.bf16.mxu0 0
  %9190 = vmatpush1.bf16.msra.mxu0 0
  %9191 = vmatprep.subr.bf16.mxu0 0
  %9192 = vmatpush1.bf16.msra.mxu0 0
  %9193 = vmatprep.subr.bf16.mxu0 0
  %9194 = vmatpush1.bf16.msra.mxu0 0
  %9195 = vmatprep.subr.bf16.mxu0 0
  %9196 = vmatpush1.bf16.msra.mxu0 0
  %9197 = vmatprep.subr.bf16.mxu0 0
  %9198 = vmatpush1.bf16.msra.mxu0 0
  %9199 = vmatprep.subr.bf16.mxu0 0
  %9200 = vmatpush1.bf16.msra.mxu0 0
  %9201 = vmatprep.subr.bf16.mxu0 0
  %9202 = vmatpush1.bf16.msra.mxu0 0
  %9203 = vmatprep.subr.bf16.mxu0 0
  %9204 = vmatpush1.bf16.msra.mxu0 0
  %9205 = vmatprep.subr.bf16.mxu0 0
  %9206 = vmatpush1.bf16.msra.mxu0 0
  %9207 = vmatprep.subr.bf16.mxu0 0
  %9208 = vmatpush1.bf16.msra.mxu0 0
  %9209 = vmatprep.subr.bf16.mxu0 0
  %9210 = vmatpush1.bf16.msra.mxu0 0
  %9211 = vmatprep.subr.bf16.mxu0 0
  %9212 = vmatpush1.bf16.msra.mxu0 0
  %9213 = vmatprep.subr.bf16.mxu0 0
  %9214 = vmatpush1.bf16.msra.mxu0 0
  %9215 = vmatprep.mubr.bf16.mxu0 0
  %9216 = vmatmul.mubr.bf16.gmra.mrb[0].mxu0 %v9181
  %v9217 = vpop.f32.mrb[0].mxu0
  %v9218 = vadd.f32 0.0, %v9217
  %v9219 = vpop.f32.mrb[0].mxu0
  %v9220 = vpop.f32.mrb[0].mxu0
  %v9221 = vadd.f32 0.0, %v9220
  %v9222 = vpop.f32.mrb[0].mxu0
  %9223 = vdwg.mxu0
  %v9224 = vpack.c.bf16 %v9177, %v9174
  %v9225 = vpack.c.bf16 %v9221, %v9218
  %s9226 = scalar_lea.vmem %s49, 14
  %v9227 = vld [vmem:[%s9226] sm:$0x3]
  %v9229 = vsel %vm715, %v9224, 0
  %v9232 = vsel %vm715, %v9225, 0
  %v9235 = vsel %vm1424, %v9227, 0
  %9237 = vmatprep.subr.bf16.mxu0 0
  %9238 = vmatpush1.bf16.msra.mxu0 %v9235
  %9239 = vmatprep.subr.bf16.mxu0 0
  %9240 = vmatpush1.bf16.msra.mxu0 0
  %9241 = vmatprep.subr.bf16.mxu0 0
  %9242 = vmatpush1.bf16.msra.mxu0 0
  %9243 = vmatprep.subr.bf16.mxu0 0
  %9244 = vmatpush1.bf16.msra.mxu0 0
  %9245 = vmatprep.subr.bf16.mxu0 0
  %9246 = vmatpush1.bf16.msra.mxu0 0
  %9247 = vmatprep.subr.bf16.mxu0 0
  %9248 = vmatpush1.bf16.msra.mxu0 0
  %9249 = vmatprep.subr.bf16.mxu0 0
  %9250 = vmatpush1.bf16.msra.mxu0 0
  %9251 = vmatprep.subr.bf16.mxu0 0
  %9252 = vmatpush1.bf16.msra.mxu0 0
  %9253 = vmatprep.subr.bf16.mxu0 0
  %9254 = vmatpush1.bf16.msra.mxu0 0
  %9255 = vmatprep.subr.bf16.mxu0 0
  %9256 = vmatpush1.bf16.msra.mxu0 0
  %9257 = vmatprep.subr.bf16.mxu0 0
  %9258 = vmatpush1.bf16.msra.mxu0 0
  %9259 = vmatprep.subr.bf16.mxu0 0
  %9260 = vmatpush1.bf16.msra.mxu0 0
  %9261 = vmatprep.subr.bf16.mxu0 0
  %9262 = vmatpush1.bf16.msra.mxu0 0
  %9263 = vmatprep.subr.bf16.mxu0 0
  %9264 = vmatpush1.bf16.msra.mxu0 0
  %9265 = vmatprep.subr.bf16.mxu0 0
  %9266 = vmatpush1.bf16.msra.mxu0 0
  %9267 = vmatprep.subr.bf16.mxu0 0
  %9268 = vmatpush1.bf16.msra.mxu0 0
  %9269 = vmatprep.mubr.bf16.mxu0 0
  %9270 = vmatmul.mubr.bf16.gmra.mrb[0].mxu0 %v9229
  %v9271 = vpop.f32.mrb[0].mxu0
  %v9272 = vadd.f32 0.0, %v9271
  %v9273 = vpop.f32.mrb[0].mxu0
  %v9274 = vpop.f32.mrb[0].mxu0
  %v9275 = vadd.f32 0.0, %v9274
  %v9276 = vpop.f32.mrb[0].mxu0
  %9277 = vmatprep.mubr.bf16.mxu0 0
  %9278 = vmatmul.mubr.bf16.gmra.mrb[0].mxu0 %v9232
  %v9279 = vpop.f32.mrb[0].mxu0
  %v9280 = vadd.f32 0.0, %v9279
  %v9281 = vpop.f32.mrb[0].mxu0
  %v9282 = vpop.f32.mrb[0].mxu0
  %v9283 = vadd.f32 0.0, %v9282
  %v9284 = vpop.f32.mrb[0].mxu0
  %9285 = vdwg.mxu0
  %v9286 = vadd.f32 %v8760, %v9272
  %v9287 = vadd.f32 %v8761, %v9275
  %v9288 = vadd.f32 %v8762, %v9280
  %v9289 = vadd.f32 %v8763, %v9283
  %v9290 = vld [vmem:[%s51] sm:$0x1]
  %v9292 = vlaneseq
  %v9293 = vshrl.u32 %v9292, 7
  %v9294 = vsub.s32 0, %v9293
  %v9295 = vrot.slane %v9290, %v9294
  %v9297 = vadd.f32 %v9286, %v9295
  %v9298 = vadd.f32 %v9287, %v9295
  %v9299 = vadd.f32 %v9288, %v9295
  %v9300 = vadd.f32 %v9289, %v9295
  %v9301 = vadd.f32 %v5085, %v9297
  %v9302 = vadd.f32 %v5086, %v9298
  %v9303 = vadd.f32 %v5087, %v9299
  %v9304 = vadd.f32 %v5088, %v9300
  %v9305 = vld [vmem:[%s53] sm:$0x1]
  %v9306 = vld [vmem:[%s53 + $0x1] sm:$0x1]
  %v9307 = vsel %vm511, %v9301, 0.0
  %9308 = vadd.xlane.f32.xlu0 %v9307
  %v9309 = vpop.xlane.xlu0 %9308
  %v9310 = vsel %vm511, %v9302, 0.0
  %9311 = vadd.xlane.f32.xlu0 %v9310
  %v9312 = vpop.xlane.xlu0 %9311
  %v9313 = vsel %vm511, %v9303, 0.0
  %9314 = vadd.xlane.f32.xlu0 %v9313
  %v9315 = vpop.xlane.xlu0 %9314
  %v9316 = vsel %vm511, %v9304, 0.0
  %9317 = vadd.xlane.f32.xlu0 %v9316
  %v9318 = vpop.xlane.xlu0 %9317
  %v9319 = vmul.f32 %v9309, %v4720
  %v9320 = vmul.f32 %v9312, %v4720
  %v9321 = vmul.f32 %v9315, %v4720
  %v9322 = vmul.f32 %v9318, %v4720
  %v9323 = vsub.f32 %v9301, %v9319
  %v9324 = vsub.f32 %v9302, %v9320
  %v9325 = vsub.f32 %v9303, %v9321
  %v9326 = vsub.f32 %v9304, %v9322
  %v9327 = vmul.f32 %v9323, %v9323
  %v9328 = vmul.f32 %v9324, %v9324
  %v9329 = vmul.f32 %v9325, %v9325
  %v9330 = vmul.f32 %v9326, %v9326
  %v9331 = vsel %vm511, %v9327, 0.0
  %9332 = vadd.xlane.f32.xlu0 %v9331
  %v9333 = vpop.xlane.xlu0 %9332
  %v9334 = vsel %vm511, %v9328, 0.0
  %9335 = vadd.xlane.f32.xlu0 %v9334
  %v9336 = vpop.xlane.xlu0 %9335
  %v9337 = vsel %vm511, %v9329, 0.0
  %9338 = vadd.xlane.f32.xlu0 %v9337
  %v9339 = vpop.xlane.xlu0 %9338
  %v9340 = vsel %vm511, %v9330, 0.0
  %9341 = vadd.xlane.f32.xlu0 %v9340
  %v9342 = vpop.xlane.xlu0 %9341
  %v9343 = vmul.f32 %v9333, %v4720
  %v9344 = vmul.f32 %v9336, %v4720
  %v9345 = vmul.f32 %v9339, %v4720
  %v9346 = vmul.f32 %v9342, %v4720
  %v9347 = vadd.f32 %v9343, 1e-05
  %v9348 = vadd.f32 %v9344, 1e-05
  %v9349 = vadd.f32 %v9345, 1e-05
  %v9350 = vadd.f32 %v9346, 1e-05
  %v9351 = vrsqrt.pop %v9347
  %v9352 = vrsqrt.pop %v9348
  %v9353 = vrsqrt.pop %v9349
  %v9354 = vrsqrt.pop %v9350
  %v9355 = vmul.f32 %v9323, %v9351
  %v9356 = vmul.f32 %v9324, %v9352
  %v9357 = vmul.f32 %v9325, %v9353
  %v9358 = vmul.f32 %v9326, %v9354
  %v9359 = vlaneseq
  %v9360 = vshrl.u32 %v9359, 7
  %v9361 = vsub.s32 0, %v9360
  %v9362 = vrot.slane %v9305, %v9361
  %v9363 = vmul.f32 %v9355, %v9362
  %v9364 = vmul.f32 %v9356, %v9362
  %v9365 = vmul.f32 %v9357, %v9362
  %v9366 = vmul.f32 %v9358, %v9362
  %v9367 = vlaneseq
  %v9368 = vshrl.u32 %v9367, 7
  %v9369 = vsub.s32 0, %v9368
  %v9370 = vrot.slane %v9306, %v9369
  %v9371 = vadd.f32 %v9363, %v9370
  %v9372 = vadd.f32 %v9364, %v9370
  %v9373 = vadd.f32 %v9365, %v9370
  %v9374 = vadd.f32 %v9366, %v9370
  %v9375 = vpack.c.bf16 %v9372, %v9371
  %v9376 = vpack.c.bf16 %v9374, %v9373
  %v9377 = vld [vmem:[%s55] sm:$0xf]
  %v9378 = vld [vmem:[%s55 + $0x4] sm:$0xf]
  %v9379 = vld [vmem:[%s55 + $0x8] sm:$0xf]
  %v9380 = vld [vmem:[%s55 + $0xc] sm:$0xf]
  %v9381 = vld [vmem:[%s57] sm:$0x1]
  %v9383 = vlaneseq
  %v9384 = vshrl.u32 %v9383, 7
  %v9385 = vsub.s32 0, %v9384
  %v9386 = vrot.slane %v9381, %v9385
  %v9392 = vunpack.c.l.b16 %v9377
  %v9393 = vunpack.c.l.b16 %v9378
  %v9394 = vunpack.c.l.b16 %v9379
  %v9395 = vunpack.c.l.b16 %v9380
  %v9396 = vpack.c.b16 %v9393, %v9392
  %v9397 = vpack.c.b16 %v9395, %v9394
  %v9401 = vsel %vm511, %v9375, 0
  %v9404 = vsel %vm511, %v9376, 0
  %9406 = vmatprep.subr.bf16.mxu0 0
  %9407 = vmatpush1.bf16.msra.mxu0 %v9396
  %9408 = vmatprep.subr.bf16.mxu0 0
  %9409 = vmatpush1.bf16.msra.mxu0 %v9397
  %9410 = vmatprep.subr.bf16.mxu0 0
  %9411 = vmatpush1.bf16.msra.mxu0 0
  %9412 = vmatprep.subr.bf16.mxu0 0
  %9413 = vmatpush1.bf16.msra.mxu0 0
  %9414 = vmatprep.subr.bf16.mxu0 0
  %9415 = vmatpush1.bf16.msra.mxu0 0
  %9416 = vmatprep.subr.bf16.mxu0 0
  %9417 = vmatpush1.bf16.msra.mxu0 0
  %9418 = vmatprep.subr.bf16.mxu0 0
  %9419 = vmatpush1.bf16.msra.mxu0 0
  %9420 = vmatprep.subr.bf16.mxu0 0
  %9421 = vmatpush1.bf16.msra.mxu0 0
  %9422 = vmatprep.subr.bf16.mxu0 0
  %9423 = vmatpush1.bf16.msra.mxu0 0
  %9424 = vmatprep.subr.bf16.mxu0 0
  %9425 = vmatpush1.bf16.msra.mxu0 0
  %9426 = vmatprep.subr.bf16.mxu0 0
  %9427 = vmatpush1.bf16.msra.mxu0 0
  %9428 = vmatprep.subr.bf16.mxu0 0
  %9429 = vmatpush1.bf16.msra.mxu0 0
  %9430 = vmatprep.subr.bf16.mxu0 0
  %9431 = vmatpush1.bf16.msra.mxu0 0
  %9432 = vmatprep.subr.bf16.mxu0 0
  %9433 = vmatpush1.bf16.msra.mxu0 0
  %9434 = vmatprep.subr.bf16.mxu0 0
  %9435 = vmatpush1.bf16.msra.mxu0 0
  %9436 = vmatprep.subr.bf16.mxu0 0
  %9437 = vmatpush1.bf16.msra.mxu0 0
  %9438 = vmatprep.mubr.bf16.mxu0 0
  %9439 = vmatmul.mubr.bf16.gmra.mrb[0].mxu0 %v9401
  %v9440 = vpop.f32.mrb[0].mxu0
  %v9441 = vadd.f32 %v9386, %v9440
  %v9442 = vpop.f32.mrb[0].mxu0
  %v9443 = vpop.f32.mrb[0].mxu0
  %v9444 = vadd.f32 %v9386, %v9443
  %v9445 = vpop.f32.mrb[0].mxu0
  %9446 = vmatprep.mubr.bf16.mxu0 0
  %9447 = vmatmul.mubr.bf16.gmra.mrb[0].mxu0 %v9404
  %v9448 = vpop.f32.mrb[0].mxu0
  %v9449 = vadd.f32 %v9386, %v9448
  %v9450 = vpop.f32.mrb[0].mxu0
  %v9451 = vpop.f32.mrb[0].mxu0
  %v9452 = vadd.f32 %v9386, %v9451
  %v9453 = vpop.f32.mrb[0].mxu0
  %9454 = vdwg.mxu0
  %v9455 = vmul.f32 %v9441, 0.5
  %v9456 = vmul.f32 %v9444, 0.5
  %v9457 = vmul.f32 %v9449, 0.5
  %v9458 = vmul.f32 %v9452, 0.5
  %v9459 = vmul.f32 %v9441, 0.044715
  %v9460 = vmul.f32 %v9444, 0.044715
  %v9461 = vmul.f32 %v9449, 0.044715
  %v9462 = vmul.f32 %v9452, 0.044715
  %v9463 = vmul.f32 %v9459, %v9441
  %v9464 = vmul.f32 %v9460, %v9444
  %v9465 = vmul.f32 %v9461, %v9449
  %v9466 = vmul.f32 %v9462, %v9452
  %v9467 = vmul.f32 %v9463, %v9441
  %v9468 = vmul.f32 %v9464, %v9444
  %v9469 = vmul.f32 %v9465, %v9449
  %v9470 = vmul.f32 %v9466, %v9452
  %v9471 = vadd.f32 %v9441, %v9467
  %v9472 = vadd.f32 %v9444, %v9468
  %v9473 = vadd.f32 %v9449, %v9469
  %v9474 = vadd.f32 %v9452, %v9470
  %v9475 = vmul.f32 %v9471, 0.7978846
  %v9476 = vmul.f32 %v9472, 0.7978846
  %v9477 = vmul.f32 %v9473, 0.7978846
  %v9478 = vmul.f32 %v9474, 0.7978846
  %v9479 = vtanh.pop %v9475
  %v9480 = vtanh.pop %v9476
  %v9481 = vtanh.pop %v9477
  %v9482 = vtanh.pop %v9478
  %v9483 = vadd.f32 %v9479, 1.0
  %v9484 = vadd.f32 %v9480, 1.0
  %v9485 = vadd.f32 %v9481, 1.0
  %v9486 = vadd.f32 %v9482, 1.0
  %v9487 = vmul.f32 %v9455, %v9483
  %v9488 = vmul.f32 %v9456, %v9484
  %v9489 = vmul.f32 %v9457, %v9485
  %v9490 = vmul.f32 %v9458, %v9486
  %v9491 = vpack.c.bf16 %v9488, %v9487
  %v9492 = vpack.c.bf16 %v9490, %v9489
  %v9493 = vld [vmem:[%s59] sm:$0xf]
  %v9494 = vld [vmem:[%s59 + $0x4] sm:$0xf]
  %v9495 = vld [vmem:[%s59 + $0x8] sm:$0xf]
  %v9496 = vld [vmem:[%s59 + $0xc] sm:$0xf]
  %v9497 = vld [vmem:[%s59 + $0x10] sm:$0xf]
  %v9498 = vld [vmem:[%s59 + $0x14] sm:$0xf]
  %v9499 = vld [vmem:[%s59 + $0x18] sm:$0xf]
  %v9500 = vld [vmem:[%s59 + $0x1c] sm:$0xf]
  %v9501 = vld [vmem:[%s59 + $0x20] sm:$0xf]
  %v9502 = vld [vmem:[%s59 + $0x24] sm:$0xf]
  %v9503 = vld [vmem:[%s59 + $0x28] sm:$0xf]
  %v9504 = vld [vmem:[%s59 + $0x2c] sm:$0xf]
  %v9505 = vld [vmem:[%s59 + $0x30] sm:$0xf]
  %v9506 = vld [vmem:[%s59 + $0x34] sm:$0xf]
  %v9507 = vld [vmem:[%s59 + $0x38] sm:$0xf]
  %v9508 = vld [vmem:[%s59 + $0x3c] sm:$0xf]
  %v9509 = vld [vmem:[%s61] sm:$0x1]
  %v9511 = vlaneseq
  %v9512 = vshrl.u32 %v9511, 7
  %v9513 = vsub.s32 0, %v9512
  %v9514 = vrot.slane %v9509, %v9513
  %v9532 = vunpack.c.l.b16 %v9493
  %v9533 = vunpack.c.l.b16 %v9494
  %v9534 = vunpack.c.l.b16 %v9495
  %v9535 = vunpack.c.l.b16 %v9496
  %v9536 = vunpack.c.l.b16 %v9497
  %v9537 = vunpack.c.l.b16 %v9498
  %v9538 = vunpack.c.l.b16 %v9499
  %v9539 = vunpack.c.l.b16 %v9500
  %v9540 = vunpack.c.l.b16 %v9501
  %v9541 = vunpack.c.l.b16 %v9502
  %v9542 = vunpack.c.l.b16 %v9503
  %v9543 = vunpack.c.l.b16 %v9504
  %v9544 = vunpack.c.l.b16 %v9505
  %v9545 = vunpack.c.l.b16 %v9506
  %v9546 = vunpack.c.l.b16 %v9507
  %v9547 = vunpack.c.l.b16 %v9508
  %v9548 = vpack.c.b16 %v9533, %v9532
  %v9549 = vpack.c.b16 %v9535, %v9534
  %v9550 = vpack.c.b16 %v9537, %v9536
  %v9551 = vpack.c.b16 %v9539, %v9538
  %v9552 = vpack.c.b16 %v9541, %v9540
  %v9553 = vpack.c.b16 %v9543, %v9542
  %v9554 = vpack.c.b16 %v9545, %v9544
  %v9555 = vpack.c.b16 %v9547, %v9546
  %9564 = vmatprep.subr.bf16.mxu0 0
  %9565 = vmatpush1.bf16.msra.mxu0 %v9548
  %9566 = vmatprep.subr.bf16.mxu0 0
  %9567 = vmatpush1.bf16.msra.mxu0 %v9549
  %9568 = vmatprep.subr.bf16.mxu0 0
  %9569 = vmatpush1.bf16.msra.mxu0 %v9550
  %9570 = vmatprep.subr.bf16.mxu0 0
  %9571 = vmatpush1.bf16.msra.mxu0 %v9551
  %9572 = vmatprep.subr.bf16.mxu0 0
  %9573 = vmatpush1.bf16.msra.mxu0 %v9552
  %9574 = vmatprep.subr.bf16.mxu0 0
  %9575 = vmatpush1.bf16.msra.mxu0 %v9553
  %9576 = vmatprep.subr.bf16.mxu0 0
  %9577 = vmatpush1.bf16.msra.mxu0 %v9554
  %9578 = vmatprep.subr.bf16.mxu0 0
  %9579 = vmatpush1.bf16.msra.mxu0 %v9555
  %9580 = vmatprep.subr.bf16.mxu0 0
  %9581 = vmatpush1.bf16.msra.mxu0 0
  %9582 = vmatprep.subr.bf16.mxu0 0
  %9583 = vmatpush1.bf16.msra.mxu0 0
  %9584 = vmatprep.subr.bf16.mxu0 0
  %9585 = vmatpush1.bf16.msra.mxu0 0
  %9586 = vmatprep.subr.bf16.mxu0 0
  %9587 = vmatpush1.bf16.msra.mxu0 0
  %9588 = vmatprep.subr.bf16.mxu0 0
  %9589 = vmatpush1.bf16.msra.mxu0 0
  %9590 = vmatprep.subr.bf16.mxu0 0
  %9591 = vmatpush1.bf16.msra.mxu0 0
  %9592 = vmatprep.subr.bf16.mxu0 0
  %9593 = vmatpush1.bf16.msra.mxu0 0
  %9594 = vmatprep.subr.bf16.mxu0 0
  %9595 = vmatpush1.bf16.msra.mxu0 0
  %9596 = vmatprep.mubr.bf16.mxu0 0
  %9597 = vmatmul.mubr.bf16.gmra.mrb[0].mxu0 %v9491
  %v9598 = vpop.f32.mrb[0].mxu0
  %v9599 = vadd.f32 %v9514, %v9598
  %v9600 = vpop.f32.mrb[0].mxu0
  %v9601 = vpop.f32.mrb[0].mxu0
  %v9602 = vadd.f32 %v9514, %v9601
  %v9603 = vpop.f32.mrb[0].mxu0
  %9604 = vmatprep.mubr.bf16.mxu0 0
  %9605 = vmatmul.mubr.bf16.gmra.mrb[0].mxu0 %v9492
  %v9606 = vpop.f32.mrb[0].mxu0
  %v9607 = vadd.f32 %v9514, %v9606
  %v9608 = vpop.f32.mrb[0].mxu0
  %v9609 = vpop.f32.mrb[0].mxu0
  %v9610 = vadd.f32 %v9514, %v9609
  %v9611 = vpop.f32.mrb[0].mxu0
  %9612 = vdwg.mxu0
  %v9613 = vadd.f32 %v9371, %v9599
  %v9614 = vadd.f32 %v9372, %v9602
  %v9615 = vadd.f32 %v9373, %v9607
  %v9616 = vadd.f32 %v9374, %v9610
  %v9617 = vld [vmem:[%s63] sm:$0x1]
  %v9618 = vld [vmem:[%s63 + $0x1] sm:$0x1]
  %v9619 = vsel %vm511, %v9613, 0.0
  %9620 = vadd.xlane.f32.xlu0 %v9619
  %v9621 = vpop.xlane.xlu0 %9620
  %v9622 = vsel %vm511, %v9614, 0.0
  %9623 = vadd.xlane.f32.xlu0 %v9622
  %v9624 = vpop.xlane.xlu0 %9623
  %v9625 = vsel %vm511, %v9615, 0.0
  %9626 = vadd.xlane.f32.xlu0 %v9625
  %v9627 = vpop.xlane.xlu0 %9626
  %v9628 = vsel %vm511, %v9616, 0.0
  %9629 = vadd.xlane.f32.xlu0 %v9628
  %v9630 = vpop.xlane.xlu0 %9629
  %v9631 = vmul.f32 %v9621, %v4720
  %v9632 = vmul.f32 %v9624, %v4720
  %v9633 = vmul.f32 %v9627, %v4720
  %v9634 = vmul.f32 %v9630, %v4720
  %v9635 = vsub.f32 %v9613, %v9631
  %v9636 = vsub.f32 %v9614, %v9632
  %v9637 = vsub.f32 %v9615, %v9633
  %v9638 = vsub.f32 %v9616, %v9634
  %v9639 = vmul.f32 %v9635, %v9635
  %v9640 = vmul.f32 %v9636, %v9636
  %v9641 = vmul.f32 %v9637, %v9637
  %v9642 = vmul.f32 %v9638, %v9638
  %v9643 = vsel %vm511, %v9639, 0.0
  %9644 = vadd.xlane.f32.xlu0 %v9643
  %v9645 = vpop.xlane.xlu0 %9644
  %v9646 = vsel %vm511, %v9640, 0.0
  %9647 = vadd.xlane.f32.xlu0 %v9646
  %v9648 = vpop.xlane.xlu0 %9647
  %v9649 = vsel %vm511, %v9641, 0.0
  %9650 = vadd.xlane.f32.xlu0 %v9649
  %v9651 = vpop.xlane.xlu0 %9650
  %v9652 = vsel %vm511, %v9642, 0.0
  %9653 = vadd.xlane.f32.xlu0 %v9652
  %v9654 = vpop.xlane.xlu0 %9653
  %v9655 = vmul.f32 %v9645, %v4720
  %v9656 = vmul.f32 %v9648, %v4720
  %v9657 = vmul.f32 %v9651, %v4720
  %v9658 = vmul.f32 %v9654, %v4720
  %v9659 = vadd.f32 %v9655, 1e-05
  %v9660 = vadd.f32 %v9656, 1e-05
  %v9661 = vadd.f32 %v9657, 1e-05
  %v9662 = vadd.f32 %v9658, 1e-05
  %v9663 = vrsqrt.pop %v9659
  %v9664 = vrsqrt.pop %v9660
  %v9665 = vrsqrt.pop %v9661
  %v9666 = vrsqrt.pop %v9662
  %v9667 = vmul.f32 %v9635, %v9663
  %v9668 = vmul.f32 %v9636, %v9664
  %v9669 = vmul.f32 %v9637, %v9665
  %v9670 = vmul.f32 %v9638, %v9666
  %v9671 = vlaneseq
  %v9672 = vshrl.u32 %v9671, 7
  %v9673 = vsub.s32 0, %v9672
  %v9674 = vrot.slane %v9617, %v9673
  %v9675 = vmul.f32 %v9667, %v9674
  %v9676 = vmul.f32 %v9668, %v9674
  %v9677 = vmul.f32 %v9669, %v9674
  %v9678 = vmul.f32 %v9670, %v9674
  %v9679 = vlaneseq
  %v9680 = vshrl.u32 %v9679, 7
  %v9681 = vsub.s32 0, %v9680
  %v9682 = vrot.slane %v9618, %v9681
  %v9683 = vadd.f32 %v9675, %v9682
  %v9684 = vadd.f32 %v9676, %v9682
  %v9685 = vadd.f32 %v9677, %v9682
  %v9686 = vadd.f32 %v9678, %v9682
  %v9687 = vsel %vm511, %v9683, 0.0
  %v9688 = vsel %vm511, %v9684, 0.0
  %v9689 = vadd.f32 %v9687, %v9688
  %v9690 = vrot.slane %v9689, 4
  %v9691 = vadd.f32 %v9689, %v9690
  %v9692 = vrot.slane %v9691, 2
  %v9693 = vadd.f32 %v9691, %v9692
  %v9694 = vrot.slane %v9693, 1
  %v9695 = vadd.f32 %v9693, %v9694
  %v9696 = vsel %vm511, %v9685, 0.0
  %v9697 = vsel %vm511, %v9686, 0.0
  %v9698 = vadd.f32 %v9696, %v9697
  %v9699 = vrot.slane %v9698, 4
  %v9700 = vadd.f32 %v9698, %v9699
  %v9701 = vrot.slane %v9700, 2
  %v9702 = vadd.f32 %v9700, %v9701
  %v9703 = vrot.slane %v9702, 1
  %v9704 = vadd.f32 %v9702, %v9703
  %v9705 = vrcp.pop 16.0
  %v9706 = vmul.f32 %v9695, %v9705
  %v9707 = vmul.f32 %v9704, %v9705
  %v9708 = vpack.c.bf16 %v9706, %v9706
  %v9709 = vpack.c.bf16 %v9707, %v9707
  %v9710 = vld [vmem:[%s65] sm:$0xf]
  %v9711 = vld [vmem:[%s65 + $0x4] sm:$0xf]
  %v9712 = vld [vmem:[%s65 + $0x8] sm:$0xf]
  %v9713 = vld [vmem:[%s65 + $0xc] sm:$0xf]
  %v9714 = vld [vmem:[%s67] sm:$0x1]
  %v9716 = vlaneseq
  %v9717 = vshrl.u32 %v9716, 7
  %v9718 = vsub.s32 0, %v9717
  %v9719 = vrot.slane %v9714, %v9718
  %v9723 = vunpack.c.l.b16 %v9708
  %v9724 = vunpack.c.l.b16 %v9709
  %vm9725 = vcmask 1041409
  %v9726 = vsel %vm9725, %v9724, %v9723
  %v9727 = vpack.c.b16 %v9726, %v9726
  %v9732 = vunpack.c.l.b16 %v9710
  %v9733 = vunpack.c.l.b16 %v9711
  %v9734 = vunpack.c.l.b16 %v9712
  %v9735 = vunpack.c.l.b16 %v9713
  %v9736 = vpack.c.b16 %v9733, %v9732
  %v9737 = vpack.c.b16 %v9735, %v9734
  %v9741 = vsel %vm511, %v9727, 0
  %9743 = vmatprep.subr.bf16.mxu0 0
  %9744 = vmatpush1.bf16.msra.mxu0 %v9736
  %9745 = vmatprep.subr.bf16.mxu0 0
  %9746 = vmatpush1.bf16.msra.mxu0 %v9737
  %9747 = vmatprep.subr.bf16.mxu0 0
  %9748 = vmatpush1.bf16.msra.mxu0 0
  %9749 = vmatprep.subr.bf16.mxu0 0
  %9750 = vmatpush1.bf16.msra.mxu0 0
  %9751 = vmatprep.subr.bf16.mxu0 0
  %9752 = vmatpush1.bf16.msra.mxu0 0
  %9753 = vmatprep.subr.bf16.mxu0 0
  %9754 = vmatpush1.bf16.msra.mxu0 0
  %9755 = vmatprep.subr.bf16.mxu0 0
  %9756 = vmatpush1.bf16.msra.mxu0 0
  %9757 = vmatprep.subr.bf16.mxu0 0
  %9758 = vmatpush1.bf16.msra.mxu0 0
  %9759 = vmatprep.subr.bf16.mxu0 0
  %9760 = vmatpush1.bf16.msra.mxu0 0
  %9761 = vmatprep.subr.bf16.mxu0 0
  %9762 = vmatpush1.bf16.msra.mxu0 0
  %9763 = vmatprep.subr.bf16.mxu0 0
  %9764 = vmatpush1.bf16.msra.mxu0 0
  %9765 = vmatprep.subr.bf16.mxu0 0
  %9766 = vmatpush1.bf16.msra.mxu0 0
  %9767 = vmatprep.subr.bf16.mxu0 0
  %9768 = vmatpush1.bf16.msra.mxu0 0
  %9769 = vmatprep.subr.bf16.mxu0 0
  %9770 = vmatpush1.bf16.msra.mxu0 0
  %9771 = vmatprep.subr.bf16.mxu0 0
  %9772 = vmatpush1.bf16.msra.mxu0 0
  %9773 = vmatprep.subr.bf16.mxu0 0
  %9774 = vmatpush1.bf16.msra.mxu0 0
  %9775 = vmatprep.mubr.bf16.mxu0 0
  %9776 = vmatmul.mubr.bf16.gmra.mrb[0].mxu0 %v9741
  %v9777 = vpop.f32.mrb[0].mxu0
  %v9778 = vadd.f32 %v9719, %v9777
  %v9779 = vpop.f32.mrb[0].mxu0
  %v9780 = vpop.f32.mrb[0].mxu0
  %v9781 = vpop.f32.mrb[0].mxu0
  %9782 = vdwg.mxu0
  %v9783 = vmul.f32 %v9778, 0.5
  %v9784 = vmul.f32 %v9778, 0.044715
  %v9785 = vmul.f32 %v9784, %v9778
  %v9786 = vmul.f32 %v9785, %v9778
  %v9787 = vadd.f32 %v9778, %v9786
  %v9788 = vmul.f32 %v9787, 0.7978846
  %v9789 = vtanh.pop %v9788
  %v9790 = vadd.f32 %v9789, 1.0
  %v9791 = vmul.f32 %v9783, %v9790
  %v9792 = vpack.c.bf16 %v9791, %v9791
  %v9793 = vld [vmem:[%s69] sm:$0xf]
  %v9794 = vld [vmem:[%s69 + $0x4] sm:$0xf]
  %v9795 = vld [vmem:[%s69 + $0x8] sm:$0xf]
  %v9796 = vld [vmem:[%s69 + $0xc] sm:$0xf]
  %v9797 = vld [vmem:[%s69 + $0x10] sm:$0xf]
  %v9798 = vld [vmem:[%s69 + $0x14] sm:$0xf]
  %v9799 = vld [vmem:[%s69 + $0x18] sm:$0xf]
  %v9800 = vld [vmem:[%s69 + $0x1c] sm:$0xf]
  %v9801 = vld [vmem:[#allocation2] sm:$0x1]
  %v9803 = vlaneseq
  %v9804 = vshrl.u32 %v9803, 7
  %v9805 = vsub.s32 0, %v9804
  %v9806 = vrot.slane %v9801, %v9805
  %v9816 = vunpack.c.l.b16 %v9793
  %v9817 = vunpack.c.l.b16 %v9794
  %v9818 = vunpack.c.l.b16 %v9795
  %v9819 = vunpack.c.l.b16 %v9796
  %v9820 = vunpack.c.l.b16 %v9797
  %v9821 = vunpack.c.l.b16 %v9798
  %v9822 = vunpack.c.l.b16 %v9799
  %v9823 = vunpack.c.l.b16 %v9800
  %v9824 = vpack.c.b16 %v9817, %v9816
  %v9825 = vpack.c.b16 %v9819, %v9818
  %v9826 = vpack.c.b16 %v9821, %v9820
  %v9827 = vpack.c.b16 %v9823, %v9822
  %vm9832 = vcmask 523264
  %v9834 = vsel %vm9832, %v9792, 0
  %9836 = vmatprep.subr.bf16.mxu0 0
  %9837 = vmatpush1.bf16.msra.mxu0 %v9824
  %9838 = vmatprep.subr.bf16.mxu0 0
  %9839 = vmatpush1.bf16.msra.mxu0 %v9825
  %9840 = vmatprep.subr.bf16.mxu0 0
  %9841 = vmatpush1.bf16.msra.mxu0 %v9826
  %9842 = vmatprep.subr.bf16.mxu0 0
  %9843 = vmatpush1.bf16.msra.mxu0 %v9827
  %9844 = vmatprep.subr.bf16.mxu0 0
  %9845 = vmatpush1.bf16.msra.mxu0 0
  %9846 = vmatprep.subr.bf16.mxu0 0
  %9847 = vmatpush1.bf16.msra.mxu0 0
  %9848 = vmatprep.subr.bf16.mxu0 0
  %9849 = vmatpush1.bf16.msra.mxu0 0
  %9850 = vmatprep.subr.bf16.mxu0 0
  %9851 = vmatpush1.bf16.msra.mxu0 0
  %9852 = vmatprep.subr.bf16.mxu0 0
  %9853 = vmatpush1.bf16.msra.mxu0 0
  %9854 = vmatprep.subr.bf16.mxu0 0
  %9855 = vmatpush1.bf16.msra.mxu0 0
  %9856 = vmatprep.subr.bf16.mxu0 0
  %9857 = vmatpush1.bf16.msra.mxu0 0
  %9858 = vmatprep.subr.bf16.mxu0 0
  %9859 = vmatpush1.bf16.msra.mxu0 0
  %9860 = vmatprep.subr.bf16.mxu0 0
  %9861 = vmatpush1.bf16.msra.mxu0 0
  %9862 = vmatprep.subr.bf16.mxu0 0
  %9863 = vmatpush1.bf16.msra.mxu0 0
  %9864 = vmatprep.subr.bf16.mxu0 0
  %9865 = vmatpush1.bf16.msra.mxu0 0
  %9866 = vmatprep.subr.bf16.mxu0 0
  %9867 = vmatpush1.bf16.msra.mxu0 0
  %9868 = vmatprep.mubr.bf16.mxu0 0
  %9869 = vmatmul.mubr.bf16.gmra.mrb[0].mxu0 %v9834
  %v9870 = vpop.f32.mrb[0].mxu0
  %v9871 = vadd.f32 %v9806, %v9870
  %v9872 = vpop.f32.mrb[0].mxu0
  %v9873 = vpop.f32.mrb[0].mxu0
  %v9874 = vpop.f32.mrb[0].mxu0
  %9875 = vdwg.mxu0
  %vm9876 = vcmask 1024
  %9877 = vst.msk [vmem:[%s73] sm:$0x3] %vm9876, %v9871
  // Predicated region
  $region146: #{model_forward.1} parent=0 // pred_check
    _
  $region147: #{model_forward.1} parent=0 // pred_check_branch
    %9879 = sbr.rel (0) target = $region149
  $region148: #{model_forward.1} parent=0 // pred_region
    _
  $region149: #{model_forward.1} parent=0 // pred_fallthru
    _
  // Predicated region
  $region150: #{model_forward.1} parent=0 // pred_check
    _
  $region151: #{model_forward.1} parent=0 // pred_check_branch
    %9881 = sbr.rel (0) target = $region153
  $region152: #{model_forward.1} parent=0 // pred_region
    _
  $region153: #{model_forward.1} parent=0 // pred_fallthru
    _

</llo_original>
